<compile_context>
chip_gen: v7x
topology: tpu7x:2x2x1
jax: 0.10.0
libtpu: 0.0.40
codegen_flags: <defaults>
</compile_context>

<pallas_src>
import functools

import numpy as np
import jax
import jax.numpy as jnp
from jax.experimental import pallas as pl
from jax.experimental.pallas import tpu as pltpu

LN_EPS = 1e-5  # torch.nn.LayerNorm default

_VMEM = pl.BlockSpec(memory_space=pltpu.MemorySpace.VMEM)


# --------------------- host-side selection-matrix constants ------------------ #

def _nearest_idx(out_size, in_size):
    # torch F.interpolate / nn.Upsample 'nearest': src = floor(dst * in / out)
    return (np.arange(out_size) * in_size) // out_size


def _one_hot(idx, n_cols):
    m = np.zeros((len(idx), n_cols), np.float32)
    for r, c in enumerate(idx):
        if 0 <= c < n_cols:
            m[r, c] = 1.0
    return m


def _block_diag(m, B):
    R, C = m.shape
    out = np.zeros((B * R, B * C), np.float32)
    for b in range(B):
        out[b * R:(b + 1) * R, b * C:(b + 1) * C] = m
    return out


def _stride2_taps(L, B):
    """Block-diag tap selectors for a k=3 / stride=2 / pad=1 conv: 3 x [B*L2, B*L]."""
    L2 = (L - 1) // 2 + 1
    mats = []
    for k in range(3):
        idx = [2 * j + k - 1 if 0 <= 2 * j + k - 1 < L else -1 for j in range(L2)]
        mats.append(_block_diag(_one_hot(idx, L), B))
    return np.stack(mats), L2


def _nearest_sel(out_len, in_len, B):
    """Block-diag nearest row-resampling selector [B*out_len, B*in_len]."""
    return _block_diag(_one_hot(list(_nearest_idx(out_len, in_len)), in_len), B)


def _video_encoder_taps(Lv, vlen, B):
    """nearest upsample (vlen -> Lv) composed with k=3/s=1/p=1 conv taps."""
    up_idx = _nearest_idx(Lv, vlen)
    mats = []
    for k in range(3):
        idx = []
        for j in range(Lv):
            u = j + k - 1
            idx.append(int(up_idx[u]) if 0 <= u < Lv else -1)
        mats.append(_block_diag(_one_hot(idx, vlen), B))
    return np.stack(mats)


# ------------------------------ parameter init -------------------------------- #

def _init_conv(key, c_out, c_in, ksize):
    k1, k2 = jax.random.split(key)
    return dict(
        w=0.1 * jax.random.normal(k1, (c_out, c_in, ksize), jnp.float32),  # torch Conv1d [Cout, Cin, K]
        b=0.1 * jax.random.normal(k2, (c_out,), jnp.float32),
        gamma=jnp.ones((c_out,), jnp.float32),
        beta=jnp.zeros((c_out,), jnp.float32),
    )


def _init_sub(key, hidden):
    # Live parameters of AudioSub/VideoSub (num_layers == 2): one stride-2
    # ConvBlock + the 1x1 macro_compressor ConvBlock.
    # NOTE: pre_down_sample / micro_compressor parameters exist in the PyTorch
    # module but their outputs are discarded by forward(); not computed here.
    k1, k2 = jax.random.split(key)
    return dict(main=_init_conv(k1, hidden, hidden, 3),
                macro=_init_conv(k2, hidden, 2 * hidden, 1))


def _init_thalamic(key, audio_dim, video_dim):
    k1, k2, k3, k4 = jax.random.split(key, 4)
    return dict(
        wa=0.1 * jax.random.normal(k1, (audio_dim, audio_dim), jnp.float32),  # torch Linear [out, in]
        ba=0.1 * jax.random.normal(k2, (audio_dim,), jnp.float32),
        wv=0.1 * jax.random.normal(k3, (video_dim, video_dim), jnp.float32),
        bv=0.1 * jax.random.normal(k4, (video_dim,), jnp.float32),
    )


def init_ctcnet(key, cfg):
    keys = iter(jax.random.split(key, 16))
    ae, ve = cfg['audio_encoder'], cfg['video_encoder']
    Ca, Cv = cfg['audio_emb_dim'], cfg['video_emb_dim']
    p = {}
    p['audio_encoder'] = _init_conv(next(keys), Ca, 1, ae['kernel_size'])
    p['video_encoder'] = _init_conv(next(keys), Cv, 512, ve['kernel_size'])
    p['audio_blocks'] = [_init_sub(next(keys), cfg['audio_block']['hidden_dim'])
                         for _ in range(cfg['audio_blocks_cnt'])]
    p['video_blocks'] = [_init_sub(next(keys), cfg['video_block']['hidden_dim'])
                         for _ in range(cfg['video_blocks_cnt'])]
    p['thalamic'] = [_init_thalamic(next(keys), **cfg['thalamic'])
                     for _ in range(cfg['video_blocks_cnt'])]
    k1, k2 = jax.random.split(next(keys))
    p['last_w'] = 0.1 * jax.random.normal(k1, (Ca, Ca), jnp.float32)   # torch Linear [out, in]
    p['last_b'] = 0.1 * jax.random.normal(k2, (Ca,), jnp.float32)
    k1, k2 = jax.random.split(next(keys))
    p['decoder'] = dict(
        w=0.1 * jax.random.normal(k1, (Ca, 1, ae['kernel_size']), jnp.float32),  # ConvTranspose1d [Cin, Cout, K]
        b=0.1 * jax.random.normal(k2, (1,), jnp.float32),
    )
    return p


# ---------------------------- operand packing --------------------------------- #

def pack_ctcnet(params, cfg, B, audio_len, video_len):
    ae, ve = cfg['audio_encoder'], cfg['video_encoder']
    Ca, Cv = cfg['audio_emb_dim'], cfg['video_emb_dim']
    K, S = ae['kernel_size'], ae['stride']
    # TODO(synk): the fused kernel is specialized to this config family:
    #   audio encoder/decoder with kernel_size == 2*stride, padding == 0;
    #   video encoder with kernel_size == 3, stride == 1, padding == 1;
    #   sub-blocks with num_layers == 2, kernel_size == 3, even lengths;
    #   audio_emb_dim == video_emb_dim (thalamic channel-resize is identity).
    assert ae['padding'] == 0 and K == 2 * S
    assert ve['kernel_size'] == 3 and ve['stride'] == 1 and ve['padding'] == 1
    assert Ca == Cv
    assert cfg['audio_block']['hidden_dim'] == Ca and cfg['audio_block']['num_layers'] == 2
    assert cfg['video_block']['hidden_dim'] == Cv and cfg['video_block']['num_layers'] == 2
    assert cfg['audio_block']['kernel_size'] == 3 and cfg['video_block']['kernel_size'] == 3

    La = (audio_len - K) // S + 1
    Lv = ve['upsample_size']
    assert La % 2 == 0 and Lv % 2 == 0
    n_ab, n_vb = cfg['audio_blocks_cnt'], cfg['video_blocks_cnt']

    pa, pv = params['audio_encoder'], params['video_encoder']
    enc_a_w = jnp.transpose(pa['w'][:, 0, :]).reshape(2, S, Ca)     # [2, S, Ca] (lo/hi tap halves)
    enc_a_vec = jnp.stack([pa['b'], pa['gamma'], pa['beta']])       # [3, Ca]
    enc_v_w = jnp.transpose(pv['w'], (2, 1, 0))                     # [3, 512, Cv]
    enc_v_vec = jnp.stack([pv['b'], pv['gamma'], pv['beta']])       # [3, Cv]
    enc_v_sel = jnp.asarray(_video_encoder_taps(Lv, video_len, B))  # [3, B*Lv, B*video_len]

    blocks = params['audio_blocks'] + params['video_blocks']        # audio blocks then video blocks
    sub_wmain = jnp.stack([jnp.transpose(p['main']['w'], (2, 1, 0)) for p in blocks])   # [nb, 3, C, C]
    sub_wmac = jnp.stack([jnp.stack([jnp.transpose(p['macro']['w'][:, :Ca, 0]),
                                     jnp.transpose(p['macro']['w'][:, Ca:, 0])])
                          for p in blocks])                                              # [nb, 2, C, C]
    sub_vec = jnp.stack([jnp.stack([p['main']['b'], p['main']['gamma'], p['main']['beta'],
                                    p['macro']['b'], p['macro']['gamma'], p['macro']['beta']])
                         for p in blocks])                                               # [nb, 6, C]

    sa_down, La2 = _stride2_taps(La, B)
    sv_down, Lv2 = _stride2_taps(Lv, B)
    sel_a_down = jnp.asarray(sa_down)                     # [3, B*La2, B*La]
    sel_a_up = jnp.asarray(_nearest_sel(La, La2, B))      # [B*La, B*La2]
    sel_v_down = jnp.asarray(sv_down)                     # [3, B*Lv2, B*Lv]
    sel_v_up = jnp.asarray(_nearest_sel(Lv, Lv2, B))      # [B*Lv, B*Lv2]
    sel_v2a = jnp.asarray(_nearest_sel(La, Lv, B))        # video length -> audio length
    sel_a2v = jnp.asarray(_nearest_sel(Lv, La, B))        # audio length -> video length

    thal_w = jnp.stack([jnp.stack([jnp.transpose(p['wa']), jnp.transpose(p['wv'])])
                        for p in params['thalamic']])     # [n_vb, 2, C, C]
    thal_b = jnp.stack([jnp.stack([p['ba'], p['bv']]) for p in params['thalamic']])  # [n_vb, 2, C]

    last_w = jnp.transpose(params['last_w'])              # [C, C]
    last_b = params['last_b'].reshape(1, Ca)              # [1, C]
    wd = params['decoder']['w'][:, 0, :]                  # [C, K]
    dec_w = jnp.stack([wd[:, :S], wd[:, S:]])             # [2, C, S] (lo/hi output halves)

    operands = (enc_a_w, enc_a_vec, enc_v_w, enc_v_vec, enc_v_sel,
                sub_wmain, sub_wmac, sub_vec,
                sel_a_down, sel_a_up, sel_v_down, sel_v_up, sel_v2a, sel_a2v,
                thal_w, thal_b, last_w, last_b, dec_w)
    static = dict(B=B, La=La, Lv=Lv, n_ab=n_ab, n_vb=n_vb, stride=S)
    packed = dict(operands=operands, dec_bias=params['decoder']['b'][0])
    return static, packed


# ------------------------------ the fused kernel ------------------------------ #

def build_ctcnet_kernel(st):
    B, La = st['B'], st['La']
    n_ab, n_vb = st['n_ab'], st['n_vb']

    def kernel(mix_lo_ref, mix_hi_ref, vid_ref,
               enc_a_w_ref, enc_a_vec_ref, enc_v_w_ref, enc_v_vec_ref, enc_v_sel_ref,
               sub_wmain_ref, sub_wmac_ref, sub_vec_ref,
               sel_ad_ref, sel_au_ref, sel_vd_ref, sel_vu_ref, sel_v2a_ref, sel_a2v_ref,
               thal_w_ref, thal_b_ref, last_w_ref, last_b_ref, dec_w_ref,
               out_ref):

        def mm(a, b):
            return jnp.dot(a, b, preferred_element_type=jnp.float32)

        def ln(y, g, beta):
            mu = jnp.mean(y, axis=-1, keepdims=True)
            c = y - mu
            var = jnp.mean(c * c, axis=-1, keepdims=True)
            return c * jax.lax.rsqrt(var + LN_EPS) * g + beta

        def conv_post(pre, vec, row):
            # bias + ReLU + LayerNorm(channels); vec rows are (bias, gamma, beta)
            y = jnp.maximum(pre + vec[row:row + 1, :], 0.0)
            return ln(y, vec[row + 1:row + 2, :], vec[row + 2:row + 3, :])

        # ----------------- encoders (batch folded into matmul rows) -----------------
        a_pre = mm(mix_lo_ref[...], enc_a_w_ref[0]) + mm(mix_hi_ref[...], enc_a_w_ref[1])
        audio = conv_post(a_pre, enc_a_vec_ref[...], 0)            # [B*La, C]

        vid = vid_ref[...]                                          # [B*video_len, 512]
        v_pre = (mm(enc_v_sel_ref[0], mm(vid, enc_v_w_ref[0]))
                 + mm(enc_v_sel_ref[1], mm(vid, enc_v_w_ref[1]))
                 + mm(enc_v_sel_ref[2], mm(vid, enc_v_w_ref[2])))
        video = conv_post(v_pre, enc_v_vec_ref[...], 0)             # [B*Lv, C]

        saved_audio = audio

        def sub_block(x, blk, sd_ref, su_ref):
            # Live path of AudioSub/VideoSub (num_layers == 2): stride-2 k=3 ConvBlock,
            # nearest 2x upsample, 1x1 macro ConvBlock over concat([x, up(down)]) with
            # the channel concat folded into split weights (sub_wmac[blk, 0/1]).
            vec = sub_vec_ref[blk]                                   # [6, C]
            d_pre = (mm(mm(sd_ref[0], x), sub_wmain_ref[blk, 0])
                     + mm(mm(sd_ref[1], x), sub_wmain_ref[blk, 1])
                     + mm(mm(sd_ref[2], x), sub_wmain_ref[blk, 2]))
            down = conv_post(d_pre, vec, 0)                          # [B*L/2, C]
            z_pre = (mm(x, sub_wmac_ref[blk, 0])
                     + mm(su_ref[...], mm(down, sub_wmac_ref[blk, 1])))
            return conv_post(z_pre, vec, 3)                          # [B*L, C]

        # --------------- CTC iterations: AudioSub + VideoSub + ThalamicSub ----------
        a_res = None
        v_res = None
        for i in range(n_vb):
            a_s = sub_block(audio if a_res is None else audio + a_res,
                            i, sel_ad_ref, sel_au_ref)
            v_s = sub_block(video if v_res is None else video + v_res,
                            n_ab + i, sel_vd_ref, sel_vu_ref)
            a_res, v_res = a_s, v_s
            # ThalamicSub: nearest length resize via block-diag selection.
            # TODO(synk): the channel nearest-resize is the identity for
            # audio_emb_dim == video_emb_dim and is elided; add the one-hot
            # [Cv,Ca]/[Ca,Cv] channel matmuls for configs with differing dims.
            sv = mm(sel_v2a_ref[...], v_s)                           # [B*La, C]
            sa = mm(sel_a2v_ref[...], a_s)                           # [B*Lv, C]
            tb = thal_b_ref[i]                                       # [2, C]
            audio = mm(a_s + sv, thal_w_ref[i, 0]) + tb[0:1, :]
            video = mm(v_s + sa, thal_w_ref[i, 1]) + tb[1:2, :]

        # --------------------- tail AudioSubs (no residual) -------------------------
        for i in range(n_vb, n_ab):
            audio = sub_block(audio, i, sel_ad_ref, sel_au_ref)

        # ---- last_linear + ReLU mask + ConvTranspose1d taps + in-kernel overlap-add
        mask = jnp.maximum(mm(audio, last_w_ref[...]) + last_b_ref[...], 0.0)
        masked = saved_audio * mask                                  # [B*La, C]
        taps_lo = mm(masked, dec_w_ref[0])                           # [B*La, S]
        taps_hi = mm(masked, dec_w_ref[1])                           # [B*La, S]
        for b in range(B):
            lo = taps_lo[b * La:(b + 1) * La, :]
            hi = taps_hi[b * La:(b + 1) * La, :]
            base = b * (La + 1)
            out_ref[pl.ds(base, 1), :] = lo[0:1, :]
            out_ref[pl.ds(base + 1, La - 1), :] = lo[1:La, :] + hi[0:La - 1, :]
            out_ref[pl.ds(base + La, 1), :] = hi[La - 1:La, :]

    return kernel


# ---------------------------------- forward ----------------------------------- #

def ctcnet_forward(static, packed, mix, vid1):
    """mix: [B, audio_len] f32,  vid1: [B, video_len, 512] f32."""
    B, La, S = static['B'], static['La'], static['stride']
    Lw = (La + 1) * S

    # Free host reshapes of the raw inputs (the stride-8 / k-16 conv windows are
    # exactly two adjacent 8-sample blocks, so im2col degenerates to two views).
    mix3 = mix[:, :Lw].reshape(B, La + 1, S)
    mix_lo = mix3[:, :La, :].reshape(B * La, S)
    mix_hi = mix3[:, 1:, :].reshape(B * La, S)
    vid_flat = vid1.reshape(B * vid1.shape[1], vid1.shape[2])

    operands = (mix_lo, mix_hi, vid_flat) + packed['operands']
    out_grid = pl.pallas_call(
        build_ctcnet_kernel(static),
        out_shape=jax.ShapeDtypeStruct((B * (La + 1), S), jnp.float32),
        in_specs=[_VMEM] * len(operands),
        out_specs=_VMEM,
    )(*operands)

    # Epilogue (single tiny host fusion): flatten the sub-pixel grid to
    # [B, (La+1)*S], append the ConvTranspose1d output_padding zeros, add bias.
    # TODO(synk): doing this inside the kernel would need a minor-dim reshape of
    # the output tile; kept on the host for lowering safety.
    z = out_grid.reshape(B, Lw)
    out = jnp.pad(z, ((0, 0), (0, S - 1))) + packed['dec_bias']
    return {'output_audio': out}


# ------------------------------------ main ------------------------------------- #

CFG = dict(
    audio_blocks_cnt=3,
    video_blocks_cnt=2,
    audio_emb_dim=32,
    video_emb_dim=32,
    audio_encoder=dict(kernel_size=16, stride=8, padding=0),
    video_encoder=dict(upsample_size=24, kernel_size=3, stride=1, padding=1),
    audio_block=dict(hidden_dim=32, audio_len=16, num_layers=2, kernel_size=3),
    video_block=dict(hidden_dim=32, audio_len=24, num_layers=2, kernel_size=3),
    thalamic=dict(audio_dim=32, video_dim=32),
)

if __name__ == "__main__":
    key = jax.random.PRNGKey(0)
    kp, kmix, kvid = jax.random.split(key, 3)

    params = init_ctcnet(kp, CFG)

    B, audio_len, video_len = 2, 136, 8
    mix = jax.random.normal(kmix, (B, audio_len), jnp.float32)           # [B, audio_len]
    vid1 = jax.random.normal(kvid, (B, video_len, 512), jnp.float32)     # [B, video_len, 512]

    static, packed = pack_ctcnet(params, CFG, B, audio_len, video_len)
    fwd = jax.jit(functools.partial(ctcnet_forward, static, packed))
    out = fwd(mix, vid1)
    jax.block_until_ready(out)

    # L_enc = (136-16)//8 + 1 = 16 ; decoder length = (16-1)*8 + 16 + (8-1) = 143
    expected_len = (static['La'] - 1) * static['stride'] \
        + CFG['audio_encoder']['kernel_size'] + (static['stride'] - 1)
    assert out['output_audio'].shape == (B, expected_len), out['output_audio'].shape
    assert out['output_audio'].dtype == jnp.float32
    assert bool(jnp.all(jnp.isfinite(out['output_audio'])))
    print("KERNEL_OK")
</pallas_src>

<mosaic_0001>
module attributes {stable_mosaic.version = 11 : i64} {
  func.func @kernel(%arg0: memref<32x8xf32, #tpu.memory_space<vmem>>, %arg1: memref<32x8xf32, #tpu.memory_space<vmem>>, %arg2: memref<16x512xf32, #tpu.memory_space<vmem>>, %arg3: memref<2x8x32xf32, #tpu.memory_space<vmem>>, %arg4: memref<3x32xf32, #tpu.memory_space<vmem>>, %arg5: memref<3x512x32xf32, #tpu.memory_space<vmem>>, %arg6: memref<3x32xf32, #tpu.memory_space<vmem>>, %arg7: memref<3x48x16xf32, #tpu.memory_space<vmem>>, %arg8: memref<5x3x32x32xf32, #tpu.memory_space<vmem>>, %arg9: memref<5x2x32x32xf32, #tpu.memory_space<vmem>>, %arg10: memref<5x6x32xf32, #tpu.memory_space<vmem>>, %arg11: memref<3x16x32xf32, #tpu.memory_space<vmem>>, %arg12: memref<32x16xf32, #tpu.memory_space<vmem>>, %arg13: memref<3x24x48xf32, #tpu.memory_space<vmem>>, %arg14: memref<48x24xf32, #tpu.memory_space<vmem>>, %arg15: memref<32x48xf32, #tpu.memory_space<vmem>>, %arg16: memref<48x32xf32, #tpu.memory_space<vmem>>, %arg17: memref<2x2x32x32xf32, #tpu.memory_space<vmem>>, %arg18: memref<2x2x32xf32, #tpu.memory_space<vmem>>, %arg19: memref<32x32xf32, #tpu.memory_space<vmem>>, %arg20: memref<1x32xf32, #tpu.memory_space<vmem>>, %arg21: memref<2x32x8xf32, #tpu.memory_space<vmem>>, %arg22: memref<34x8xf32, #tpu.memory_space<vmem>>) attributes {dimension_semantics = [], scalar_prefetch = 0 : i64, scratch_operands = 0 : i64, tpu.core_type = #tpu.core_type<tc>} {
    %c0 = arith.constant 0 : index
    %c0_0 = arith.constant 0 : index
    %0 = vector.load %arg0[%c0, %c0_0] : memref<32x8xf32, #tpu.memory_space<vmem>>, vector<32x8xf32>
    %c0_1 = arith.constant 0 : index
    %c0_2 = arith.constant 0 : index
    %c0_3 = arith.constant 0 : index
    %1 = vector.load %arg3[%c0_1, %c0_2, %c0_3] : memref<2x8x32xf32, #tpu.memory_space<vmem>>, vector<1x8x32xf32>
    %2 = vector.shape_cast %1 : vector<1x8x32xf32> to vector<8x32xf32>
    %cst = arith.constant dense<0.000000e+00> : vector<32x32xf32>
    %3 = tpu.matmul %0, %2, %cst {dimension_numbers = #tpu.dot_dimension_numbers<[1], [0], [0], [1], [0, 0, 1, 1], [], []>} : vector<32x8xf32>, vector<8x32xf32>, vector<32x32xf32> -> vector<32x32xf32>
    %c0_4 = arith.constant 0 : index
    %c0_5 = arith.constant 0 : index
    %4 = vector.load %arg1[%c0_4, %c0_5] : memref<32x8xf32, #tpu.memory_space<vmem>>, vector<32x8xf32>
    %c1 = arith.constant 1 : index
    %c0_6 = arith.constant 0 : index
    %c0_7 = arith.constant 0 : index
    %5 = vector.load %arg3[%c1, %c0_6, %c0_7] : memref<2x8x32xf32, #tpu.memory_space<vmem>>, vector<1x8x32xf32>
    %6 = vector.shape_cast %5 : vector<1x8x32xf32> to vector<8x32xf32>
    %cst_8 = arith.constant dense<0.000000e+00> : vector<32x32xf32>
    %7 = tpu.matmul %4, %6, %cst_8 {dimension_numbers = #tpu.dot_dimension_numbers<[1], [0], [0], [1], [0, 0, 1, 1], [], []>} : vector<32x8xf32>, vector<8x32xf32>, vector<32x32xf32> -> vector<32x32xf32>
    %8 = arith.addf %3, %7 : vector<32x32xf32>
    %c0_9 = arith.constant 0 : index
    %c0_10 = arith.constant 0 : index
    %9 = vector.load %arg4[%c0_9, %c0_10] : memref<3x32xf32, #tpu.memory_space<vmem>>, vector<3x32xf32>
    %10 = vector.extract_strided_slice %9 {offsets = [0, 0], sizes = [1, 32], strides = [1, 1]} : vector<3x32xf32> to vector<1x32xf32>
    %11 = vector.broadcast %10 : vector<1x32xf32> to vector<32x32xf32>
    %12 = arith.addf %8, %11 : vector<32x32xf32>
    %cst_11 = arith.constant 0.000000e+00 : f32
    %13 = vector.broadcast %cst_11 : f32 to vector<32x32xf32>
    %14 = arith.maximumf %12, %13 : vector<32x32xf32>
    %15 = vector.extract_strided_slice %9 {offsets = [1, 0], sizes = [1, 32], strides = [1, 1]} : vector<3x32xf32> to vector<1x32xf32>
    %16 = vector.extract_strided_slice %9 {offsets = [2, 0], sizes = [1, 32], strides = [1, 1]} : vector<3x32xf32> to vector<1x32xf32>
    %cst_12 = arith.constant dense<0.000000e+00> : vector<32xf32>
    %17 = vector.multi_reduction <add>, %14, %cst_12 [1] : vector<32x32xf32> to vector<32xf32>
    %18 = vector.shape_cast %17 : vector<32xf32> to vector<32x1xf32>
    %cst_13 = arith.constant 3.200000e+01 : f32
    %19 = vector.broadcast %cst_13 : f32 to vector<32x1xf32>
    %20 = arith.divf %18, %19 : vector<32x1xf32>
    %21 = vector.broadcast %20 : vector<32x1xf32> to vector<32x32xf32>
    %22 = arith.subf %14, %21 : vector<32x32xf32>
    %23 = arith.mulf %22, %22 : vector<32x32xf32>
    %cst_14 = arith.constant dense<0.000000e+00> : vector<32xf32>
    %24 = vector.multi_reduction <add>, %23, %cst_14 [1] : vector<32x32xf32> to vector<32xf32>
    %25 = vector.shape_cast %24 : vector<32xf32> to vector<32x1xf32>
    %cst_15 = arith.constant 3.200000e+01 : f32
    %26 = vector.broadcast %cst_15 : f32 to vector<32x1xf32>
    %27 = arith.divf %25, %26 : vector<32x1xf32>
    %cst_16 = arith.constant 9.99999974E-6 : f32
    %28 = vector.broadcast %cst_16 : f32 to vector<32x1xf32>
    %29 = arith.addf %27, %28 : vector<32x1xf32>
    %30 = math.rsqrt %29 : vector<32x1xf32>
    %31 = vector.broadcast %30 : vector<32x1xf32> to vector<32x32xf32>
    %32 = arith.mulf %22, %31 : vector<32x32xf32>
    %33 = vector.broadcast %15 : vector<1x32xf32> to vector<32x32xf32>
    %34 = arith.mulf %32, %33 : vector<32x32xf32>
    %35 = vector.broadcast %16 : vector<1x32xf32> to vector<32x32xf32>
    %36 = arith.addf %34, %35 : vector<32x32xf32>
    %c0_17 = arith.constant 0 : index
    %c0_18 = arith.constant 0 : index
    %37 = vector.load %arg2[%c0_17, %c0_18] : memref<16x512xf32, #tpu.memory_space<vmem>>, vector<16x512xf32>
    %c0_19 = arith.constant 0 : index
    %c0_20 = arith.constant 0 : index
    %c0_21 = arith.constant 0 : index
    %38 = vector.load %arg7[%c0_19, %c0_20, %c0_21] : memref<3x48x16xf32, #tpu.memory_space<vmem>>, vector<1x48x16xf32>
    %39 = vector.shape_cast %38 : vector<1x48x16xf32> to vector<48x16xf32>
    %c0_22 = arith.constant 0 : index
    %c0_23 = arith.constant 0 : index
    %c0_24 = arith.constant 0 : index
    %40 = vector.load %arg5[%c0_22, %c0_23, %c0_24] : memref<3x512x32xf32, #tpu.memory_space<vmem>>, vector<1x512x32xf32>
    %41 = vector.shape_cast %40 : vector<1x512x32xf32> to vector<512x32xf32>
    %cst_25 = arith.constant dense<0.000000e+00> : vector<16x32xf32>
    %42 = tpu.matmul %37, %41, %cst_25 {dimension_numbers = #tpu.dot_dimension_numbers<[1], [0], [0], [1], [0, 0, 1, 1], [], []>} : vector<16x512xf32>, vector<512x32xf32>, vector<16x32xf32> -> vector<16x32xf32>
    %cst_26 = arith.constant dense<0.000000e+00> : vector<48x32xf32>
    %43 = tpu.matmul %39, %42, %cst_26 {dimension_numbers = #tpu.dot_dimension_numbers<[1], [0], [0], [1], [0, 0, 1, 1], [], []>} : vector<48x16xf32>, vector<16x32xf32>, vector<48x32xf32> -> vector<48x32xf32>
    %c1_27 = arith.constant 1 : index
    %c0_28 = arith.constant 0 : index
    %c0_29 = arith.constant 0 : index
    %44 = vector.load %arg7[%c1_27, %c0_28, %c0_29] : memref<3x48x16xf32, #tpu.memory_space<vmem>>, vector<1x48x16xf32>
    %45 = vector.shape_cast %44 : vector<1x48x16xf32> to vector<48x16xf32>
    %c1_30 = arith.constant 1 : index
    %c0_31 = arith.constant 0 : index
    %c0_32 = arith.constant 0 : index
    %46 = vector.load %arg5[%c1_30, %c0_31, %c0_32] : memref<3x512x32xf32, #tpu.memory_space<vmem>>, vector<1x512x32xf32>
    %47 = vector.shape_cast %46 : vector<1x512x32xf32> to vector<512x32xf32>
    %cst_33 = arith.constant dense<0.000000e+00> : vector<16x32xf32>
    %48 = tpu.matmul %37, %47, %cst_33 {dimension_numbers = #tpu.dot_dimension_numbers<[1], [0], [0], [1], [0, 0, 1, 1], [], []>} : vector<16x512xf32>, vector<512x32xf32>, vector<16x32xf32> -> vector<16x32xf32>
    %cst_34 = arith.constant dense<0.000000e+00> : vector<48x32xf32>
    %49 = tpu.matmul %45, %48, %cst_34 {dimension_numbers = #tpu.dot_dimension_numbers<[1], [0], [0], [1], [0, 0, 1, 1], [], []>} : vector<48x16xf32>, vector<16x32xf32>, vector<48x32xf32> -> vector<48x32xf32>
    %50 = arith.addf %43, %49 : vector<48x32xf32>
    %c2 = arith.constant 2 : index
    %c0_35 = arith.constant 0 : index
    %c0_36 = arith.constant 0 : index
    %51 = vector.load %arg7[%c2, %c0_35, %c0_36] : memref<3x48x16xf32, #tpu.memory_space<vmem>>, vector<1x48x16xf32>
    %52 = vector.shape_cast %51 : vector<1x48x16xf32> to vector<48x16xf32>
    %c2_37 = arith.constant 2 : index
    %c0_38 = arith.constant 0 : index
    %c0_39 = arith.constant 0 : index
    %53 = vector.load %arg5[%c2_37, %c0_38, %c0_39] : memref<3x512x32xf32, #tpu.memory_space<vmem>>, vector<1x512x32xf32>
    %54 = vector.shape_cast %53 : vector<1x512x32xf32> to vector<512x32xf32>
    %cst_40 = arith.constant dense<0.000000e+00> : vector<16x32xf32>
    %55 = tpu.matmul %37, %54, %cst_40 {dimension_numbers = #tpu.dot_dimension_numbers<[1], [0], [0], [1], [0, 0, 1, 1], [], []>} : vector<16x512xf32>, vector<512x32xf32>, vector<16x32xf32> -> vector<16x32xf32>
    %cst_41 = arith.constant dense<0.000000e+00> : vector<48x32xf32>
    %56 = tpu.matmul %52, %55, %cst_41 {dimension_numbers = #tpu.dot_dimension_numbers<[1], [0], [0], [1], [0, 0, 1, 1], [], []>} : vector<48x16xf32>, vector<16x32xf32>, vector<48x32xf32> -> vector<48x32xf32>
    %57 = arith.addf %50, %56 : vector<48x32xf32>
    %c0_42 = arith.constant 0 : index
    %c0_43 = arith.constant 0 : index
    %58 = vector.load %arg6[%c0_42, %c0_43] : memref<3x32xf32, #tpu.memory_space<vmem>>, vector<3x32xf32>
    %59 = vector.extract_strided_slice %58 {offsets = [0, 0], sizes = [1, 32], strides = [1, 1]} : vector<3x32xf32> to vector<1x32xf32>
    %60 = vector.broadcast %59 : vector<1x32xf32> to vector<48x32xf32>
    %61 = arith.addf %57, %60 : vector<48x32xf32>
    %cst_44 = arith.constant 0.000000e+00 : f32
    %62 = vector.broadcast %cst_44 : f32 to vector<48x32xf32>
    %63 = arith.maximumf %61, %62 : vector<48x32xf32>
    %64 = vector.extract_strided_slice %58 {offsets = [1, 0], sizes = [1, 32], strides = [1, 1]} : vector<3x32xf32> to vector<1x32xf32>
    %65 = vector.extract_strided_slice %58 {offsets = [2, 0], sizes = [1, 32], strides = [1, 1]} : vector<3x32xf32> to vector<1x32xf32>
    %cst_45 = arith.constant dense<0.000000e+00> : vector<48xf32>
    %66 = vector.multi_reduction <add>, %63, %cst_45 [1] : vector<48x32xf32> to vector<48xf32>
    %67 = vector.shape_cast %66 : vector<48xf32> to vector<48x1xf32>
    %cst_46 = arith.constant 3.200000e+01 : f32
    %68 = vector.broadcast %cst_46 : f32 to vector<48x1xf32>
    %69 = arith.divf %67, %68 : vector<48x1xf32>
    %70 = vector.broadcast %69 : vector<48x1xf32> to vector<48x32xf32>
    %71 = arith.subf %63, %70 : vector<48x32xf32>
    %72 = arith.mulf %71, %71 : vector<48x32xf32>
    %cst_47 = arith.constant dense<0.000000e+00> : vector<48xf32>
    %73 = vector.multi_reduction <add>, %72, %cst_47 [1] : vector<48x32xf32> to vector<48xf32>
    %74 = vector.shape_cast %73 : vector<48xf32> to vector<48x1xf32>
    %cst_48 = arith.constant 3.200000e+01 : f32
    %75 = vector.broadcast %cst_48 : f32 to vector<48x1xf32>
    %76 = arith.divf %74, %75 : vector<48x1xf32>
    %cst_49 = arith.constant 9.99999974E-6 : f32
    %77 = vector.broadcast %cst_49 : f32 to vector<48x1xf32>
    %78 = arith.addf %76, %77 : vector<48x1xf32>
    %79 = math.rsqrt %78 : vector<48x1xf32>
    %80 = vector.broadcast %79 : vector<48x1xf32> to vector<48x32xf32>
    %81 = arith.mulf %71, %80 : vector<48x32xf32>
    %82 = vector.broadcast %64 : vector<1x32xf32> to vector<48x32xf32>
    %83 = arith.mulf %81, %82 : vector<48x32xf32>
    %84 = vector.broadcast %65 : vector<1x32xf32> to vector<48x32xf32>
    %85 = arith.addf %83, %84 : vector<48x32xf32>
    %c0_50 = arith.constant 0 : index
    %c0_51 = arith.constant 0 : index
    %c0_52 = arith.constant 0 : index
    %86 = vector.load %arg10[%c0_50, %c0_51, %c0_52] : memref<5x6x32xf32, #tpu.memory_space<vmem>>, vector<1x6x32xf32>
    %87 = vector.shape_cast %86 : vector<1x6x32xf32> to vector<6x32xf32>
    %c0_53 = arith.constant 0 : index
    %c0_54 = arith.constant 0 : index
    %c0_55 = arith.constant 0 : index
    %88 = vector.load %arg11[%c0_53, %c0_54, %c0_55] : memref<3x16x32xf32, #tpu.memory_space<vmem>>, vector<1x16x32xf32>
    %89 = vector.shape_cast %88 : vector<1x16x32xf32> to vector<16x32xf32>
    %cst_56 = arith.constant dense<0.000000e+00> : vector<16x32xf32>
    %90 = tpu.matmul %89, %36, %cst_56 {dimension_numbers = #tpu.dot_dimension_numbers<[1], [0], [0], [1], [0, 0, 1, 1], [], []>} : vector<16x32xf32>, vector<32x32xf32>, vector<16x32xf32> -> vector<16x32xf32>
    %c0_57 = arith.constant 0 : index
    %c0_58 = arith.constant 0 : index
    %c0_59 = arith.constant 0 : index
    %c0_60 = arith.constant 0 : index
    %91 = vector.load %arg8[%c0_57, %c0_58, %c0_59, %c0_60] : memref<5x3x32x32xf32, #tpu.memory_space<vmem>>, vector<1x1x32x32xf32>
    %92 = vector.shape_cast %91 : vector<1x1x32x32xf32> to vector<32x32xf32>
    %cst_61 = arith.constant dense<0.000000e+00> : vector<16x32xf32>
    %93 = tpu.matmul %90, %92, %cst_61 {dimension_numbers = #tpu.dot_dimension_numbers<[1], [0], [0], [1], [0, 0, 1, 1], [], []>} : vector<16x32xf32>, vector<32x32xf32>, vector<16x32xf32> -> vector<16x32xf32>
    %c1_62 = arith.constant 1 : index
    %c0_63 = arith.constant 0 : index
    %c0_64 = arith.constant 0 : index
    %94 = vector.load %arg11[%c1_62, %c0_63, %c0_64] : memref<3x16x32xf32, #tpu.memory_space<vmem>>, vector<1x16x32xf32>
    %95 = vector.shape_cast %94 : vector<1x16x32xf32> to vector<16x32xf32>
    %cst_65 = arith.constant dense<0.000000e+00> : vector<16x32xf32>
    %96 = tpu.matmul %95, %36, %cst_65 {dimension_numbers = #tpu.dot_dimension_numbers<[1], [0], [0], [1], [0, 0, 1, 1], [], []>} : vector<16x32xf32>, vector<32x32xf32>, vector<16x32xf32> -> vector<16x32xf32>
    %c0_66 = arith.constant 0 : index
    %c1_67 = arith.constant 1 : index
    %c0_68 = arith.constant 0 : index
    %c0_69 = arith.constant 0 : index
    %97 = vector.load %arg8[%c0_66, %c1_67, %c0_68, %c0_69] : memref<5x3x32x32xf32, #tpu.memory_space<vmem>>, vector<1x1x32x32xf32>
    %98 = vector.shape_cast %97 : vector<1x1x32x32xf32> to vector<32x32xf32>
    %cst_70 = arith.constant dense<0.000000e+00> : vector<16x32xf32>
    %99 = tpu.matmul %96, %98, %cst_70 {dimension_numbers = #tpu.dot_dimension_numbers<[1], [0], [0], [1], [0, 0, 1, 1], [], []>} : vector<16x32xf32>, vector<32x32xf32>, vector<16x32xf32> -> vector<16x32xf32>
    %100 = arith.addf %93, %99 : vector<16x32xf32>
    %c2_71 = arith.constant 2 : index
    %c0_72 = arith.constant 0 : index
    %c0_73 = arith.constant 0 : index
    %101 = vector.load %arg11[%c2_71, %c0_72, %c0_73] : memref<3x16x32xf32, #tpu.memory_space<vmem>>, vector<1x16x32xf32>
    %102 = vector.shape_cast %101 : vector<1x16x32xf32> to vector<16x32xf32>
    %cst_74 = arith.constant dense<0.000000e+00> : vector<16x32xf32>
    %103 = tpu.matmul %102, %36, %cst_74 {dimension_numbers = #tpu.dot_dimension_numbers<[1], [0], [0], [1], [0, 0, 1, 1], [], []>} : vector<16x32xf32>, vector<32x32xf32>, vector<16x32xf32> -> vector<16x32xf32>
    %c0_75 = arith.constant 0 : index
    %c2_76 = arith.constant 2 : index
    %c0_77 = arith.constant 0 : index
    %c0_78 = arith.constant 0 : index
    %104 = vector.load %arg8[%c0_75, %c2_76, %c0_77, %c0_78] : memref<5x3x32x32xf32, #tpu.memory_space<vmem>>, vector<1x1x32x32xf32>
    %105 = vector.shape_cast %104 : vector<1x1x32x32xf32> to vector<32x32xf32>
    %cst_79 = arith.constant dense<0.000000e+00> : vector<16x32xf32>
    %106 = tpu.matmul %103, %105, %cst_79 {dimension_numbers = #tpu.dot_dimension_numbers<[1], [0], [0], [1], [0, 0, 1, 1], [], []>} : vector<16x32xf32>, vector<32x32xf32>, vector<16x32xf32> -> vector<16x32xf32>
    %107 = arith.addf %100, %106 : vector<16x32xf32>
    %108 = vector.extract_strided_slice %87 {offsets = [0, 0], sizes = [1, 32], strides = [1, 1]} : vector<6x32xf32> to vector<1x32xf32>
    %109 = vector.broadcast %108 : vector<1x32xf32> to vector<16x32xf32>
    %110 = arith.addf %107, %109 : vector<16x32xf32>
    %cst_80 = arith.constant 0.000000e+00 : f32
    %111 = vector.broadcast %cst_80 : f32 to vector<16x32xf32>
    %112 = arith.maximumf %110, %111 : vector<16x32xf32>
    %113 = vector.extract_strided_slice %87 {offsets = [1, 0], sizes = [1, 32], strides = [1, 1]} : vector<6x32xf32> to vector<1x32xf32>
    %114 = vector.extract_strided_slice %87 {offsets = [2, 0], sizes = [1, 32], strides = [1, 1]} : vector<6x32xf32> to vector<1x32xf32>
    %cst_81 = arith.constant dense<0.000000e+00> : vector<16xf32>
    %115 = vector.multi_reduction <add>, %112, %cst_81 [1] : vector<16x32xf32> to vector<16xf32>
    %116 = vector.shape_cast %115 : vector<16xf32> to vector<16x1xf32>
    %cst_82 = arith.constant 3.200000e+01 : f32
    %117 = vector.broadcast %cst_82 : f32 to vector<16x1xf32>
    %118 = arith.divf %116, %117 : vector<16x1xf32>
    %119 = vector.broadcast %118 : vector<16x1xf32> to vector<16x32xf32>
    %120 = arith.subf %112, %119 : vector<16x32xf32>
    %121 = arith.mulf %120, %120 : vector<16x32xf32>
    %cst_83 = arith.constant dense<0.000000e+00> : vector<16xf32>
    %122 = vector.multi_reduction <add>, %121, %cst_83 [1] : vector<16x32xf32> to vector<16xf32>
    %123 = vector.shape_cast %122 : vector<16xf32> to vector<16x1xf32>
    %cst_84 = arith.constant 3.200000e+01 : f32
    %124 = vector.broadcast %cst_84 : f32 to vector<16x1xf32>
    %125 = arith.divf %123, %124 : vector<16x1xf32>
    %cst_85 = arith.constant 9.99999974E-6 : f32
    %126 = vector.broadcast %cst_85 : f32 to vector<16x1xf32>
    %127 = arith.addf %125, %126 : vector<16x1xf32>
    %128 = math.rsqrt %127 : vector<16x1xf32>
    %129 = vector.broadcast %128 : vector<16x1xf32> to vector<16x32xf32>
    %130 = arith.mulf %120, %129 : vector<16x32xf32>
    %131 = vector.broadcast %113 : vector<1x32xf32> to vector<16x32xf32>
    %132 = arith.mulf %130, %131 : vector<16x32xf32>
    %133 = vector.broadcast %114 : vector<1x32xf32> to vector<16x32xf32>
    %134 = arith.addf %132, %133 : vector<16x32xf32>
    %c0_86 = arith.constant 0 : index
    %c0_87 = arith.constant 0 : index
    %c0_88 = arith.constant 0 : index
    %c0_89 = arith.constant 0 : index
    %135 = vector.load %arg9[%c0_86, %c0_87, %c0_88, %c0_89] : memref<5x2x32x32xf32, #tpu.memory_space<vmem>>, vector<1x1x32x32xf32>
    %136 = vector.shape_cast %135 : vector<1x1x32x32xf32> to vector<32x32xf32>
    %cst_90 = arith.constant dense<0.000000e+00> : vector<32x32xf32>
    %137 = tpu.matmul %36, %136, %cst_90 {dimension_numbers = #tpu.dot_dimension_numbers<[1], [0], [0], [1], [0, 0, 1, 1], [], []>} : vector<32x32xf32>, vector<32x32xf32>, vector<32x32xf32> -> vector<32x32xf32>
    %c0_91 = arith.constant 0 : index
    %c0_92 = arith.constant 0 : index
    %138 = vector.load %arg12[%c0_91, %c0_92] : memref<32x16xf32, #tpu.memory_space<vmem>>, vector<32x16xf32>
    %c0_93 = arith.constant 0 : index
    %c1_94 = arith.constant 1 : index
    %c0_95 = arith.constant 0 : index
    %c0_96 = arith.constant 0 : index
    %139 = vector.load %arg9[%c0_93, %c1_94, %c0_95, %c0_96] : memref<5x2x32x32xf32, #tpu.memory_space<vmem>>, vector<1x1x32x32xf32>
    %140 = vector.shape_cast %139 : vector<1x1x32x32xf32> to vector<32x32xf32>
    %cst_97 = arith.constant dense<0.000000e+00> : vector<16x32xf32>
    %141 = tpu.matmul %134, %140, %cst_97 {dimension_numbers = #tpu.dot_dimension_numbers<[1], [0], [0], [1], [0, 0, 1, 1], [], []>} : vector<16x32xf32>, vector<32x32xf32>, vector<16x32xf32> -> vector<16x32xf32>
    %cst_98 = arith.constant dense<0.000000e+00> : vector<32x32xf32>
    %142 = tpu.matmul %138, %141, %cst_98 {dimension_numbers = #tpu.dot_dimension_numbers<[1], [0], [0], [1], [0, 0, 1, 1], [], []>} : vector<32x16xf32>, vector<16x32xf32>, vector<32x32xf32> -> vector<32x32xf32>
    %143 = arith.addf %137, %142 : vector<32x32xf32>
    %144 = vector.extract_strided_slice %87 {offsets = [3, 0], sizes = [1, 32], strides = [1, 1]} : vector<6x32xf32> to vector<1x32xf32>
    %145 = vector.broadcast %144 : vector<1x32xf32> to vector<32x32xf32>
    %146 = arith.addf %143, %145 : vector<32x32xf32>
    %cst_99 = arith.constant 0.000000e+00 : f32
    %147 = vector.broadcast %cst_99 : f32 to vector<32x32xf32>
    %148 = arith.maximumf %146, %147 : vector<32x32xf32>
    %149 = vector.extract_strided_slice %87 {offsets = [4, 0], sizes = [1, 32], strides = [1, 1]} : vector<6x32xf32> to vector<1x32xf32>
    %150 = vector.extract_strided_slice %87 {offsets = [5, 0], sizes = [1, 32], strides = [1, 1]} : vector<6x32xf32> to vector<1x32xf32>
    %cst_100 = arith.constant dense<0.000000e+00> : vector<32xf32>
    %151 = vector.multi_reduction <add>, %148, %cst_100 [1] : vector<32x32xf32> to vector<32xf32>
    %152 = vector.shape_cast %151 : vector<32xf32> to vector<32x1xf32>
    %cst_101 = arith.constant 3.200000e+01 : f32
    %153 = vector.broadcast %cst_101 : f32 to vector<32x1xf32>
    %154 = arith.divf %152, %153 : vector<32x1xf32>
    %155 = vector.broadcast %154 : vector<32x1xf32> to vector<32x32xf32>
    %156 = arith.subf %148, %155 : vector<32x32xf32>
    %157 = arith.mulf %156, %156 : vector<32x32xf32>
    %cst_102 = arith.constant dense<0.000000e+00> : vector<32xf32>
    %158 = vector.multi_reduction <add>, %157, %cst_102 [1] : vector<32x32xf32> to vector<32xf32>
    %159 = vector.shape_cast %158 : vector<32xf32> to vector<32x1xf32>
    %cst_103 = arith.constant 3.200000e+01 : f32
    %160 = vector.broadcast %cst_103 : f32 to vector<32x1xf32>
    %161 = arith.divf %159, %160 : vector<32x1xf32>
    %cst_104 = arith.constant 9.99999974E-6 : f32
    %162 = vector.broadcast %cst_104 : f32 to vector<32x1xf32>
    %163 = arith.addf %161, %162 : vector<32x1xf32>
    %164 = math.rsqrt %163 : vector<32x1xf32>
    %165 = vector.broadcast %164 : vector<32x1xf32> to vector<32x32xf32>
    %166 = arith.mulf %156, %165 : vector<32x32xf32>
    %167 = vector.broadcast %149 : vector<1x32xf32> to vector<32x32xf32>
    %168 = arith.mulf %166, %167 : vector<32x32xf32>
    %169 = vector.broadcast %150 : vector<1x32xf32> to vector<32x32xf32>
    %170 = arith.addf %168, %169 : vector<32x32xf32>
    %c3 = arith.constant 3 : index
    %c0_105 = arith.constant 0 : index
    %c0_106 = arith.constant 0 : index
    %171 = vector.load %arg10[%c3, %c0_105, %c0_106] : memref<5x6x32xf32, #tpu.memory_space<vmem>>, vector<1x6x32xf32>
    %172 = vector.shape_cast %171 : vector<1x6x32xf32> to vector<6x32xf32>
    %c0_107 = arith.constant 0 : index
    %c0_108 = arith.constant 0 : index
    %c0_109 = arith.constant 0 : index
    %173 = vector.load %arg13[%c0_107, %c0_108, %c0_109] : memref<3x24x48xf32, #tpu.memory_space<vmem>>, vector<1x24x48xf32>
    %174 = vector.shape_cast %173 : vector<1x24x48xf32> to vector<24x48xf32>
    %cst_110 = arith.constant dense<0.000000e+00> : vector<24x32xf32>
    %175 = tpu.matmul %174, %85, %cst_110 {dimension_numbers = #tpu.dot_dimension_numbers<[1], [0], [0], [1], [0, 0, 1, 1], [], []>} : vector<24x48xf32>, vector<48x32xf32>, vector<24x32xf32> -> vector<24x32xf32>
    %c3_111 = arith.constant 3 : index
    %c0_112 = arith.constant 0 : index
    %c0_113 = arith.constant 0 : index
    %c0_114 = arith.constant 0 : index
    %176 = vector.load %arg8[%c3_111, %c0_112, %c0_113, %c0_114] : memref<5x3x32x32xf32, #tpu.memory_space<vmem>>, vector<1x1x32x32xf32>
    %177 = vector.shape_cast %176 : vector<1x1x32x32xf32> to vector<32x32xf32>
    %cst_115 = arith.constant dense<0.000000e+00> : vector<24x32xf32>
    %178 = tpu.matmul %175, %177, %cst_115 {dimension_numbers = #tpu.dot_dimension_numbers<[1], [0], [0], [1], [0, 0, 1, 1], [], []>} : vector<24x32xf32>, vector<32x32xf32>, vector<24x32xf32> -> vector<24x32xf32>
    %c1_116 = arith.constant 1 : index
    %c0_117 = arith.constant 0 : index
    %c0_118 = arith.constant 0 : index
    %179 = vector.load %arg13[%c1_116, %c0_117, %c0_118] : memref<3x24x48xf32, #tpu.memory_space<vmem>>, vector<1x24x48xf32>
    %180 = vector.shape_cast %179 : vector<1x24x48xf32> to vector<24x48xf32>
    %cst_119 = arith.constant dense<0.000000e+00> : vector<24x32xf32>
    %181 = tpu.matmul %180, %85, %cst_119 {dimension_numbers = #tpu.dot_dimension_numbers<[1], [0], [0], [1], [0, 0, 1, 1], [], []>} : vector<24x48xf32>, vector<48x32xf32>, vector<24x32xf32> -> vector<24x32xf32>
    %c3_120 = arith.constant 3 : index
    %c1_121 = arith.constant 1 : index
    %c0_122 = arith.constant 0 : index
    %c0_123 = arith.constant 0 : index
    %182 = vector.load %arg8[%c3_120, %c1_121, %c0_122, %c0_123] : memref<5x3x32x32xf32, #tpu.memory_space<vmem>>, vector<1x1x32x32xf32>
    %183 = vector.shape_cast %182 : vector<1x1x32x32xf32> to vector<32x32xf32>
    %cst_124 = arith.constant dense<0.000000e+00> : vector<24x32xf32>
    %184 = tpu.matmul %181, %183, %cst_124 {dimension_numbers = #tpu.dot_dimension_numbers<[1], [0], [0], [1], [0, 0, 1, 1], [], []>} : vector<24x32xf32>, vector<32x32xf32>, vector<24x32xf32> -> vector<24x32xf32>
    %185 = arith.addf %178, %184 : vector<24x32xf32>
    %c2_125 = arith.constant 2 : index
    %c0_126 = arith.constant 0 : index
    %c0_127 = arith.constant 0 : index
    %186 = vector.load %arg13[%c2_125, %c0_126, %c0_127] : memref<3x24x48xf32, #tpu.memory_space<vmem>>, vector<1x24x48xf32>
    %187 = vector.shape_cast %186 : vector<1x24x48xf32> to vector<24x48xf32>
    %cst_128 = arith.constant dense<0.000000e+00> : vector<24x32xf32>
    %188 = tpu.matmul %187, %85, %cst_128 {dimension_numbers = #tpu.dot_dimension_numbers<[1], [0], [0], [1], [0, 0, 1, 1], [], []>} : vector<24x48xf32>, vector<48x32xf32>, vector<24x32xf32> -> vector<24x32xf32>
    %c3_129 = arith.constant 3 : index
    %c2_130 = arith.constant 2 : index
    %c0_131 = arith.constant 0 : index
    %c0_132 = arith.constant 0 : index
    %189 = vector.load %arg8[%c3_129, %c2_130, %c0_131, %c0_132] : memref<5x3x32x32xf32, #tpu.memory_space<vmem>>, vector<1x1x32x32xf32>
    %190 = vector.shape_cast %189 : vector<1x1x32x32xf32> to vector<32x32xf32>
    %cst_133 = arith.constant dense<0.000000e+00> : vector<24x32xf32>
    %191 = tpu.matmul %188, %190, %cst_133 {dimension_numbers = #tpu.dot_dimension_numbers<[1], [0], [0], [1], [0, 0, 1, 1], [], []>} : vector<24x32xf32>, vector<32x32xf32>, vector<24x32xf32> -> vector<24x32xf32>
    %192 = arith.addf %185, %191 : vector<24x32xf32>
    %193 = vector.extract_strided_slice %172 {offsets = [0, 0], sizes = [1, 32], strides = [1, 1]} : vector<6x32xf32> to vector<1x32xf32>
    %194 = vector.broadcast %193 : vector<1x32xf32> to vector<24x32xf32>
    %195 = arith.addf %192, %194 : vector<24x32xf32>
    %cst_134 = arith.constant 0.000000e+00 : f32
    %196 = vector.broadcast %cst_134 : f32 to vector<24x32xf32>
    %197 = arith.maximumf %195, %196 : vector<24x32xf32>
    %198 = vector.extract_strided_slice %172 {offsets = [1, 0], sizes = [1, 32], strides = [1, 1]} : vector<6x32xf32> to vector<1x32xf32>
    %199 = vector.extract_strided_slice %172 {offsets = [2, 0], sizes = [1, 32], strides = [1, 1]} : vector<6x32xf32> to vector<1x32xf32>
    %cst_135 = arith.constant dense<0.000000e+00> : vector<24xf32>
    %200 = vector.multi_reduction <add>, %197, %cst_135 [1] : vector<24x32xf32> to vector<24xf32>
    %201 = vector.shape_cast %200 : vector<24xf32> to vector<24x1xf32>
    %cst_136 = arith.constant 3.200000e+01 : f32
    %202 = vector.broadcast %cst_136 : f32 to vector<24x1xf32>
    %203 = arith.divf %201, %202 : vector<24x1xf32>
    %204 = vector.broadcast %203 : vector<24x1xf32> to vector<24x32xf32>
    %205 = arith.subf %197, %204 : vector<24x32xf32>
    %206 = arith.mulf %205, %205 : vector<24x32xf32>
    %cst_137 = arith.constant dense<0.000000e+00> : vector<24xf32>
    %207 = vector.multi_reduction <add>, %206, %cst_137 [1] : vector<24x32xf32> to vector<24xf32>
    %208 = vector.shape_cast %207 : vector<24xf32> to vector<24x1xf32>
    %cst_138 = arith.constant 3.200000e+01 : f32
    %209 = vector.broadcast %cst_138 : f32 to vector<24x1xf32>
    %210 = arith.divf %208, %209 : vector<24x1xf32>
    %cst_139 = arith.constant 9.99999974E-6 : f32
    %211 = vector.broadcast %cst_139 : f32 to vector<24x1xf32>
    %212 = arith.addf %210, %211 : vector<24x1xf32>
    %213 = math.rsqrt %212 : vector<24x1xf32>
    %214 = vector.broadcast %213 : vector<24x1xf32> to vector<24x32xf32>
    %215 = arith.mulf %205, %214 : vector<24x32xf32>
    %216 = vector.broadcast %198 : vector<1x32xf32> to vector<24x32xf32>
    %217 = arith.mulf %215, %216 : vector<24x32xf32>
    %218 = vector.broadcast %199 : vector<1x32xf32> to vector<24x32xf32>
    %219 = arith.addf %217, %218 : vector<24x32xf32>
    %c3_140 = arith.constant 3 : index
    %c0_141 = arith.constant 0 : index
    %c0_142 = arith.constant 0 : index
    %c0_143 = arith.constant 0 : index
    %220 = vector.load %arg9[%c3_140, %c0_141, %c0_142, %c0_143] : memref<5x2x32x32xf32, #tpu.memory_space<vmem>>, vector<1x1x32x32xf32>
    %221 = vector.shape_cast %220 : vector<1x1x32x32xf32> to vector<32x32xf32>
    %cst_144 = arith.constant dense<0.000000e+00> : vector<48x32xf32>
    %222 = tpu.matmul %85, %221, %cst_144 {dimension_numbers = #tpu.dot_dimension_numbers<[1], [0], [0], [1], [0, 0, 1, 1], [], []>} : vector<48x32xf32>, vector<32x32xf32>, vector<48x32xf32> -> vector<48x32xf32>
    %c0_145 = arith.constant 0 : index
    %c0_146 = arith.constant 0 : index
    %223 = vector.load %arg14[%c0_145, %c0_146] : memref<48x24xf32, #tpu.memory_space<vmem>>, vector<48x24xf32>
    %c3_147 = arith.constant 3 : index
    %c1_148 = arith.constant 1 : index
    %c0_149 = arith.constant 0 : index
    %c0_150 = arith.constant 0 : index
    %224 = vector.load %arg9[%c3_147, %c1_148, %c0_149, %c0_150] : memref<5x2x32x32xf32, #tpu.memory_space<vmem>>, vector<1x1x32x32xf32>
    %225 = vector.shape_cast %224 : vector<1x1x32x32xf32> to vector<32x32xf32>
    %cst_151 = arith.constant dense<0.000000e+00> : vector<24x32xf32>
    %226 = tpu.matmul %219, %225, %cst_151 {dimension_numbers = #tpu.dot_dimension_numbers<[1], [0], [0], [1], [0, 0, 1, 1], [], []>} : vector<24x32xf32>, vector<32x32xf32>, vector<24x32xf32> -> vector<24x32xf32>
    %cst_152 = arith.constant dense<0.000000e+00> : vector<48x32xf32>
    %227 = tpu.matmul %223, %226, %cst_152 {dimension_numbers = #tpu.dot_dimension_numbers<[1], [0], [0], [1], [0, 0, 1, 1], [], []>} : vector<48x24xf32>, vector<24x32xf32>, vector<48x32xf32> -> vector<48x32xf32>
    %228 = arith.addf %222, %227 : vector<48x32xf32>
    %229 = vector.extract_strided_slice %172 {offsets = [3, 0], sizes = [1, 32], strides = [1, 1]} : vector<6x32xf32> to vector<1x32xf32>
    %230 = vector.broadcast %229 : vector<1x32xf32> to vector<48x32xf32>
    %231 = arith.addf %228, %230 : vector<48x32xf32>
    %cst_153 = arith.constant 0.000000e+00 : f32
    %232 = vector.broadcast %cst_153 : f32 to vector<48x32xf32>
    %233 = arith.maximumf %231, %232 : vector<48x32xf32>
    %234 = vector.extract_strided_slice %172 {offsets = [4, 0], sizes = [1, 32], strides = [1, 1]} : vector<6x32xf32> to vector<1x32xf32>
    %235 = vector.extract_strided_slice %172 {offsets = [5, 0], sizes = [1, 32], strides = [1, 1]} : vector<6x32xf32> to vector<1x32xf32>
    %cst_154 = arith.constant dense<0.000000e+00> : vector<48xf32>
    %236 = vector.multi_reduction <add>, %233, %cst_154 [1] : vector<48x32xf32> to vector<48xf32>
    %237 = vector.shape_cast %236 : vector<48xf32> to vector<48x1xf32>
    %cst_155 = arith.constant 3.200000e+01 : f32
    %238 = vector.broadcast %cst_155 : f32 to vector<48x1xf32>
    %239 = arith.divf %237, %238 : vector<48x1xf32>
    %240 = vector.broadcast %239 : vector<48x1xf32> to vector<48x32xf32>
    %241 = arith.subf %233, %240 : vector<48x32xf32>
    %242 = arith.mulf %241, %241 : vector<48x32xf32>
    %cst_156 = arith.constant dense<0.000000e+00> : vector<48xf32>
    %243 = vector.multi_reduction <add>, %242, %cst_156 [1] : vector<48x32xf32> to vector<48xf32>
    %244 = vector.shape_cast %243 : vector<48xf32> to vector<48x1xf32>
    %cst_157 = arith.constant 3.200000e+01 : f32
    %245 = vector.broadcast %cst_157 : f32 to vector<48x1xf32>
    %246 = arith.divf %244, %245 : vector<48x1xf32>
    %cst_158 = arith.constant 9.99999974E-6 : f32
    %247 = vector.broadcast %cst_158 : f32 to vector<48x1xf32>
    %248 = arith.addf %246, %247 : vector<48x1xf32>
    %249 = math.rsqrt %248 : vector<48x1xf32>
    %250 = vector.broadcast %249 : vector<48x1xf32> to vector<48x32xf32>
    %251 = arith.mulf %241, %250 : vector<48x32xf32>
    %252 = vector.broadcast %234 : vector<1x32xf32> to vector<48x32xf32>
    %253 = arith.mulf %251, %252 : vector<48x32xf32>
    %254 = vector.broadcast %235 : vector<1x32xf32> to vector<48x32xf32>
    %255 = arith.addf %253, %254 : vector<48x32xf32>
    %c0_159 = arith.constant 0 : index
    %c0_160 = arith.constant 0 : index
    %256 = vector.load %arg15[%c0_159, %c0_160] : memref<32x48xf32, #tpu.memory_space<vmem>>, vector<32x48xf32>
    %cst_161 = arith.constant dense<0.000000e+00> : vector<32x32xf32>
    %257 = tpu.matmul %256, %255, %cst_161 {dimension_numbers = #tpu.dot_dimension_numbers<[1], [0], [0], [1], [0, 0, 1, 1], [], []>} : vector<32x48xf32>, vector<48x32xf32>, vector<32x32xf32> -> vector<32x32xf32>
    %c0_162 = arith.constant 0 : index
    %c0_163 = arith.constant 0 : index
    %258 = vector.load %arg16[%c0_162, %c0_163] : memref<48x32xf32, #tpu.memory_space<vmem>>, vector<48x32xf32>
    %cst_164 = arith.constant dense<0.000000e+00> : vector<48x32xf32>
    %259 = tpu.matmul %258, %170, %cst_164 {dimension_numbers = #tpu.dot_dimension_numbers<[1], [0], [0], [1], [0, 0, 1, 1], [], []>} : vector<48x32xf32>, vector<32x32xf32>, vector<48x32xf32> -> vector<48x32xf32>
    %c0_165 = arith.constant 0 : index
    %c0_166 = arith.constant 0 : index
    %c0_167 = arith.constant 0 : index
    %260 = vector.load %arg18[%c0_165, %c0_166, %c0_167] : memref<2x2x32xf32, #tpu.memory_space<vmem>>, vector<1x2x32xf32>
    %261 = vector.shape_cast %260 : vector<1x2x32xf32> to vector<2x32xf32>
    %262 = arith.addf %170, %257 : vector<32x32xf32>
    %c0_168 = arith.constant 0 : index
    %c0_169 = arith.constant 0 : index
    %c0_170 = arith.constant 0 : index
    %c0_171 = arith.constant 0 : index
    %263 = vector.load %arg17[%c0_168, %c0_169, %c0_170, %c0_171] : memref<2x2x32x32xf32, #tpu.memory_space<vmem>>, vector<1x1x32x32xf32>
    %264 = vector.shape_cast %263 : vector<1x1x32x32xf32> to vector<32x32xf32>
    %cst_172 = arith.constant dense<0.000000e+00> : vector<32x32xf32>
    %265 = tpu.matmul %262, %264, %cst_172 {dimension_numbers = #tpu.dot_dimension_numbers<[1], [0], [0], [1], [0, 0, 1, 1], [], []>} : vector<32x32xf32>, vector<32x32xf32>, vector<32x32xf32> -> vector<32x32xf32>
    %266 = vector.extract_strided_slice %261 {offsets = [0, 0], sizes = [1, 32], strides = [1, 1]} : vector<2x32xf32> to vector<1x32xf32>
    %267 = vector.broadcast %266 : vector<1x32xf32> to vector<32x32xf32>
    %268 = arith.addf %265, %267 : vector<32x32xf32>
    %269 = arith.addf %255, %259 : vector<48x32xf32>
    %c0_173 = arith.constant 0 : index
    %c1_174 = arith.constant 1 : index
    %c0_175 = arith.constant 0 : index
    %c0_176 = arith.constant 0 : index
    %270 = vector.load %arg17[%c0_173, %c1_174, %c0_175, %c0_176] : memref<2x2x32x32xf32, #tpu.memory_space<vmem>>, vector<1x1x32x32xf32>
    %271 = vector.shape_cast %270 : vector<1x1x32x32xf32> to vector<32x32xf32>
    %cst_177 = arith.constant dense<0.000000e+00> : vector<48x32xf32>
    %272 = tpu.matmul %269, %271, %cst_177 {dimension_numbers = #tpu.dot_dimension_numbers<[1], [0], [0], [1], [0, 0, 1, 1], [], []>} : vector<48x32xf32>, vector<32x32xf32>, vector<48x32xf32> -> vector<48x32xf32>
    %273 = vector.extract_strided_slice %261 {offsets = [1, 0], sizes = [1, 32], strides = [1, 1]} : vector<2x32xf32> to vector<1x32xf32>
    %274 = vector.broadcast %273 : vector<1x32xf32> to vector<48x32xf32>
    %275 = arith.addf %272, %274 : vector<48x32xf32>
    %276 = arith.addf %268, %170 : vector<32x32xf32>
    %c1_178 = arith.constant 1 : index
    %c0_179 = arith.constant 0 : index
    %c0_180 = arith.constant 0 : index
    %277 = vector.load %arg10[%c1_178, %c0_179, %c0_180] : memref<5x6x32xf32, #tpu.memory_space<vmem>>, vector<1x6x32xf32>
    %278 = vector.shape_cast %277 : vector<1x6x32xf32> to vector<6x32xf32>
    %c0_181 = arith.constant 0 : index
    %c0_182 = arith.constant 0 : index
    %c0_183 = arith.constant 0 : index
    %279 = vector.load %arg11[%c0_181, %c0_182, %c0_183] : memref<3x16x32xf32, #tpu.memory_space<vmem>>, vector<1x16x32xf32>
    %280 = vector.shape_cast %279 : vector<1x16x32xf32> to vector<16x32xf32>
    %cst_184 = arith.constant dense<0.000000e+00> : vector<16x32xf32>
    %281 = tpu.matmul %280, %276, %cst_184 {dimension_numbers = #tpu.dot_dimension_numbers<[1], [0], [0], [1], [0, 0, 1, 1], [], []>} : vector<16x32xf32>, vector<32x32xf32>, vector<16x32xf32> -> vector<16x32xf32>
    %c1_185 = arith.constant 1 : index
    %c0_186 = arith.constant 0 : index
    %c0_187 = arith.constant 0 : index
    %c0_188 = arith.constant 0 : index
    %282 = vector.load %arg8[%c1_185, %c0_186, %c0_187, %c0_188] : memref<5x3x32x32xf32, #tpu.memory_space<vmem>>, vector<1x1x32x32xf32>
    %283 = vector.shape_cast %282 : vector<1x1x32x32xf32> to vector<32x32xf32>
    %cst_189 = arith.constant dense<0.000000e+00> : vector<16x32xf32>
    %284 = tpu.matmul %281, %283, %cst_189 {dimension_numbers = #tpu.dot_dimension_numbers<[1], [0], [0], [1], [0, 0, 1, 1], [], []>} : vector<16x32xf32>, vector<32x32xf32>, vector<16x32xf32> -> vector<16x32xf32>
    %c1_190 = arith.constant 1 : index
    %c0_191 = arith.constant 0 : index
    %c0_192 = arith.constant 0 : index
    %285 = vector.load %arg11[%c1_190, %c0_191, %c0_192] : memref<3x16x32xf32, #tpu.memory_space<vmem>>, vector<1x16x32xf32>
    %286 = vector.shape_cast %285 : vector<1x16x32xf32> to vector<16x32xf32>
    %cst_193 = arith.constant dense<0.000000e+00> : vector<16x32xf32>
    %287 = tpu.matmul %286, %276, %cst_193 {dimension_numbers = #tpu.dot_dimension_numbers<[1], [0], [0], [1], [0, 0, 1, 1], [], []>} : vector<16x32xf32>, vector<32x32xf32>, vector<16x32xf32> -> vector<16x32xf32>
    %c1_194 = arith.constant 1 : index
    %c1_195 = arith.constant 1 : index
    %c0_196 = arith.constant 0 : index
    %c0_197 = arith.constant 0 : index
    %288 = vector.load %arg8[%c1_194, %c1_195, %c0_196, %c0_197] : memref<5x3x32x32xf32, #tpu.memory_space<vmem>>, vector<1x1x32x32xf32>
    %289 = vector.shape_cast %288 : vector<1x1x32x32xf32> to vector<32x32xf32>
    %cst_198 = arith.constant dense<0.000000e+00> : vector<16x32xf32>
    %290 = tpu.matmul %287, %289, %cst_198 {dimension_numbers = #tpu.dot_dimension_numbers<[1], [0], [0], [1], [0, 0, 1, 1], [], []>} : vector<16x32xf32>, vector<32x32xf32>, vector<16x32xf32> -> vector<16x32xf32>
    %291 = arith.addf %284, %290 : vector<16x32xf32>
    %c2_199 = arith.constant 2 : index
    %c0_200 = arith.constant 0 : index
    %c0_201 = arith.constant 0 : index
    %292 = vector.load %arg11[%c2_199, %c0_200, %c0_201] : memref<3x16x32xf32, #tpu.memory_space<vmem>>, vector<1x16x32xf32>
    %293 = vector.shape_cast %292 : vector<1x16x32xf32> to vector<16x32xf32>
    %cst_202 = arith.constant dense<0.000000e+00> : vector<16x32xf32>
    %294 = tpu.matmul %293, %276, %cst_202 {dimension_numbers = #tpu.dot_dimension_numbers<[1], [0], [0], [1], [0, 0, 1, 1], [], []>} : vector<16x32xf32>, vector<32x32xf32>, vector<16x32xf32> -> vector<16x32xf32>
    %c1_203 = arith.constant 1 : index
    %c2_204 = arith.constant 2 : index
    %c0_205 = arith.constant 0 : index
    %c0_206 = arith.constant 0 : index
    %295 = vector.load %arg8[%c1_203, %c2_204, %c0_205, %c0_206] : memref<5x3x32x32xf32, #tpu.memory_space<vmem>>, vector<1x1x32x32xf32>
    %296 = vector.shape_cast %295 : vector<1x1x32x32xf32> to vector<32x32xf32>
    %cst_207 = arith.constant dense<0.000000e+00> : vector<16x32xf32>
    %297 = tpu.matmul %294, %296, %cst_207 {dimension_numbers = #tpu.dot_dimension_numbers<[1], [0], [0], [1], [0, 0, 1, 1], [], []>} : vector<16x32xf32>, vector<32x32xf32>, vector<16x32xf32> -> vector<16x32xf32>
    %298 = arith.addf %291, %297 : vector<16x32xf32>
    %299 = vector.extract_strided_slice %278 {offsets = [0, 0], sizes = [1, 32], strides = [1, 1]} : vector<6x32xf32> to vector<1x32xf32>
    %300 = vector.broadcast %299 : vector<1x32xf32> to vector<16x32xf32>
    %301 = arith.addf %298, %300 : vector<16x32xf32>
    %cst_208 = arith.constant 0.000000e+00 : f32
    %302 = vector.broadcast %cst_208 : f32 to vector<16x32xf32>
    %303 = arith.maximumf %301, %302 : vector<16x32xf32>
    %304 = vector.extract_strided_slice %278 {offsets = [1, 0], sizes = [1, 32], strides = [1, 1]} : vector<6x32xf32> to vector<1x32xf32>
    %305 = vector.extract_strided_slice %278 {offsets = [2, 0], sizes = [1, 32], strides = [1, 1]} : vector<6x32xf32> to vector<1x32xf32>
    %cst_209 = arith.constant dense<0.000000e+00> : vector<16xf32>
    %306 = vector.multi_reduction <add>, %303, %cst_209 [1] : vector<16x32xf32> to vector<16xf32>
    %307 = vector.shape_cast %306 : vector<16xf32> to vector<16x1xf32>
    %cst_210 = arith.constant 3.200000e+01 : f32
    %308 = vector.broadcast %cst_210 : f32 to vector<16x1xf32>
    %309 = arith.divf %307, %308 : vector<16x1xf32>
    %310 = vector.broadcast %309 : vector<16x1xf32> to vector<16x32xf32>
    %311 = arith.subf %303, %310 : vector<16x32xf32>
    %312 = arith.mulf %311, %311 : vector<16x32xf32>
    %cst_211 = arith.constant dense<0.000000e+00> : vector<16xf32>
    %313 = vector.multi_reduction <add>, %312, %cst_211 [1] : vector<16x32xf32> to vector<16xf32>
    %314 = vector.shape_cast %313 : vector<16xf32> to vector<16x1xf32>
    %cst_212 = arith.constant 3.200000e+01 : f32
    %315 = vector.broadcast %cst_212 : f32 to vector<16x1xf32>
    %316 = arith.divf %314, %315 : vector<16x1xf32>
    %cst_213 = arith.constant 9.99999974E-6 : f32
    %317 = vector.broadcast %cst_213 : f32 to vector<16x1xf32>
    %318 = arith.addf %316, %317 : vector<16x1xf32>
    %319 = math.rsqrt %318 : vector<16x1xf32>
    %320 = vector.broadcast %319 : vector<16x1xf32> to vector<16x32xf32>
    %321 = arith.mulf %311, %320 : vector<16x32xf32>
    %322 = vector.broadcast %304 : vector<1x32xf32> to vector<16x32xf32>
    %323 = arith.mulf %321, %322 : vector<16x32xf32>
    %324 = vector.broadcast %305 : vector<1x32xf32> to vector<16x32xf32>
    %325 = arith.addf %323, %324 : vector<16x32xf32>
    %c1_214 = arith.constant 1 : index
    %c0_215 = arith.constant 0 : index
    %c0_216 = arith.constant 0 : index
    %c0_217 = arith.constant 0 : index
    %326 = vector.load %arg9[%c1_214, %c0_215, %c0_216, %c0_217] : memref<5x2x32x32xf32, #tpu.memory_space<vmem>>, vector<1x1x32x32xf32>
    %327 = vector.shape_cast %326 : vector<1x1x32x32xf32> to vector<32x32xf32>
    %cst_218 = arith.constant dense<0.000000e+00> : vector<32x32xf32>
    %328 = tpu.matmul %276, %327, %cst_218 {dimension_numbers = #tpu.dot_dimension_numbers<[1], [0], [0], [1], [0, 0, 1, 1], [], []>} : vector<32x32xf32>, vector<32x32xf32>, vector<32x32xf32> -> vector<32x32xf32>
    %c0_219 = arith.constant 0 : index
    %c0_220 = arith.constant 0 : index
    %329 = vector.load %arg12[%c0_219, %c0_220] : memref<32x16xf32, #tpu.memory_space<vmem>>, vector<32x16xf32>
    %c1_221 = arith.constant 1 : index
    %c1_222 = arith.constant 1 : index
    %c0_223 = arith.constant 0 : index
    %c0_224 = arith.constant 0 : index
    %330 = vector.load %arg9[%c1_221, %c1_222, %c0_223, %c0_224] : memref<5x2x32x32xf32, #tpu.memory_space<vmem>>, vector<1x1x32x32xf32>
    %331 = vector.shape_cast %330 : vector<1x1x32x32xf32> to vector<32x32xf32>
    %cst_225 = arith.constant dense<0.000000e+00> : vector<16x32xf32>
    %332 = tpu.matmul %325, %331, %cst_225 {dimension_numbers = #tpu.dot_dimension_numbers<[1], [0], [0], [1], [0, 0, 1, 1], [], []>} : vector<16x32xf32>, vector<32x32xf32>, vector<16x32xf32> -> vector<16x32xf32>
    %cst_226 = arith.constant dense<0.000000e+00> : vector<32x32xf32>
    %333 = tpu.matmul %329, %332, %cst_226 {dimension_numbers = #tpu.dot_dimension_numbers<[1], [0], [0], [1], [0, 0, 1, 1], [], []>} : vector<32x16xf32>, vector<16x32xf32>, vector<32x32xf32> -> vector<32x32xf32>
    %334 = arith.addf %328, %333 : vector<32x32xf32>
    %335 = vector.extract_strided_slice %278 {offsets = [3, 0], sizes = [1, 32], strides = [1, 1]} : vector<6x32xf32> to vector<1x32xf32>
    %336 = vector.broadcast %335 : vector<1x32xf32> to vector<32x32xf32>
    %337 = arith.addf %334, %336 : vector<32x32xf32>
    %cst_227 = arith.constant 0.000000e+00 : f32
    %338 = vector.broadcast %cst_227 : f32 to vector<32x32xf32>
    %339 = arith.maximumf %337, %338 : vector<32x32xf32>
    %340 = vector.extract_strided_slice %278 {offsets = [4, 0], sizes = [1, 32], strides = [1, 1]} : vector<6x32xf32> to vector<1x32xf32>
    %341 = vector.extract_strided_slice %278 {offsets = [5, 0], sizes = [1, 32], strides = [1, 1]} : vector<6x32xf32> to vector<1x32xf32>
    %cst_228 = arith.constant dense<0.000000e+00> : vector<32xf32>
    %342 = vector.multi_reduction <add>, %339, %cst_228 [1] : vector<32x32xf32> to vector<32xf32>
    %343 = vector.shape_cast %342 : vector<32xf32> to vector<32x1xf32>
    %cst_229 = arith.constant 3.200000e+01 : f32
    %344 = vector.broadcast %cst_229 : f32 to vector<32x1xf32>
    %345 = arith.divf %343, %344 : vector<32x1xf32>
    %346 = vector.broadcast %345 : vector<32x1xf32> to vector<32x32xf32>
    %347 = arith.subf %339, %346 : vector<32x32xf32>
    %348 = arith.mulf %347, %347 : vector<32x32xf32>
    %cst_230 = arith.constant dense<0.000000e+00> : vector<32xf32>
    %349 = vector.multi_reduction <add>, %348, %cst_230 [1] : vector<32x32xf32> to vector<32xf32>
    %350 = vector.shape_cast %349 : vector<32xf32> to vector<32x1xf32>
    %cst_231 = arith.constant 3.200000e+01 : f32
    %351 = vector.broadcast %cst_231 : f32 to vector<32x1xf32>
    %352 = arith.divf %350, %351 : vector<32x1xf32>
    %cst_232 = arith.constant 9.99999974E-6 : f32
    %353 = vector.broadcast %cst_232 : f32 to vector<32x1xf32>
    %354 = arith.addf %352, %353 : vector<32x1xf32>
    %355 = math.rsqrt %354 : vector<32x1xf32>
    %356 = vector.broadcast %355 : vector<32x1xf32> to vector<32x32xf32>
    %357 = arith.mulf %347, %356 : vector<32x32xf32>
    %358 = vector.broadcast %340 : vector<1x32xf32> to vector<32x32xf32>
    %359 = arith.mulf %357, %358 : vector<32x32xf32>
    %360 = vector.broadcast %341 : vector<1x32xf32> to vector<32x32xf32>
    %361 = arith.addf %359, %360 : vector<32x32xf32>
    %362 = arith.addf %275, %255 : vector<48x32xf32>
    %c4 = arith.constant 4 : index
    %c0_233 = arith.constant 0 : index
    %c0_234 = arith.constant 0 : index
    %363 = vector.load %arg10[%c4, %c0_233, %c0_234] : memref<5x6x32xf32, #tpu.memory_space<vmem>>, vector<1x6x32xf32>
    %364 = vector.shape_cast %363 : vector<1x6x32xf32> to vector<6x32xf32>
    %c0_235 = arith.constant 0 : index
    %c0_236 = arith.constant 0 : index
    %c0_237 = arith.constant 0 : index
    %365 = vector.load %arg13[%c0_235, %c0_236, %c0_237] : memref<3x24x48xf32, #tpu.memory_space<vmem>>, vector<1x24x48xf32>
    %366 = vector.shape_cast %365 : vector<1x24x48xf32> to vector<24x48xf32>
    %cst_238 = arith.constant dense<0.000000e+00> : vector<24x32xf32>
    %367 = tpu.matmul %366, %362, %cst_238 {dimension_numbers = #tpu.dot_dimension_numbers<[1], [0], [0], [1], [0, 0, 1, 1], [], []>} : vector<24x48xf32>, vector<48x32xf32>, vector<24x32xf32> -> vector<24x32xf32>
    %c4_239 = arith.constant 4 : index
    %c0_240 = arith.constant 0 : index
    %c0_241 = arith.constant 0 : index
    %c0_242 = arith.constant 0 : index
    %368 = vector.load %arg8[%c4_239, %c0_240, %c0_241, %c0_242] : memref<5x3x32x32xf32, #tpu.memory_space<vmem>>, vector<1x1x32x32xf32>
    %369 = vector.shape_cast %368 : vector<1x1x32x32xf32> to vector<32x32xf32>
    %cst_243 = arith.constant dense<0.000000e+00> : vector<24x32xf32>
    %370 = tpu.matmul %367, %369, %cst_243 {dimension_numbers = #tpu.dot_dimension_numbers<[1], [0], [0], [1], [0, 0, 1, 1], [], []>} : vector<24x32xf32>, vector<32x32xf32>, vector<24x32xf32> -> vector<24x32xf32>
    %c1_244 = arith.constant 1 : index
    %c0_245 = arith.constant 0 : index
    %c0_246 = arith.constant 0 : index
    %371 = vector.load %arg13[%c1_244, %c0_245, %c0_246] : memref<3x24x48xf32, #tpu.memory_space<vmem>>, vector<1x24x48xf32>
    %372 = vector.shape_cast %371 : vector<1x24x48xf32> to vector<24x48xf32>
    %cst_247 = arith.constant dense<0.000000e+00> : vector<24x32xf32>
    %373 = tpu.matmul %372, %362, %cst_247 {dimension_numbers = #tpu.dot_dimension_numbers<[1], [0], [0], [1], [0, 0, 1, 1], [], []>} : vector<24x48xf32>, vector<48x32xf32>, vector<24x32xf32> -> vector<24x32xf32>
    %c4_248 = arith.constant 4 : index
    %c1_249 = arith.constant 1 : index
    %c0_250 = arith.constant 0 : index
    %c0_251 = arith.constant 0 : index
    %374 = vector.load %arg8[%c4_248, %c1_249, %c0_250, %c0_251] : memref<5x3x32x32xf32, #tpu.memory_space<vmem>>, vector<1x1x32x32xf32>
    %375 = vector.shape_cast %374 : vector<1x1x32x32xf32> to vector<32x32xf32>
    %cst_252 = arith.constant dense<0.000000e+00> : vector<24x32xf32>
    %376 = tpu.matmul %373, %375, %cst_252 {dimension_numbers = #tpu.dot_dimension_numbers<[1], [0], [0], [1], [0, 0, 1, 1], [], []>} : vector<24x32xf32>, vector<32x32xf32>, vector<24x32xf32> -> vector<24x32xf32>
    %377 = arith.addf %370, %376 : vector<24x32xf32>
    %c2_253 = arith.constant 2 : index
    %c0_254 = arith.constant 0 : index
    %c0_255 = arith.constant 0 : index
    %378 = vector.load %arg13[%c2_253, %c0_254, %c0_255] : memref<3x24x48xf32, #tpu.memory_space<vmem>>, vector<1x24x48xf32>
    %379 = vector.shape_cast %378 : vector<1x24x48xf32> to vector<24x48xf32>
    %cst_256 = arith.constant dense<0.000000e+00> : vector<24x32xf32>
    %380 = tpu.matmul %379, %362, %cst_256 {dimension_numbers = #tpu.dot_dimension_numbers<[1], [0], [0], [1], [0, 0, 1, 1], [], []>} : vector<24x48xf32>, vector<48x32xf32>, vector<24x32xf32> -> vector<24x32xf32>
    %c4_257 = arith.constant 4 : index
    %c2_258 = arith.constant 2 : index
    %c0_259 = arith.constant 0 : index
    %c0_260 = arith.constant 0 : index
    %381 = vector.load %arg8[%c4_257, %c2_258, %c0_259, %c0_260] : memref<5x3x32x32xf32, #tpu.memory_space<vmem>>, vector<1x1x32x32xf32>
    %382 = vector.shape_cast %381 : vector<1x1x32x32xf32> to vector<32x32xf32>
    %cst_261 = arith.constant dense<0.000000e+00> : vector<24x32xf32>
    %383 = tpu.matmul %380, %382, %cst_261 {dimension_numbers = #tpu.dot_dimension_numbers<[1], [0], [0], [1], [0, 0, 1, 1], [], []>} : vector<24x32xf32>, vector<32x32xf32>, vector<24x32xf32> -> vector<24x32xf32>
    %384 = arith.addf %377, %383 : vector<24x32xf32>
    %385 = vector.extract_strided_slice %364 {offsets = [0, 0], sizes = [1, 32], strides = [1, 1]} : vector<6x32xf32> to vector<1x32xf32>
    %386 = vector.broadcast %385 : vector<1x32xf32> to vector<24x32xf32>
    %387 = arith.addf %384, %386 : vector<24x32xf32>
    %cst_262 = arith.constant 0.000000e+00 : f32
    %388 = vector.broadcast %cst_262 : f32 to vector<24x32xf32>
    %389 = arith.maximumf %387, %388 : vector<24x32xf32>
    %390 = vector.extract_strided_slice %364 {offsets = [1, 0], sizes = [1, 32], strides = [1, 1]} : vector<6x32xf32> to vector<1x32xf32>
    %391 = vector.extract_strided_slice %364 {offsets = [2, 0], sizes = [1, 32], strides = [1, 1]} : vector<6x32xf32> to vector<1x32xf32>
    %cst_263 = arith.constant dense<0.000000e+00> : vector<24xf32>
    %392 = vector.multi_reduction <add>, %389, %cst_263 [1] : vector<24x32xf32> to vector<24xf32>
    %393 = vector.shape_cast %392 : vector<24xf32> to vector<24x1xf32>
    %cst_264 = arith.constant 3.200000e+01 : f32
    %394 = vector.broadcast %cst_264 : f32 to vector<24x1xf32>
    %395 = arith.divf %393, %394 : vector<24x1xf32>
    %396 = vector.broadcast %395 : vector<24x1xf32> to vector<24x32xf32>
    %397 = arith.subf %389, %396 : vector<24x32xf32>
    %398 = arith.mulf %397, %397 : vector<24x32xf32>
    %cst_265 = arith.constant dense<0.000000e+00> : vector<24xf32>
    %399 = vector.multi_reduction <add>, %398, %cst_265 [1] : vector<24x32xf32> to vector<24xf32>
    %400 = vector.shape_cast %399 : vector<24xf32> to vector<24x1xf32>
    %cst_266 = arith.constant 3.200000e+01 : f32
    %401 = vector.broadcast %cst_266 : f32 to vector<24x1xf32>
    %402 = arith.divf %400, %401 : vector<24x1xf32>
    %cst_267 = arith.constant 9.99999974E-6 : f32
    %403 = vector.broadcast %cst_267 : f32 to vector<24x1xf32>
    %404 = arith.addf %402, %403 : vector<24x1xf32>
    %405 = math.rsqrt %404 : vector<24x1xf32>
    %406 = vector.broadcast %405 : vector<24x1xf32> to vector<24x32xf32>
    %407 = arith.mulf %397, %406 : vector<24x32xf32>
    %408 = vector.broadcast %390 : vector<1x32xf32> to vector<24x32xf32>
    %409 = arith.mulf %407, %408 : vector<24x32xf32>
    %410 = vector.broadcast %391 : vector<1x32xf32> to vector<24x32xf32>
    %411 = arith.addf %409, %410 : vector<24x32xf32>
    %c4_268 = arith.constant 4 : index
    %c0_269 = arith.constant 0 : index
    %c0_270 = arith.constant 0 : index
    %c0_271 = arith.constant 0 : index
    %412 = vector.load %arg9[%c4_268, %c0_269, %c0_270, %c0_271] : memref<5x2x32x32xf32, #tpu.memory_space<vmem>>, vector<1x1x32x32xf32>
    %413 = vector.shape_cast %412 : vector<1x1x32x32xf32> to vector<32x32xf32>
    %cst_272 = arith.constant dense<0.000000e+00> : vector<48x32xf32>
    %414 = tpu.matmul %362, %413, %cst_272 {dimension_numbers = #tpu.dot_dimension_numbers<[1], [0], [0], [1], [0, 0, 1, 1], [], []>} : vector<48x32xf32>, vector<32x32xf32>, vector<48x32xf32> -> vector<48x32xf32>
    %c0_273 = arith.constant 0 : index
    %c0_274 = arith.constant 0 : index
    %415 = vector.load %arg14[%c0_273, %c0_274] : memref<48x24xf32, #tpu.memory_space<vmem>>, vector<48x24xf32>
    %c4_275 = arith.constant 4 : index
    %c1_276 = arith.constant 1 : index
    %c0_277 = arith.constant 0 : index
    %c0_278 = arith.constant 0 : index
    %416 = vector.load %arg9[%c4_275, %c1_276, %c0_277, %c0_278] : memref<5x2x32x32xf32, #tpu.memory_space<vmem>>, vector<1x1x32x32xf32>
    %417 = vector.shape_cast %416 : vector<1x1x32x32xf32> to vector<32x32xf32>
    %cst_279 = arith.constant dense<0.000000e+00> : vector<24x32xf32>
    %418 = tpu.matmul %411, %417, %cst_279 {dimension_numbers = #tpu.dot_dimension_numbers<[1], [0], [0], [1], [0, 0, 1, 1], [], []>} : vector<24x32xf32>, vector<32x32xf32>, vector<24x32xf32> -> vector<24x32xf32>
    %cst_280 = arith.constant dense<0.000000e+00> : vector<48x32xf32>
    %419 = tpu.matmul %415, %418, %cst_280 {dimension_numbers = #tpu.dot_dimension_numbers<[1], [0], [0], [1], [0, 0, 1, 1], [], []>} : vector<48x24xf32>, vector<24x32xf32>, vector<48x32xf32> -> vector<48x32xf32>
    %420 = arith.addf %414, %419 : vector<48x32xf32>
    %421 = vector.extract_strided_slice %364 {offsets = [3, 0], sizes = [1, 32], strides = [1, 1]} : vector<6x32xf32> to vector<1x32xf32>
    %422 = vector.broadcast %421 : vector<1x32xf32> to vector<48x32xf32>
    %423 = arith.addf %420, %422 : vector<48x32xf32>
    %cst_281 = arith.constant 0.000000e+00 : f32
    %424 = vector.broadcast %cst_281 : f32 to vector<48x32xf32>
    %425 = arith.maximumf %423, %424 : vector<48x32xf32>
    %426 = vector.extract_strided_slice %364 {offsets = [4, 0], sizes = [1, 32], strides = [1, 1]} : vector<6x32xf32> to vector<1x32xf32>
    %427 = vector.extract_strided_slice %364 {offsets = [5, 0], sizes = [1, 32], strides = [1, 1]} : vector<6x32xf32> to vector<1x32xf32>
    %cst_282 = arith.constant dense<0.000000e+00> : vector<48xf32>
    %428 = vector.multi_reduction <add>, %425, %cst_282 [1] : vector<48x32xf32> to vector<48xf32>
    %429 = vector.shape_cast %428 : vector<48xf32> to vector<48x1xf32>
    %cst_283 = arith.constant 3.200000e+01 : f32
    %430 = vector.broadcast %cst_283 : f32 to vector<48x1xf32>
    %431 = arith.divf %429, %430 : vector<48x1xf32>
    %432 = vector.broadcast %431 : vector<48x1xf32> to vector<48x32xf32>
    %433 = arith.subf %425, %432 : vector<48x32xf32>
    %434 = arith.mulf %433, %433 : vector<48x32xf32>
    %cst_284 = arith.constant dense<0.000000e+00> : vector<48xf32>
    %435 = vector.multi_reduction <add>, %434, %cst_284 [1] : vector<48x32xf32> to vector<48xf32>
    %436 = vector.shape_cast %435 : vector<48xf32> to vector<48x1xf32>
    %cst_285 = arith.constant 3.200000e+01 : f32
    %437 = vector.broadcast %cst_285 : f32 to vector<48x1xf32>
    %438 = arith.divf %436, %437 : vector<48x1xf32>
    %cst_286 = arith.constant 9.99999974E-6 : f32
    %439 = vector.broadcast %cst_286 : f32 to vector<48x1xf32>
    %440 = arith.addf %438, %439 : vector<48x1xf32>
    %441 = math.rsqrt %440 : vector<48x1xf32>
    %442 = vector.broadcast %441 : vector<48x1xf32> to vector<48x32xf32>
    %443 = arith.mulf %433, %442 : vector<48x32xf32>
    %444 = vector.broadcast %426 : vector<1x32xf32> to vector<48x32xf32>
    %445 = arith.mulf %443, %444 : vector<48x32xf32>
    %446 = vector.broadcast %427 : vector<1x32xf32> to vector<48x32xf32>
    %447 = arith.addf %445, %446 : vector<48x32xf32>
    %c0_287 = arith.constant 0 : index
    %c0_288 = arith.constant 0 : index
    %448 = vector.load %arg15[%c0_287, %c0_288] : memref<32x48xf32, #tpu.memory_space<vmem>>, vector<32x48xf32>
    %cst_289 = arith.constant dense<0.000000e+00> : vector<32x32xf32>
    %449 = tpu.matmul %448, %447, %cst_289 {dimension_numbers = #tpu.dot_dimension_numbers<[1], [0], [0], [1], [0, 0, 1, 1], [], []>} : vector<32x48xf32>, vector<48x32xf32>, vector<32x32xf32> -> vector<32x32xf32>
    %c1_290 = arith.constant 1 : index
    %c0_291 = arith.constant 0 : index
    %c0_292 = arith.constant 0 : index
    %450 = vector.load %arg18[%c1_290, %c0_291, %c0_292] : memref<2x2x32xf32, #tpu.memory_space<vmem>>, vector<1x2x32xf32>
    %451 = vector.shape_cast %450 : vector<1x2x32xf32> to vector<2x32xf32>
    %452 = arith.addf %361, %449 : vector<32x32xf32>
    %c1_293 = arith.constant 1 : index
    %c0_294 = arith.constant 0 : index
    %c0_295 = arith.constant 0 : index
    %c0_296 = arith.constant 0 : index
    %453 = vector.load %arg17[%c1_293, %c0_294, %c0_295, %c0_296] : memref<2x2x32x32xf32, #tpu.memory_space<vmem>>, vector<1x1x32x32xf32>
    %454 = vector.shape_cast %453 : vector<1x1x32x32xf32> to vector<32x32xf32>
    %cst_297 = arith.constant dense<0.000000e+00> : vector<32x32xf32>
    %455 = tpu.matmul %452, %454, %cst_297 {dimension_numbers = #tpu.dot_dimension_numbers<[1], [0], [0], [1], [0, 0, 1, 1], [], []>} : vector<32x32xf32>, vector<32x32xf32>, vector<32x32xf32> -> vector<32x32xf32>
    %456 = vector.extract_strided_slice %451 {offsets = [0, 0], sizes = [1, 32], strides = [1, 1]} : vector<2x32xf32> to vector<1x32xf32>
    %457 = vector.broadcast %456 : vector<1x32xf32> to vector<32x32xf32>
    %458 = arith.addf %455, %457 : vector<32x32xf32>
    %c2_298 = arith.constant 2 : index
    %c0_299 = arith.constant 0 : index
    %c0_300 = arith.constant 0 : index
    %459 = vector.load %arg10[%c2_298, %c0_299, %c0_300] : memref<5x6x32xf32, #tpu.memory_space<vmem>>, vector<1x6x32xf32>
    %460 = vector.shape_cast %459 : vector<1x6x32xf32> to vector<6x32xf32>
    %c0_301 = arith.constant 0 : index
    %c0_302 = arith.constant 0 : index
    %c0_303 = arith.constant 0 : index
    %461 = vector.load %arg11[%c0_301, %c0_302, %c0_303] : memref<3x16x32xf32, #tpu.memory_space<vmem>>, vector<1x16x32xf32>
    %462 = vector.shape_cast %461 : vector<1x16x32xf32> to vector<16x32xf32>
    %cst_304 = arith.constant dense<0.000000e+00> : vector<16x32xf32>
    %463 = tpu.matmul %462, %458, %cst_304 {dimension_numbers = #tpu.dot_dimension_numbers<[1], [0], [0], [1], [0, 0, 1, 1], [], []>} : vector<16x32xf32>, vector<32x32xf32>, vector<16x32xf32> -> vector<16x32xf32>
    %c2_305 = arith.constant 2 : index
    %c0_306 = arith.constant 0 : index
    %c0_307 = arith.constant 0 : index
    %c0_308 = arith.constant 0 : index
    %464 = vector.load %arg8[%c2_305, %c0_306, %c0_307, %c0_308] : memref<5x3x32x32xf32, #tpu.memory_space<vmem>>, vector<1x1x32x32xf32>
    %465 = vector.shape_cast %464 : vector<1x1x32x32xf32> to vector<32x32xf32>
    %cst_309 = arith.constant dense<0.000000e+00> : vector<16x32xf32>
    %466 = tpu.matmul %463, %465, %cst_309 {dimension_numbers = #tpu.dot_dimension_numbers<[1], [0], [0], [1], [0, 0, 1, 1], [], []>} : vector<16x32xf32>, vector<32x32xf32>, vector<16x32xf32> -> vector<16x32xf32>
    %c1_310 = arith.constant 1 : index
    %c0_311 = arith.constant 0 : index
    %c0_312 = arith.constant 0 : index
    %467 = vector.load %arg11[%c1_310, %c0_311, %c0_312] : memref<3x16x32xf32, #tpu.memory_space<vmem>>, vector<1x16x32xf32>
    %468 = vector.shape_cast %467 : vector<1x16x32xf32> to vector<16x32xf32>
    %cst_313 = arith.constant dense<0.000000e+00> : vector<16x32xf32>
    %469 = tpu.matmul %468, %458, %cst_313 {dimension_numbers = #tpu.dot_dimension_numbers<[1], [0], [0], [1], [0, 0, 1, 1], [], []>} : vector<16x32xf32>, vector<32x32xf32>, vector<16x32xf32> -> vector<16x32xf32>
    %c2_314 = arith.constant 2 : index
    %c1_315 = arith.constant 1 : index
    %c0_316 = arith.constant 0 : index
    %c0_317 = arith.constant 0 : index
    %470 = vector.load %arg8[%c2_314, %c1_315, %c0_316, %c0_317] : memref<5x3x32x32xf32, #tpu.memory_space<vmem>>, vector<1x1x32x32xf32>
    %471 = vector.shape_cast %470 : vector<1x1x32x32xf32> to vector<32x32xf32>
    %cst_318 = arith.constant dense<0.000000e+00> : vector<16x32xf32>
    %472 = tpu.matmul %469, %471, %cst_318 {dimension_numbers = #tpu.dot_dimension_numbers<[1], [0], [0], [1], [0, 0, 1, 1], [], []>} : vector<16x32xf32>, vector<32x32xf32>, vector<16x32xf32> -> vector<16x32xf32>
    %473 = arith.addf %466, %472 : vector<16x32xf32>
    %c2_319 = arith.constant 2 : index
    %c0_320 = arith.constant 0 : index
    %c0_321 = arith.constant 0 : index
    %474 = vector.load %arg11[%c2_319, %c0_320, %c0_321] : memref<3x16x32xf32, #tpu.memory_space<vmem>>, vector<1x16x32xf32>
    %475 = vector.shape_cast %474 : vector<1x16x32xf32> to vector<16x32xf32>
    %cst_322 = arith.constant dense<0.000000e+00> : vector<16x32xf32>
    %476 = tpu.matmul %475, %458, %cst_322 {dimension_numbers = #tpu.dot_dimension_numbers<[1], [0], [0], [1], [0, 0, 1, 1], [], []>} : vector<16x32xf32>, vector<32x32xf32>, vector<16x32xf32> -> vector<16x32xf32>
    %c2_323 = arith.constant 2 : index
    %c2_324 = arith.constant 2 : index
    %c0_325 = arith.constant 0 : index
    %c0_326 = arith.constant 0 : index
    %477 = vector.load %arg8[%c2_323, %c2_324, %c0_325, %c0_326] : memref<5x3x32x32xf32, #tpu.memory_space<vmem>>, vector<1x1x32x32xf32>
    %478 = vector.shape_cast %477 : vector<1x1x32x32xf32> to vector<32x32xf32>
    %cst_327 = arith.constant dense<0.000000e+00> : vector<16x32xf32>
    %479 = tpu.matmul %476, %478, %cst_327 {dimension_numbers = #tpu.dot_dimension_numbers<[1], [0], [0], [1], [0, 0, 1, 1], [], []>} : vector<16x32xf32>, vector<32x32xf32>, vector<16x32xf32> -> vector<16x32xf32>
    %480 = arith.addf %473, %479 : vector<16x32xf32>
    %481 = vector.extract_strided_slice %460 {offsets = [0, 0], sizes = [1, 32], strides = [1, 1]} : vector<6x32xf32> to vector<1x32xf32>
    %482 = vector.broadcast %481 : vector<1x32xf32> to vector<16x32xf32>
    %483 = arith.addf %480, %482 : vector<16x32xf32>
    %cst_328 = arith.constant 0.000000e+00 : f32
    %484 = vector.broadcast %cst_328 : f32 to vector<16x32xf32>
    %485 = arith.maximumf %483, %484 : vector<16x32xf32>
    %486 = vector.extract_strided_slice %460 {offsets = [1, 0], sizes = [1, 32], strides = [1, 1]} : vector<6x32xf32> to vector<1x32xf32>
    %487 = vector.extract_strided_slice %460 {offsets = [2, 0], sizes = [1, 32], strides = [1, 1]} : vector<6x32xf32> to vector<1x32xf32>
    %cst_329 = arith.constant dense<0.000000e+00> : vector<16xf32>
    %488 = vector.multi_reduction <add>, %485, %cst_329 [1] : vector<16x32xf32> to vector<16xf32>
    %489 = vector.shape_cast %488 : vector<16xf32> to vector<16x1xf32>
    %cst_330 = arith.constant 3.200000e+01 : f32
    %490 = vector.broadcast %cst_330 : f32 to vector<16x1xf32>
    %491 = arith.divf %489, %490 : vector<16x1xf32>
    %492 = vector.broadcast %491 : vector<16x1xf32> to vector<16x32xf32>
    %493 = arith.subf %485, %492 : vector<16x32xf32>
    %494 = arith.mulf %493, %493 : vector<16x32xf32>
    %cst_331 = arith.constant dense<0.000000e+00> : vector<16xf32>
    %495 = vector.multi_reduction <add>, %494, %cst_331 [1] : vector<16x32xf32> to vector<16xf32>
    %496 = vector.shape_cast %495 : vector<16xf32> to vector<16x1xf32>
    %cst_332 = arith.constant 3.200000e+01 : f32
    %497 = vector.broadcast %cst_332 : f32 to vector<16x1xf32>
    %498 = arith.divf %496, %497 : vector<16x1xf32>
    %cst_333 = arith.constant 9.99999974E-6 : f32
    %499 = vector.broadcast %cst_333 : f32 to vector<16x1xf32>
    %500 = arith.addf %498, %499 : vector<16x1xf32>
    %501 = math.rsqrt %500 : vector<16x1xf32>
    %502 = vector.broadcast %501 : vector<16x1xf32> to vector<16x32xf32>
    %503 = arith.mulf %493, %502 : vector<16x32xf32>
    %504 = vector.broadcast %486 : vector<1x32xf32> to vector<16x32xf32>
    %505 = arith.mulf %503, %504 : vector<16x32xf32>
    %506 = vector.broadcast %487 : vector<1x32xf32> to vector<16x32xf32>
    %507 = arith.addf %505, %506 : vector<16x32xf32>
    %c2_334 = arith.constant 2 : index
    %c0_335 = arith.constant 0 : index
    %c0_336 = arith.constant 0 : index
    %c0_337 = arith.constant 0 : index
    %508 = vector.load %arg9[%c2_334, %c0_335, %c0_336, %c0_337] : memref<5x2x32x32xf32, #tpu.memory_space<vmem>>, vector<1x1x32x32xf32>
    %509 = vector.shape_cast %508 : vector<1x1x32x32xf32> to vector<32x32xf32>
    %cst_338 = arith.constant dense<0.000000e+00> : vector<32x32xf32>
    %510 = tpu.matmul %458, %509, %cst_338 {dimension_numbers = #tpu.dot_dimension_numbers<[1], [0], [0], [1], [0, 0, 1, 1], [], []>} : vector<32x32xf32>, vector<32x32xf32>, vector<32x32xf32> -> vector<32x32xf32>
    %c0_339 = arith.constant 0 : index
    %c0_340 = arith.constant 0 : index
    %511 = vector.load %arg12[%c0_339, %c0_340] : memref<32x16xf32, #tpu.memory_space<vmem>>, vector<32x16xf32>
    %c2_341 = arith.constant 2 : index
    %c1_342 = arith.constant 1 : index
    %c0_343 = arith.constant 0 : index
    %c0_344 = arith.constant 0 : index
    %512 = vector.load %arg9[%c2_341, %c1_342, %c0_343, %c0_344] : memref<5x2x32x32xf32, #tpu.memory_space<vmem>>, vector<1x1x32x32xf32>
    %513 = vector.shape_cast %512 : vector<1x1x32x32xf32> to vector<32x32xf32>
    %cst_345 = arith.constant dense<0.000000e+00> : vector<16x32xf32>
    %514 = tpu.matmul %507, %513, %cst_345 {dimension_numbers = #tpu.dot_dimension_numbers<[1], [0], [0], [1], [0, 0, 1, 1], [], []>} : vector<16x32xf32>, vector<32x32xf32>, vector<16x32xf32> -> vector<16x32xf32>
    %cst_346 = arith.constant dense<0.000000e+00> : vector<32x32xf32>
    %515 = tpu.matmul %511, %514, %cst_346 {dimension_numbers = #tpu.dot_dimension_numbers<[1], [0], [0], [1], [0, 0, 1, 1], [], []>} : vector<32x16xf32>, vector<16x32xf32>, vector<32x32xf32> -> vector<32x32xf32>
    %516 = arith.addf %510, %515 : vector<32x32xf32>
    %517 = vector.extract_strided_slice %460 {offsets = [3, 0], sizes = [1, 32], strides = [1, 1]} : vector<6x32xf32> to vector<1x32xf32>
    %518 = vector.broadcast %517 : vector<1x32xf32> to vector<32x32xf32>
    %519 = arith.addf %516, %518 : vector<32x32xf32>
    %cst_347 = arith.constant 0.000000e+00 : f32
    %520 = vector.broadcast %cst_347 : f32 to vector<32x32xf32>
    %521 = arith.maximumf %519, %520 : vector<32x32xf32>
    %522 = vector.extract_strided_slice %460 {offsets = [4, 0], sizes = [1, 32], strides = [1, 1]} : vector<6x32xf32> to vector<1x32xf32>
    %523 = vector.extract_strided_slice %460 {offsets = [5, 0], sizes = [1, 32], strides = [1, 1]} : vector<6x32xf32> to vector<1x32xf32>
    %cst_348 = arith.constant dense<0.000000e+00> : vector<32xf32>
    %524 = vector.multi_reduction <add>, %521, %cst_348 [1] : vector<32x32xf32> to vector<32xf32>
    %525 = vector.shape_cast %524 : vector<32xf32> to vector<32x1xf32>
    %cst_349 = arith.constant 3.200000e+01 : f32
    %526 = vector.broadcast %cst_349 : f32 to vector<32x1xf32>
    %527 = arith.divf %525, %526 : vector<32x1xf32>
    %528 = vector.broadcast %527 : vector<32x1xf32> to vector<32x32xf32>
    %529 = arith.subf %521, %528 : vector<32x32xf32>
    %530 = arith.mulf %529, %529 : vector<32x32xf32>
    %cst_350 = arith.constant dense<0.000000e+00> : vector<32xf32>
    %531 = vector.multi_reduction <add>, %530, %cst_350 [1] : vector<32x32xf32> to vector<32xf32>
    %532 = vector.shape_cast %531 : vector<32xf32> to vector<32x1xf32>
    %cst_351 = arith.constant 3.200000e+01 : f32
    %533 = vector.broadcast %cst_351 : f32 to vector<32x1xf32>
    %534 = arith.divf %532, %533 : vector<32x1xf32>
    %cst_352 = arith.constant 9.99999974E-6 : f32
    %535 = vector.broadcast %cst_352 : f32 to vector<32x1xf32>
    %536 = arith.addf %534, %535 : vector<32x1xf32>
    %537 = math.rsqrt %536 : vector<32x1xf32>
    %538 = vector.broadcast %537 : vector<32x1xf32> to vector<32x32xf32>
    %539 = arith.mulf %529, %538 : vector<32x32xf32>
    %540 = vector.broadcast %522 : vector<1x32xf32> to vector<32x32xf32>
    %541 = arith.mulf %539, %540 : vector<32x32xf32>
    %542 = vector.broadcast %523 : vector<1x32xf32> to vector<32x32xf32>
    %543 = arith.addf %541, %542 : vector<32x32xf32>
    %c0_353 = arith.constant 0 : index
    %c0_354 = arith.constant 0 : index
    %544 = vector.load %arg19[%c0_353, %c0_354] : memref<32x32xf32, #tpu.memory_space<vmem>>, vector<32x32xf32>
    %cst_355 = arith.constant dense<0.000000e+00> : vector<32x32xf32>
    %545 = tpu.matmul %543, %544, %cst_355 {dimension_numbers = #tpu.dot_dimension_numbers<[1], [0], [0], [1], [0, 0, 1, 1], [], []>} : vector<32x32xf32>, vector<32x32xf32>, vector<32x32xf32> -> vector<32x32xf32>
    %c0_356 = arith.constant 0 : index
    %c0_357 = arith.constant 0 : index
    %546 = vector.load %arg20[%c0_356, %c0_357] : memref<1x32xf32, #tpu.memory_space<vmem>>, vector<1x32xf32>
    %547 = vector.broadcast %546 : vector<1x32xf32> to vector<32x32xf32>
    %548 = arith.addf %545, %547 : vector<32x32xf32>
    %cst_358 = arith.constant 0.000000e+00 : f32
    %549 = vector.broadcast %cst_358 : f32 to vector<32x32xf32>
    %550 = arith.maximumf %548, %549 : vector<32x32xf32>
    %551 = arith.mulf %36, %550 : vector<32x32xf32>
    %c0_359 = arith.constant 0 : index
    %c0_360 = arith.constant 0 : index
    %c0_361 = arith.constant 0 : index
    %552 = vector.load %arg21[%c0_359, %c0_360, %c0_361] : memref<2x32x8xf32, #tpu.memory_space<vmem>>, vector<1x32x8xf32>
    %553 = vector.shape_cast %552 : vector<1x32x8xf32> to vector<32x8xf32>
    %cst_362 = arith.constant dense<0.000000e+00> : vector<32x8xf32>
    %554 = tpu.matmul %551, %553, %cst_362 {dimension_numbers = #tpu.dot_dimension_numbers<[1], [0], [0], [1], [0, 0, 1, 1], [], []>} : vector<32x32xf32>, vector<32x8xf32>, vector<32x8xf32> -> vector<32x8xf32>
    %c1_363 = arith.constant 1 : index
    %c0_364 = arith.constant 0 : index
    %c0_365 = arith.constant 0 : index
    %555 = vector.load %arg21[%c1_363, %c0_364, %c0_365] : memref<2x32x8xf32, #tpu.memory_space<vmem>>, vector<1x32x8xf32>
    %556 = vector.shape_cast %555 : vector<1x32x8xf32> to vector<32x8xf32>
    %cst_366 = arith.constant dense<0.000000e+00> : vector<32x8xf32>
    %557 = tpu.matmul %551, %556, %cst_366 {dimension_numbers = #tpu.dot_dimension_numbers<[1], [0], [0], [1], [0, 0, 1, 1], [], []>} : vector<32x32xf32>, vector<32x8xf32>, vector<32x8xf32> -> vector<32x8xf32>
    %558 = vector.extract_strided_slice %554 {offsets = [0, 0], sizes = [16, 8], strides = [1, 1]} : vector<32x8xf32> to vector<16x8xf32>
    %559 = vector.extract_strided_slice %557 {offsets = [0, 0], sizes = [16, 8], strides = [1, 1]} : vector<32x8xf32> to vector<16x8xf32>
    %560 = vector.extract_strided_slice %558 {offsets = [0, 0], sizes = [1, 8], strides = [1, 1]} : vector<16x8xf32> to vector<1x8xf32>
    %c0_367 = arith.constant 0 : index
    %c0_368 = arith.constant 0 : index
    %561 = vector.load %arg22[%c0_367, %c0_368] : memref<34x8xf32, #tpu.memory_space<vmem>>, vector<1x8xf32>
    tpu.vector_store %arg22[%c0_367, %c0_368], %560 {strides = array<i32>} : memref<34x8xf32, #tpu.memory_space<vmem>>, vector<1x8xf32>,
    %562 = vector.extract_strided_slice %558 {offsets = [1, 0], sizes = [15, 8], strides = [1, 1]} : vector<16x8xf32> to vector<15x8xf32>
    %563 = vector.extract_strided_slice %559 {offsets = [0, 0], sizes = [15, 8], strides = [1, 1]} : vector<16x8xf32> to vector<15x8xf32>
    %564 = arith.addf %562, %563 : vector<15x8xf32>
    %c1_369 = arith.constant 1 : index
    %c0_370 = arith.constant 0 : index
    %565 = vector.load %arg22[%c1_369, %c0_370] : memref<34x8xf32, #tpu.memory_space<vmem>>, vector<15x8xf32>
    tpu.vector_store %arg22[%c1_369, %c0_370], %564 {strides = array<i32>} : memref<34x8xf32, #tpu.memory_space<vmem>>, vector<15x8xf32>,
    %566 = vector.extract_strided_slice %559 {offsets = [15, 0], sizes = [1, 8], strides = [1, 1]} : vector<16x8xf32> to vector<1x8xf32>
    %c16 = arith.constant 16 : index
    %c0_371 = arith.constant 0 : index
    %567 = vector.load %arg22[%c16, %c0_371] : memref<34x8xf32, #tpu.memory_space<vmem>>, vector<1x8xf32>
    tpu.vector_store %arg22[%c16, %c0_371], %566 {strides = array<i32>} : memref<34x8xf32, #tpu.memory_space<vmem>>, vector<1x8xf32>,
    %568 = vector.extract_strided_slice %554 {offsets = [16, 0], sizes = [16, 8], strides = [1, 1]} : vector<32x8xf32> to vector<16x8xf32>
    %569 = vector.extract_strided_slice %557 {offsets = [16, 0], sizes = [16, 8], strides = [1, 1]} : vector<32x8xf32> to vector<16x8xf32>
    %570 = vector.extract_strided_slice %568 {offsets = [0, 0], sizes = [1, 8], strides = [1, 1]} : vector<16x8xf32> to vector<1x8xf32>
    %c17 = arith.constant 17 : index
    %c0_372 = arith.constant 0 : index
    %571 = vector.load %arg22[%c17, %c0_372] : memref<34x8xf32, #tpu.memory_space<vmem>>, vector<1x8xf32>
    tpu.vector_store %arg22[%c17, %c0_372], %570 {strides = array<i32>} : memref<34x8xf32, #tpu.memory_space<vmem>>, vector<1x8xf32>,
    %572 = vector.extract_strided_slice %568 {offsets = [1, 0], sizes = [15, 8], strides = [1, 1]} : vector<16x8xf32> to vector<15x8xf32>
    %573 = vector.extract_strided_slice %569 {offsets = [0, 0], sizes = [15, 8], strides = [1, 1]} : vector<16x8xf32> to vector<15x8xf32>
    %574 = arith.addf %572, %573 : vector<15x8xf32>
    %c18 = arith.constant 18 : index
    %c0_373 = arith.constant 0 : index
    %575 = vector.load %arg22[%c18, %c0_373] : memref<34x8xf32, #tpu.memory_space<vmem>>, vector<15x8xf32>
    tpu.vector_store %arg22[%c18, %c0_373], %574 {strides = array<i32>} : memref<34x8xf32, #tpu.memory_space<vmem>>, vector<15x8xf32>,
    %576 = vector.extract_strided_slice %569 {offsets = [15, 0], sizes = [1, 8], strides = [1, 1]} : vector<16x8xf32> to vector<1x8xf32>
    %c33 = arith.constant 33 : index
    %c0_374 = arith.constant 0 : index
    %577 = vector.load %arg22[%c33, %c0_374] : memref<34x8xf32, #tpu.memory_space<vmem>>, vector<1x8xf32>
    tpu.vector_store %arg22[%c33, %c0_374], %576 {strides = array<i32>} : memref<34x8xf32, #tpu.memory_space<vmem>>, vector<1x8xf32>,
    return
  }
}

</mosaic_0001>

<llo_original>
// kernel: ctcnet_forward.1
$region0: #{ctcnet_forward.1}
  #allocation0 [shape = 'u32[]', space=smem, size = 0x4, offset = 0x4, fixed_abs, tag = 'smem constant byte address 0x4 - core index']
  #allocation1 [shape = 'u32[144,128]{1,0:T(1,128)}', space=vmem, size = 0x12000, scoped, tag = 'internal scratch']
  %s0 = inlined_call_operand.vmem [shape: f32[32,8], index: 0, kind: input, shape index: {}]
  %s1 = inlined_call_operand.vmem [shape: f32[32,8], index: 1, kind: input, shape index: {}]
  %s2 = inlined_call_operand.hbm [shape: f32[16,512], index: 2, kind: input, shape index: {}]
  %s3 = inlined_call_operand.hbm [shape: f32[2,8,32], index: 3, kind: input, shape index: {}]
  %s4 = inlined_call_operand.hbm [shape: f32[3,32], index: 4, kind: input, shape index: {}]
  %s5 = inlined_call_operand.hbm [shape: f32[3,512,32], index: 5, kind: input, shape index: {}]
  %s6 = inlined_call_operand.hbm [shape: f32[3,32], index: 6, kind: input, shape index: {}]
  %s7 = inlined_call_operand.vmem [shape: f32[3,48,16], index: 7, kind: input, shape index: {}]
  %s8 = inlined_call_operand.hbm [shape: f32[5,3,32,32], index: 8, kind: input, shape index: {}]
  %s9 = inlined_call_operand.hbm [shape: f32[5,2,32,32], index: 9, kind: input, shape index: {}]
  %s10 = inlined_call_operand.hbm [shape: f32[5,6,32], index: 10, kind: input, shape index: {}]
  %s11 = inlined_call_operand.hbm [shape: f32[3,16,32], index: 11, kind: input, shape index: {}]
  %s12 = inlined_call_operand.hbm [shape: f32[32,16], index: 12, kind: input, shape index: {}]
  %s13 = inlined_call_operand.vmem [shape: f32[3,24,48], index: 13, kind: input, shape index: {}]
  %s14 = inlined_call_operand.hbm [shape: f32[48,24], index: 14, kind: input, shape index: {}]
  %s15 = inlined_call_operand.hbm [shape: f32[32,48], index: 15, kind: input, shape index: {}]
  %s16 = inlined_call_operand.hbm [shape: f32[48,32], index: 16, kind: input, shape index: {}]
  %s17 = inlined_call_operand.hbm [shape: f32[2,2,32,32], index: 17, kind: input, shape index: {}]
  %s18 = inlined_call_operand.vmem [shape: f32[2,2,32], index: 18, kind: input, shape index: {}]
  %s19 = inlined_call_operand.vmem [shape: f32[32,32], index: 19, kind: input, shape index: {}]
  %s20 = inlined_call_operand.vmem [shape: f32[1,32], index: 20, kind: input, shape index: {}]
  %s21 = inlined_call_operand.hbm [shape: f32[2,32,8], index: 21, kind: input, shape index: {}]
  %s22 = inlined_call_operand.vmem [shape: f32[34,8], index: 22, kind: output, shape index: {}]
  %s23 = sld [smem:[#allocation0]]
  $region158: #{ctcnet_forward.1} parent=0
    _
  %s25 = ssub.s32 1, %s23
  %s26 = scalar_select 0, %s25, %s23
  $region1: #{ctcnet_forward.1} parent=0
    #allocation2 [shape = 'u8[32768]{0}', space=vmem, size = 0x8000, scoped, tag = 'input window, operand 2, single buffered']
    #allocation3 [shape = 's32[1]{0}', space=sflag, size = 0x4, scoped, tag = 'scoped memory for ctcnet_forward.1']
    #allocation4 [shape = 'u8[8192]{0}', space=vmem, size = 0x2000, scoped, tag = 'input window, operand 3, single buffered']
    #allocation5 [shape = 's32[1]{0}', space=sflag, size = 0x4, scoped, tag = 'scoped memory for ctcnet_forward.1']
    #allocation6 [shape = 'u8[2048]{0}', space=vmem, size = 0x800, scoped, tag = 'input window, operand 4, single buffered']
    #allocation7 [shape = 'u8[786432]{0}', space=vmem, size = 0xc0000, scoped, tag = 'input window, operand 5, single buffered']
    #allocation8 [shape = 's32[1]{0}', space=sflag, size = 0x4, scoped, tag = 'scoped memory for ctcnet_forward.1']
    #allocation9 [shape = 'u8[2048]{0}', space=vmem, size = 0x800, scoped, tag = 'input window, operand 6, single buffered']
    #allocation10 [shape = 'u8[245760]{0}', space=vmem, size = 0x3c000, scoped, tag = 'input window, operand 8, single buffered']
    #allocation11 [shape = 's32[1]{0}', space=sflag, size = 0x4, scoped, tag = 'scoped memory for ctcnet_forward.1']
    #allocation12 [shape = 'u8[163840]{0}', space=vmem, size = 0x28000, scoped, tag = 'input window, operand 9, single buffered']
    #allocation13 [shape = 'u8[20480]{0}', space=vmem, size = 0x5000, scoped, tag = 'input window, operand 10, single buffered']
    #allocation14 [shape = 's32[1]{0}', space=sflag, size = 0x4, scoped, tag = 'scoped memory for ctcnet_forward.1']
    #allocation15 [shape = 'u8[24576]{0}', space=vmem, size = 0x6000, scoped, tag = 'input window, operand 11, single buffered']
    #allocation16 [shape = 'u8[16384]{0}', space=vmem, size = 0x4000, scoped, tag = 'input window, operand 12, single buffered']
    #allocation17 [shape = 's32[1]{0}', space=sflag, size = 0x4, scoped, tag = 'scoped memory for ctcnet_forward.1']
    #allocation18 [shape = 'u8[24576]{0}', space=vmem, size = 0x6000, scoped, tag = 'input window, operand 14, single buffered']
    #allocation19 [shape = 'u8[16384]{0}', space=vmem, size = 0x4000, scoped, tag = 'input window, operand 15, single buffered']
    #allocation20 [shape = 's32[1]{0}', space=sflag, size = 0x4, scoped, tag = 'scoped memory for ctcnet_forward.1']
    #allocation21 [shape = 'u8[24576]{0}', space=vmem, size = 0x6000, scoped, tag = 'input window, operand 16, single buffered']
    #allocation22 [shape = 'u8[65536]{0}', space=vmem, size = 0x10000, scoped, tag = 'input window, operand 17, single buffered']
    #allocation23 [shape = 's32[1]{0}', space=sflag, size = 0x4, scoped, tag = 'scoped memory for ctcnet_forward.1']
    #allocation24 [shape = 'u8[32768]{0}', space=vmem, size = 0x8000, scoped, tag = 'input window, operand 21, single buffered']
    %27 = vsyncpa [#allocation3], 0
    %28 = vsyncpa [#allocation5], 0
    %29 = vsyncpa [#allocation8], 0
    %30 = vsyncpa [#allocation11], 0
    %31 = vsyncpa [#allocation14], 0
    %32 = vsyncpa [#allocation17], 0
    %33 = vsyncpa [#allocation20], 0
    %34 = vsyncpa [#allocation23], 0
    // Predicated region
    $region2: #{ctcnet_forward.1} parent=1 // pred_check
      _
    $region3: #{ctcnet_forward.1} parent=1 // pred_check_branch
      %36 = sbr.rel (0) target = $region5
    $region4: #{ctcnet_forward.1} parent=1 // pred_region
      _
    $region5: #{ctcnet_forward.1} parent=1 // pred_fallthru
      _
    // Predicated region
    $region6: #{ctcnet_forward.1} parent=1 // pred_check
      _
    $region7: #{ctcnet_forward.1} parent=1 // pred_check_branch
      %38 = sbr.rel (0) target = $region9
    $region8: #{ctcnet_forward.1} parent=1 // pred_region
      _
    $region9: #{ctcnet_forward.1} parent=1 // pred_fallthru
      _
    // Predicated region
    $region10: #{ctcnet_forward.1} parent=1 // pred_check
      _
    $region11: #{ctcnet_forward.1} parent=1 // pred_check_branch
      %40 = sbr.rel (0) target = $region13
    $region12: #{ctcnet_forward.1} parent=1 // pred_region
      %s42 = ssub.s32 1024, 1024
      %43 = vsyncadd [#allocation3], %s42
      %s44 = sshll.u32 [#allocation2], 4
      %s45 = int_to_ptr.vmem [resolvable:$true] %s44
      %50 = dma.hbm_to_vmem [thread:$0]  %s2, 1024, %s45, [#allocation3], 512, 512, 32
    $region13: #{ctcnet_forward.1} parent=1 // pred_fallthru
      _
    // Predicated region
    $region14: #{ctcnet_forward.1} parent=1 // pred_check
      _
    $region15: #{ctcnet_forward.1} parent=1 // pred_check_branch
      %52 = sbr.rel (0) target = $region17
    $region16: #{ctcnet_forward.1} parent=1 // pred_region
      %s54 = ssub.s32 256, 256
      %55 = vsyncadd [#allocation5], %s54
      %s56 = sshll.u32 [#allocation4], 4
      %s57 = int_to_ptr.vmem [resolvable:$true] %s56
      %62 = dma.hbm_to_vmem [thread:$0]  %s3, 256, %s57, [#allocation5], 128, 128, 8
    $region17: #{ctcnet_forward.1} parent=1 // pred_fallthru
      _
    // Predicated region
    $region18: #{ctcnet_forward.1} parent=1 // pred_check
      _
    $region19: #{ctcnet_forward.1} parent=1 // pred_check_branch
      %64 = sbr.rel (0) target = $region21
    $region20: #{ctcnet_forward.1} parent=1 // pred_region
      %s66 = ssub.s32 64, 64
      %67 = vsyncadd [#allocation5], %s66
      %s69 = sshll.u32 [#allocation6], 4
      %s70 = int_to_ptr.vmem [resolvable:$true] %s69
      %72 = dma.hbm_to_vmem [thread:$0]  %s4, 64, %s70, [#allocation5]
    $region21: #{ctcnet_forward.1} parent=1 // pred_fallthru
      _
    // Predicated region
    $region22: #{ctcnet_forward.1} parent=1 // pred_check
      _
    $region23: #{ctcnet_forward.1} parent=1 // pred_check_branch
      %74 = sbr.rel (0) target = $region25
    $region24: #{ctcnet_forward.1} parent=1 // pred_region
      %s76 = ssub.s32 24576, 24576
      %77 = vsyncadd [#allocation8], %s76
      %s78 = sshll.u32 [#allocation7], 4
      %s79 = int_to_ptr.vmem [resolvable:$true] %s78
      %84 = dma.hbm_to_vmem [thread:$0]  %s5, 24576, %s79, [#allocation8], 128, 128, 8
    $region25: #{ctcnet_forward.1} parent=1 // pred_fallthru
      _
    // Predicated region
    $region26: #{ctcnet_forward.1} parent=1 // pred_check
      _
    $region27: #{ctcnet_forward.1} parent=1 // pred_check_branch
      %86 = sbr.rel (0) target = $region29
    $region28: #{ctcnet_forward.1} parent=1 // pred_region
      %s88 = ssub.s32 64, 64
      %89 = vsyncadd [#allocation8], %s88
      %s91 = sshll.u32 [#allocation9], 4
      %s92 = int_to_ptr.vmem [resolvable:$true] %s91
      %94 = dma.hbm_to_vmem [thread:$0]  %s6, 64, %s92, [#allocation8]
    $region29: #{ctcnet_forward.1} parent=1 // pred_fallthru
      _
    // Predicated region
    $region30: #{ctcnet_forward.1} parent=1 // pred_check
      _
    $region31: #{ctcnet_forward.1} parent=1 // pred_check_branch
      %96 = sbr.rel (0) target = $region33
    $region32: #{ctcnet_forward.1} parent=1 // pred_region
      _
    $region33: #{ctcnet_forward.1} parent=1 // pred_fallthru
      _
    // Predicated region
    $region34: #{ctcnet_forward.1} parent=1 // pred_check
      _
    $region35: #{ctcnet_forward.1} parent=1 // pred_check_branch
      %98 = sbr.rel (0) target = $region37
    $region36: #{ctcnet_forward.1} parent=1 // pred_region
      %s100 = ssub.s32 7680, 7680
      %101 = vsyncadd [#allocation11], %s100
      %s102 = sshll.u32 [#allocation10], 4
      %s103 = int_to_ptr.vmem [resolvable:$true] %s102
      %108 = dma.hbm_to_vmem [thread:$0]  %s8, 7680, %s103, [#allocation11], 128, 128, 8
    $region37: #{ctcnet_forward.1} parent=1 // pred_fallthru
      _
    // Predicated region
    $region38: #{ctcnet_forward.1} parent=1 // pred_check
      _
    $region39: #{ctcnet_forward.1} parent=1 // pred_check_branch
      %110 = sbr.rel (0) target = $region41
    $region40: #{ctcnet_forward.1} parent=1 // pred_region
      %s112 = ssub.s32 5120, 5120
      %113 = vsyncadd [#allocation11], %s112
      %s114 = sshll.u32 [#allocation12], 4
      %s115 = int_to_ptr.vmem [resolvable:$true] %s114
      %120 = dma.hbm_to_vmem [thread:$0]  %s9, 5120, %s115, [#allocation11], 128, 128, 8
    $region41: #{ctcnet_forward.1} parent=1 // pred_fallthru
      _
    // Predicated region
    $region42: #{ctcnet_forward.1} parent=1 // pred_check
      _
    $region43: #{ctcnet_forward.1} parent=1 // pred_check_branch
      %122 = sbr.rel (0) target = $region45
    $region44: #{ctcnet_forward.1} parent=1 // pred_region
      %s124 = ssub.s32 640, 640
      %125 = vsyncadd [#allocation14], %s124
      %s126 = sshll.u32 [#allocation13], 4
      %s127 = int_to_ptr.vmem [resolvable:$true] %s126
      %132 = dma.hbm_to_vmem [thread:$0]  %s10, 640, %s127, [#allocation14], 128, 128, 8
    $region45: #{ctcnet_forward.1} parent=1 // pred_fallthru
      _
    // Predicated region
    $region46: #{ctcnet_forward.1} parent=1 // pred_check
      _
    $region47: #{ctcnet_forward.1} parent=1 // pred_check_branch
      %134 = sbr.rel (0) target = $region49
    $region48: #{ctcnet_forward.1} parent=1 // pred_region
      %s136 = ssub.s32 768, 768
      %137 = vsyncadd [#allocation14], %s136
      %s138 = sshll.u32 [#allocation15], 4
      %s139 = int_to_ptr.vmem [resolvable:$true] %s138
      %144 = dma.hbm_to_vmem [thread:$0]  %s11, 768, %s139, [#allocation14], 128, 128, 8
    $region49: #{ctcnet_forward.1} parent=1 // pred_fallthru
      _
    // Predicated region
    $region50: #{ctcnet_forward.1} parent=1 // pred_check
      _
    $region51: #{ctcnet_forward.1} parent=1 // pred_check_branch
      %146 = sbr.rel (0) target = $region53
    $region52: #{ctcnet_forward.1} parent=1 // pred_region
      %s148 = ssub.s32 512, 512
      %149 = vsyncadd [#allocation17], %s148
      %s150 = sshll.u32 [#allocation16], 4
      %s151 = int_to_ptr.vmem [resolvable:$true] %s150
      %156 = dma.hbm_to_vmem [thread:$0]  %s12, 512, %s151, [#allocation17], 128, 128, 8
    $region53: #{ctcnet_forward.1} parent=1 // pred_fallthru
      _
    // Predicated region
    $region54: #{ctcnet_forward.1} parent=1 // pred_check
      _
    $region55: #{ctcnet_forward.1} parent=1 // pred_check_branch
      %158 = sbr.rel (0) target = $region57
    $region56: #{ctcnet_forward.1} parent=1 // pred_region
      _
    $region57: #{ctcnet_forward.1} parent=1 // pred_fallthru
      _
    // Predicated region
    $region58: #{ctcnet_forward.1} parent=1 // pred_check
      _
    $region59: #{ctcnet_forward.1} parent=1 // pred_check_branch
      %160 = sbr.rel (0) target = $region61
    $region60: #{ctcnet_forward.1} parent=1 // pred_region
      %s162 = ssub.s32 768, 768
      %163 = vsyncadd [#allocation17], %s162
      %s164 = sshll.u32 [#allocation18], 4
      %s165 = int_to_ptr.vmem [resolvable:$true] %s164
      %170 = dma.hbm_to_vmem [thread:$0]  %s14, 768, %s165, [#allocation17], 128, 128, 8
    $region61: #{ctcnet_forward.1} parent=1 // pred_fallthru
      _
    // Predicated region
    $region62: #{ctcnet_forward.1} parent=1 // pred_check
      _
    $region63: #{ctcnet_forward.1} parent=1 // pred_check_branch
      %172 = sbr.rel (0) target = $region65
    $region64: #{ctcnet_forward.1} parent=1 // pred_region
      %s174 = ssub.s32 512, 512
      %175 = vsyncadd [#allocation20], %s174
      %s176 = sshll.u32 [#allocation19], 4
      %s177 = int_to_ptr.vmem [resolvable:$true] %s176
      %182 = dma.hbm_to_vmem [thread:$0]  %s15, 512, %s177, [#allocation20], 128, 128, 8
    $region65: #{ctcnet_forward.1} parent=1 // pred_fallthru
      _
    // Predicated region
    $region66: #{ctcnet_forward.1} parent=1 // pred_check
      _
    $region67: #{ctcnet_forward.1} parent=1 // pred_check_branch
      %184 = sbr.rel (0) target = $region69
    $region68: #{ctcnet_forward.1} parent=1 // pred_region
      %s186 = ssub.s32 768, 768
      %187 = vsyncadd [#allocation20], %s186
      %s188 = sshll.u32 [#allocation21], 4
      %s189 = int_to_ptr.vmem [resolvable:$true] %s188
      %194 = dma.hbm_to_vmem [thread:$0]  %s16, 768, %s189, [#allocation20], 128, 128, 8
    $region69: #{ctcnet_forward.1} parent=1 // pred_fallthru
      _
    // Predicated region
    $region70: #{ctcnet_forward.1} parent=1 // pred_check
      _
    $region71: #{ctcnet_forward.1} parent=1 // pred_check_branch
      %196 = sbr.rel (0) target = $region73
    $region72: #{ctcnet_forward.1} parent=1 // pred_region
      %s198 = ssub.s32 2048, 2048
      %199 = vsyncadd [#allocation23], %s198
      %s200 = sshll.u32 [#allocation22], 4
      %s201 = int_to_ptr.vmem [resolvable:$true] %s200
      %206 = dma.hbm_to_vmem [thread:$0]  %s17, 2048, %s201, [#allocation23], 128, 128, 8
    $region73: #{ctcnet_forward.1} parent=1 // pred_fallthru
      _
    // Predicated region
    $region74: #{ctcnet_forward.1} parent=1 // pred_check
      _
    $region75: #{ctcnet_forward.1} parent=1 // pred_check_branch
      %208 = sbr.rel (0) target = $region77
    $region76: #{ctcnet_forward.1} parent=1 // pred_region
      _
    $region77: #{ctcnet_forward.1} parent=1 // pred_fallthru
      _
    // Predicated region
    $region78: #{ctcnet_forward.1} parent=1 // pred_check
      _
    $region79: #{ctcnet_forward.1} parent=1 // pred_check_branch
      %210 = sbr.rel (0) target = $region81
    $region80: #{ctcnet_forward.1} parent=1 // pred_region
      _
    $region81: #{ctcnet_forward.1} parent=1 // pred_fallthru
      _
    // Predicated region
    $region82: #{ctcnet_forward.1} parent=1 // pred_check
      _
    $region83: #{ctcnet_forward.1} parent=1 // pred_check_branch
      %212 = sbr.rel (0) target = $region85
    $region84: #{ctcnet_forward.1} parent=1 // pred_region
      _
    $region85: #{ctcnet_forward.1} parent=1 // pred_fallthru
      _
    // Predicated region
    $region86: #{ctcnet_forward.1} parent=1 // pred_check
      _
    $region87: #{ctcnet_forward.1} parent=1 // pred_check_branch
      %214 = sbr.rel (0) target = $region89
    $region88: #{ctcnet_forward.1} parent=1 // pred_region
      %s216 = ssub.s32 1024, 1024
      %217 = vsyncadd [#allocation23], %s216
      %s218 = sshll.u32 [#allocation24], 4
      %s219 = int_to_ptr.vmem [resolvable:$true] %s218
      %224 = dma.hbm_to_vmem [thread:$0]  %s21, 1024, %s219, [#allocation23], 128, 128, 8
    $region89: #{ctcnet_forward.1} parent=1 // pred_fallthru
      _
    // Predicated region
    $region90: #{ctcnet_forward.1} parent=1 // pred_check
      _
    $region91: #{ctcnet_forward.1} parent=1 // pred_check_branch
      %226 = sbr.rel (0) target = $region93
    $region92: #{ctcnet_forward.1} parent=1 // pred_region
      %227 = dma.done [#allocation3], 1024
    $region93: #{ctcnet_forward.1} parent=1 // pred_fallthru
      _
    // Predicated region
    $region94: #{ctcnet_forward.1} parent=1 // pred_check
      _
    $region95: #{ctcnet_forward.1} parent=1 // pred_check_branch
      %229 = sbr.rel (0) target = $region97
    $region96: #{ctcnet_forward.1} parent=1 // pred_region
      %230 = dma.done [#allocation5], 256
    $region97: #{ctcnet_forward.1} parent=1 // pred_fallthru
      _
    // Predicated region
    $region98: #{ctcnet_forward.1} parent=1 // pred_check
      _
    $region99: #{ctcnet_forward.1} parent=1 // pred_check_branch
      %232 = sbr.rel (0) target = $region101
    $region100: #{ctcnet_forward.1} parent=1 // pred_region
      %233 = dma.done [#allocation5], 64
    $region101: #{ctcnet_forward.1} parent=1 // pred_fallthru
      _
    // Predicated region
    $region102: #{ctcnet_forward.1} parent=1 // pred_check
      _
    $region103: #{ctcnet_forward.1} parent=1 // pred_check_branch
      %235 = sbr.rel (0) target = $region105
    $region104: #{ctcnet_forward.1} parent=1 // pred_region
      %236 = dma.done [#allocation8], 24576
    $region105: #{ctcnet_forward.1} parent=1 // pred_fallthru
      _
    // Predicated region
    $region106: #{ctcnet_forward.1} parent=1 // pred_check
      _
    $region107: #{ctcnet_forward.1} parent=1 // pred_check_branch
      %238 = sbr.rel (0) target = $region109
    $region108: #{ctcnet_forward.1} parent=1 // pred_region
      %239 = dma.done [#allocation8], 64
    $region109: #{ctcnet_forward.1} parent=1 // pred_fallthru
      _
    // Predicated region
    $region110: #{ctcnet_forward.1} parent=1 // pred_check
      _
    $region111: #{ctcnet_forward.1} parent=1 // pred_check_branch
      %241 = sbr.rel (0) target = $region113
    $region112: #{ctcnet_forward.1} parent=1 // pred_region
      %242 = dma.done [#allocation11], 7680
    $region113: #{ctcnet_forward.1} parent=1 // pred_fallthru
      _
    // Predicated region
    $region114: #{ctcnet_forward.1} parent=1 // pred_check
      _
    $region115: #{ctcnet_forward.1} parent=1 // pred_check_branch
      %244 = sbr.rel (0) target = $region117
    $region116: #{ctcnet_forward.1} parent=1 // pred_region
      %245 = dma.done [#allocation11], 5120
    $region117: #{ctcnet_forward.1} parent=1 // pred_fallthru
      _
    // Predicated region
    $region118: #{ctcnet_forward.1} parent=1 // pred_check
      _
    $region119: #{ctcnet_forward.1} parent=1 // pred_check_branch
      %247 = sbr.rel (0) target = $region121
    $region120: #{ctcnet_forward.1} parent=1 // pred_region
      %248 = dma.done [#allocation14], 640
    $region121: #{ctcnet_forward.1} parent=1 // pred_fallthru
      _
    // Predicated region
    $region122: #{ctcnet_forward.1} parent=1 // pred_check
      _
    $region123: #{ctcnet_forward.1} parent=1 // pred_check_branch
      %250 = sbr.rel (0) target = $region125
    $region124: #{ctcnet_forward.1} parent=1 // pred_region
      %251 = dma.done [#allocation14], 768
    $region125: #{ctcnet_forward.1} parent=1 // pred_fallthru
      _
    // Predicated region
    $region126: #{ctcnet_forward.1} parent=1 // pred_check
      _
    $region127: #{ctcnet_forward.1} parent=1 // pred_check_branch
      %253 = sbr.rel (0) target = $region129
    $region128: #{ctcnet_forward.1} parent=1 // pred_region
      %254 = dma.done [#allocation17], 512
    $region129: #{ctcnet_forward.1} parent=1 // pred_fallthru
      _
    // Predicated region
    $region130: #{ctcnet_forward.1} parent=1 // pred_check
      _
    $region131: #{ctcnet_forward.1} parent=1 // pred_check_branch
      %256 = sbr.rel (0) target = $region133
    $region132: #{ctcnet_forward.1} parent=1 // pred_region
      %257 = dma.done [#allocation17], 768
    $region133: #{ctcnet_forward.1} parent=1 // pred_fallthru
      _
    // Predicated region
    $region134: #{ctcnet_forward.1} parent=1 // pred_check
      _
    $region135: #{ctcnet_forward.1} parent=1 // pred_check_branch
      %259 = sbr.rel (0) target = $region137
    $region136: #{ctcnet_forward.1} parent=1 // pred_region
      %260 = dma.done [#allocation20], 512
    $region137: #{ctcnet_forward.1} parent=1 // pred_fallthru
      _
    // Predicated region
    $region138: #{ctcnet_forward.1} parent=1 // pred_check
      _
    $region139: #{ctcnet_forward.1} parent=1 // pred_check_branch
      %262 = sbr.rel (0) target = $region141
    $region140: #{ctcnet_forward.1} parent=1 // pred_region
      %263 = dma.done [#allocation20], 768
    $region141: #{ctcnet_forward.1} parent=1 // pred_fallthru
      _
    // Predicated region
    $region142: #{ctcnet_forward.1} parent=1 // pred_check
      _
    $region143: #{ctcnet_forward.1} parent=1 // pred_check_branch
      %265 = sbr.rel (0) target = $region145
    $region144: #{ctcnet_forward.1} parent=1 // pred_region
      %266 = dma.done [#allocation23], 2048
    $region145: #{ctcnet_forward.1} parent=1 // pred_fallthru
      _
    // Predicated region
    $region146: #{ctcnet_forward.1} parent=1 // pred_check
      _
    $region147: #{ctcnet_forward.1} parent=1 // pred_check_branch
      %268 = sbr.rel (0) target = $region149
    $region148: #{ctcnet_forward.1} parent=1 // pred_region
      %269 = dma.done [#allocation23], 1024
    $region149: #{ctcnet_forward.1} parent=1 // pred_fallthru
      _
    %v270 = vld [vmem:[%s0] sm:$0xff]
    %v271 = vld [vmem:[%s0 + $0x8] sm:$0xff]
    %v272 = vld [vmem:[%s0 + $0x10] sm:$0xff]
    %v273 = vld [vmem:[%s0 + $0x18] sm:$0xff]
    %v274 = vld [vmem:[#allocation4] sm:$0xff]
    %v275 = vld [vmem:[%s1] sm:$0xff]
    %v276 = vld [vmem:[%s1 + $0x8] sm:$0xff]
    %v277 = vld [vmem:[%s1 + $0x10] sm:$0xff]
    %v278 = vld [vmem:[%s1 + $0x18] sm:$0xff]
    %s279 = scalar_lea.vmem [#allocation4], 8
    %v280 = vld [vmem:[%s279] sm:$0xff]
    %vm281 = vcmask 64512
    %v283 = vsel %vm281, %v275, 0
    %v286 = vsel %vm281, %v276, 0
    %v289 = vsel %vm281, %v277, 0
    %v292 = vsel %vm281, %v278, 0
    %294 = vmatprep.subr.mxu0 0.0
    %295 = vmatpush1.msra.mxu0 %v280
    %296 = vmatprep.subr.mxu0 0.0
    %297 = vmatpush1.msra.mxu0 0.0
    %298 = vmatprep.subr.mxu0 0.0
    %299 = vmatpush1.msra.mxu0 0.0
    %300 = vmatprep.subr.mxu0 0.0
    %301 = vmatpush1.msra.mxu0 0.0
    %302 = vmatprep.subr.mxu0 0.0
    %303 = vmatpush1.msra.mxu0 0.0
    %304 = vmatprep.subr.mxu0 0.0
    %305 = vmatpush1.msra.mxu0 0.0
    %306 = vmatprep.subr.mxu0 0.0
    %307 = vmatpush1.msra.mxu0 0.0
    %308 = vmatprep.subr.mxu0 0.0
    %309 = vmatpush1.msra.mxu0 0.0
    %310 = vmatprep.subr.mxu0 0.0
    %311 = vmatpush1.msra.mxu0 0.0
    %312 = vmatprep.subr.mxu0 0.0
    %313 = vmatpush1.msra.mxu0 0.0
    %314 = vmatprep.subr.mxu0 0.0
    %315 = vmatpush1.msra.mxu0 0.0
    %316 = vmatprep.subr.mxu0 0.0
    %317 = vmatpush1.msra.mxu0 0.0
    %318 = vmatprep.subr.mxu0 0.0
    %319 = vmatpush1.msra.mxu0 0.0
    %320 = vmatprep.subr.mxu0 0.0
    %321 = vmatpush1.msra.mxu0 0.0
    %322 = vmatprep.subr.mxu0 0.0
    %323 = vmatpush1.msra.mxu0 0.0
    %324 = vmatprep.subr.mxu0 0.0
    %325 = vmatpush1.msra.mxu0 0.0
    %326 = vmatprep.subr.mxu0 0.0
    %327 = vmatpush1.msra.mxu0 0.0
    %328 = vmatprep.subr.mxu0 0.0
    %329 = vmatpush1.msra.mxu0 0.0
    %330 = vmatprep.subr.mxu0 0.0
    %331 = vmatpush1.msra.mxu0 0.0
    %332 = vmatprep.subr.mxu0 0.0
    %333 = vmatpush1.msra.mxu0 0.0
    %334 = vmatprep.subr.mxu0 0.0
    %335 = vmatpush1.msra.mxu0 0.0
    %336 = vmatprep.subr.mxu0 0.0
    %337 = vmatpush1.msra.mxu0 0.0
    %338 = vmatprep.subr.mxu0 0.0
    %339 = vmatpush1.msra.mxu0 0.0
    %340 = vmatprep.subr.mxu0 0.0
    %341 = vmatpush1.msra.mxu0 0.0
    %342 = vmatprep.subr.mxu0 0.0
    %343 = vmatpush1.msra.mxu0 0.0
    %344 = vmatprep.subr.mxu0 0.0
    %345 = vmatpush1.msra.mxu0 0.0
    %346 = vmatprep.subr.mxu0 0.0
    %347 = vmatpush1.msra.mxu0 0.0
    %348 = vmatprep.subr.mxu0 0.0
    %349 = vmatpush1.msra.mxu0 0.0
    %350 = vmatprep.subr.mxu0 0.0
    %351 = vmatpush1.msra.mxu0 0.0
    %352 = vmatprep.subr.mxu0 0.0
    %353 = vmatpush1.msra.mxu0 0.0
    %354 = vmatprep.subr.mxu0 0.0
    %355 = vmatpush1.msra.mxu0 0.0
    %356 = vmatprep.subr.mxu0 0.0
    %357 = vmatpush1.msra.mxu0 0.0
    %358 = vmatprep.mubr.f32.mxu0 0.0
    %359 = vmatmul.mubr.f32.gmra.mrb[0].mxu0 %v283
    %v360 = vpop.f32.mrb[0].mxu0
    %v361 = vadd.f32 0.0, %v360
    %v362 = vpop.f32.mrb[0].mxu0
    %363 = vmatprep.mubr.f32.mxu0 0.0
    %364 = vmatmul.mubr.f32.gmra.mrb[0].mxu0 %v286
    %v365 = vpop.f32.mrb[0].mxu0
    %v366 = vadd.f32 0.0, %v365
    %v367 = vpop.f32.mrb[0].mxu0
    %368 = vmatprep.mubr.f32.mxu0 0.0
    %369 = vmatmul.mubr.f32.gmra.mrb[0].mxu0 %v289
    %v370 = vpop.f32.mrb[0].mxu0
    %v371 = vadd.f32 0.0, %v370
    %v372 = vpop.f32.mrb[0].mxu0
    %373 = vmatprep.mubr.f32.mxu0 0.0
    %374 = vmatmul.mubr.f32.gmra.mrb[0].mxu0 %v292
    %v375 = vpop.f32.mrb[0].mxu0
    %v376 = vadd.f32 0.0, %v375
    %v377 = vpop.f32.mrb[0].mxu0
    %378 = vdwg.mxu0
    %v380 = vsel %vm281, %v270, 0
    %v383 = vsel %vm281, %v271, 0
    %v386 = vsel %vm281, %v272, 0
    %v389 = vsel %vm281, %v273, 0
    %391 = vmatprep.subr.mxu0 0.0
    %392 = vmatpush1.msra.mxu0 %v274
    %393 = vmatprep.subr.mxu0 0.0
    %394 = vmatpush1.msra.mxu0 0.0
    %395 = vmatprep.subr.mxu0 0.0
    %396 = vmatpush1.msra.mxu0 0.0
    %397 = vmatprep.subr.mxu0 0.0
    %398 = vmatpush1.msra.mxu0 0.0
    %399 = vmatprep.subr.mxu0 0.0
    %400 = vmatpush1.msra.mxu0 0.0
    %401 = vmatprep.subr.mxu0 0.0
    %402 = vmatpush1.msra.mxu0 0.0
    %403 = vmatprep.subr.mxu0 0.0
    %404 = vmatpush1.msra.mxu0 0.0
    %405 = vmatprep.subr.mxu0 0.0
    %406 = vmatpush1.msra.mxu0 0.0
    %407 = vmatprep.subr.mxu0 0.0
    %408 = vmatpush1.msra.mxu0 0.0
    %409 = vmatprep.subr.mxu0 0.0
    %410 = vmatpush1.msra.mxu0 0.0
    %411 = vmatprep.subr.mxu0 0.0
    %412 = vmatpush1.msra.mxu0 0.0
    %413 = vmatprep.subr.mxu0 0.0
    %414 = vmatpush1.msra.mxu0 0.0
    %415 = vmatprep.subr.mxu0 0.0
    %416 = vmatpush1.msra.mxu0 0.0
    %417 = vmatprep.subr.mxu0 0.0
    %418 = vmatpush1.msra.mxu0 0.0
    %419 = vmatprep.subr.mxu0 0.0
    %420 = vmatpush1.msra.mxu0 0.0
    %421 = vmatprep.subr.mxu0 0.0
    %422 = vmatpush1.msra.mxu0 0.0
    %423 = vmatprep.subr.mxu0 0.0
    %424 = vmatpush1.msra.mxu0 0.0
    %425 = vmatprep.subr.mxu0 0.0
    %426 = vmatpush1.msra.mxu0 0.0
    %427 = vmatprep.subr.mxu0 0.0
    %428 = vmatpush1.msra.mxu0 0.0
    %429 = vmatprep.subr.mxu0 0.0
    %430 = vmatpush1.msra.mxu0 0.0
    %431 = vmatprep.subr.mxu0 0.0
    %432 = vmatpush1.msra.mxu0 0.0
    %433 = vmatprep.subr.mxu0 0.0
    %434 = vmatpush1.msra.mxu0 0.0
    %435 = vmatprep.subr.mxu0 0.0
    %436 = vmatpush1.msra.mxu0 0.0
    %437 = vmatprep.subr.mxu0 0.0
    %438 = vmatpush1.msra.mxu0 0.0
    %439 = vmatprep.subr.mxu0 0.0
    %440 = vmatpush1.msra.mxu0 0.0
    %441 = vmatprep.subr.mxu0 0.0
    %442 = vmatpush1.msra.mxu0 0.0
    %443 = vmatprep.subr.mxu0 0.0
    %444 = vmatpush1.msra.mxu0 0.0
    %445 = vmatprep.subr.mxu0 0.0
    %446 = vmatpush1.msra.mxu0 0.0
    %447 = vmatprep.subr.mxu0 0.0
    %448 = vmatpush1.msra.mxu0 0.0
    %449 = vmatprep.subr.mxu0 0.0
    %450 = vmatpush1.msra.mxu0 0.0
    %451 = vmatprep.subr.mxu0 0.0
    %452 = vmatpush1.msra.mxu0 0.0
    %453 = vmatprep.subr.mxu0 0.0
    %454 = vmatpush1.msra.mxu0 0.0
    %455 = vmatprep.mubr.f32.mxu0 0.0
    %456 = vmatmul.mubr.f32.gmra.mrb[0].mxu0 %v380
    %v457 = vpop.f32.mrb[0].mxu0
    %v458 = vadd.f32 %v361, %v457
    %v459 = vpop.f32.mrb[0].mxu0
    %460 = vmatprep.mubr.f32.mxu0 0.0
    %461 = vmatmul.mubr.f32.gmra.mrb[0].mxu0 %v383
    %v462 = vpop.f32.mrb[0].mxu0
    %v463 = vadd.f32 %v366, %v462
    %v464 = vpop.f32.mrb[0].mxu0
    %465 = vmatprep.mubr.f32.mxu0 0.0
    %466 = vmatmul.mubr.f32.gmra.mrb[0].mxu0 %v386
    %v467 = vpop.f32.mrb[0].mxu0
    %v468 = vadd.f32 %v371, %v467
    %v469 = vpop.f32.mrb[0].mxu0
    %470 = vmatprep.mubr.f32.mxu0 0.0
    %471 = vmatmul.mubr.f32.gmra.mrb[0].mxu0 %v389
    %v472 = vpop.f32.mrb[0].mxu0
    %v473 = vadd.f32 %v376, %v472
    %v474 = vpop.f32.mrb[0].mxu0
    %475 = vdwg.mxu0
    %v476 = vld [vmem:[#allocation6] sm:$0x7]
    %v477 = vlaneseq
    %v478 = vshrl.u32 %v477, 7
    %v479 = vsub.s32 0, %v478
    %v480 = vrot.slane %v476, %v479
    %v481 = vadd.f32 %v458, %v480
    %v482 = vadd.f32 %v463, %v480
    %v483 = vadd.f32 %v468, %v480
    %v484 = vadd.f32 %v473, %v480
    %v485 = vmax.f32 %v481, 0.0
    %v486 = vmax.f32 %v482, 0.0
    %v487 = vmax.f32 %v483, 0.0
    %v488 = vmax.f32 %v484, 0.0
    %vm489 = vcmask 261120
    %v490 = vsel %vm489, %v485, 0.0
    %491 = vadd.xlane.f32.xlu0 %v490
    %v492 = vpop.xlane.xlu0 %491
    %v493 = vsel %vm489, %v486, 0.0
    %494 = vadd.xlane.f32.xlu0 %v493
    %v495 = vpop.xlane.xlu0 %494
    %v496 = vsel %vm489, %v487, 0.0
    %497 = vadd.xlane.f32.xlu0 %v496
    %v498 = vpop.xlane.xlu0 %497
    %v499 = vsel %vm489, %v488, 0.0
    %500 = vadd.xlane.f32.xlu0 %v499
    %v501 = vpop.xlane.xlu0 %500
    %v502 = vrcp.pop 32.0
    %v503 = vmul.f32 %v492, %v502
    %v504 = vmul.f32 %v495, %v502
    %v505 = vmul.f32 %v498, %v502
    %v506 = vmul.f32 %v501, %v502
    %v507 = vsub.f32 %v485, %v503
    %v508 = vsub.f32 %v486, %v504
    %v509 = vsub.f32 %v487, %v505
    %v510 = vsub.f32 %v488, %v506
    %v511 = vmul.f32 %v507, %v507
    %v512 = vmul.f32 %v508, %v508
    %v513 = vmul.f32 %v509, %v509
    %v514 = vmul.f32 %v510, %v510
    %v515 = vsel %vm489, %v511, 0.0
    %516 = vadd.xlane.f32.xlu0 %v515
    %v517 = vpop.xlane.xlu0 %516
    %v518 = vsel %vm489, %v512, 0.0
    %519 = vadd.xlane.f32.xlu0 %v518
    %v520 = vpop.xlane.xlu0 %519
    %v521 = vsel %vm489, %v513, 0.0
    %522 = vadd.xlane.f32.xlu0 %v521
    %v523 = vpop.xlane.xlu0 %522
    %v524 = vsel %vm489, %v514, 0.0
    %525 = vadd.xlane.f32.xlu0 %v524
    %v526 = vpop.xlane.xlu0 %525
    %v527 = vmul.f32 %v517, %v502
    %v528 = vmul.f32 %v520, %v502
    %v529 = vmul.f32 %v523, %v502
    %v530 = vmul.f32 %v526, %v502
    %v531 = vadd.f32 %v527, 1e-05
    %v532 = vadd.f32 %v528, 1e-05
    %v533 = vadd.f32 %v529, 1e-05
    %v534 = vadd.f32 %v530, 1e-05
    %v535 = vrsqrt.pop %v531
    %v536 = vrsqrt.pop %v532
    %v537 = vrsqrt.pop %v533
    %v538 = vrsqrt.pop %v534
    %v539 = vmul.f32 %v507, %v535
    %v540 = vmul.f32 %v508, %v536
    %v541 = vmul.f32 %v509, %v537
    %v542 = vmul.f32 %v510, %v538
    %v543 = vlaneseq
    %v544 = vshrl.u32 %v543, 7
    %v545 = vsub.s32 1, %v544
    %v546 = vrot.slane %v476, %v545
    %v547 = vmul.f32 %v539, %v546
    %v548 = vmul.f32 %v540, %v546
    %v549 = vmul.f32 %v541, %v546
    %v550 = vmul.f32 %v542, %v546
    %v551 = vlaneseq
    %v552 = vshrl.u32 %v551, 7
    %v553 = vsub.s32 2, %v552
    %v554 = vrot.slane %v476, %v553
    %v555 = vadd.f32 %v547, %v554
    %v556 = vadd.f32 %v548, %v554
    %v557 = vadd.f32 %v549, %v554
    %v558 = vadd.f32 %v550, %v554
    %v559 = vld [vmem:[#allocation2] sm:$0xff]
    %v560 = vld [vmem:[#allocation2 + $0x8] sm:$0xff]
    %v561 = vld [vmem:[#allocation2 + $0x10] sm:$0xff]
    %v562 = vld [vmem:[#allocation2 + $0x18] sm:$0xff]
    %v563 = vld [vmem:[#allocation2 + $0x20] sm:$0xff]
    %v564 = vld [vmem:[#allocation2 + $0x28] sm:$0xff]
    %v565 = vld [vmem:[#allocation2 + $0x30] sm:$0xff]
    %v566 = vld [vmem:[#allocation2 + $0x38] sm:$0xff]
    %v567 = vld [vmem:[%s7] sm:$0xff]
    %v568 = vld [vmem:[%s7 + $0x8] sm:$0xff]
    %v569 = vld [vmem:[%s7 + $0x10] sm:$0xff]
    %v570 = vld [vmem:[%s7 + $0x18] sm:$0xff]
    %v571 = vld [vmem:[%s7 + $0x20] sm:$0xff]
    %v572 = vld [vmem:[%s7 + $0x28] sm:$0xff]
    %v573 = vld [vmem:[#allocation7] sm:$0xff]
    %v574 = vld [vmem:[#allocation7 + $0x8] sm:$0xff]
    %v575 = vld [vmem:[#allocation7 + $0x10] sm:$0xff]
    %v576 = vld [vmem:[#allocation7 + $0x18] sm:$0xff]
    %v577 = vld [vmem:[#allocation7 + $0x20] sm:$0xff]
    %v578 = vld [vmem:[#allocation7 + $0x28] sm:$0xff]
    %v579 = vld [vmem:[#allocation7 + $0x30] sm:$0xff]
    %v580 = vld [vmem:[#allocation7 + $0x38] sm:$0xff]
    %v581 = vld [vmem:[#allocation7 + $0x40] sm:$0xff]
    %v582 = vld [vmem:[#allocation7 + $0x48] sm:$0xff]
    %v583 = vld [vmem:[#allocation7 + $0x50] sm:$0xff]
    %v584 = vld [vmem:[#allocation7 + $0x58] sm:$0xff]
    %v585 = vld [vmem:[#allocation7 + $0x60] sm:$0xff]
    %v586 = vld [vmem:[#allocation7 + $0x68] sm:$0xff]
    %v587 = vld [vmem:[#allocation7 + $0x70] sm:$0xff]
    %v588 = vld [vmem:[#allocation7 + $0x78] sm:$0xff]
    %v589 = vld [vmem:[#allocation7 + $0x80] sm:$0xff]
    %v590 = vld [vmem:[#allocation7 + $0x88] sm:$0xff]
    %v591 = vld [vmem:[#allocation7 + $0x90] sm:$0xff]
    %v592 = vld [vmem:[#allocation7 + $0x98] sm:$0xff]
    %v593 = vld [vmem:[#allocation7 + $0xa0] sm:$0xff]
    %v594 = vld [vmem:[#allocation7 + $0xa8] sm:$0xff]
    %v595 = vld [vmem:[#allocation7 + $0xb0] sm:$0xff]
    %v596 = vld [vmem:[#allocation7 + $0xb8] sm:$0xff]
    %v597 = vld [vmem:[#allocation7 + $0xc0] sm:$0xff]
    %v598 = vld [vmem:[#allocation7 + $0xc8] sm:$0xff]
    %v599 = vld [vmem:[#allocation7 + $0xd0] sm:$0xff]
    %v600 = vld [vmem:[#allocation7 + $0xd8] sm:$0xff]
    %v601 = vld [vmem:[#allocation7 + $0xe0] sm:$0xff]
    %v602 = vld [vmem:[#allocation7 + $0xe8] sm:$0xff]
    %v603 = vld [vmem:[#allocation7 + $0xf0] sm:$0xff]
    %v604 = vld [vmem:[#allocation7 + $0xf8] sm:$0xff]
    %v605 = vld [vmem:[#allocation7 + $0x100] sm:$0xff]
    %v606 = vld [vmem:[#allocation7 + $0x108] sm:$0xff]
    %v607 = vld [vmem:[#allocation7 + $0x110] sm:$0xff]
    %v608 = vld [vmem:[#allocation7 + $0x118] sm:$0xff]
    %v609 = vld [vmem:[#allocation7 + $0x120] sm:$0xff]
    %v610 = vld [vmem:[#allocation7 + $0x128] sm:$0xff]
    %v611 = vld [vmem:[#allocation7 + $0x130] sm:$0xff]
    %v612 = vld [vmem:[#allocation7 + $0x138] sm:$0xff]
    %v613 = vld [vmem:[#allocation7 + $0x140] sm:$0xff]
    %v614 = vld [vmem:[#allocation7 + $0x148] sm:$0xff]
    %v615 = vld [vmem:[#allocation7 + $0x150] sm:$0xff]
    %v616 = vld [vmem:[#allocation7 + $0x158] sm:$0xff]
    %v617 = vld [vmem:[#allocation7 + $0x160] sm:$0xff]
    %v618 = vld [vmem:[#allocation7 + $0x168] sm:$0xff]
    %v619 = vld [vmem:[#allocation7 + $0x170] sm:$0xff]
    %v620 = vld [vmem:[#allocation7 + $0x178] sm:$0xff]
    %v621 = vld [vmem:[#allocation7 + $0x180] sm:$0xff]
    %v622 = vld [vmem:[#allocation7 + $0x188] sm:$0xff]
    %v623 = vld [vmem:[#allocation7 + $0x190] sm:$0xff]
    %v624 = vld [vmem:[#allocation7 + $0x198] sm:$0xff]
    %v625 = vld [vmem:[#allocation7 + $0x1a0] sm:$0xff]
    %v626 = vld [vmem:[#allocation7 + $0x1a8] sm:$0xff]
    %v627 = vld [vmem:[#allocation7 + $0x1b0] sm:$0xff]
    %v628 = vld [vmem:[#allocation7 + $0x1b8] sm:$0xff]
    %v629 = vld [vmem:[#allocation7 + $0x1c0] sm:$0xff]
    %v630 = vld [vmem:[#allocation7 + $0x1c8] sm:$0xff]
    %v631 = vld [vmem:[#allocation7 + $0x1d0] sm:$0xff]
    %v632 = vld [vmem:[#allocation7 + $0x1d8] sm:$0xff]
    %v633 = vld [vmem:[#allocation7 + $0x1e0] sm:$0xff]
    %v634 = vld [vmem:[#allocation7 + $0x1e8] sm:$0xff]
    %v635 = vld [vmem:[#allocation7 + $0x1f0] sm:$0xff]
    %v636 = vld [vmem:[#allocation7 + $0x1f8] sm:$0xff]
    %637 = vmatprep.subr.mxu0 0.0
    %638 = vmatpush1.msra.mxu0 %v573
    %639 = vmatprep.subr.mxu0 0.0
    %640 = vmatpush1.msra.mxu0 %v574
    %641 = vmatprep.subr.mxu0 0.0
    %642 = vmatpush1.msra.mxu0 %v575
    %643 = vmatprep.subr.mxu0 0.0
    %644 = vmatpush1.msra.mxu0 %v576
    %645 = vmatprep.subr.mxu0 0.0
    %646 = vmatpush1.msra.mxu0 %v577
    %647 = vmatprep.subr.mxu0 0.0
    %648 = vmatpush1.msra.mxu0 %v578
    %649 = vmatprep.subr.mxu0 0.0
    %650 = vmatpush1.msra.mxu0 %v579
    %651 = vmatprep.subr.mxu0 0.0
    %652 = vmatpush1.msra.mxu0 %v580
    %653 = vmatprep.subr.mxu0 0.0
    %654 = vmatpush1.msra.mxu0 %v581
    %655 = vmatprep.subr.mxu0 0.0
    %656 = vmatpush1.msra.mxu0 %v582
    %657 = vmatprep.subr.mxu0 0.0
    %658 = vmatpush1.msra.mxu0 %v583
    %659 = vmatprep.subr.mxu0 0.0
    %660 = vmatpush1.msra.mxu0 %v584
    %661 = vmatprep.subr.mxu0 0.0
    %662 = vmatpush1.msra.mxu0 %v585
    %663 = vmatprep.subr.mxu0 0.0
    %664 = vmatpush1.msra.mxu0 %v586
    %665 = vmatprep.subr.mxu0 0.0
    %666 = vmatpush1.msra.mxu0 %v587
    %667 = vmatprep.subr.mxu0 0.0
    %668 = vmatpush1.msra.mxu0 %v588
    %669 = vmatprep.subr.mxu0 0.0
    %670 = vmatpush1.msra.mxu0 %v589
    %671 = vmatprep.subr.mxu0 0.0
    %672 = vmatpush1.msra.mxu0 %v590
    %673 = vmatprep.subr.mxu0 0.0
    %674 = vmatpush1.msra.mxu0 %v591
    %675 = vmatprep.subr.mxu0 0.0
    %676 = vmatpush1.msra.mxu0 %v592
    %677 = vmatprep.subr.mxu0 0.0
    %678 = vmatpush1.msra.mxu0 %v593
    %679 = vmatprep.subr.mxu0 0.0
    %680 = vmatpush1.msra.mxu0 %v594
    %681 = vmatprep.subr.mxu0 0.0
    %682 = vmatpush1.msra.mxu0 %v595
    %683 = vmatprep.subr.mxu0 0.0
    %684 = vmatpush1.msra.mxu0 %v596
    %685 = vmatprep.subr.mxu0 0.0
    %686 = vmatpush1.msra.mxu0 %v597
    %687 = vmatprep.subr.mxu0 0.0
    %688 = vmatpush1.msra.mxu0 %v598
    %689 = vmatprep.subr.mxu0 0.0
    %690 = vmatpush1.msra.mxu0 %v599
    %691 = vmatprep.subr.mxu0 0.0
    %692 = vmatpush1.msra.mxu0 %v600
    %693 = vmatprep.subr.mxu0 0.0
    %694 = vmatpush1.msra.mxu0 %v601
    %695 = vmatprep.subr.mxu0 0.0
    %696 = vmatpush1.msra.mxu0 %v602
    %697 = vmatprep.subr.mxu0 0.0
    %698 = vmatpush1.msra.mxu0 %v603
    %699 = vmatprep.subr.mxu0 0.0
    %700 = vmatpush1.msra.mxu0 %v604
    %701 = vmatprep.mubr.f32.mxu0 %v560
    %702 = vmatmul.mubr.f32.gmra.mrb[0].mxu0 %v559
    %v703 = vpop.f32.mrb[0].mxu0
    %v704 = vadd.f32 0.0, %v703
    %v705 = vpop.f32.mrb[0].mxu0
    %706 = vmatprep.mubr.f32.mxu0 %v564
    %707 = vmatmul.mubr.f32.gmra.mrb[0].mxu0 %v563
    %v708 = vpop.f32.mrb[0].mxu0
    %v709 = vadd.f32 0.0, %v708
    %v710 = vpop.f32.mrb[0].mxu0
    %711 = vdwg.mxu0
    %712 = vmatprep.subr.mxu0 0.0
    %713 = vmatpush1.msra.mxu0 %v605
    %714 = vmatprep.subr.mxu0 0.0
    %715 = vmatpush1.msra.mxu0 %v606
    %716 = vmatprep.subr.mxu0 0.0
    %717 = vmatpush1.msra.mxu0 %v607
    %718 = vmatprep.subr.mxu0 0.0
    %719 = vmatpush1.msra.mxu0 %v608
    %720 = vmatprep.subr.mxu0 0.0
    %721 = vmatpush1.msra.mxu0 %v609
    %722 = vmatprep.subr.mxu0 0.0
    %723 = vmatpush1.msra.mxu0 %v610
    %724 = vmatprep.subr.mxu0 0.0
    %725 = vmatpush1.msra.mxu0 %v611
    %726 = vmatprep.subr.mxu0 0.0
    %727 = vmatpush1.msra.mxu0 %v612
    %728 = vmatprep.subr.mxu0 0.0
    %729 = vmatpush1.msra.mxu0 %v613
    %730 = vmatprep.subr.mxu0 0.0
    %731 = vmatpush1.msra.mxu0 %v614
    %732 = vmatprep.subr.mxu0 0.0
    %733 = vmatpush1.msra.mxu0 %v615
    %734 = vmatprep.subr.mxu0 0.0
    %735 = vmatpush1.msra.mxu0 %v616
    %736 = vmatprep.subr.mxu0 0.0
    %737 = vmatpush1.msra.mxu0 %v617
    %738 = vmatprep.subr.mxu0 0.0
    %739 = vmatpush1.msra.mxu0 %v618
    %740 = vmatprep.subr.mxu0 0.0
    %741 = vmatpush1.msra.mxu0 %v619
    %742 = vmatprep.subr.mxu0 0.0
    %743 = vmatpush1.msra.mxu0 %v620
    %744 = vmatprep.subr.mxu0 0.0
    %745 = vmatpush1.msra.mxu0 %v621
    %746 = vmatprep.subr.mxu0 0.0
    %747 = vmatpush1.msra.mxu0 %v622
    %748 = vmatprep.subr.mxu0 0.0
    %749 = vmatpush1.msra.mxu0 %v623
    %750 = vmatprep.subr.mxu0 0.0
    %751 = vmatpush1.msra.mxu0 %v624
    %752 = vmatprep.subr.mxu0 0.0
    %753 = vmatpush1.msra.mxu0 %v625
    %754 = vmatprep.subr.mxu0 0.0
    %755 = vmatpush1.msra.mxu0 %v626
    %756 = vmatprep.subr.mxu0 0.0
    %757 = vmatpush1.msra.mxu0 %v627
    %758 = vmatprep.subr.mxu0 0.0
    %759 = vmatpush1.msra.mxu0 %v628
    %760 = vmatprep.subr.mxu0 0.0
    %761 = vmatpush1.msra.mxu0 %v629
    %762 = vmatprep.subr.mxu0 0.0
    %763 = vmatpush1.msra.mxu0 %v630
    %764 = vmatprep.subr.mxu0 0.0
    %765 = vmatpush1.msra.mxu0 %v631
    %766 = vmatprep.subr.mxu0 0.0
    %767 = vmatpush1.msra.mxu0 %v632
    %768 = vmatprep.subr.mxu0 0.0
    %769 = vmatpush1.msra.mxu0 %v633
    %770 = vmatprep.subr.mxu0 0.0
    %771 = vmatpush1.msra.mxu0 %v634
    %772 = vmatprep.subr.mxu0 0.0
    %773 = vmatpush1.msra.mxu0 %v635
    %774 = vmatprep.subr.mxu0 0.0
    %775 = vmatpush1.msra.mxu0 %v636
    %776 = vmatprep.mubr.f32.mxu0 %v562
    %777 = vmatmul.mubr.f32.gmra.mrb[0].mxu0 %v561
    %v778 = vpop.f32.mrb[0].mxu0
    %v779 = vadd.f32 %v704, %v778
    %v780 = vpop.f32.mrb[0].mxu0
    %781 = vmatprep.mubr.f32.mxu0 %v566
    %782 = vmatmul.mubr.f32.gmra.mrb[0].mxu0 %v565
    %v783 = vpop.f32.mrb[0].mxu0
    %v784 = vadd.f32 %v709, %v783
    %v785 = vpop.f32.mrb[0].mxu0
    %786 = vdwg.mxu0
    %s787 = scalar_lea.vmem %s7, 48
    %v788 = vld [vmem:[%s787] sm:$0xff]
    %v789 = vld [vmem:[%s787 + $0x8] sm:$0xff]
    %v790 = vld [vmem:[%s787 + $0x10] sm:$0xff]
    %v791 = vld [vmem:[%s787 + $0x18] sm:$0xff]
    %v792 = vld [vmem:[%s787 + $0x20] sm:$0xff]
    %v793 = vld [vmem:[%s787 + $0x28] sm:$0xff]
    %s794 = scalar_lea.vmem [#allocation7], 512
    %v795 = vld [vmem:[%s794] sm:$0xff]
    %v796 = vld [vmem:[%s794 + $0x8] sm:$0xff]
    %v797 = vld [vmem:[%s794 + $0x10] sm:$0xff]
    %v798 = vld [vmem:[%s794 + $0x18] sm:$0xff]
    %v799 = vld [vmem:[%s794 + $0x20] sm:$0xff]
    %v800 = vld [vmem:[%s794 + $0x28] sm:$0xff]
    %v801 = vld [vmem:[%s794 + $0x30] sm:$0xff]
    %v802 = vld [vmem:[%s794 + $0x38] sm:$0xff]
    %v803 = vld [vmem:[%s794 + $0x40] sm:$0xff]
    %v804 = vld [vmem:[%s794 + $0x48] sm:$0xff]
    %v805 = vld [vmem:[%s794 + $0x50] sm:$0xff]
    %v806 = vld [vmem:[%s794 + $0x58] sm:$0xff]
    %v807 = vld [vmem:[%s794 + $0x60] sm:$0xff]
    %v808 = vld [vmem:[%s794 + $0x68] sm:$0xff]
    %v809 = vld [vmem:[%s794 + $0x70] sm:$0xff]
    %v810 = vld [vmem:[%s794 + $0x78] sm:$0xff]
    %v811 = vld [vmem:[%s794 + $0x80] sm:$0xff]
    %v812 = vld [vmem:[%s794 + $0x88] sm:$0xff]
    %v813 = vld [vmem:[%s794 + $0x90] sm:$0xff]
    %v814 = vld [vmem:[%s794 + $0x98] sm:$0xff]
    %v815 = vld [vmem:[%s794 + $0xa0] sm:$0xff]
    %v816 = vld [vmem:[%s794 + $0xa8] sm:$0xff]
    %v817 = vld [vmem:[%s794 + $0xb0] sm:$0xff]
    %v818 = vld [vmem:[%s794 + $0xb8] sm:$0xff]
    %v819 = vld [vmem:[%s794 + $0xc0] sm:$0xff]
    %v820 = vld [vmem:[%s794 + $0xc8] sm:$0xff]
    %v821 = vld [vmem:[%s794 + $0xd0] sm:$0xff]
    %v822 = vld [vmem:[%s794 + $0xd8] sm:$0xff]
    %v823 = vld [vmem:[%s794 + $0xe0] sm:$0xff]
    %v824 = vld [vmem:[%s794 + $0xe8] sm:$0xff]
    %v825 = vld [vmem:[%s794 + $0xf0] sm:$0xff]
    %v826 = vld [vmem:[%s794 + $0xf8] sm:$0xff]
    %v827 = vld [vmem:[%s794 + $0x100] sm:$0xff]
    %v828 = vld [vmem:[%s794 + $0x108] sm:$0xff]
    %v829 = vld [vmem:[%s794 + $0x110] sm:$0xff]
    %v830 = vld [vmem:[%s794 + $0x118] sm:$0xff]
    %v831 = vld [vmem:[%s794 + $0x120] sm:$0xff]
    %v832 = vld [vmem:[%s794 + $0x128] sm:$0xff]
    %v833 = vld [vmem:[%s794 + $0x130] sm:$0xff]
    %v834 = vld [vmem:[%s794 + $0x138] sm:$0xff]
    %v835 = vld [vmem:[%s794 + $0x140] sm:$0xff]
    %v836 = vld [vmem:[%s794 + $0x148] sm:$0xff]
    %v837 = vld [vmem:[%s794 + $0x150] sm:$0xff]
    %v838 = vld [vmem:[%s794 + $0x158] sm:$0xff]
    %v839 = vld [vmem:[%s794 + $0x160] sm:$0xff]
    %v840 = vld [vmem:[%s794 + $0x168] sm:$0xff]
    %v841 = vld [vmem:[%s794 + $0x170] sm:$0xff]
    %v842 = vld [vmem:[%s794 + $0x178] sm:$0xff]
    %v843 = vld [vmem:[%s794 + $0x180] sm:$0xff]
    %v844 = vld [vmem:[%s794 + $0x188] sm:$0xff]
    %v845 = vld [vmem:[%s794 + $0x190] sm:$0xff]
    %v846 = vld [vmem:[%s794 + $0x198] sm:$0xff]
    %v847 = vld [vmem:[%s794 + $0x1a0] sm:$0xff]
    %v848 = vld [vmem:[%s794 + $0x1a8] sm:$0xff]
    %v849 = vld [vmem:[%s794 + $0x1b0] sm:$0xff]
    %v850 = vld [vmem:[%s794 + $0x1b8] sm:$0xff]
    %v851 = vld [vmem:[%s794 + $0x1c0] sm:$0xff]
    %v852 = vld [vmem:[%s794 + $0x1c8] sm:$0xff]
    %v853 = vld [vmem:[%s794 + $0x1d0] sm:$0xff]
    %v854 = vld [vmem:[%s794 + $0x1d8] sm:$0xff]
    %v855 = vld [vmem:[%s794 + $0x1e0] sm:$0xff]
    %v856 = vld [vmem:[%s794 + $0x1e8] sm:$0xff]
    %v857 = vld [vmem:[%s794 + $0x1f0] sm:$0xff]
    %v858 = vld [vmem:[%s794 + $0x1f8] sm:$0xff]
    %859 = vmatprep.subr.mxu0 0.0
    %860 = vmatpush1.msra.mxu0 %v795
    %861 = vmatprep.subr.mxu0 0.0
    %862 = vmatpush1.msra.mxu0 %v796
    %863 = vmatprep.subr.mxu0 0.0
    %864 = vmatpush1.msra.mxu0 %v797
    %865 = vmatprep.subr.mxu0 0.0
    %866 = vmatpush1.msra.mxu0 %v798
    %867 = vmatprep.subr.mxu0 0.0
    %868 = vmatpush1.msra.mxu0 %v799
    %869 = vmatprep.subr.mxu0 0.0
    %870 = vmatpush1.msra.mxu0 %v800
    %871 = vmatprep.subr.mxu0 0.0
    %872 = vmatpush1.msra.mxu0 %v801
    %873 = vmatprep.subr.mxu0 0.0
    %874 = vmatpush1.msra.mxu0 %v802
    %875 = vmatprep.subr.mxu0 0.0
    %876 = vmatpush1.msra.mxu0 %v803
    %877 = vmatprep.subr.mxu0 0.0
    %878 = vmatpush1.msra.mxu0 %v804
    %879 = vmatprep.subr.mxu0 0.0
    %880 = vmatpush1.msra.mxu0 %v805
    %881 = vmatprep.subr.mxu0 0.0
    %882 = vmatpush1.msra.mxu0 %v806
    %883 = vmatprep.subr.mxu0 0.0
    %884 = vmatpush1.msra.mxu0 %v807
    %885 = vmatprep.subr.mxu0 0.0
    %886 = vmatpush1.msra.mxu0 %v808
    %887 = vmatprep.subr.mxu0 0.0
    %888 = vmatpush1.msra.mxu0 %v809
    %889 = vmatprep.subr.mxu0 0.0
    %890 = vmatpush1.msra.mxu0 %v810
    %891 = vmatprep.subr.mxu0 0.0
    %892 = vmatpush1.msra.mxu0 %v811
    %893 = vmatprep.subr.mxu0 0.0
    %894 = vmatpush1.msra.mxu0 %v812
    %895 = vmatprep.subr.mxu0 0.0
    %896 = vmatpush1.msra.mxu0 %v813
    %897 = vmatprep.subr.mxu0 0.0
    %898 = vmatpush1.msra.mxu0 %v814
    %899 = vmatprep.subr.mxu0 0.0
    %900 = vmatpush1.msra.mxu0 %v815
    %901 = vmatprep.subr.mxu0 0.0
    %902 = vmatpush1.msra.mxu0 %v816
    %903 = vmatprep.subr.mxu0 0.0
    %904 = vmatpush1.msra.mxu0 %v817
    %905 = vmatprep.subr.mxu0 0.0
    %906 = vmatpush1.msra.mxu0 %v818
    %907 = vmatprep.subr.mxu0 0.0
    %908 = vmatpush1.msra.mxu0 %v819
    %909 = vmatprep.subr.mxu0 0.0
    %910 = vmatpush1.msra.mxu0 %v820
    %911 = vmatprep.subr.mxu0 0.0
    %912 = vmatpush1.msra.mxu0 %v821
    %913 = vmatprep.subr.mxu0 0.0
    %914 = vmatpush1.msra.mxu0 %v822
    %915 = vmatprep.subr.mxu0 0.0
    %916 = vmatpush1.msra.mxu0 %v823
    %917 = vmatprep.subr.mxu0 0.0
    %918 = vmatpush1.msra.mxu0 %v824
    %919 = vmatprep.subr.mxu0 0.0
    %920 = vmatpush1.msra.mxu0 %v825
    %921 = vmatprep.subr.mxu0 0.0
    %922 = vmatpush1.msra.mxu0 %v826
    %923 = vmatprep.mubr.f32.mxu0 %v560
    %924 = vmatmul.mubr.f32.gmra.mrb[0].mxu0 %v559
    %v925 = vpop.f32.mrb[0].mxu0
    %v926 = vadd.f32 0.0, %v925
    %v927 = vpop.f32.mrb[0].mxu0
    %928 = vmatprep.mubr.f32.mxu0 %v564
    %929 = vmatmul.mubr.f32.gmra.mrb[0].mxu0 %v563
    %v930 = vpop.f32.mrb[0].mxu0
    %v931 = vadd.f32 0.0, %v930
    %v932 = vpop.f32.mrb[0].mxu0
    %933 = vdwg.mxu0
    %934 = vmatprep.subr.mxu0 0.0
    %935 = vmatpush1.msra.mxu0 %v827
    %936 = vmatprep.subr.mxu0 0.0
    %937 = vmatpush1.msra.mxu0 %v828
    %938 = vmatprep.subr.mxu0 0.0
    %939 = vmatpush1.msra.mxu0 %v829
    %940 = vmatprep.subr.mxu0 0.0
    %941 = vmatpush1.msra.mxu0 %v830
    %942 = vmatprep.subr.mxu0 0.0
    %943 = vmatpush1.msra.mxu0 %v831
    %944 = vmatprep.subr.mxu0 0.0
    %945 = vmatpush1.msra.mxu0 %v832
    %946 = vmatprep.subr.mxu0 0.0
    %947 = vmatpush1.msra.mxu0 %v833
    %948 = vmatprep.subr.mxu0 0.0
    %949 = vmatpush1.msra.mxu0 %v834
    %950 = vmatprep.subr.mxu0 0.0
    %951 = vmatpush1.msra.mxu0 %v835
    %952 = vmatprep.subr.mxu0 0.0
    %953 = vmatpush1.msra.mxu0 %v836
    %954 = vmatprep.subr.mxu0 0.0
    %955 = vmatpush1.msra.mxu0 %v837
    %956 = vmatprep.subr.mxu0 0.0
    %957 = vmatpush1.msra.mxu0 %v838
    %958 = vmatprep.subr.mxu0 0.0
    %959 = vmatpush1.msra.mxu0 %v839
    %960 = vmatprep.subr.mxu0 0.0
    %961 = vmatpush1.msra.mxu0 %v840
    %962 = vmatprep.subr.mxu0 0.0
    %963 = vmatpush1.msra.mxu0 %v841
    %964 = vmatprep.subr.mxu0 0.0
    %965 = vmatpush1.msra.mxu0 %v842
    %966 = vmatprep.subr.mxu0 0.0
    %967 = vmatpush1.msra.mxu0 %v843
    %968 = vmatprep.subr.mxu0 0.0
    %969 = vmatpush1.msra.mxu0 %v844
    %970 = vmatprep.subr.mxu0 0.0
    %971 = vmatpush1.msra.mxu0 %v845
    %972 = vmatprep.subr.mxu0 0.0
    %973 = vmatpush1.msra.mxu0 %v846
    %974 = vmatprep.subr.mxu0 0.0
    %975 = vmatpush1.msra.mxu0 %v847
    %976 = vmatprep.subr.mxu0 0.0
    %977 = vmatpush1.msra.mxu0 %v848
    %978 = vmatprep.subr.mxu0 0.0
    %979 = vmatpush1.msra.mxu0 %v849
    %980 = vmatprep.subr.mxu0 0.0
    %981 = vmatpush1.msra.mxu0 %v850
    %982 = vmatprep.subr.mxu0 0.0
    %983 = vmatpush1.msra.mxu0 %v851
    %984 = vmatprep.subr.mxu0 0.0
    %985 = vmatpush1.msra.mxu0 %v852
    %986 = vmatprep.subr.mxu0 0.0
    %987 = vmatpush1.msra.mxu0 %v853
    %988 = vmatprep.subr.mxu0 0.0
    %989 = vmatpush1.msra.mxu0 %v854
    %990 = vmatprep.subr.mxu0 0.0
    %991 = vmatpush1.msra.mxu0 %v855
    %992 = vmatprep.subr.mxu0 0.0
    %993 = vmatpush1.msra.mxu0 %v856
    %994 = vmatprep.subr.mxu0 0.0
    %995 = vmatpush1.msra.mxu0 %v857
    %996 = vmatprep.subr.mxu0 0.0
    %997 = vmatpush1.msra.mxu0 %v858
    %998 = vmatprep.mubr.f32.mxu0 %v562
    %999 = vmatmul.mubr.f32.gmra.mrb[0].mxu0 %v561
    %v1000 = vpop.f32.mrb[0].mxu0
    %v1001 = vadd.f32 %v926, %v1000
    %v1002 = vpop.f32.mrb[0].mxu0
    %1003 = vmatprep.mubr.f32.mxu0 %v566
    %1004 = vmatmul.mubr.f32.gmra.mrb[0].mxu0 %v565
    %v1005 = vpop.f32.mrb[0].mxu0
    %v1006 = vadd.f32 %v931, %v1005
    %v1007 = vpop.f32.mrb[0].mxu0
    %1008 = vdwg.mxu0
    %vm1009 = vcmask 130048
    %v1011 = vsel %vm1009, %v788, 0
    %v1014 = vsel %vm1009, %v789, 0
    %v1017 = vsel %vm1009, %v790, 0
    %v1020 = vsel %vm1009, %v791, 0
    %v1023 = vsel %vm1009, %v792, 0
    %v1026 = vsel %vm1009, %v793, 0
    %1028 = vmatprep.subr.mxu0 0.0
    %1029 = vmatpush1.msra.mxu0 %v1001
    %1030 = vmatprep.subr.mxu0 0.0
    %1031 = vmatpush1.msra.mxu0 %v1006
    %1032 = vmatprep.subr.mxu0 0.0
    %1033 = vmatpush1.msra.mxu0 0.0
    %1034 = vmatprep.subr.mxu0 0.0
    %1035 = vmatpush1.msra.mxu0 0.0
    %1036 = vmatprep.subr.mxu0 0.0
    %1037 = vmatpush1.msra.mxu0 0.0
    %1038 = vmatprep.subr.mxu0 0.0
    %1039 = vmatpush1.msra.mxu0 0.0
    %1040 = vmatprep.subr.mxu0 0.0
    %1041 = vmatpush1.msra.mxu0 0.0
    %1042 = vmatprep.subr.mxu0 0.0
    %1043 = vmatpush1.msra.mxu0 0.0
    %1044 = vmatprep.subr.mxu0 0.0
    %1045 = vmatpush1.msra.mxu0 0.0
    %1046 = vmatprep.subr.mxu0 0.0
    %1047 = vmatpush1.msra.mxu0 0.0
    %1048 = vmatprep.subr.mxu0 0.0
    %1049 = vmatpush1.msra.mxu0 0.0
    %1050 = vmatprep.subr.mxu0 0.0
    %1051 = vmatpush1.msra.mxu0 0.0
    %1052 = vmatprep.subr.mxu0 0.0
    %1053 = vmatpush1.msra.mxu0 0.0
    %1054 = vmatprep.subr.mxu0 0.0
    %1055 = vmatpush1.msra.mxu0 0.0
    %1056 = vmatprep.subr.mxu0 0.0
    %1057 = vmatpush1.msra.mxu0 0.0
    %1058 = vmatprep.subr.mxu0 0.0
    %1059 = vmatpush1.msra.mxu0 0.0
    %1060 = vmatprep.subr.mxu0 0.0
    %1061 = vmatpush1.msra.mxu0 0.0
    %1062 = vmatprep.subr.mxu0 0.0
    %1063 = vmatpush1.msra.mxu0 0.0
    %1064 = vmatprep.subr.mxu0 0.0
    %1065 = vmatpush1.msra.mxu0 0.0
    %1066 = vmatprep.subr.mxu0 0.0
    %1067 = vmatpush1.msra.mxu0 0.0
    %1068 = vmatprep.subr.mxu0 0.0
    %1069 = vmatpush1.msra.mxu0 0.0
    %1070 = vmatprep.subr.mxu0 0.0
    %1071 = vmatpush1.msra.mxu0 0.0
    %1072 = vmatprep.subr.mxu0 0.0
    %1073 = vmatpush1.msra.mxu0 0.0
    %1074 = vmatprep.subr.mxu0 0.0
    %1075 = vmatpush1.msra.mxu0 0.0
    %1076 = vmatprep.subr.mxu0 0.0
    %1077 = vmatpush1.msra.mxu0 0.0
    %1078 = vmatprep.subr.mxu0 0.0
    %1079 = vmatpush1.msra.mxu0 0.0
    %1080 = vmatprep.subr.mxu0 0.0
    %1081 = vmatpush1.msra.mxu0 0.0
    %1082 = vmatprep.subr.mxu0 0.0
    %1083 = vmatpush1.msra.mxu0 0.0
    %1084 = vmatprep.subr.mxu0 0.0
    %1085 = vmatpush1.msra.mxu0 0.0
    %1086 = vmatprep.subr.mxu0 0.0
    %1087 = vmatpush1.msra.mxu0 0.0
    %1088 = vmatprep.subr.mxu0 0.0
    %1089 = vmatpush1.msra.mxu0 0.0
    %1090 = vmatprep.subr.mxu0 0.0
    %1091 = vmatpush1.msra.mxu0 0.0
    %1092 = vmatprep.mubr.f32.mxu0 0.0
    %1093 = vmatmul.mubr.f32.gmra.mrb[0].mxu0 %v1011
    %v1094 = vpop.f32.mrb[0].mxu0
    %v1095 = vadd.f32 0.0, %v1094
    %v1096 = vpop.f32.mrb[0].mxu0
    %1097 = vmatprep.mubr.f32.mxu0 0.0
    %1098 = vmatmul.mubr.f32.gmra.mrb[0].mxu0 %v1014
    %v1099 = vpop.f32.mrb[0].mxu0
    %v1100 = vadd.f32 0.0, %v1099
    %v1101 = vpop.f32.mrb[0].mxu0
    %1102 = vmatprep.mubr.f32.mxu0 0.0
    %1103 = vmatmul.mubr.f32.gmra.mrb[0].mxu0 %v1017
    %v1104 = vpop.f32.mrb[0].mxu0
    %v1105 = vadd.f32 0.0, %v1104
    %v1106 = vpop.f32.mrb[0].mxu0
    %1107 = vmatprep.mubr.f32.mxu0 0.0
    %1108 = vmatmul.mubr.f32.gmra.mrb[0].mxu0 %v1020
    %v1109 = vpop.f32.mrb[0].mxu0
    %v1110 = vadd.f32 0.0, %v1109
    %v1111 = vpop.f32.mrb[0].mxu0
    %1112 = vmatprep.mubr.f32.mxu0 0.0
    %1113 = vmatmul.mubr.f32.gmra.mrb[0].mxu0 %v1023
    %v1114 = vpop.f32.mrb[0].mxu0
    %v1115 = vadd.f32 0.0, %v1114
    %v1116 = vpop.f32.mrb[0].mxu0
    %1117 = vmatprep.mubr.f32.mxu0 0.0
    %1118 = vmatmul.mubr.f32.gmra.mrb[0].mxu0 %v1026
    %v1119 = vpop.f32.mrb[0].mxu0
    %v1120 = vadd.f32 0.0, %v1119
    %v1121 = vpop.f32.mrb[0].mxu0
    %1122 = vdwg.mxu0
    %v1124 = vsel %vm1009, %v567, 0
    %v1127 = vsel %vm1009, %v568, 0
    %v1130 = vsel %vm1009, %v569, 0
    %v1133 = vsel %vm1009, %v570, 0
    %v1136 = vsel %vm1009, %v571, 0
    %v1139 = vsel %vm1009, %v572, 0
    %1141 = vmatprep.subr.mxu0 0.0
    %1142 = vmatpush1.msra.mxu0 %v779
    %1143 = vmatprep.subr.mxu0 0.0
    %1144 = vmatpush1.msra.mxu0 %v784
    %1145 = vmatprep.subr.mxu0 0.0
    %1146 = vmatpush1.msra.mxu0 0.0
    %1147 = vmatprep.subr.mxu0 0.0
    %1148 = vmatpush1.msra.mxu0 0.0
    %1149 = vmatprep.subr.mxu0 0.0
    %1150 = vmatpush1.msra.mxu0 0.0
    %1151 = vmatprep.subr.mxu0 0.0
    %1152 = vmatpush1.msra.mxu0 0.0
    %1153 = vmatprep.subr.mxu0 0.0
    %1154 = vmatpush1.msra.mxu0 0.0
    %1155 = vmatprep.subr.mxu0 0.0
    %1156 = vmatpush1.msra.mxu0 0.0
    %1157 = vmatprep.subr.mxu0 0.0
    %1158 = vmatpush1.msra.mxu0 0.0
    %1159 = vmatprep.subr.mxu0 0.0
    %1160 = vmatpush1.msra.mxu0 0.0
    %1161 = vmatprep.subr.mxu0 0.0
    %1162 = vmatpush1.msra.mxu0 0.0
    %1163 = vmatprep.subr.mxu0 0.0
    %1164 = vmatpush1.msra.mxu0 0.0
    %1165 = vmatprep.subr.mxu0 0.0
    %1166 = vmatpush1.msra.mxu0 0.0
    %1167 = vmatprep.subr.mxu0 0.0
    %1168 = vmatpush1.msra.mxu0 0.0
    %1169 = vmatprep.subr.mxu0 0.0
    %1170 = vmatpush1.msra.mxu0 0.0
    %1171 = vmatprep.subr.mxu0 0.0
    %1172 = vmatpush1.msra.mxu0 0.0
    %1173 = vmatprep.subr.mxu0 0.0
    %1174 = vmatpush1.msra.mxu0 0.0
    %1175 = vmatprep.subr.mxu0 0.0
    %1176 = vmatpush1.msra.mxu0 0.0
    %1177 = vmatprep.subr.mxu0 0.0
    %1178 = vmatpush1.msra.mxu0 0.0
    %1179 = vmatprep.subr.mxu0 0.0
    %1180 = vmatpush1.msra.mxu0 0.0
    %1181 = vmatprep.subr.mxu0 0.0
    %1182 = vmatpush1.msra.mxu0 0.0
    %1183 = vmatprep.subr.mxu0 0.0
    %1184 = vmatpush1.msra.mxu0 0.0
    %1185 = vmatprep.subr.mxu0 0.0
    %1186 = vmatpush1.msra.mxu0 0.0
    %1187 = vmatprep.subr.mxu0 0.0
    %1188 = vmatpush1.msra.mxu0 0.0
    %1189 = vmatprep.subr.mxu0 0.0
    %1190 = vmatpush1.msra.mxu0 0.0
    %1191 = vmatprep.subr.mxu0 0.0
    %1192 = vmatpush1.msra.mxu0 0.0
    %1193 = vmatprep.subr.mxu0 0.0
    %1194 = vmatpush1.msra.mxu0 0.0
    %1195 = vmatprep.subr.mxu0 0.0
    %1196 = vmatpush1.msra.mxu0 0.0
    %1197 = vmatprep.subr.mxu0 0.0
    %1198 = vmatpush1.msra.mxu0 0.0
    %1199 = vmatprep.subr.mxu0 0.0
    %1200 = vmatpush1.msra.mxu0 0.0
    %1201 = vmatprep.subr.mxu0 0.0
    %1202 = vmatpush1.msra.mxu0 0.0
    %1203 = vmatprep.subr.mxu0 0.0
    %1204 = vmatpush1.msra.mxu0 0.0
    %1205 = vmatprep.mubr.f32.mxu0 0.0
    %1206 = vmatmul.mubr.f32.gmra.mrb[0].mxu0 %v1124
    %v1207 = vpop.f32.mrb[0].mxu0
    %v1208 = vadd.f32 %v1095, %v1207
    %v1209 = vpop.f32.mrb[0].mxu0
    %1210 = vmatprep.mubr.f32.mxu0 0.0
    %1211 = vmatmul.mubr.f32.gmra.mrb[0].mxu0 %v1127
    %v1212 = vpop.f32.mrb[0].mxu0
    %v1213 = vadd.f32 %v1100, %v1212
    %v1214 = vpop.f32.mrb[0].mxu0
    %1215 = vmatprep.mubr.f32.mxu0 0.0
    %1216 = vmatmul.mubr.f32.gmra.mrb[0].mxu0 %v1130
    %v1217 = vpop.f32.mrb[0].mxu0
    %v1218 = vadd.f32 %v1105, %v1217
    %v1219 = vpop.f32.mrb[0].mxu0
    %1220 = vmatprep.mubr.f32.mxu0 0.0
    %1221 = vmatmul.mubr.f32.gmra.mrb[0].mxu0 %v1133
    %v1222 = vpop.f32.mrb[0].mxu0
    %v1223 = vadd.f32 %v1110, %v1222
    %v1224 = vpop.f32.mrb[0].mxu0
    %1225 = vmatprep.mubr.f32.mxu0 0.0
    %1226 = vmatmul.mubr.f32.gmra.mrb[0].mxu0 %v1136
    %v1227 = vpop.f32.mrb[0].mxu0
    %v1228 = vadd.f32 %v1115, %v1227
    %v1229 = vpop.f32.mrb[0].mxu0
    %1230 = vmatprep.mubr.f32.mxu0 0.0
    %1231 = vmatmul.mubr.f32.gmra.mrb[0].mxu0 %v1139
    %v1232 = vpop.f32.mrb[0].mxu0
    %v1233 = vadd.f32 %v1120, %v1232
    %v1234 = vpop.f32.mrb[0].mxu0
    %1235 = vdwg.mxu0
    %s1236 = scalar_lea.vmem %s7, 96
    %v1237 = vld [vmem:[%s1236] sm:$0xff]
    %v1238 = vld [vmem:[%s1236 + $0x8] sm:$0xff]
    %v1239 = vld [vmem:[%s1236 + $0x10] sm:$0xff]
    %v1240 = vld [vmem:[%s1236 + $0x18] sm:$0xff]
    %v1241 = vld [vmem:[%s1236 + $0x20] sm:$0xff]
    %v1242 = vld [vmem:[%s1236 + $0x28] sm:$0xff]
    %s1243 = scalar_lea.vmem [#allocation7], 1024
    %v1244 = vld [vmem:[%s1243] sm:$0xff]
    %v1245 = vld [vmem:[%s1243 + $0x8] sm:$0xff]
    %v1246 = vld [vmem:[%s1243 + $0x10] sm:$0xff]
    %v1247 = vld [vmem:[%s1243 + $0x18] sm:$0xff]
    %v1248 = vld [vmem:[%s1243 + $0x20] sm:$0xff]
    %v1249 = vld [vmem:[%s1243 + $0x28] sm:$0xff]
    %v1250 = vld [vmem:[%s1243 + $0x30] sm:$0xff]
    %v1251 = vld [vmem:[%s1243 + $0x38] sm:$0xff]
    %v1252 = vld [vmem:[%s1243 + $0x40] sm:$0xff]
    %v1253 = vld [vmem:[%s1243 + $0x48] sm:$0xff]
    %v1254 = vld [vmem:[%s1243 + $0x50] sm:$0xff]
    %v1255 = vld [vmem:[%s1243 + $0x58] sm:$0xff]
    %v1256 = vld [vmem:[%s1243 + $0x60] sm:$0xff]
    %v1257 = vld [vmem:[%s1243 + $0x68] sm:$0xff]
    %v1258 = vld [vmem:[%s1243 + $0x70] sm:$0xff]
    %v1259 = vld [vmem:[%s1243 + $0x78] sm:$0xff]
    %v1260 = vld [vmem:[%s1243 + $0x80] sm:$0xff]
    %v1261 = vld [vmem:[%s1243 + $0x88] sm:$0xff]
    %v1262 = vld [vmem:[%s1243 + $0x90] sm:$0xff]
    %v1263 = vld [vmem:[%s1243 + $0x98] sm:$0xff]
    %v1264 = vld [vmem:[%s1243 + $0xa0] sm:$0xff]
    %v1265 = vld [vmem:[%s1243 + $0xa8] sm:$0xff]
    %v1266 = vld [vmem:[%s1243 + $0xb0] sm:$0xff]
    %v1267 = vld [vmem:[%s1243 + $0xb8] sm:$0xff]
    %v1268 = vld [vmem:[%s1243 + $0xc0] sm:$0xff]
    %v1269 = vld [vmem:[%s1243 + $0xc8] sm:$0xff]
    %v1270 = vld [vmem:[%s1243 + $0xd0] sm:$0xff]
    %v1271 = vld [vmem:[%s1243 + $0xd8] sm:$0xff]
    %v1272 = vld [vmem:[%s1243 + $0xe0] sm:$0xff]
    %v1273 = vld [vmem:[%s1243 + $0xe8] sm:$0xff]
    %v1274 = vld [vmem:[%s1243 + $0xf0] sm:$0xff]
    %v1275 = vld [vmem:[%s1243 + $0xf8] sm:$0xff]
    %v1276 = vld [vmem:[%s1243 + $0x100] sm:$0xff]
    %v1277 = vld [vmem:[%s1243 + $0x108] sm:$0xff]
    %v1278 = vld [vmem:[%s1243 + $0x110] sm:$0xff]
    %v1279 = vld [vmem:[%s1243 + $0x118] sm:$0xff]
    %v1280 = vld [vmem:[%s1243 + $0x120] sm:$0xff]
    %v1281 = vld [vmem:[%s1243 + $0x128] sm:$0xff]
    %v1282 = vld [vmem:[%s1243 + $0x130] sm:$0xff]
    %v1283 = vld [vmem:[%s1243 + $0x138] sm:$0xff]
    %v1284 = vld [vmem:[%s1243 + $0x140] sm:$0xff]
    %v1285 = vld [vmem:[%s1243 + $0x148] sm:$0xff]
    %v1286 = vld [vmem:[%s1243 + $0x150] sm:$0xff]
    %v1287 = vld [vmem:[%s1243 + $0x158] sm:$0xff]
    %v1288 = vld [vmem:[%s1243 + $0x160] sm:$0xff]
    %v1289 = vld [vmem:[%s1243 + $0x168] sm:$0xff]
    %v1290 = vld [vmem:[%s1243 + $0x170] sm:$0xff]
    %v1291 = vld [vmem:[%s1243 + $0x178] sm:$0xff]
    %v1292 = vld [vmem:[%s1243 + $0x180] sm:$0xff]
    %v1293 = vld [vmem:[%s1243 + $0x188] sm:$0xff]
    %v1294 = vld [vmem:[%s1243 + $0x190] sm:$0xff]
    %v1295 = vld [vmem:[%s1243 + $0x198] sm:$0xff]
    %v1296 = vld [vmem:[%s1243 + $0x1a0] sm:$0xff]
    %v1297 = vld [vmem:[%s1243 + $0x1a8] sm:$0xff]
    %v1298 = vld [vmem:[%s1243 + $0x1b0] sm:$0xff]
    %v1299 = vld [vmem:[%s1243 + $0x1b8] sm:$0xff]
    %v1300 = vld [vmem:[%s1243 + $0x1c0] sm:$0xff]
    %v1301 = vld [vmem:[%s1243 + $0x1c8] sm:$0xff]
    %v1302 = vld [vmem:[%s1243 + $0x1d0] sm:$0xff]
    %v1303 = vld [vmem:[%s1243 + $0x1d8] sm:$0xff]
    %v1304 = vld [vmem:[%s1243 + $0x1e0] sm:$0xff]
    %v1305 = vld [vmem:[%s1243 + $0x1e8] sm:$0xff]
    %v1306 = vld [vmem:[%s1243 + $0x1f0] sm:$0xff]
    %v1307 = vld [vmem:[%s1243 + $0x1f8] sm:$0xff]
    %1308 = vmatprep.subr.mxu0 0.0
    %1309 = vmatpush1.msra.mxu0 %v1244
    %1310 = vmatprep.subr.mxu0 0.0
    %1311 = vmatpush1.msra.mxu0 %v1245
    %1312 = vmatprep.subr.mxu0 0.0
    %1313 = vmatpush1.msra.mxu0 %v1246
    %1314 = vmatprep.subr.mxu0 0.0
    %1315 = vmatpush1.msra.mxu0 %v1247
    %1316 = vmatprep.subr.mxu0 0.0
    %1317 = vmatpush1.msra.mxu0 %v1248
    %1318 = vmatprep.subr.mxu0 0.0
    %1319 = vmatpush1.msra.mxu0 %v1249
    %1320 = vmatprep.subr.mxu0 0.0
    %1321 = vmatpush1.msra.mxu0 %v1250
    %1322 = vmatprep.subr.mxu0 0.0
    %1323 = vmatpush1.msra.mxu0 %v1251
    %1324 = vmatprep.subr.mxu0 0.0
    %1325 = vmatpush1.msra.mxu0 %v1252
    %1326 = vmatprep.subr.mxu0 0.0
    %1327 = vmatpush1.msra.mxu0 %v1253
    %1328 = vmatprep.subr.mxu0 0.0
    %1329 = vmatpush1.msra.mxu0 %v1254
    %1330 = vmatprep.subr.mxu0 0.0
    %1331 = vmatpush1.msra.mxu0 %v1255
    %1332 = vmatprep.subr.mxu0 0.0
    %1333 = vmatpush1.msra.mxu0 %v1256
    %1334 = vmatprep.subr.mxu0 0.0
    %1335 = vmatpush1.msra.mxu0 %v1257
    %1336 = vmatprep.subr.mxu0 0.0
    %1337 = vmatpush1.msra.mxu0 %v1258
    %1338 = vmatprep.subr.mxu0 0.0
    %1339 = vmatpush1.msra.mxu0 %v1259
    %1340 = vmatprep.subr.mxu0 0.0
    %1341 = vmatpush1.msra.mxu0 %v1260
    %1342 = vmatprep.subr.mxu0 0.0
    %1343 = vmatpush1.msra.mxu0 %v1261
    %1344 = vmatprep.subr.mxu0 0.0
    %1345 = vmatpush1.msra.mxu0 %v1262
    %1346 = vmatprep.subr.mxu0 0.0
    %1347 = vmatpush1.msra.mxu0 %v1263
    %1348 = vmatprep.subr.mxu0 0.0
    %1349 = vmatpush1.msra.mxu0 %v1264
    %1350 = vmatprep.subr.mxu0 0.0
    %1351 = vmatpush1.msra.mxu0 %v1265
    %1352 = vmatprep.subr.mxu0 0.0
    %1353 = vmatpush1.msra.mxu0 %v1266
    %1354 = vmatprep.subr.mxu0 0.0
    %1355 = vmatpush1.msra.mxu0 %v1267
    %1356 = vmatprep.subr.mxu0 0.0
    %1357 = vmatpush1.msra.mxu0 %v1268
    %1358 = vmatprep.subr.mxu0 0.0
    %1359 = vmatpush1.msra.mxu0 %v1269
    %1360 = vmatprep.subr.mxu0 0.0
    %1361 = vmatpush1.msra.mxu0 %v1270
    %1362 = vmatprep.subr.mxu0 0.0
    %1363 = vmatpush1.msra.mxu0 %v1271
    %1364 = vmatprep.subr.mxu0 0.0
    %1365 = vmatpush1.msra.mxu0 %v1272
    %1366 = vmatprep.subr.mxu0 0.0
    %1367 = vmatpush1.msra.mxu0 %v1273
    %1368 = vmatprep.subr.mxu0 0.0
    %1369 = vmatpush1.msra.mxu0 %v1274
    %1370 = vmatprep.subr.mxu0 0.0
    %1371 = vmatpush1.msra.mxu0 %v1275
    %1372 = vmatprep.mubr.f32.mxu0 %v560
    %1373 = vmatmul.mubr.f32.gmra.mrb[0].mxu0 %v559
    %v1374 = vpop.f32.mrb[0].mxu0
    %v1375 = vadd.f32 0.0, %v1374
    %v1376 = vpop.f32.mrb[0].mxu0
    %1377 = vmatprep.mubr.f32.mxu0 %v564
    %1378 = vmatmul.mubr.f32.gmra.mrb[0].mxu0 %v563
    %v1379 = vpop.f32.mrb[0].mxu0
    %v1380 = vadd.f32 0.0, %v1379
    %v1381 = vpop.f32.mrb[0].mxu0
    %1382 = vdwg.mxu0
    %1383 = vmatprep.subr.mxu0 0.0
    %1384 = vmatpush1.msra.mxu0 %v1276
    %1385 = vmatprep.subr.mxu0 0.0
    %1386 = vmatpush1.msra.mxu0 %v1277
    %1387 = vmatprep.subr.mxu0 0.0
    %1388 = vmatpush1.msra.mxu0 %v1278
    %1389 = vmatprep.subr.mxu0 0.0
    %1390 = vmatpush1.msra.mxu0 %v1279
    %1391 = vmatprep.subr.mxu0 0.0
    %1392 = vmatpush1.msra.mxu0 %v1280
    %1393 = vmatprep.subr.mxu0 0.0
    %1394 = vmatpush1.msra.mxu0 %v1281
    %1395 = vmatprep.subr.mxu0 0.0
    %1396 = vmatpush1.msra.mxu0 %v1282
    %1397 = vmatprep.subr.mxu0 0.0
    %1398 = vmatpush1.msra.mxu0 %v1283
    %1399 = vmatprep.subr.mxu0 0.0
    %1400 = vmatpush1.msra.mxu0 %v1284
    %1401 = vmatprep.subr.mxu0 0.0
    %1402 = vmatpush1.msra.mxu0 %v1285
    %1403 = vmatprep.subr.mxu0 0.0
    %1404 = vmatpush1.msra.mxu0 %v1286
    %1405 = vmatprep.subr.mxu0 0.0
    %1406 = vmatpush1.msra.mxu0 %v1287
    %1407 = vmatprep.subr.mxu0 0.0
    %1408 = vmatpush1.msra.mxu0 %v1288
    %1409 = vmatprep.subr.mxu0 0.0
    %1410 = vmatpush1.msra.mxu0 %v1289
    %1411 = vmatprep.subr.mxu0 0.0
    %1412 = vmatpush1.msra.mxu0 %v1290
    %1413 = vmatprep.subr.mxu0 0.0
    %1414 = vmatpush1.msra.mxu0 %v1291
    %1415 = vmatprep.subr.mxu0 0.0
    %1416 = vmatpush1.msra.mxu0 %v1292
    %1417 = vmatprep.subr.mxu0 0.0
    %1418 = vmatpush1.msra.mxu0 %v1293
    %1419 = vmatprep.subr.mxu0 0.0
    %1420 = vmatpush1.msra.mxu0 %v1294
    %1421 = vmatprep.subr.mxu0 0.0
    %1422 = vmatpush1.msra.mxu0 %v1295
    %1423 = vmatprep.subr.mxu0 0.0
    %1424 = vmatpush1.msra.mxu0 %v1296
    %1425 = vmatprep.subr.mxu0 0.0
    %1426 = vmatpush1.msra.mxu0 %v1297
    %1427 = vmatprep.subr.mxu0 0.0
    %1428 = vmatpush1.msra.mxu0 %v1298
    %1429 = vmatprep.subr.mxu0 0.0
    %1430 = vmatpush1.msra.mxu0 %v1299
    %1431 = vmatprep.subr.mxu0 0.0
    %1432 = vmatpush1.msra.mxu0 %v1300
    %1433 = vmatprep.subr.mxu0 0.0
    %1434 = vmatpush1.msra.mxu0 %v1301
    %1435 = vmatprep.subr.mxu0 0.0
    %1436 = vmatpush1.msra.mxu0 %v1302
    %1437 = vmatprep.subr.mxu0 0.0
    %1438 = vmatpush1.msra.mxu0 %v1303
    %1439 = vmatprep.subr.mxu0 0.0
    %1440 = vmatpush1.msra.mxu0 %v1304
    %1441 = vmatprep.subr.mxu0 0.0
    %1442 = vmatpush1.msra.mxu0 %v1305
    %1443 = vmatprep.subr.mxu0 0.0
    %1444 = vmatpush1.msra.mxu0 %v1306
    %1445 = vmatprep.subr.mxu0 0.0
    %1446 = vmatpush1.msra.mxu0 %v1307
    %1447 = vmatprep.mubr.f32.mxu0 %v562
    %1448 = vmatmul.mubr.f32.gmra.mrb[0].mxu0 %v561
    %v1449 = vpop.f32.mrb[0].mxu0
    %v1450 = vadd.f32 %v1375, %v1449
    %v1451 = vpop.f32.mrb[0].mxu0
    %1452 = vmatprep.mubr.f32.mxu0 %v566
    %1453 = vmatmul.mubr.f32.gmra.mrb[0].mxu0 %v565
    %v1454 = vpop.f32.mrb[0].mxu0
    %v1455 = vadd.f32 %v1380, %v1454
    %v1456 = vpop.f32.mrb[0].mxu0
    %1457 = vdwg.mxu0
    %v1459 = vsel %vm1009, %v1237, 0
    %v1462 = vsel %vm1009, %v1238, 0
    %v1465 = vsel %vm1009, %v1239, 0
    %v1468 = vsel %vm1009, %v1240, 0
    %v1471 = vsel %vm1009, %v1241, 0
    %v1474 = vsel %vm1009, %v1242, 0
    %1476 = vmatprep.subr.mxu0 0.0
    %1477 = vmatpush1.msra.mxu0 %v1450
    %1478 = vmatprep.subr.mxu0 0.0
    %1479 = vmatpush1.msra.mxu0 %v1455
    %1480 = vmatprep.subr.mxu0 0.0
    %1481 = vmatpush1.msra.mxu0 0.0
    %1482 = vmatprep.subr.mxu0 0.0
    %1483 = vmatpush1.msra.mxu0 0.0
    %1484 = vmatprep.subr.mxu0 0.0
    %1485 = vmatpush1.msra.mxu0 0.0
    %1486 = vmatprep.subr.mxu0 0.0
    %1487 = vmatpush1.msra.mxu0 0.0
    %1488 = vmatprep.subr.mxu0 0.0
    %1489 = vmatpush1.msra.mxu0 0.0
    %1490 = vmatprep.subr.mxu0 0.0
    %1491 = vmatpush1.msra.mxu0 0.0
    %1492 = vmatprep.subr.mxu0 0.0
    %1493 = vmatpush1.msra.mxu0 0.0
    %1494 = vmatprep.subr.mxu0 0.0
    %1495 = vmatpush1.msra.mxu0 0.0
    %1496 = vmatprep.subr.mxu0 0.0
    %1497 = vmatpush1.msra.mxu0 0.0
    %1498 = vmatprep.subr.mxu0 0.0
    %1499 = vmatpush1.msra.mxu0 0.0
    %1500 = vmatprep.subr.mxu0 0.0
    %1501 = vmatpush1.msra.mxu0 0.0
    %1502 = vmatprep.subr.mxu0 0.0
    %1503 = vmatpush1.msra.mxu0 0.0
    %1504 = vmatprep.subr.mxu0 0.0
    %1505 = vmatpush1.msra.mxu0 0.0
    %1506 = vmatprep.subr.mxu0 0.0
    %1507 = vmatpush1.msra.mxu0 0.0
    %1508 = vmatprep.subr.mxu0 0.0
    %1509 = vmatpush1.msra.mxu0 0.0
    %1510 = vmatprep.subr.mxu0 0.0
    %1511 = vmatpush1.msra.mxu0 0.0
    %1512 = vmatprep.subr.mxu0 0.0
    %1513 = vmatpush1.msra.mxu0 0.0
    %1514 = vmatprep.subr.mxu0 0.0
    %1515 = vmatpush1.msra.mxu0 0.0
    %1516 = vmatprep.subr.mxu0 0.0
    %1517 = vmatpush1.msra.mxu0 0.0
    %1518 = vmatprep.subr.mxu0 0.0
    %1519 = vmatpush1.msra.mxu0 0.0
    %1520 = vmatprep.subr.mxu0 0.0
    %1521 = vmatpush1.msra.mxu0 0.0
    %1522 = vmatprep.subr.mxu0 0.0
    %1523 = vmatpush1.msra.mxu0 0.0
    %1524 = vmatprep.subr.mxu0 0.0
    %1525 = vmatpush1.msra.mxu0 0.0
    %1526 = vmatprep.subr.mxu0 0.0
    %1527 = vmatpush1.msra.mxu0 0.0
    %1528 = vmatprep.subr.mxu0 0.0
    %1529 = vmatpush1.msra.mxu0 0.0
    %1530 = vmatprep.subr.mxu0 0.0
    %1531 = vmatpush1.msra.mxu0 0.0
    %1532 = vmatprep.subr.mxu0 0.0
    %1533 = vmatpush1.msra.mxu0 0.0
    %1534 = vmatprep.subr.mxu0 0.0
    %1535 = vmatpush1.msra.mxu0 0.0
    %1536 = vmatprep.subr.mxu0 0.0
    %1537 = vmatpush1.msra.mxu0 0.0
    %1538 = vmatprep.subr.mxu0 0.0
    %1539 = vmatpush1.msra.mxu0 0.0
    %1540 = vmatprep.mubr.f32.mxu0 0.0
    %1541 = vmatmul.mubr.f32.gmra.mrb[0].mxu0 %v1459
    %v1542 = vpop.f32.mrb[0].mxu0
    %v1543 = vadd.f32 0.0, %v1542
    %v1544 = vpop.f32.mrb[0].mxu0
    %1545 = vmatprep.mubr.f32.mxu0 0.0
    %1546 = vmatmul.mubr.f32.gmra.mrb[0].mxu0 %v1462
    %v1547 = vpop.f32.mrb[0].mxu0
    %v1548 = vadd.f32 0.0, %v1547
    %v1549 = vpop.f32.mrb[0].mxu0
    %1550 = vmatprep.mubr.f32.mxu0 0.0
    %1551 = vmatmul.mubr.f32.gmra.mrb[0].mxu0 %v1465
    %v1552 = vpop.f32.mrb[0].mxu0
    %v1553 = vadd.f32 0.0, %v1552
    %v1554 = vpop.f32.mrb[0].mxu0
    %1555 = vmatprep.mubr.f32.mxu0 0.0
    %1556 = vmatmul.mubr.f32.gmra.mrb[0].mxu0 %v1468
    %v1557 = vpop.f32.mrb[0].mxu0
    %v1558 = vadd.f32 0.0, %v1557
    %v1559 = vpop.f32.mrb[0].mxu0
    %1560 = vmatprep.mubr.f32.mxu0 0.0
    %1561 = vmatmul.mubr.f32.gmra.mrb[0].mxu0 %v1471
    %v1562 = vpop.f32.mrb[0].mxu0
    %v1563 = vadd.f32 0.0, %v1562
    %v1564 = vpop.f32.mrb[0].mxu0
    %1565 = vmatprep.mubr.f32.mxu0 0.0
    %1566 = vmatmul.mubr.f32.gmra.mrb[0].mxu0 %v1474
    %v1567 = vpop.f32.mrb[0].mxu0
    %v1568 = vadd.f32 0.0, %v1567
    %v1569 = vpop.f32.mrb[0].mxu0
    %1570 = vdwg.mxu0
    %v1571 = vadd.f32 %v1208, %v1543
    %v1572 = vadd.f32 %v1213, %v1548
    %v1573 = vadd.f32 %v1218, %v1553
    %v1574 = vadd.f32 %v1223, %v1558
    %v1575 = vadd.f32 %v1228, %v1563
    %v1576 = vadd.f32 %v1233, %v1568
    %v1577 = vld [vmem:[#allocation9] sm:$0x7]
    %v1578 = vlaneseq
    %v1579 = vshrl.u32 %v1578, 7
    %v1580 = vsub.s32 0, %v1579
    %v1581 = vrot.slane %v1577, %v1580
    %v1582 = vadd.f32 %v1571, %v1581
    %v1583 = vadd.f32 %v1572, %v1581
    %v1584 = vadd.f32 %v1573, %v1581
    %v1585 = vadd.f32 %v1574, %v1581
    %v1586 = vadd.f32 %v1575, %v1581
    %v1587 = vadd.f32 %v1576, %v1581
    %v1588 = vmax.f32 %v1582, 0.0
    %v1589 = vmax.f32 %v1583, 0.0
    %v1590 = vmax.f32 %v1584, 0.0
    %v1591 = vmax.f32 %v1585, 0.0
    %v1592 = vmax.f32 %v1586, 0.0
    %v1593 = vmax.f32 %v1587, 0.0
    %v1594 = vsel %vm489, %v1588, 0.0
    %1595 = vadd.xlane.f32.xlu0 %v1594
    %v1596 = vpop.xlane.xlu0 %1595
    %v1597 = vsel %vm489, %v1589, 0.0
    %1598 = vadd.xlane.f32.xlu0 %v1597
    %v1599 = vpop.xlane.xlu0 %1598
    %v1600 = vsel %vm489, %v1590, 0.0
    %1601 = vadd.xlane.f32.xlu0 %v1600
    %v1602 = vpop.xlane.xlu0 %1601
    %v1603 = vsel %vm489, %v1591, 0.0
    %1604 = vadd.xlane.f32.xlu0 %v1603
    %v1605 = vpop.xlane.xlu0 %1604
    %v1606 = vsel %vm489, %v1592, 0.0
    %1607 = vadd.xlane.f32.xlu0 %v1606
    %v1608 = vpop.xlane.xlu0 %1607
    %v1609 = vsel %vm489, %v1593, 0.0
    %1610 = vadd.xlane.f32.xlu0 %v1609
    %v1611 = vpop.xlane.xlu0 %1610
    %v1612 = vmul.f32 %v1596, %v502
    %v1613 = vmul.f32 %v1599, %v502
    %v1614 = vmul.f32 %v1602, %v502
    %v1615 = vmul.f32 %v1605, %v502
    %v1616 = vmul.f32 %v1608, %v502
    %v1617 = vmul.f32 %v1611, %v502
    %v1618 = vsub.f32 %v1588, %v1612
    %v1619 = vsub.f32 %v1589, %v1613
    %v1620 = vsub.f32 %v1590, %v1614
    %v1621 = vsub.f32 %v1591, %v1615
    %v1622 = vsub.f32 %v1592, %v1616
    %v1623 = vsub.f32 %v1593, %v1617
    %v1624 = vmul.f32 %v1618, %v1618
    %v1625 = vmul.f32 %v1619, %v1619
    %v1626 = vmul.f32 %v1620, %v1620
    %v1627 = vmul.f32 %v1621, %v1621
    %v1628 = vmul.f32 %v1622, %v1622
    %v1629 = vmul.f32 %v1623, %v1623
    %v1630 = vsel %vm489, %v1624, 0.0
    %1631 = vadd.xlane.f32.xlu0 %v1630
    %v1632 = vpop.xlane.xlu0 %1631
    %v1633 = vsel %vm489, %v1625, 0.0
    %1634 = vadd.xlane.f32.xlu0 %v1633
    %v1635 = vpop.xlane.xlu0 %1634
    %v1636 = vsel %vm489, %v1626, 0.0
    %1637 = vadd.xlane.f32.xlu0 %v1636
    %v1638 = vpop.xlane.xlu0 %1637
    %v1639 = vsel %vm489, %v1627, 0.0
    %1640 = vadd.xlane.f32.xlu0 %v1639
    %v1641 = vpop.xlane.xlu0 %1640
    %v1642 = vsel %vm489, %v1628, 0.0
    %1643 = vadd.xlane.f32.xlu0 %v1642
    %v1644 = vpop.xlane.xlu0 %1643
    %v1645 = vsel %vm489, %v1629, 0.0
    %1646 = vadd.xlane.f32.xlu0 %v1645
    %v1647 = vpop.xlane.xlu0 %1646
    %v1648 = vmul.f32 %v1632, %v502
    %v1649 = vmul.f32 %v1635, %v502
    %v1650 = vmul.f32 %v1638, %v502
    %v1651 = vmul.f32 %v1641, %v502
    %v1652 = vmul.f32 %v1644, %v502
    %v1653 = vmul.f32 %v1647, %v502
    %v1654 = vadd.f32 %v1648, 1e-05
    %v1655 = vadd.f32 %v1649, 1e-05
    %v1656 = vadd.f32 %v1650, 1e-05
    %v1657 = vadd.f32 %v1651, 1e-05
    %v1658 = vadd.f32 %v1652, 1e-05
    %v1659 = vadd.f32 %v1653, 1e-05
    %v1660 = vrsqrt.pop %v1654
    %v1661 = vrsqrt.pop %v1655
    %v1662 = vrsqrt.pop %v1656
    %v1663 = vrsqrt.pop %v1657
    %v1664 = vrsqrt.pop %v1658
    %v1665 = vrsqrt.pop %v1659
    %v1666 = vmul.f32 %v1618, %v1660
    %v1667 = vmul.f32 %v1619, %v1661
    %v1668 = vmul.f32 %v1620, %v1662
    %v1669 = vmul.f32 %v1621, %v1663
    %v1670 = vmul.f32 %v1622, %v1664
    %v1671 = vmul.f32 %v1623, %v1665
    %v1672 = vlaneseq
    %v1673 = vshrl.u32 %v1672, 7
    %v1674 = vsub.s32 1, %v1673
    %v1675 = vrot.slane %v1577, %v1674
    %v1676 = vmul.f32 %v1666, %v1675
    %v1677 = vmul.f32 %v1667, %v1675
    %v1678 = vmul.f32 %v1668, %v1675
    %v1679 = vmul.f32 %v1669, %v1675
    %v1680 = vmul.f32 %v1670, %v1675
    %v1681 = vmul.f32 %v1671, %v1675
    %v1682 = vlaneseq
    %v1683 = vshrl.u32 %v1682, 7
    %v1684 = vsub.s32 2, %v1683
    %v1685 = vrot.slane %v1577, %v1684
    %v1686 = vadd.f32 %v1676, %v1685
    %v1687 = vadd.f32 %v1677, %v1685
    %v1688 = vadd.f32 %v1678, %v1685
    %v1689 = vadd.f32 %v1679, %v1685
    %v1690 = vadd.f32 %v1680, %v1685
    %v1691 = vadd.f32 %v1681, %v1685
    %v1692 = vld [vmem:[#allocation13] sm:$0x3f]
    %v1693 = vld [vmem:[#allocation15] sm:$0xff]
    %v1694 = vld [vmem:[#allocation15 + $0x8] sm:$0xff]
    %v1696 = vsel %vm489, %v1693, 0
    %v1699 = vsel %vm489, %v1694, 0
    %1701 = vmatprep.subr.mxu0 0.0
    %1702 = vmatpush1.msra.mxu0 %v555
    %1703 = vmatprep.subr.mxu0 0.0
    %1704 = vmatpush1.msra.mxu0 %v556
    %1705 = vmatprep.subr.mxu0 0.0
    %1706 = vmatpush1.msra.mxu0 %v557
    %1707 = vmatprep.subr.mxu0 0.0
    %1708 = vmatpush1.msra.mxu0 %v558
    %1709 = vmatprep.subr.mxu0 0.0
    %1710 = vmatpush1.msra.mxu0 0.0
    %1711 = vmatprep.subr.mxu0 0.0
    %1712 = vmatpush1.msra.mxu0 0.0
    %1713 = vmatprep.subr.mxu0 0.0
    %1714 = vmatpush1.msra.mxu0 0.0
    %1715 = vmatprep.subr.mxu0 0.0
    %1716 = vmatpush1.msra.mxu0 0.0
    %1717 = vmatprep.subr.mxu0 0.0
    %1718 = vmatpush1.msra.mxu0 0.0
    %1719 = vmatprep.subr.mxu0 0.0
    %1720 = vmatpush1.msra.mxu0 0.0
    %1721 = vmatprep.subr.mxu0 0.0
    %1722 = vmatpush1.msra.mxu0 0.0
    %1723 = vmatprep.subr.mxu0 0.0
    %1724 = vmatpush1.msra.mxu0 0.0
    %1725 = vmatprep.subr.mxu0 0.0
    %1726 = vmatpush1.msra.mxu0 0.0
    %1727 = vmatprep.subr.mxu0 0.0
    %1728 = vmatpush1.msra.mxu0 0.0
    %1729 = vmatprep.subr.mxu0 0.0
    %1730 = vmatpush1.msra.mxu0 0.0
    %1731 = vmatprep.subr.mxu0 0.0
    %1732 = vmatpush1.msra.mxu0 0.0
    %1733 = vmatprep.subr.mxu0 0.0
    %1734 = vmatpush1.msra.mxu0 0.0
    %1735 = vmatprep.subr.mxu0 0.0
    %1736 = vmatpush1.msra.mxu0 0.0
    %1737 = vmatprep.subr.mxu0 0.0
    %1738 = vmatpush1.msra.mxu0 0.0
    %1739 = vmatprep.subr.mxu0 0.0
    %1740 = vmatpush1.msra.mxu0 0.0
    %1741 = vmatprep.subr.mxu0 0.0
    %1742 = vmatpush1.msra.mxu0 0.0
    %1743 = vmatprep.subr.mxu0 0.0
    %1744 = vmatpush1.msra.mxu0 0.0
    %1745 = vmatprep.subr.mxu0 0.0
    %1746 = vmatpush1.msra.mxu0 0.0
    %1747 = vmatprep.subr.mxu0 0.0
    %1748 = vmatpush1.msra.mxu0 0.0
    %1749 = vmatprep.subr.mxu0 0.0
    %1750 = vmatpush1.msra.mxu0 0.0
    %1751 = vmatprep.subr.mxu0 0.0
    %1752 = vmatpush1.msra.mxu0 0.0
    %1753 = vmatprep.subr.mxu0 0.0
    %1754 = vmatpush1.msra.mxu0 0.0
    %1755 = vmatprep.subr.mxu0 0.0
    %1756 = vmatpush1.msra.mxu0 0.0
    %1757 = vmatprep.subr.mxu0 0.0
    %1758 = vmatpush1.msra.mxu0 0.0
    %1759 = vmatprep.subr.mxu0 0.0
    %1760 = vmatpush1.msra.mxu0 0.0
    %1761 = vmatprep.subr.mxu0 0.0
    %1762 = vmatpush1.msra.mxu0 0.0
    %1763 = vmatprep.subr.mxu0 0.0
    %1764 = vmatpush1.msra.mxu0 0.0
    %1765 = vmatprep.mubr.f32.mxu0 0.0
    %1766 = vmatmul.mubr.f32.gmra.mrb[0].mxu0 %v1696
    %v1767 = vpop.f32.mrb[0].mxu0
    %v1768 = vadd.f32 0.0, %v1767
    %v1769 = vpop.f32.mrb[0].mxu0
    %1770 = vmatprep.mubr.f32.mxu0 0.0
    %1771 = vmatmul.mubr.f32.gmra.mrb[0].mxu0 %v1699
    %v1772 = vpop.f32.mrb[0].mxu0
    %v1773 = vadd.f32 0.0, %v1772
    %v1774 = vpop.f32.mrb[0].mxu0
    %1775 = vdwg.mxu0
    %v1776 = vld [vmem:[#allocation10] sm:$0xff]
    %v1777 = vld [vmem:[#allocation10 + $0x8] sm:$0xff]
    %v1778 = vld [vmem:[#allocation10 + $0x10] sm:$0xff]
    %v1779 = vld [vmem:[#allocation10 + $0x18] sm:$0xff]
    %s1780 = scalar_lea.vmem [#allocation15], 16
    %v1781 = vld [vmem:[%s1780] sm:$0xff]
    %v1782 = vld [vmem:[%s1780 + $0x8] sm:$0xff]
    %v1784 = vsel %vm489, %v1781, 0
    %v1787 = vsel %vm489, %v1782, 0
    %1789 = vmatprep.subr.mxu0 0.0
    %1790 = vmatpush1.msra.mxu0 %v555
    %1791 = vmatprep.subr.mxu0 0.0
    %1792 = vmatpush1.msra.mxu0 %v556
    %1793 = vmatprep.subr.mxu0 0.0
    %1794 = vmatpush1.msra.mxu0 %v557
    %1795 = vmatprep.subr.mxu0 0.0
    %1796 = vmatpush1.msra.mxu0 %v558
    %1797 = vmatprep.subr.mxu0 0.0
    %1798 = vmatpush1.msra.mxu0 0.0
    %1799 = vmatprep.subr.mxu0 0.0
    %1800 = vmatpush1.msra.mxu0 0.0
    %1801 = vmatprep.subr.mxu0 0.0
    %1802 = vmatpush1.msra.mxu0 0.0
    %1803 = vmatprep.subr.mxu0 0.0
    %1804 = vmatpush1.msra.mxu0 0.0
    %1805 = vmatprep.subr.mxu0 0.0
    %1806 = vmatpush1.msra.mxu0 0.0
    %1807 = vmatprep.subr.mxu0 0.0
    %1808 = vmatpush1.msra.mxu0 0.0
    %1809 = vmatprep.subr.mxu0 0.0
    %1810 = vmatpush1.msra.mxu0 0.0
    %1811 = vmatprep.subr.mxu0 0.0
    %1812 = vmatpush1.msra.mxu0 0.0
    %1813 = vmatprep.subr.mxu0 0.0
    %1814 = vmatpush1.msra.mxu0 0.0
    %1815 = vmatprep.subr.mxu0 0.0
    %1816 = vmatpush1.msra.mxu0 0.0
    %1817 = vmatprep.subr.mxu0 0.0
    %1818 = vmatpush1.msra.mxu0 0.0
    %1819 = vmatprep.subr.mxu0 0.0
    %1820 = vmatpush1.msra.mxu0 0.0
    %1821 = vmatprep.subr.mxu0 0.0
    %1822 = vmatpush1.msra.mxu0 0.0
    %1823 = vmatprep.subr.mxu0 0.0
    %1824 = vmatpush1.msra.mxu0 0.0
    %1825 = vmatprep.subr.mxu0 0.0
    %1826 = vmatpush1.msra.mxu0 0.0
    %1827 = vmatprep.subr.mxu0 0.0
    %1828 = vmatpush1.msra.mxu0 0.0
    %1829 = vmatprep.subr.mxu0 0.0
    %1830 = vmatpush1.msra.mxu0 0.0
    %1831 = vmatprep.subr.mxu0 0.0
    %1832 = vmatpush1.msra.mxu0 0.0
    %1833 = vmatprep.subr.mxu0 0.0
    %1834 = vmatpush1.msra.mxu0 0.0
    %1835 = vmatprep.subr.mxu0 0.0
    %1836 = vmatpush1.msra.mxu0 0.0
    %1837 = vmatprep.subr.mxu0 0.0
    %1838 = vmatpush1.msra.mxu0 0.0
    %1839 = vmatprep.subr.mxu0 0.0
    %1840 = vmatpush1.msra.mxu0 0.0
    %1841 = vmatprep.subr.mxu0 0.0
    %1842 = vmatpush1.msra.mxu0 0.0
    %1843 = vmatprep.subr.mxu0 0.0
    %1844 = vmatpush1.msra.mxu0 0.0
    %1845 = vmatprep.subr.mxu0 0.0
    %1846 = vmatpush1.msra.mxu0 0.0
    %1847 = vmatprep.subr.mxu0 0.0
    %1848 = vmatpush1.msra.mxu0 0.0
    %1849 = vmatprep.subr.mxu0 0.0
    %1850 = vmatpush1.msra.mxu0 0.0
    %1851 = vmatprep.subr.mxu0 0.0
    %1852 = vmatpush1.msra.mxu0 0.0
    %1853 = vmatprep.mubr.f32.mxu0 0.0
    %1854 = vmatmul.mubr.f32.gmra.mrb[0].mxu0 %v1784
    %v1855 = vpop.f32.mrb[0].mxu0
    %v1856 = vadd.f32 0.0, %v1855
    %v1857 = vpop.f32.mrb[0].mxu0
    %1858 = vmatprep.mubr.f32.mxu0 0.0
    %1859 = vmatmul.mubr.f32.gmra.mrb[0].mxu0 %v1787
    %v1860 = vpop.f32.mrb[0].mxu0
    %v1861 = vadd.f32 0.0, %v1860
    %v1862 = vpop.f32.mrb[0].mxu0
    %1863 = vdwg.mxu0
    %s1864 = scalar_lea.vmem [#allocation10], 32
    %v1865 = vld [vmem:[%s1864] sm:$0xff]
    %v1866 = vld [vmem:[%s1864 + $0x8] sm:$0xff]
    %v1867 = vld [vmem:[%s1864 + $0x10] sm:$0xff]
    %v1868 = vld [vmem:[%s1864 + $0x18] sm:$0xff]
    %v1870 = vsel %vm489, %v1856, 0
    %v1873 = vsel %vm489, %v1861, 0
    %1875 = vmatprep.subr.mxu0 0.0
    %1876 = vmatpush1.msra.mxu0 %v1865
    %1877 = vmatprep.subr.mxu0 0.0
    %1878 = vmatpush1.msra.mxu0 %v1866
    %1879 = vmatprep.subr.mxu0 0.0
    %1880 = vmatpush1.msra.mxu0 %v1867
    %1881 = vmatprep.subr.mxu0 0.0
    %1882 = vmatpush1.msra.mxu0 %v1868
    %1883 = vmatprep.subr.mxu0 0.0
    %1884 = vmatpush1.msra.mxu0 0.0
    %1885 = vmatprep.subr.mxu0 0.0
    %1886 = vmatpush1.msra.mxu0 0.0
    %1887 = vmatprep.subr.mxu0 0.0
    %1888 = vmatpush1.msra.mxu0 0.0
    %1889 = vmatprep.subr.mxu0 0.0
    %1890 = vmatpush1.msra.mxu0 0.0
    %1891 = vmatprep.subr.mxu0 0.0
    %1892 = vmatpush1.msra.mxu0 0.0
    %1893 = vmatprep.subr.mxu0 0.0
    %1894 = vmatpush1.msra.mxu0 0.0
    %1895 = vmatprep.subr.mxu0 0.0
    %1896 = vmatpush1.msra.mxu0 0.0
    %1897 = vmatprep.subr.mxu0 0.0
    %1898 = vmatpush1.msra.mxu0 0.0
    %1899 = vmatprep.subr.mxu0 0.0
    %1900 = vmatpush1.msra.mxu0 0.0
    %1901 = vmatprep.subr.mxu0 0.0
    %1902 = vmatpush1.msra.mxu0 0.0
    %1903 = vmatprep.subr.mxu0 0.0
    %1904 = vmatpush1.msra.mxu0 0.0
    %1905 = vmatprep.subr.mxu0 0.0
    %1906 = vmatpush1.msra.mxu0 0.0
    %1907 = vmatprep.subr.mxu0 0.0
    %1908 = vmatpush1.msra.mxu0 0.0
    %1909 = vmatprep.subr.mxu0 0.0
    %1910 = vmatpush1.msra.mxu0 0.0
    %1911 = vmatprep.subr.mxu0 0.0
    %1912 = vmatpush1.msra.mxu0 0.0
    %1913 = vmatprep.subr.mxu0 0.0
    %1914 = vmatpush1.msra.mxu0 0.0
    %1915 = vmatprep.subr.mxu0 0.0
    %1916 = vmatpush1.msra.mxu0 0.0
    %1917 = vmatprep.subr.mxu0 0.0
    %1918 = vmatpush1.msra.mxu0 0.0
    %1919 = vmatprep.subr.mxu0 0.0
    %1920 = vmatpush1.msra.mxu0 0.0
    %1921 = vmatprep.subr.mxu0 0.0
    %1922 = vmatpush1.msra.mxu0 0.0
    %1923 = vmatprep.subr.mxu0 0.0
    %1924 = vmatpush1.msra.mxu0 0.0
    %1925 = vmatprep.subr.mxu0 0.0
    %1926 = vmatpush1.msra.mxu0 0.0
    %1927 = vmatprep.subr.mxu0 0.0
    %1928 = vmatpush1.msra.mxu0 0.0
    %1929 = vmatprep.subr.mxu0 0.0
    %1930 = vmatpush1.msra.mxu0 0.0
    %1931 = vmatprep.subr.mxu0 0.0
    %1932 = vmatpush1.msra.mxu0 0.0
    %1933 = vmatprep.subr.mxu0 0.0
    %1934 = vmatpush1.msra.mxu0 0.0
    %1935 = vmatprep.subr.mxu0 0.0
    %1936 = vmatpush1.msra.mxu0 0.0
    %1937 = vmatprep.subr.mxu0 0.0
    %1938 = vmatpush1.msra.mxu0 0.0
    %1939 = vmatprep.mubr.f32.mxu0 0.0
    %1940 = vmatmul.mubr.f32.gmra.mrb[0].mxu0 %v1870
    %v1941 = vpop.f32.mrb[0].mxu0
    %v1942 = vadd.f32 0.0, %v1941
    %v1943 = vpop.f32.mrb[0].mxu0
    %1944 = vmatprep.mubr.f32.mxu0 0.0
    %1945 = vmatmul.mubr.f32.gmra.mrb[0].mxu0 %v1873
    %v1946 = vpop.f32.mrb[0].mxu0
    %v1947 = vadd.f32 0.0, %v1946
    %v1948 = vpop.f32.mrb[0].mxu0
    %1949 = vdwg.mxu0
    %v1951 = vsel %vm489, %v1768, 0
    %v1954 = vsel %vm489, %v1773, 0
    %1956 = vmatprep.subr.mxu0 0.0
    %1957 = vmatpush1.msra.mxu0 %v1776
    %1958 = vmatprep.subr.mxu0 0.0
    %1959 = vmatpush1.msra.mxu0 %v1777
    %1960 = vmatprep.subr.mxu0 0.0
    %1961 = vmatpush1.msra.mxu0 %v1778
    %1962 = vmatprep.subr.mxu0 0.0
    %1963 = vmatpush1.msra.mxu0 %v1779
    %1964 = vmatprep.subr.mxu0 0.0
    %1965 = vmatpush1.msra.mxu0 0.0
    %1966 = vmatprep.subr.mxu0 0.0
    %1967 = vmatpush1.msra.mxu0 0.0
    %1968 = vmatprep.subr.mxu0 0.0
    %1969 = vmatpush1.msra.mxu0 0.0
    %1970 = vmatprep.subr.mxu0 0.0
    %1971 = vmatpush1.msra.mxu0 0.0
    %1972 = vmatprep.subr.mxu0 0.0
    %1973 = vmatpush1.msra.mxu0 0.0
    %1974 = vmatprep.subr.mxu0 0.0
    %1975 = vmatpush1.msra.mxu0 0.0
    %1976 = vmatprep.subr.mxu0 0.0
    %1977 = vmatpush1.msra.mxu0 0.0
    %1978 = vmatprep.subr.mxu0 0.0
    %1979 = vmatpush1.msra.mxu0 0.0
    %1980 = vmatprep.subr.mxu0 0.0
    %1981 = vmatpush1.msra.mxu0 0.0
    %1982 = vmatprep.subr.mxu0 0.0
    %1983 = vmatpush1.msra.mxu0 0.0
    %1984 = vmatprep.subr.mxu0 0.0
    %1985 = vmatpush1.msra.mxu0 0.0
    %1986 = vmatprep.subr.mxu0 0.0
    %1987 = vmatpush1.msra.mxu0 0.0
    %1988 = vmatprep.subr.mxu0 0.0
    %1989 = vmatpush1.msra.mxu0 0.0
    %1990 = vmatprep.subr.mxu0 0.0
    %1991 = vmatpush1.msra.mxu0 0.0
    %1992 = vmatprep.subr.mxu0 0.0
    %1993 = vmatpush1.msra.mxu0 0.0
    %1994 = vmatprep.subr.mxu0 0.0
    %1995 = vmatpush1.msra.mxu0 0.0
    %1996 = vmatprep.subr.mxu0 0.0
    %1997 = vmatpush1.msra.mxu0 0.0
    %1998 = vmatprep.subr.mxu0 0.0
    %1999 = vmatpush1.msra.mxu0 0.0
    %2000 = vmatprep.subr.mxu0 0.0
    %2001 = vmatpush1.msra.mxu0 0.0
    %2002 = vmatprep.subr.mxu0 0.0
    %2003 = vmatpush1.msra.mxu0 0.0
    %2004 = vmatprep.subr.mxu0 0.0
    %2005 = vmatpush1.msra.mxu0 0.0
    %2006 = vmatprep.subr.mxu0 0.0
    %2007 = vmatpush1.msra.mxu0 0.0
    %2008 = vmatprep.subr.mxu0 0.0
    %2009 = vmatpush1.msra.mxu0 0.0
    %2010 = vmatprep.subr.mxu0 0.0
    %2011 = vmatpush1.msra.mxu0 0.0
    %2012 = vmatprep.subr.mxu0 0.0
    %2013 = vmatpush1.msra.mxu0 0.0
    %2014 = vmatprep.subr.mxu0 0.0
    %2015 = vmatpush1.msra.mxu0 0.0
    %2016 = vmatprep.subr.mxu0 0.0
    %2017 = vmatpush1.msra.mxu0 0.0
    %2018 = vmatprep.subr.mxu0 0.0
    %2019 = vmatpush1.msra.mxu0 0.0
    %2020 = vmatprep.mubr.f32.mxu0 0.0
    %2021 = vmatmul.mubr.f32.gmra.mrb[0].mxu0 %v1951
    %v2022 = vpop.f32.mrb[0].mxu0
    %v2023 = vadd.f32 %v1942, %v2022
    %v2024 = vpop.f32.mrb[0].mxu0
    %2025 = vmatprep.mubr.f32.mxu0 0.0
    %2026 = vmatmul.mubr.f32.gmra.mrb[0].mxu0 %v1954
    %v2027 = vpop.f32.mrb[0].mxu0
    %v2028 = vadd.f32 %v1947, %v2027
    %v2029 = vpop.f32.mrb[0].mxu0
    %2030 = vdwg.mxu0
    %s2031 = scalar_lea.vmem [#allocation15], 32
    %v2032 = vld [vmem:[%s2031] sm:$0xff]
    %v2033 = vld [vmem:[%s2031 + $0x8] sm:$0xff]
    %v2035 = vsel %vm489, %v2032, 0
    %v2038 = vsel %vm489, %v2033, 0
    %2040 = vmatprep.subr.mxu0 0.0
    %2041 = vmatpush1.msra.mxu0 %v555
    %2042 = vmatprep.subr.mxu0 0.0
    %2043 = vmatpush1.msra.mxu0 %v556
    %2044 = vmatprep.subr.mxu0 0.0
    %2045 = vmatpush1.msra.mxu0 %v557
    %2046 = vmatprep.subr.mxu0 0.0
    %2047 = vmatpush1.msra.mxu0 %v558
    %2048 = vmatprep.subr.mxu0 0.0
    %2049 = vmatpush1.msra.mxu0 0.0
    %2050 = vmatprep.subr.mxu0 0.0
    %2051 = vmatpush1.msra.mxu0 0.0
    %2052 = vmatprep.subr.mxu0 0.0
    %2053 = vmatpush1.msra.mxu0 0.0
    %2054 = vmatprep.subr.mxu0 0.0
    %2055 = vmatpush1.msra.mxu0 0.0
    %2056 = vmatprep.subr.mxu0 0.0
    %2057 = vmatpush1.msra.mxu0 0.0
    %2058 = vmatprep.subr.mxu0 0.0
    %2059 = vmatpush1.msra.mxu0 0.0
    %2060 = vmatprep.subr.mxu0 0.0
    %2061 = vmatpush1.msra.mxu0 0.0
    %2062 = vmatprep.subr.mxu0 0.0
    %2063 = vmatpush1.msra.mxu0 0.0
    %2064 = vmatprep.subr.mxu0 0.0
    %2065 = vmatpush1.msra.mxu0 0.0
    %2066 = vmatprep.subr.mxu0 0.0
    %2067 = vmatpush1.msra.mxu0 0.0
    %2068 = vmatprep.subr.mxu0 0.0
    %2069 = vmatpush1.msra.mxu0 0.0
    %2070 = vmatprep.subr.mxu0 0.0
    %2071 = vmatpush1.msra.mxu0 0.0
    %2072 = vmatprep.subr.mxu0 0.0
    %2073 = vmatpush1.msra.mxu0 0.0
    %2074 = vmatprep.subr.mxu0 0.0
    %2075 = vmatpush1.msra.mxu0 0.0
    %2076 = vmatprep.subr.mxu0 0.0
    %2077 = vmatpush1.msra.mxu0 0.0
    %2078 = vmatprep.subr.mxu0 0.0
    %2079 = vmatpush1.msra.mxu0 0.0
    %2080 = vmatprep.subr.mxu0 0.0
    %2081 = vmatpush1.msra.mxu0 0.0
    %2082 = vmatprep.subr.mxu0 0.0
    %2083 = vmatpush1.msra.mxu0 0.0
    %2084 = vmatprep.subr.mxu0 0.0
    %2085 = vmatpush1.msra.mxu0 0.0
    %2086 = vmatprep.subr.mxu0 0.0
    %2087 = vmatpush1.msra.mxu0 0.0
    %2088 = vmatprep.subr.mxu0 0.0
    %2089 = vmatpush1.msra.mxu0 0.0
    %2090 = vmatprep.subr.mxu0 0.0
    %2091 = vmatpush1.msra.mxu0 0.0
    %2092 = vmatprep.subr.mxu0 0.0
    %2093 = vmatpush1.msra.mxu0 0.0
    %2094 = vmatprep.subr.mxu0 0.0
    %2095 = vmatpush1.msra.mxu0 0.0
    %2096 = vmatprep.subr.mxu0 0.0
    %2097 = vmatpush1.msra.mxu0 0.0
    %2098 = vmatprep.subr.mxu0 0.0
    %2099 = vmatpush1.msra.mxu0 0.0
    %2100 = vmatprep.subr.mxu0 0.0
    %2101 = vmatpush1.msra.mxu0 0.0
    %2102 = vmatprep.subr.mxu0 0.0
    %2103 = vmatpush1.msra.mxu0 0.0
    %2104 = vmatprep.mubr.f32.mxu0 0.0
    %2105 = vmatmul.mubr.f32.gmra.mrb[0].mxu0 %v2035
    %v2106 = vpop.f32.mrb[0].mxu0
    %v2107 = vadd.f32 0.0, %v2106
    %v2108 = vpop.f32.mrb[0].mxu0
    %2109 = vmatprep.mubr.f32.mxu0 0.0
    %2110 = vmatmul.mubr.f32.gmra.mrb[0].mxu0 %v2038
    %v2111 = vpop.f32.mrb[0].mxu0
    %v2112 = vadd.f32 0.0, %v2111
    %v2113 = vpop.f32.mrb[0].mxu0
    %2114 = vdwg.mxu0
    %s2115 = scalar_lea.vmem [#allocation10], 64
    %v2116 = vld [vmem:[%s2115] sm:$0xff]
    %v2117 = vld [vmem:[%s2115 + $0x8] sm:$0xff]
    %v2118 = vld [vmem:[%s2115 + $0x10] sm:$0xff]
    %v2119 = vld [vmem:[%s2115 + $0x18] sm:$0xff]
    %v2121 = vsel %vm489, %v2107, 0
    %v2124 = vsel %vm489, %v2112, 0
    %2126 = vmatprep.subr.mxu0 0.0
    %2127 = vmatpush1.msra.mxu0 %v2116
    %2128 = vmatprep.subr.mxu0 0.0
    %2129 = vmatpush1.msra.mxu0 %v2117
    %2130 = vmatprep.subr.mxu0 0.0
    %2131 = vmatpush1.msra.mxu0 %v2118
    %2132 = vmatprep.subr.mxu0 0.0
    %2133 = vmatpush1.msra.mxu0 %v2119
    %2134 = vmatprep.subr.mxu0 0.0
    %2135 = vmatpush1.msra.mxu0 0.0
    %2136 = vmatprep.subr.mxu0 0.0
    %2137 = vmatpush1.msra.mxu0 0.0
    %2138 = vmatprep.subr.mxu0 0.0
    %2139 = vmatpush1.msra.mxu0 0.0
    %2140 = vmatprep.subr.mxu0 0.0
    %2141 = vmatpush1.msra.mxu0 0.0
    %2142 = vmatprep.subr.mxu0 0.0
    %2143 = vmatpush1.msra.mxu0 0.0
    %2144 = vmatprep.subr.mxu0 0.0
    %2145 = vmatpush1.msra.mxu0 0.0
    %2146 = vmatprep.subr.mxu0 0.0
    %2147 = vmatpush1.msra.mxu0 0.0
    %2148 = vmatprep.subr.mxu0 0.0
    %2149 = vmatpush1.msra.mxu0 0.0
    %2150 = vmatprep.subr.mxu0 0.0
    %2151 = vmatpush1.msra.mxu0 0.0
    %2152 = vmatprep.subr.mxu0 0.0
    %2153 = vmatpush1.msra.mxu0 0.0
    %2154 = vmatprep.subr.mxu0 0.0
    %2155 = vmatpush1.msra.mxu0 0.0
    %2156 = vmatprep.subr.mxu0 0.0
    %2157 = vmatpush1.msra.mxu0 0.0
    %2158 = vmatprep.subr.mxu0 0.0
    %2159 = vmatpush1.msra.mxu0 0.0
    %2160 = vmatprep.subr.mxu0 0.0
    %2161 = vmatpush1.msra.mxu0 0.0
    %2162 = vmatprep.subr.mxu0 0.0
    %2163 = vmatpush1.msra.mxu0 0.0
    %2164 = vmatprep.subr.mxu0 0.0
    %2165 = vmatpush1.msra.mxu0 0.0
    %2166 = vmatprep.subr.mxu0 0.0
    %2167 = vmatpush1.msra.mxu0 0.0
    %2168 = vmatprep.subr.mxu0 0.0
    %2169 = vmatpush1.msra.mxu0 0.0
    %2170 = vmatprep.subr.mxu0 0.0
    %2171 = vmatpush1.msra.mxu0 0.0
    %2172 = vmatprep.subr.mxu0 0.0
    %2173 = vmatpush1.msra.mxu0 0.0
    %2174 = vmatprep.subr.mxu0 0.0
    %2175 = vmatpush1.msra.mxu0 0.0
    %2176 = vmatprep.subr.mxu0 0.0
    %2177 = vmatpush1.msra.mxu0 0.0
    %2178 = vmatprep.subr.mxu0 0.0
    %2179 = vmatpush1.msra.mxu0 0.0
    %2180 = vmatprep.subr.mxu0 0.0
    %2181 = vmatpush1.msra.mxu0 0.0
    %2182 = vmatprep.subr.mxu0 0.0
    %2183 = vmatpush1.msra.mxu0 0.0
    %2184 = vmatprep.subr.mxu0 0.0
    %2185 = vmatpush1.msra.mxu0 0.0
    %2186 = vmatprep.subr.mxu0 0.0
    %2187 = vmatpush1.msra.mxu0 0.0
    %2188 = vmatprep.subr.mxu0 0.0
    %2189 = vmatpush1.msra.mxu0 0.0
    %2190 = vmatprep.mubr.f32.mxu0 0.0
    %2191 = vmatmul.mubr.f32.gmra.mrb[0].mxu0 %v2121
    %v2192 = vpop.f32.mrb[0].mxu0
    %v2193 = vadd.f32 0.0, %v2192
    %v2194 = vpop.f32.mrb[0].mxu0
    %2195 = vmatprep.mubr.f32.mxu0 0.0
    %2196 = vmatmul.mubr.f32.gmra.mrb[0].mxu0 %v2124
    %v2197 = vpop.f32.mrb[0].mxu0
    %v2198 = vadd.f32 0.0, %v2197
    %v2199 = vpop.f32.mrb[0].mxu0
    %2200 = vdwg.mxu0
    %v2201 = vadd.f32 %v2023, %v2193
    %v2202 = vadd.f32 %v2028, %v2198
    %v2203 = vlaneseq
    %v2204 = vshrl.u32 %v2203, 7
    %v2205 = vsub.s32 0, %v2204
    %v2206 = vrot.slane %v1692, %v2205
    %v2207 = vadd.f32 %v2201, %v2206
    %v2208 = vadd.f32 %v2202, %v2206
    %v2209 = vmax.f32 %v2207, 0.0
    %v2210 = vmax.f32 %v2208, 0.0
    %v2211 = vsel %vm489, %v2209, 0.0
    %2212 = vadd.xlane.f32.xlu0 %v2211
    %v2213 = vpop.xlane.xlu0 %2212
    %v2214 = vsel %vm489, %v2210, 0.0
    %2215 = vadd.xlane.f32.xlu0 %v2214
    %v2216 = vpop.xlane.xlu0 %2215
    %v2217 = vmul.f32 %v2213, %v502
    %v2218 = vmul.f32 %v2216, %v502
    %v2219 = vsub.f32 %v2209, %v2217
    %v2220 = vsub.f32 %v2210, %v2218
    %v2221 = vmul.f32 %v2219, %v2219
    %v2222 = vmul.f32 %v2220, %v2220
    %v2223 = vsel %vm489, %v2221, 0.0
    %2224 = vadd.xlane.f32.xlu0 %v2223
    %v2225 = vpop.xlane.xlu0 %2224
    %v2226 = vsel %vm489, %v2222, 0.0
    %2227 = vadd.xlane.f32.xlu0 %v2226
    %v2228 = vpop.xlane.xlu0 %2227
    %v2229 = vmul.f32 %v2225, %v502
    %v2230 = vmul.f32 %v2228, %v502
    %v2231 = vadd.f32 %v2229, 1e-05
    %v2232 = vadd.f32 %v2230, 1e-05
    %v2233 = vrsqrt.pop %v2231
    %v2234 = vrsqrt.pop %v2232
    %v2235 = vmul.f32 %v2219, %v2233
    %v2236 = vmul.f32 %v2220, %v2234
    %v2237 = vlaneseq
    %v2238 = vshrl.u32 %v2237, 7
    %v2239 = vsub.s32 1, %v2238
    %v2240 = vrot.slane %v1692, %v2239
    %v2241 = vmul.f32 %v2235, %v2240
    %v2242 = vmul.f32 %v2236, %v2240
    %v2243 = vlaneseq
    %v2244 = vshrl.u32 %v2243, 7
    %v2245 = vsub.s32 2, %v2244
    %v2246 = vrot.slane %v1692, %v2245
    %v2247 = vadd.f32 %v2241, %v2246
    %v2248 = vadd.f32 %v2242, %v2246
    %v2249 = vld [vmem:[#allocation12] sm:$0xff]
    %v2250 = vld [vmem:[#allocation12 + $0x8] sm:$0xff]
    %v2251 = vld [vmem:[#allocation12 + $0x10] sm:$0xff]
    %v2252 = vld [vmem:[#allocation12 + $0x18] sm:$0xff]
    %v2253 = vld [vmem:[#allocation16] sm:$0xff]
    %v2254 = vld [vmem:[#allocation16 + $0x8] sm:$0xff]
    %v2255 = vld [vmem:[#allocation16 + $0x10] sm:$0xff]
    %v2256 = vld [vmem:[#allocation16 + $0x18] sm:$0xff]
    %s2257 = scalar_lea.vmem [#allocation12], 32
    %v2258 = vld [vmem:[%s2257] sm:$0xff]
    %v2259 = vld [vmem:[%s2257 + $0x8] sm:$0xff]
    %v2260 = vld [vmem:[%s2257 + $0x10] sm:$0xff]
    %v2261 = vld [vmem:[%s2257 + $0x18] sm:$0xff]
    %v2263 = vsel %vm489, %v2247, 0
    %v2266 = vsel %vm489, %v2248, 0
    %2268 = vmatprep.subr.mxu0 0.0
    %2269 = vmatpush1.msra.mxu0 %v2258
    %2270 = vmatprep.subr.mxu0 0.0
    %2271 = vmatpush1.msra.mxu0 %v2259
    %2272 = vmatprep.subr.mxu0 0.0
    %2273 = vmatpush1.msra.mxu0 %v2260
    %2274 = vmatprep.subr.mxu0 0.0
    %2275 = vmatpush1.msra.mxu0 %v2261
    %2276 = vmatprep.subr.mxu0 0.0
    %2277 = vmatpush1.msra.mxu0 0.0
    %2278 = vmatprep.subr.mxu0 0.0
    %2279 = vmatpush1.msra.mxu0 0.0
    %2280 = vmatprep.subr.mxu0 0.0
    %2281 = vmatpush1.msra.mxu0 0.0
    %2282 = vmatprep.subr.mxu0 0.0
    %2283 = vmatpush1.msra.mxu0 0.0
    %2284 = vmatprep.subr.mxu0 0.0
    %2285 = vmatpush1.msra.mxu0 0.0
    %2286 = vmatprep.subr.mxu0 0.0
    %2287 = vmatpush1.msra.mxu0 0.0
    %2288 = vmatprep.subr.mxu0 0.0
    %2289 = vmatpush1.msra.mxu0 0.0
    %2290 = vmatprep.subr.mxu0 0.0
    %2291 = vmatpush1.msra.mxu0 0.0
    %2292 = vmatprep.subr.mxu0 0.0
    %2293 = vmatpush1.msra.mxu0 0.0
    %2294 = vmatprep.subr.mxu0 0.0
    %2295 = vmatpush1.msra.mxu0 0.0
    %2296 = vmatprep.subr.mxu0 0.0
    %2297 = vmatpush1.msra.mxu0 0.0
    %2298 = vmatprep.subr.mxu0 0.0
    %2299 = vmatpush1.msra.mxu0 0.0
    %2300 = vmatprep.subr.mxu0 0.0
    %2301 = vmatpush1.msra.mxu0 0.0
    %2302 = vmatprep.subr.mxu0 0.0
    %2303 = vmatpush1.msra.mxu0 0.0
    %2304 = vmatprep.subr.mxu0 0.0
    %2305 = vmatpush1.msra.mxu0 0.0
    %2306 = vmatprep.subr.mxu0 0.0
    %2307 = vmatpush1.msra.mxu0 0.0
    %2308 = vmatprep.subr.mxu0 0.0
    %2309 = vmatpush1.msra.mxu0 0.0
    %2310 = vmatprep.subr.mxu0 0.0
    %2311 = vmatpush1.msra.mxu0 0.0
    %2312 = vmatprep.subr.mxu0 0.0
    %2313 = vmatpush1.msra.mxu0 0.0
    %2314 = vmatprep.subr.mxu0 0.0
    %2315 = vmatpush1.msra.mxu0 0.0
    %2316 = vmatprep.subr.mxu0 0.0
    %2317 = vmatpush1.msra.mxu0 0.0
    %2318 = vmatprep.subr.mxu0 0.0
    %2319 = vmatpush1.msra.mxu0 0.0
    %2320 = vmatprep.subr.mxu0 0.0
    %2321 = vmatpush1.msra.mxu0 0.0
    %2322 = vmatprep.subr.mxu0 0.0
    %2323 = vmatpush1.msra.mxu0 0.0
    %2324 = vmatprep.subr.mxu0 0.0
    %2325 = vmatpush1.msra.mxu0 0.0
    %2326 = vmatprep.subr.mxu0 0.0
    %2327 = vmatpush1.msra.mxu0 0.0
    %2328 = vmatprep.subr.mxu0 0.0
    %2329 = vmatpush1.msra.mxu0 0.0
    %2330 = vmatprep.subr.mxu0 0.0
    %2331 = vmatpush1.msra.mxu0 0.0
    %2332 = vmatprep.mubr.f32.mxu0 0.0
    %2333 = vmatmul.mubr.f32.gmra.mrb[0].mxu0 %v2263
    %v2334 = vpop.f32.mrb[0].mxu0
    %v2335 = vadd.f32 0.0, %v2334
    %v2336 = vpop.f32.mrb[0].mxu0
    %2337 = vmatprep.mubr.f32.mxu0 0.0
    %2338 = vmatmul.mubr.f32.gmra.mrb[0].mxu0 %v2266
    %v2339 = vpop.f32.mrb[0].mxu0
    %v2340 = vadd.f32 0.0, %v2339
    %v2341 = vpop.f32.mrb[0].mxu0
    %2342 = vdwg.mxu0
    %v2344 = vsel %vm1009, %v2253, 0
    %v2347 = vsel %vm1009, %v2254, 0
    %v2350 = vsel %vm1009, %v2255, 0
    %v2353 = vsel %vm1009, %v2256, 0
    %2355 = vmatprep.subr.mxu0 0.0
    %2356 = vmatpush1.msra.mxu0 %v2335
    %2357 = vmatprep.subr.mxu0 0.0
    %2358 = vmatpush1.msra.mxu0 %v2340
    %2359 = vmatprep.subr.mxu0 0.0
    %2360 = vmatpush1.msra.mxu0 0.0
    %2361 = vmatprep.subr.mxu0 0.0
    %2362 = vmatpush1.msra.mxu0 0.0
    %2363 = vmatprep.subr.mxu0 0.0
    %2364 = vmatpush1.msra.mxu0 0.0
    %2365 = vmatprep.subr.mxu0 0.0
    %2366 = vmatpush1.msra.mxu0 0.0
    %2367 = vmatprep.subr.mxu0 0.0
    %2368 = vmatpush1.msra.mxu0 0.0
    %2369 = vmatprep.subr.mxu0 0.0
    %2370 = vmatpush1.msra.mxu0 0.0
    %2371 = vmatprep.subr.mxu0 0.0
    %2372 = vmatpush1.msra.mxu0 0.0
    %2373 = vmatprep.subr.mxu0 0.0
    %2374 = vmatpush1.msra.mxu0 0.0
    %2375 = vmatprep.subr.mxu0 0.0
    %2376 = vmatpush1.msra.mxu0 0.0
    %2377 = vmatprep.subr.mxu0 0.0
    %2378 = vmatpush1.msra.mxu0 0.0
    %2379 = vmatprep.subr.mxu0 0.0
    %2380 = vmatpush1.msra.mxu0 0.0
    %2381 = vmatprep.subr.mxu0 0.0
    %2382 = vmatpush1.msra.mxu0 0.0
    %2383 = vmatprep.subr.mxu0 0.0
    %2384 = vmatpush1.msra.mxu0 0.0
    %2385 = vmatprep.subr.mxu0 0.0
    %2386 = vmatpush1.msra.mxu0 0.0
    %2387 = vmatprep.subr.mxu0 0.0
    %2388 = vmatpush1.msra.mxu0 0.0
    %2389 = vmatprep.subr.mxu0 0.0
    %2390 = vmatpush1.msra.mxu0 0.0
    %2391 = vmatprep.subr.mxu0 0.0
    %2392 = vmatpush1.msra.mxu0 0.0
    %2393 = vmatprep.subr.mxu0 0.0
    %2394 = vmatpush1.msra.mxu0 0.0
    %2395 = vmatprep.subr.mxu0 0.0
    %2396 = vmatpush1.msra.mxu0 0.0
    %2397 = vmatprep.subr.mxu0 0.0
    %2398 = vmatpush1.msra.mxu0 0.0
    %2399 = vmatprep.subr.mxu0 0.0
    %2400 = vmatpush1.msra.mxu0 0.0
    %2401 = vmatprep.subr.mxu0 0.0
    %2402 = vmatpush1.msra.mxu0 0.0
    %2403 = vmatprep.subr.mxu0 0.0
    %2404 = vmatpush1.msra.mxu0 0.0
    %2405 = vmatprep.subr.mxu0 0.0
    %2406 = vmatpush1.msra.mxu0 0.0
    %2407 = vmatprep.subr.mxu0 0.0
    %2408 = vmatpush1.msra.mxu0 0.0
    %2409 = vmatprep.subr.mxu0 0.0
    %2410 = vmatpush1.msra.mxu0 0.0
    %2411 = vmatprep.subr.mxu0 0.0
    %2412 = vmatpush1.msra.mxu0 0.0
    %2413 = vmatprep.subr.mxu0 0.0
    %2414 = vmatpush1.msra.mxu0 0.0
    %2415 = vmatprep.subr.mxu0 0.0
    %2416 = vmatpush1.msra.mxu0 0.0
    %2417 = vmatprep.subr.mxu0 0.0
    %2418 = vmatpush1.msra.mxu0 0.0
    %2419 = vmatprep.mubr.f32.mxu0 0.0
    %2420 = vmatmul.mubr.f32.gmra.mrb[0].mxu0 %v2344
    %v2421 = vpop.f32.mrb[0].mxu0
    %v2422 = vadd.f32 0.0, %v2421
    %v2423 = vpop.f32.mrb[0].mxu0
    %2424 = vmatprep.mubr.f32.mxu0 0.0
    %2425 = vmatmul.mubr.f32.gmra.mrb[0].mxu0 %v2347
    %v2426 = vpop.f32.mrb[0].mxu0
    %v2427 = vadd.f32 0.0, %v2426
    %v2428 = vpop.f32.mrb[0].mxu0
    %2429 = vmatprep.mubr.f32.mxu0 0.0
    %2430 = vmatmul.mubr.f32.gmra.mrb[0].mxu0 %v2350
    %v2431 = vpop.f32.mrb[0].mxu0
    %v2432 = vadd.f32 0.0, %v2431
    %v2433 = vpop.f32.mrb[0].mxu0
    %2434 = vmatprep.mubr.f32.mxu0 0.0
    %2435 = vmatmul.mubr.f32.gmra.mrb[0].mxu0 %v2353
    %v2436 = vpop.f32.mrb[0].mxu0
    %v2437 = vadd.f32 0.0, %v2436
    %v2438 = vpop.f32.mrb[0].mxu0
    %2439 = vdwg.mxu0
    %v2441 = vsel %vm489, %v555, 0
    %v2444 = vsel %vm489, %v556, 0
    %v2447 = vsel %vm489, %v557, 0
    %v2450 = vsel %vm489, %v558, 0
    %2452 = vmatprep.subr.mxu0 0.0
    %2453 = vmatpush1.msra.mxu0 %v2249
    %2454 = vmatprep.subr.mxu0 0.0
    %2455 = vmatpush1.msra.mxu0 %v2250
    %2456 = vmatprep.subr.mxu0 0.0
    %2457 = vmatpush1.msra.mxu0 %v2251
    %2458 = vmatprep.subr.mxu0 0.0
    %2459 = vmatpush1.msra.mxu0 %v2252
    %2460 = vmatprep.subr.mxu0 0.0
    %2461 = vmatpush1.msra.mxu0 0.0
    %2462 = vmatprep.subr.mxu0 0.0
    %2463 = vmatpush1.msra.mxu0 0.0
    %2464 = vmatprep.subr.mxu0 0.0
    %2465 = vmatpush1.msra.mxu0 0.0
    %2466 = vmatprep.subr.mxu0 0.0
    %2467 = vmatpush1.msra.mxu0 0.0
    %2468 = vmatprep.subr.mxu0 0.0
    %2469 = vmatpush1.msra.mxu0 0.0
    %2470 = vmatprep.subr.mxu0 0.0
    %2471 = vmatpush1.msra.mxu0 0.0
    %2472 = vmatprep.subr.mxu0 0.0
    %2473 = vmatpush1.msra.mxu0 0.0
    %2474 = vmatprep.subr.mxu0 0.0
    %2475 = vmatpush1.msra.mxu0 0.0
    %2476 = vmatprep.subr.mxu0 0.0
    %2477 = vmatpush1.msra.mxu0 0.0
    %2478 = vmatprep.subr.mxu0 0.0
    %2479 = vmatpush1.msra.mxu0 0.0
    %2480 = vmatprep.subr.mxu0 0.0
    %2481 = vmatpush1.msra.mxu0 0.0
    %2482 = vmatprep.subr.mxu0 0.0
    %2483 = vmatpush1.msra.mxu0 0.0
    %2484 = vmatprep.subr.mxu0 0.0
    %2485 = vmatpush1.msra.mxu0 0.0
    %2486 = vmatprep.subr.mxu0 0.0
    %2487 = vmatpush1.msra.mxu0 0.0
    %2488 = vmatprep.subr.mxu0 0.0
    %2489 = vmatpush1.msra.mxu0 0.0
    %2490 = vmatprep.subr.mxu0 0.0
    %2491 = vmatpush1.msra.mxu0 0.0
    %2492 = vmatprep.subr.mxu0 0.0
    %2493 = vmatpush1.msra.mxu0 0.0
    %2494 = vmatprep.subr.mxu0 0.0
    %2495 = vmatpush1.msra.mxu0 0.0
    %2496 = vmatprep.subr.mxu0 0.0
    %2497 = vmatpush1.msra.mxu0 0.0
    %2498 = vmatprep.subr.mxu0 0.0
    %2499 = vmatpush1.msra.mxu0 0.0
    %2500 = vmatprep.subr.mxu0 0.0
    %2501 = vmatpush1.msra.mxu0 0.0
    %2502 = vmatprep.subr.mxu0 0.0
    %2503 = vmatpush1.msra.mxu0 0.0
    %2504 = vmatprep.subr.mxu0 0.0
    %2505 = vmatpush1.msra.mxu0 0.0
    %2506 = vmatprep.subr.mxu0 0.0
    %2507 = vmatpush1.msra.mxu0 0.0
    %2508 = vmatprep.subr.mxu0 0.0
    %2509 = vmatpush1.msra.mxu0 0.0
    %2510 = vmatprep.subr.mxu0 0.0
    %2511 = vmatpush1.msra.mxu0 0.0
    %2512 = vmatprep.subr.mxu0 0.0
    %2513 = vmatpush1.msra.mxu0 0.0
    %2514 = vmatprep.subr.mxu0 0.0
    %2515 = vmatpush1.msra.mxu0 0.0
    %2516 = vmatprep.mubr.f32.mxu0 0.0
    %2517 = vmatmul.mubr.f32.gmra.mrb[0].mxu0 %v2441
    %v2518 = vpop.f32.mrb[0].mxu0
    %v2519 = vadd.f32 %v2422, %v2518
    %v2520 = vpop.f32.mrb[0].mxu0
    %2521 = vmatprep.mubr.f32.mxu0 0.0
    %2522 = vmatmul.mubr.f32.gmra.mrb[0].mxu0 %v2444
    %v2523 = vpop.f32.mrb[0].mxu0
    %v2524 = vadd.f32 %v2427, %v2523
    %v2525 = vpop.f32.mrb[0].mxu0
    %2526 = vmatprep.mubr.f32.mxu0 0.0
    %2527 = vmatmul.mubr.f32.gmra.mrb[0].mxu0 %v2447
    %v2528 = vpop.f32.mrb[0].mxu0
    %v2529 = vadd.f32 %v2432, %v2528
    %v2530 = vpop.f32.mrb[0].mxu0
    %2531 = vmatprep.mubr.f32.mxu0 0.0
    %2532 = vmatmul.mubr.f32.gmra.mrb[0].mxu0 %v2450
    %v2533 = vpop.f32.mrb[0].mxu0
    %v2534 = vadd.f32 %v2437, %v2533
    %v2535 = vpop.f32.mrb[0].mxu0
    %2536 = vdwg.mxu0
    %v2537 = vlaneseq
    %v2538 = vshrl.u32 %v2537, 7
    %v2539 = vsub.s32 3, %v2538
    %v2540 = vrot.slane %v1692, %v2539
    %v2541 = vadd.f32 %v2519, %v2540
    %v2542 = vadd.f32 %v2524, %v2540
    %v2543 = vadd.f32 %v2529, %v2540
    %v2544 = vadd.f32 %v2534, %v2540
    %v2545 = vmax.f32 %v2541, 0.0
    %v2546 = vmax.f32 %v2542, 0.0
    %v2547 = vmax.f32 %v2543, 0.0
    %v2548 = vmax.f32 %v2544, 0.0
    %v2549 = vsel %vm489, %v2545, 0.0
    %2550 = vadd.xlane.f32.xlu0 %v2549
    %v2551 = vpop.xlane.xlu0 %2550
    %v2552 = vsel %vm489, %v2546, 0.0
    %2553 = vadd.xlane.f32.xlu0 %v2552
    %v2554 = vpop.xlane.xlu0 %2553
    %v2555 = vsel %vm489, %v2547, 0.0
    %2556 = vadd.xlane.f32.xlu0 %v2555
    %v2557 = vpop.xlane.xlu0 %2556
    %v2558 = vsel %vm489, %v2548, 0.0
    %2559 = vadd.xlane.f32.xlu0 %v2558
    %v2560 = vpop.xlane.xlu0 %2559
    %v2561 = vmul.f32 %v2551, %v502
    %v2562 = vmul.f32 %v2554, %v502
    %v2563 = vmul.f32 %v2557, %v502
    %v2564 = vmul.f32 %v2560, %v502
    %v2565 = vsub.f32 %v2545, %v2561
    %v2566 = vsub.f32 %v2546, %v2562
    %v2567 = vsub.f32 %v2547, %v2563
    %v2568 = vsub.f32 %v2548, %v2564
    %v2569 = vmul.f32 %v2565, %v2565
    %v2570 = vmul.f32 %v2566, %v2566
    %v2571 = vmul.f32 %v2567, %v2567
    %v2572 = vmul.f32 %v2568, %v2568
    %v2573 = vsel %vm489, %v2569, 0.0
    %2574 = vadd.xlane.f32.xlu0 %v2573
    %v2575 = vpop.xlane.xlu0 %2574
    %v2576 = vsel %vm489, %v2570, 0.0
    %2577 = vadd.xlane.f32.xlu0 %v2576
    %v2578 = vpop.xlane.xlu0 %2577
    %v2579 = vsel %vm489, %v2571, 0.0
    %2580 = vadd.xlane.f32.xlu0 %v2579
    %v2581 = vpop.xlane.xlu0 %2580
    %v2582 = vsel %vm489, %v2572, 0.0
    %2583 = vadd.xlane.f32.xlu0 %v2582
    %v2584 = vpop.xlane.xlu0 %2583
    %v2585 = vmul.f32 %v2575, %v502
    %v2586 = vmul.f32 %v2578, %v502
    %v2587 = vmul.f32 %v2581, %v502
    %v2588 = vmul.f32 %v2584, %v502
    %v2589 = vadd.f32 %v2585, 1e-05
    %v2590 = vadd.f32 %v2586, 1e-05
    %v2591 = vadd.f32 %v2587, 1e-05
    %v2592 = vadd.f32 %v2588, 1e-05
    %v2593 = vrsqrt.pop %v2589
    %v2594 = vrsqrt.pop %v2590
    %v2595 = vrsqrt.pop %v2591
    %v2596 = vrsqrt.pop %v2592
    %v2597 = vmul.f32 %v2565, %v2593
    %v2598 = vmul.f32 %v2566, %v2594
    %v2599 = vmul.f32 %v2567, %v2595
    %v2600 = vmul.f32 %v2568, %v2596
    %v2601 = vlaneseq
    %v2602 = vshrl.u32 %v2601, 7
    %v2603 = vsub.s32 4, %v2602
    %v2604 = vrot.slane %v1692, %v2603
    %v2605 = vmul.f32 %v2597, %v2604
    %v2606 = vmul.f32 %v2598, %v2604
    %v2607 = vmul.f32 %v2599, %v2604
    %v2608 = vmul.f32 %v2600, %v2604
    %v2609 = vlaneseq
    %v2610 = vshrl.u32 %v2609, 7
    %v2611 = vsub.s32 5, %v2610
    %v2612 = vrot.slane %v1692, %v2611
    %v2613 = vadd.f32 %v2605, %v2612
    %v2614 = vadd.f32 %v2606, %v2612
    %v2615 = vadd.f32 %v2607, %v2612
    %v2616 = vadd.f32 %v2608, %v2612
    %s2617 = scalar_lea.vmem [#allocation13], 24
    %v2618 = vld [vmem:[%s2617] sm:$0x3f]
    %v2619 = vld [vmem:[%s13] sm:$0xff]
    %v2620 = vld [vmem:[%s13 + $0x8] sm:$0xff]
    %v2621 = vld [vmem:[%s13 + $0x10] sm:$0xff]
    %vm2622 = vcmask 392192
    %v2624 = vsel %vm2622, %v2619, 0
    %v2627 = vsel %vm2622, %v2620, 0
    %v2630 = vsel %vm2622, %v2621, 0
    %2632 = vmatprep.subr.mxu0 0.0
    %2633 = vmatpush1.msra.mxu0 %v1686
    %2634 = vmatprep.subr.mxu0 0.0
    %2635 = vmatpush1.msra.mxu0 %v1687
    %2636 = vmatprep.subr.mxu0 0.0
    %2637 = vmatpush1.msra.mxu0 %v1688
    %2638 = vmatprep.subr.mxu0 0.0
    %2639 = vmatpush1.msra.mxu0 %v1689
    %2640 = vmatprep.subr.mxu0 0.0
    %2641 = vmatpush1.msra.mxu0 %v1690
    %2642 = vmatprep.subr.mxu0 0.0
    %2643 = vmatpush1.msra.mxu0 %v1691
    %2644 = vmatprep.subr.mxu0 0.0
    %2645 = vmatpush1.msra.mxu0 0.0
    %2646 = vmatprep.subr.mxu0 0.0
    %2647 = vmatpush1.msra.mxu0 0.0
    %2648 = vmatprep.subr.mxu0 0.0
    %2649 = vmatpush1.msra.mxu0 0.0
    %2650 = vmatprep.subr.mxu0 0.0
    %2651 = vmatpush1.msra.mxu0 0.0
    %2652 = vmatprep.subr.mxu0 0.0
    %2653 = vmatpush1.msra.mxu0 0.0
    %2654 = vmatprep.subr.mxu0 0.0
    %2655 = vmatpush1.msra.mxu0 0.0
    %2656 = vmatprep.subr.mxu0 0.0
    %2657 = vmatpush1.msra.mxu0 0.0
    %2658 = vmatprep.subr.mxu0 0.0
    %2659 = vmatpush1.msra.mxu0 0.0
    %2660 = vmatprep.subr.mxu0 0.0
    %2661 = vmatpush1.msra.mxu0 0.0
    %2662 = vmatprep.subr.mxu0 0.0
    %2663 = vmatpush1.msra.mxu0 0.0
    %2664 = vmatprep.subr.mxu0 0.0
    %2665 = vmatpush1.msra.mxu0 0.0
    %2666 = vmatprep.subr.mxu0 0.0
    %2667 = vmatpush1.msra.mxu0 0.0
    %2668 = vmatprep.subr.mxu0 0.0
    %2669 = vmatpush1.msra.mxu0 0.0
    %2670 = vmatprep.subr.mxu0 0.0
    %2671 = vmatpush1.msra.mxu0 0.0
    %2672 = vmatprep.subr.mxu0 0.0
    %2673 = vmatpush1.msra.mxu0 0.0
    %2674 = vmatprep.subr.mxu0 0.0
    %2675 = vmatpush1.msra.mxu0 0.0
    %2676 = vmatprep.subr.mxu0 0.0
    %2677 = vmatpush1.msra.mxu0 0.0
    %2678 = vmatprep.subr.mxu0 0.0
    %2679 = vmatpush1.msra.mxu0 0.0
    %2680 = vmatprep.subr.mxu0 0.0
    %2681 = vmatpush1.msra.mxu0 0.0
    %2682 = vmatprep.subr.mxu0 0.0
    %2683 = vmatpush1.msra.mxu0 0.0
    %2684 = vmatprep.subr.mxu0 0.0
    %2685 = vmatpush1.msra.mxu0 0.0
    %2686 = vmatprep.subr.mxu0 0.0
    %2687 = vmatpush1.msra.mxu0 0.0
    %2688 = vmatprep.subr.mxu0 0.0
    %2689 = vmatpush1.msra.mxu0 0.0
    %2690 = vmatprep.subr.mxu0 0.0
    %2691 = vmatpush1.msra.mxu0 0.0
    %2692 = vmatprep.subr.mxu0 0.0
    %2693 = vmatpush1.msra.mxu0 0.0
    %2694 = vmatprep.subr.mxu0 0.0
    %2695 = vmatpush1.msra.mxu0 0.0
    %2696 = vmatprep.mubr.f32.mxu0 0.0
    %2697 = vmatmul.mubr.f32.gmra.mrb[0].mxu0 %v2624
    %v2698 = vpop.f32.mrb[0].mxu0
    %v2699 = vadd.f32 0.0, %v2698
    %v2700 = vpop.f32.mrb[0].mxu0
    %2701 = vmatprep.mubr.f32.mxu0 0.0
    %2702 = vmatmul.mubr.f32.gmra.mrb[0].mxu0 %v2627
    %v2703 = vpop.f32.mrb[0].mxu0
    %v2704 = vadd.f32 0.0, %v2703
    %v2705 = vpop.f32.mrb[0].mxu0
    %2706 = vmatprep.mubr.f32.mxu0 0.0
    %2707 = vmatmul.mubr.f32.gmra.mrb[0].mxu0 %v2630
    %v2708 = vpop.f32.mrb[0].mxu0
    %v2709 = vadd.f32 0.0, %v2708
    %v2710 = vpop.f32.mrb[0].mxu0
    %2711 = vdwg.mxu0
    %s2712 = scalar_lea.vmem [#allocation10], 288
    %v2713 = vld [vmem:[%s2712] sm:$0xff]
    %v2714 = vld [vmem:[%s2712 + $0x8] sm:$0xff]
    %v2715 = vld [vmem:[%s2712 + $0x10] sm:$0xff]
    %v2716 = vld [vmem:[%s2712 + $0x18] sm:$0xff]
    %s2717 = scalar_lea.vmem %s13, 24
    %v2718 = vld [vmem:[%s2717] sm:$0xff]
    %v2719 = vld [vmem:[%s2717 + $0x8] sm:$0xff]
    %v2720 = vld [vmem:[%s2717 + $0x10] sm:$0xff]
    %v2722 = vsel %vm2622, %v2718, 0
    %v2725 = vsel %vm2622, %v2719, 0
    %v2728 = vsel %vm2622, %v2720, 0
    %2730 = vmatprep.subr.mxu0 0.0
    %2731 = vmatpush1.msra.mxu0 %v1686
    %2732 = vmatprep.subr.mxu0 0.0
    %2733 = vmatpush1.msra.mxu0 %v1687
    %2734 = vmatprep.subr.mxu0 0.0
    %2735 = vmatpush1.msra.mxu0 %v1688
    %2736 = vmatprep.subr.mxu0 0.0
    %2737 = vmatpush1.msra.mxu0 %v1689
    %2738 = vmatprep.subr.mxu0 0.0
    %2739 = vmatpush1.msra.mxu0 %v1690
    %2740 = vmatprep.subr.mxu0 0.0
    %2741 = vmatpush1.msra.mxu0 %v1691
    %2742 = vmatprep.subr.mxu0 0.0
    %2743 = vmatpush1.msra.mxu0 0.0
    %2744 = vmatprep.subr.mxu0 0.0
    %2745 = vmatpush1.msra.mxu0 0.0
    %2746 = vmatprep.subr.mxu0 0.0
    %2747 = vmatpush1.msra.mxu0 0.0
    %2748 = vmatprep.subr.mxu0 0.0
    %2749 = vmatpush1.msra.mxu0 0.0
    %2750 = vmatprep.subr.mxu0 0.0
    %2751 = vmatpush1.msra.mxu0 0.0
    %2752 = vmatprep.subr.mxu0 0.0
    %2753 = vmatpush1.msra.mxu0 0.0
    %2754 = vmatprep.subr.mxu0 0.0
    %2755 = vmatpush1.msra.mxu0 0.0
    %2756 = vmatprep.subr.mxu0 0.0
    %2757 = vmatpush1.msra.mxu0 0.0
    %2758 = vmatprep.subr.mxu0 0.0
    %2759 = vmatpush1.msra.mxu0 0.0
    %2760 = vmatprep.subr.mxu0 0.0
    %2761 = vmatpush1.msra.mxu0 0.0
    %2762 = vmatprep.subr.mxu0 0.0
    %2763 = vmatpush1.msra.mxu0 0.0
    %2764 = vmatprep.subr.mxu0 0.0
    %2765 = vmatpush1.msra.mxu0 0.0
    %2766 = vmatprep.subr.mxu0 0.0
    %2767 = vmatpush1.msra.mxu0 0.0
    %2768 = vmatprep.subr.mxu0 0.0
    %2769 = vmatpush1.msra.mxu0 0.0
    %2770 = vmatprep.subr.mxu0 0.0
    %2771 = vmatpush1.msra.mxu0 0.0
    %2772 = vmatprep.subr.mxu0 0.0
    %2773 = vmatpush1.msra.mxu0 0.0
    %2774 = vmatprep.subr.mxu0 0.0
    %2775 = vmatpush1.msra.mxu0 0.0
    %2776 = vmatprep.subr.mxu0 0.0
    %2777 = vmatpush1.msra.mxu0 0.0
    %2778 = vmatprep.subr.mxu0 0.0
    %2779 = vmatpush1.msra.mxu0 0.0
    %2780 = vmatprep.subr.mxu0 0.0
    %2781 = vmatpush1.msra.mxu0 0.0
    %2782 = vmatprep.subr.mxu0 0.0
    %2783 = vmatpush1.msra.mxu0 0.0
    %2784 = vmatprep.subr.mxu0 0.0
    %2785 = vmatpush1.msra.mxu0 0.0
    %2786 = vmatprep.subr.mxu0 0.0
    %2787 = vmatpush1.msra.mxu0 0.0
    %2788 = vmatprep.subr.mxu0 0.0
    %2789 = vmatpush1.msra.mxu0 0.0
    %2790 = vmatprep.subr.mxu0 0.0
    %2791 = vmatpush1.msra.mxu0 0.0
    %2792 = vmatprep.subr.mxu0 0.0
    %2793 = vmatpush1.msra.mxu0 0.0
    %2794 = vmatprep.mubr.f32.mxu0 0.0
    %2795 = vmatmul.mubr.f32.gmra.mrb[0].mxu0 %v2722
    %v2796 = vpop.f32.mrb[0].mxu0
    %v2797 = vadd.f32 0.0, %v2796
    %v2798 = vpop.f32.mrb[0].mxu0
    %2799 = vmatprep.mubr.f32.mxu0 0.0
    %2800 = vmatmul.mubr.f32.gmra.mrb[0].mxu0 %v2725
    %v2801 = vpop.f32.mrb[0].mxu0
    %v2802 = vadd.f32 0.0, %v2801
    %v2803 = vpop.f32.mrb[0].mxu0
    %2804 = vmatprep.mubr.f32.mxu0 0.0
    %2805 = vmatmul.mubr.f32.gmra.mrb[0].mxu0 %v2728
    %v2806 = vpop.f32.mrb[0].mxu0
    %v2807 = vadd.f32 0.0, %v2806
    %v2808 = vpop.f32.mrb[0].mxu0
    %2809 = vdwg.mxu0
    %s2810 = scalar_lea.vmem [#allocation10], 320
    %v2811 = vld [vmem:[%s2810] sm:$0xff]
    %v2812 = vld [vmem:[%s2810 + $0x8] sm:$0xff]
    %v2813 = vld [vmem:[%s2810 + $0x10] sm:$0xff]
    %v2814 = vld [vmem:[%s2810 + $0x18] sm:$0xff]
    %v2816 = vsel %vm489, %v2797, 0
    %v2819 = vsel %vm489, %v2802, 0
    %v2822 = vsel %vm489, %v2807, 0
    %2824 = vmatprep.subr.mxu0 0.0
    %2825 = vmatpush1.msra.mxu0 %v2811
    %2826 = vmatprep.subr.mxu0 0.0
    %2827 = vmatpush1.msra.mxu0 %v2812
    %2828 = vmatprep.subr.mxu0 0.0
    %2829 = vmatpush1.msra.mxu0 %v2813
    %2830 = vmatprep.subr.mxu0 0.0
    %2831 = vmatpush1.msra.mxu0 %v2814
    %2832 = vmatprep.subr.mxu0 0.0
    %2833 = vmatpush1.msra.mxu0 0.0
    %2834 = vmatprep.subr.mxu0 0.0
    %2835 = vmatpush1.msra.mxu0 0.0
    %2836 = vmatprep.subr.mxu0 0.0
    %2837 = vmatpush1.msra.mxu0 0.0
    %2838 = vmatprep.subr.mxu0 0.0
    %2839 = vmatpush1.msra.mxu0 0.0
    %2840 = vmatprep.subr.mxu0 0.0
    %2841 = vmatpush1.msra.mxu0 0.0
    %2842 = vmatprep.subr.mxu0 0.0
    %2843 = vmatpush1.msra.mxu0 0.0
    %2844 = vmatprep.subr.mxu0 0.0
    %2845 = vmatpush1.msra.mxu0 0.0
    %2846 = vmatprep.subr.mxu0 0.0
    %2847 = vmatpush1.msra.mxu0 0.0
    %2848 = vmatprep.subr.mxu0 0.0
    %2849 = vmatpush1.msra.mxu0 0.0
    %2850 = vmatprep.subr.mxu0 0.0
    %2851 = vmatpush1.msra.mxu0 0.0
    %2852 = vmatprep.subr.mxu0 0.0
    %2853 = vmatpush1.msra.mxu0 0.0
    %2854 = vmatprep.subr.mxu0 0.0
    %2855 = vmatpush1.msra.mxu0 0.0
    %2856 = vmatprep.subr.mxu0 0.0
    %2857 = vmatpush1.msra.mxu0 0.0
    %2858 = vmatprep.subr.mxu0 0.0
    %2859 = vmatpush1.msra.mxu0 0.0
    %2860 = vmatprep.subr.mxu0 0.0
    %2861 = vmatpush1.msra.mxu0 0.0
    %2862 = vmatprep.subr.mxu0 0.0
    %2863 = vmatpush1.msra.mxu0 0.0
    %2864 = vmatprep.subr.mxu0 0.0
    %2865 = vmatpush1.msra.mxu0 0.0
    %2866 = vmatprep.subr.mxu0 0.0
    %2867 = vmatpush1.msra.mxu0 0.0
    %2868 = vmatprep.subr.mxu0 0.0
    %2869 = vmatpush1.msra.mxu0 0.0
    %2870 = vmatprep.subr.mxu0 0.0
    %2871 = vmatpush1.msra.mxu0 0.0
    %2872 = vmatprep.subr.mxu0 0.0
    %2873 = vmatpush1.msra.mxu0 0.0
    %2874 = vmatprep.subr.mxu0 0.0
    %2875 = vmatpush1.msra.mxu0 0.0
    %2876 = vmatprep.subr.mxu0 0.0
    %2877 = vmatpush1.msra.mxu0 0.0
    %2878 = vmatprep.subr.mxu0 0.0
    %2879 = vmatpush1.msra.mxu0 0.0
    %2880 = vmatprep.subr.mxu0 0.0
    %2881 = vmatpush1.msra.mxu0 0.0
    %2882 = vmatprep.subr.mxu0 0.0
    %2883 = vmatpush1.msra.mxu0 0.0
    %2884 = vmatprep.subr.mxu0 0.0
    %2885 = vmatpush1.msra.mxu0 0.0
    %2886 = vmatprep.subr.mxu0 0.0
    %2887 = vmatpush1.msra.mxu0 0.0
    %2888 = vmatprep.mubr.f32.mxu0 0.0
    %2889 = vmatmul.mubr.f32.gmra.mrb[0].mxu0 %v2816
    %v2890 = vpop.f32.mrb[0].mxu0
    %v2891 = vadd.f32 0.0, %v2890
    %v2892 = vpop.f32.mrb[0].mxu0
    %2893 = vmatprep.mubr.f32.mxu0 0.0
    %2894 = vmatmul.mubr.f32.gmra.mrb[0].mxu0 %v2819
    %v2895 = vpop.f32.mrb[0].mxu0
    %v2896 = vadd.f32 0.0, %v2895
    %v2897 = vpop.f32.mrb[0].mxu0
    %2898 = vmatprep.mubr.f32.mxu0 0.0
    %2899 = vmatmul.mubr.f32.gmra.mrb[0].mxu0 %v2822
    %v2900 = vpop.f32.mrb[0].mxu0
    %v2901 = vadd.f32 0.0, %v2900
    %v2902 = vpop.f32.mrb[0].mxu0
    %2903 = vdwg.mxu0
    %v2905 = vsel %vm489, %v2699, 0
    %v2908 = vsel %vm489, %v2704, 0
    %v2911 = vsel %vm489, %v2709, 0
    %2913 = vmatprep.subr.mxu0 0.0
    %2914 = vmatpush1.msra.mxu0 %v2713
    %2915 = vmatprep.subr.mxu0 0.0
    %2916 = vmatpush1.msra.mxu0 %v2714
    %2917 = vmatprep.subr.mxu0 0.0
    %2918 = vmatpush1.msra.mxu0 %v2715
    %2919 = vmatprep.subr.mxu0 0.0
    %2920 = vmatpush1.msra.mxu0 %v2716
    %2921 = vmatprep.subr.mxu0 0.0
    %2922 = vmatpush1.msra.mxu0 0.0
    %2923 = vmatprep.subr.mxu0 0.0
    %2924 = vmatpush1.msra.mxu0 0.0
    %2925 = vmatprep.subr.mxu0 0.0
    %2926 = vmatpush1.msra.mxu0 0.0
    %2927 = vmatprep.subr.mxu0 0.0
    %2928 = vmatpush1.msra.mxu0 0.0
    %2929 = vmatprep.subr.mxu0 0.0
    %2930 = vmatpush1.msra.mxu0 0.0
    %2931 = vmatprep.subr.mxu0 0.0
    %2932 = vmatpush1.msra.mxu0 0.0
    %2933 = vmatprep.subr.mxu0 0.0
    %2934 = vmatpush1.msra.mxu0 0.0
    %2935 = vmatprep.subr.mxu0 0.0
    %2936 = vmatpush1.msra.mxu0 0.0
    %2937 = vmatprep.subr.mxu0 0.0
    %2938 = vmatpush1.msra.mxu0 0.0
    %2939 = vmatprep.subr.mxu0 0.0
    %2940 = vmatpush1.msra.mxu0 0.0
    %2941 = vmatprep.subr.mxu0 0.0
    %2942 = vmatpush1.msra.mxu0 0.0
    %2943 = vmatprep.subr.mxu0 0.0
    %2944 = vmatpush1.msra.mxu0 0.0
    %2945 = vmatprep.subr.mxu0 0.0
    %2946 = vmatpush1.msra.mxu0 0.0
    %2947 = vmatprep.subr.mxu0 0.0
    %2948 = vmatpush1.msra.mxu0 0.0
    %2949 = vmatprep.subr.mxu0 0.0
    %2950 = vmatpush1.msra.mxu0 0.0
    %2951 = vmatprep.subr.mxu0 0.0
    %2952 = vmatpush1.msra.mxu0 0.0
    %2953 = vmatprep.subr.mxu0 0.0
    %2954 = vmatpush1.msra.mxu0 0.0
    %2955 = vmatprep.subr.mxu0 0.0
    %2956 = vmatpush1.msra.mxu0 0.0
    %2957 = vmatprep.subr.mxu0 0.0
    %2958 = vmatpush1.msra.mxu0 0.0
    %2959 = vmatprep.subr.mxu0 0.0
    %2960 = vmatpush1.msra.mxu0 0.0
    %2961 = vmatprep.subr.mxu0 0.0
    %2962 = vmatpush1.msra.mxu0 0.0
    %2963 = vmatprep.subr.mxu0 0.0
    %2964 = vmatpush1.msra.mxu0 0.0
    %2965 = vmatprep.subr.mxu0 0.0
    %2966 = vmatpush1.msra.mxu0 0.0
    %2967 = vmatprep.subr.mxu0 0.0
    %2968 = vmatpush1.msra.mxu0 0.0
    %2969 = vmatprep.subr.mxu0 0.0
    %2970 = vmatpush1.msra.mxu0 0.0
    %2971 = vmatprep.subr.mxu0 0.0
    %2972 = vmatpush1.msra.mxu0 0.0
    %2973 = vmatprep.subr.mxu0 0.0
    %2974 = vmatpush1.msra.mxu0 0.0
    %2975 = vmatprep.subr.mxu0 0.0
    %2976 = vmatpush1.msra.mxu0 0.0
    %2977 = vmatprep.mubr.f32.mxu0 0.0
    %2978 = vmatmul.mubr.f32.gmra.mrb[0].mxu0 %v2905
    %v2979 = vpop.f32.mrb[0].mxu0
    %v2980 = vadd.f32 %v2891, %v2979
    %v2981 = vpop.f32.mrb[0].mxu0
    %2982 = vmatprep.mubr.f32.mxu0 0.0
    %2983 = vmatmul.mubr.f32.gmra.mrb[0].mxu0 %v2908
    %v2984 = vpop.f32.mrb[0].mxu0
    %v2985 = vadd.f32 %v2896, %v2984
    %v2986 = vpop.f32.mrb[0].mxu0
    %2987 = vmatprep.mubr.f32.mxu0 0.0
    %2988 = vmatmul.mubr.f32.gmra.mrb[0].mxu0 %v2911
    %v2989 = vpop.f32.mrb[0].mxu0
    %v2990 = vadd.f32 %v2901, %v2989
    %v2991 = vpop.f32.mrb[0].mxu0
    %2992 = vdwg.mxu0
    %s2993 = scalar_lea.vmem %s13, 48
    %v2994 = vld [vmem:[%s2993] sm:$0xff]
    %v2995 = vld [vmem:[%s2993 + $0x8] sm:$0xff]
    %v2996 = vld [vmem:[%s2993 + $0x10] sm:$0xff]
    %v2998 = vsel %vm2622, %v2994, 0
    %v3001 = vsel %vm2622, %v2995, 0
    %v3004 = vsel %vm2622, %v2996, 0
    %3006 = vmatprep.subr.mxu0 0.0
    %3007 = vmatpush1.msra.mxu0 %v1686
    %3008 = vmatprep.subr.mxu0 0.0
    %3009 = vmatpush1.msra.mxu0 %v1687
    %3010 = vmatprep.subr.mxu0 0.0
    %3011 = vmatpush1.msra.mxu0 %v1688
    %3012 = vmatprep.subr.mxu0 0.0
    %3013 = vmatpush1.msra.mxu0 %v1689
    %3014 = vmatprep.subr.mxu0 0.0
    %3015 = vmatpush1.msra.mxu0 %v1690
    %3016 = vmatprep.subr.mxu0 0.0
    %3017 = vmatpush1.msra.mxu0 %v1691
    %3018 = vmatprep.subr.mxu0 0.0
    %3019 = vmatpush1.msra.mxu0 0.0
    %3020 = vmatprep.subr.mxu0 0.0
    %3021 = vmatpush1.msra.mxu0 0.0
    %3022 = vmatprep.subr.mxu0 0.0
    %3023 = vmatpush1.msra.mxu0 0.0
    %3024 = vmatprep.subr.mxu0 0.0
    %3025 = vmatpush1.msra.mxu0 0.0
    %3026 = vmatprep.subr.mxu0 0.0
    %3027 = vmatpush1.msra.mxu0 0.0
    %3028 = vmatprep.subr.mxu0 0.0
    %3029 = vmatpush1.msra.mxu0 0.0
    %3030 = vmatprep.subr.mxu0 0.0
    %3031 = vmatpush1.msra.mxu0 0.0
    %3032 = vmatprep.subr.mxu0 0.0
    %3033 = vmatpush1.msra.mxu0 0.0
    %3034 = vmatprep.subr.mxu0 0.0
    %3035 = vmatpush1.msra.mxu0 0.0
    %3036 = vmatprep.subr.mxu0 0.0
    %3037 = vmatpush1.msra.mxu0 0.0
    %3038 = vmatprep.subr.mxu0 0.0
    %3039 = vmatpush1.msra.mxu0 0.0
    %3040 = vmatprep.subr.mxu0 0.0
    %3041 = vmatpush1.msra.mxu0 0.0
    %3042 = vmatprep.subr.mxu0 0.0
    %3043 = vmatpush1.msra.mxu0 0.0
    %3044 = vmatprep.subr.mxu0 0.0
    %3045 = vmatpush1.msra.mxu0 0.0
    %3046 = vmatprep.subr.mxu0 0.0
    %3047 = vmatpush1.msra.mxu0 0.0
    %3048 = vmatprep.subr.mxu0 0.0
    %3049 = vmatpush1.msra.mxu0 0.0
    %3050 = vmatprep.subr.mxu0 0.0
    %3051 = vmatpush1.msra.mxu0 0.0
    %3052 = vmatprep.subr.mxu0 0.0
    %3053 = vmatpush1.msra.mxu0 0.0
    %3054 = vmatprep.subr.mxu0 0.0
    %3055 = vmatpush1.msra.mxu0 0.0
    %3056 = vmatprep.subr.mxu0 0.0
    %3057 = vmatpush1.msra.mxu0 0.0
    %3058 = vmatprep.subr.mxu0 0.0
    %3059 = vmatpush1.msra.mxu0 0.0
    %3060 = vmatprep.subr.mxu0 0.0
    %3061 = vmatpush1.msra.mxu0 0.0
    %3062 = vmatprep.subr.mxu0 0.0
    %3063 = vmatpush1.msra.mxu0 0.0
    %3064 = vmatprep.subr.mxu0 0.0
    %3065 = vmatpush1.msra.mxu0 0.0
    %3066 = vmatprep.subr.mxu0 0.0
    %3067 = vmatpush1.msra.mxu0 0.0
    %3068 = vmatprep.subr.mxu0 0.0
    %3069 = vmatpush1.msra.mxu0 0.0
    %3070 = vmatprep.mubr.f32.mxu0 0.0
    %3071 = vmatmul.mubr.f32.gmra.mrb[0].mxu0 %v2998
    %v3072 = vpop.f32.mrb[0].mxu0
    %v3073 = vadd.f32 0.0, %v3072
    %v3074 = vpop.f32.mrb[0].mxu0
    %3075 = vmatprep.mubr.f32.mxu0 0.0
    %3076 = vmatmul.mubr.f32.gmra.mrb[0].mxu0 %v3001
    %v3077 = vpop.f32.mrb[0].mxu0
    %v3078 = vadd.f32 0.0, %v3077
    %v3079 = vpop.f32.mrb[0].mxu0
    %3080 = vmatprep.mubr.f32.mxu0 0.0
    %3081 = vmatmul.mubr.f32.gmra.mrb[0].mxu0 %v3004
    %v3082 = vpop.f32.mrb[0].mxu0
    %v3083 = vadd.f32 0.0, %v3082
    %v3084 = vpop.f32.mrb[0].mxu0
    %3085 = vdwg.mxu0
    %s3086 = scalar_lea.vmem [#allocation10], 352
    %v3087 = vld [vmem:[%s3086] sm:$0xff]
    %v3088 = vld [vmem:[%s3086 + $0x8] sm:$0xff]
    %v3089 = vld [vmem:[%s3086 + $0x10] sm:$0xff]
    %v3090 = vld [vmem:[%s3086 + $0x18] sm:$0xff]
    %v3092 = vsel %vm489, %v3073, 0
    %v3095 = vsel %vm489, %v3078, 0
    %v3098 = vsel %vm489, %v3083, 0
    %3100 = vmatprep.subr.mxu0 0.0
    %3101 = vmatpush1.msra.mxu0 %v3087
    %3102 = vmatprep.subr.mxu0 0.0
    %3103 = vmatpush1.msra.mxu0 %v3088
    %3104 = vmatprep.subr.mxu0 0.0
    %3105 = vmatpush1.msra.mxu0 %v3089
    %3106 = vmatprep.subr.mxu0 0.0
    %3107 = vmatpush1.msra.mxu0 %v3090
    %3108 = vmatprep.subr.mxu0 0.0
    %3109 = vmatpush1.msra.mxu0 0.0
    %3110 = vmatprep.subr.mxu0 0.0
    %3111 = vmatpush1.msra.mxu0 0.0
    %3112 = vmatprep.subr.mxu0 0.0
    %3113 = vmatpush1.msra.mxu0 0.0
    %3114 = vmatprep.subr.mxu0 0.0
    %3115 = vmatpush1.msra.mxu0 0.0
    %3116 = vmatprep.subr.mxu0 0.0
    %3117 = vmatpush1.msra.mxu0 0.0
    %3118 = vmatprep.subr.mxu0 0.0
    %3119 = vmatpush1.msra.mxu0 0.0
    %3120 = vmatprep.subr.mxu0 0.0
    %3121 = vmatpush1.msra.mxu0 0.0
    %3122 = vmatprep.subr.mxu0 0.0
    %3123 = vmatpush1.msra.mxu0 0.0
    %3124 = vmatprep.subr.mxu0 0.0
    %3125 = vmatpush1.msra.mxu0 0.0
    %3126 = vmatprep.subr.mxu0 0.0
    %3127 = vmatpush1.msra.mxu0 0.0
    %3128 = vmatprep.subr.mxu0 0.0
    %3129 = vmatpush1.msra.mxu0 0.0
    %3130 = vmatprep.subr.mxu0 0.0
    %3131 = vmatpush1.msra.mxu0 0.0
    %3132 = vmatprep.subr.mxu0 0.0
    %3133 = vmatpush1.msra.mxu0 0.0
    %3134 = vmatprep.subr.mxu0 0.0
    %3135 = vmatpush1.msra.mxu0 0.0
    %3136 = vmatprep.subr.mxu0 0.0
    %3137 = vmatpush1.msra.mxu0 0.0
    %3138 = vmatprep.subr.mxu0 0.0
    %3139 = vmatpush1.msra.mxu0 0.0
    %3140 = vmatprep.subr.mxu0 0.0
    %3141 = vmatpush1.msra.mxu0 0.0
    %3142 = vmatprep.subr.mxu0 0.0
    %3143 = vmatpush1.msra.mxu0 0.0
    %3144 = vmatprep.subr.mxu0 0.0
    %3145 = vmatpush1.msra.mxu0 0.0
    %3146 = vmatprep.subr.mxu0 0.0
    %3147 = vmatpush1.msra.mxu0 0.0
    %3148 = vmatprep.subr.mxu0 0.0
    %3149 = vmatpush1.msra.mxu0 0.0
    %3150 = vmatprep.subr.mxu0 0.0
    %3151 = vmatpush1.msra.mxu0 0.0
    %3152 = vmatprep.subr.mxu0 0.0
    %3153 = vmatpush1.msra.mxu0 0.0
    %3154 = vmatprep.subr.mxu0 0.0
    %3155 = vmatpush1.msra.mxu0 0.0
    %3156 = vmatprep.subr.mxu0 0.0
    %3157 = vmatpush1.msra.mxu0 0.0
    %3158 = vmatprep.subr.mxu0 0.0
    %3159 = vmatpush1.msra.mxu0 0.0
    %3160 = vmatprep.subr.mxu0 0.0
    %3161 = vmatpush1.msra.mxu0 0.0
    %3162 = vmatprep.subr.mxu0 0.0
    %3163 = vmatpush1.msra.mxu0 0.0
    %3164 = vmatprep.mubr.f32.mxu0 0.0
    %3165 = vmatmul.mubr.f32.gmra.mrb[0].mxu0 %v3092
    %v3166 = vpop.f32.mrb[0].mxu0
    %v3167 = vadd.f32 0.0, %v3166
    %v3168 = vpop.f32.mrb[0].mxu0
    %3169 = vmatprep.mubr.f32.mxu0 0.0
    %3170 = vmatmul.mubr.f32.gmra.mrb[0].mxu0 %v3095
    %v3171 = vpop.f32.mrb[0].mxu0
    %v3172 = vadd.f32 0.0, %v3171
    %v3173 = vpop.f32.mrb[0].mxu0
    %3174 = vmatprep.mubr.f32.mxu0 0.0
    %3175 = vmatmul.mubr.f32.gmra.mrb[0].mxu0 %v3098
    %v3176 = vpop.f32.mrb[0].mxu0
    %v3177 = vadd.f32 0.0, %v3176
    %v3178 = vpop.f32.mrb[0].mxu0
    %3179 = vdwg.mxu0
    %v3180 = vadd.f32 %v2980, %v3167
    %v3181 = vadd.f32 %v2985, %v3172
    %v3182 = vadd.f32 %v2990, %v3177
    %v3183 = vlaneseq
    %v3184 = vshrl.u32 %v3183, 7
    %v3185 = vsub.s32 0, %v3184
    %v3186 = vrot.slane %v2618, %v3185
    %v3187 = vadd.f32 %v3180, %v3186
    %v3188 = vadd.f32 %v3181, %v3186
    %v3189 = vadd.f32 %v3182, %v3186
    %v3190 = vmax.f32 %v3187, 0.0
    %v3191 = vmax.f32 %v3188, 0.0
    %v3192 = vmax.f32 %v3189, 0.0
    %v3193 = vsel %vm489, %v3190, 0.0
    %3194 = vadd.xlane.f32.xlu0 %v3193
    %v3195 = vpop.xlane.xlu0 %3194
    %v3196 = vsel %vm489, %v3191, 0.0
    %3197 = vadd.xlane.f32.xlu0 %v3196
    %v3198 = vpop.xlane.xlu0 %3197
    %v3199 = vsel %vm489, %v3192, 0.0
    %3200 = vadd.xlane.f32.xlu0 %v3199
    %v3201 = vpop.xlane.xlu0 %3200
    %v3202 = vmul.f32 %v3195, %v502
    %v3203 = vmul.f32 %v3198, %v502
    %v3204 = vmul.f32 %v3201, %v502
    %v3205 = vsub.f32 %v3190, %v3202
    %v3206 = vsub.f32 %v3191, %v3203
    %v3207 = vsub.f32 %v3192, %v3204
    %v3208 = vmul.f32 %v3205, %v3205
    %v3209 = vmul.f32 %v3206, %v3206
    %v3210 = vmul.f32 %v3207, %v3207
    %v3211 = vsel %vm489, %v3208, 0.0
    %3212 = vadd.xlane.f32.xlu0 %v3211
    %v3213 = vpop.xlane.xlu0 %3212
    %v3214 = vsel %vm489, %v3209, 0.0
    %3215 = vadd.xlane.f32.xlu0 %v3214
    %v3216 = vpop.xlane.xlu0 %3215
    %v3217 = vsel %vm489, %v3210, 0.0
    %3218 = vadd.xlane.f32.xlu0 %v3217
    %v3219 = vpop.xlane.xlu0 %3218
    %v3220 = vmul.f32 %v3213, %v502
    %v3221 = vmul.f32 %v3216, %v502
    %v3222 = vmul.f32 %v3219, %v502
    %v3223 = vadd.f32 %v3220, 1e-05
    %v3224 = vadd.f32 %v3221, 1e-05
    %v3225 = vadd.f32 %v3222, 1e-05
    %v3226 = vrsqrt.pop %v3223
    %v3227 = vrsqrt.pop %v3224
    %v3228 = vrsqrt.pop %v3225
    %v3229 = vmul.f32 %v3205, %v3226
    %v3230 = vmul.f32 %v3206, %v3227
    %v3231 = vmul.f32 %v3207, %v3228
    %v3232 = vlaneseq
    %v3233 = vshrl.u32 %v3232, 7
    %v3234 = vsub.s32 1, %v3233
    %v3235 = vrot.slane %v2618, %v3234
    %v3236 = vmul.f32 %v3229, %v3235
    %v3237 = vmul.f32 %v3230, %v3235
    %v3238 = vmul.f32 %v3231, %v3235
    %v3239 = vlaneseq
    %v3240 = vshrl.u32 %v3239, 7
    %v3241 = vsub.s32 2, %v3240
    %v3242 = vrot.slane %v2618, %v3241
    %v3243 = vadd.f32 %v3236, %v3242
    %v3244 = vadd.f32 %v3237, %v3242
    %v3245 = vadd.f32 %v3238, %v3242
    %s3246 = scalar_lea.vmem [#allocation12], 192
    %v3247 = vld [vmem:[%s3246] sm:$0xff]
    %v3248 = vld [vmem:[%s3246 + $0x8] sm:$0xff]
    %v3249 = vld [vmem:[%s3246 + $0x10] sm:$0xff]
    %v3250 = vld [vmem:[%s3246 + $0x18] sm:$0xff]
    %v3251 = vld [vmem:[#allocation18] sm:$0xff]
    %v3252 = vld [vmem:[#allocation18 + $0x8] sm:$0xff]
    %v3253 = vld [vmem:[#allocation18 + $0x10] sm:$0xff]
    %v3254 = vld [vmem:[#allocation18 + $0x18] sm:$0xff]
    %v3255 = vld [vmem:[#allocation18 + $0x20] sm:$0xff]
    %v3256 = vld [vmem:[#allocation18 + $0x28] sm:$0xff]
    %s3257 = scalar_lea.vmem [#allocation12], 224
    %v3258 = vld [vmem:[%s3257] sm:$0xff]
    %v3259 = vld [vmem:[%s3257 + $0x8] sm:$0xff]
    %v3260 = vld [vmem:[%s3257 + $0x10] sm:$0xff]
    %v3261 = vld [vmem:[%s3257 + $0x18] sm:$0xff]
    %v3263 = vsel %vm489, %v3243, 0
    %v3266 = vsel %vm489, %v3244, 0
    %v3269 = vsel %vm489, %v3245, 0
    %3271 = vmatprep.subr.mxu0 0.0
    %3272 = vmatpush1.msra.mxu0 %v3258
    %3273 = vmatprep.subr.mxu0 0.0
    %3274 = vmatpush1.msra.mxu0 %v3259
    %3275 = vmatprep.subr.mxu0 0.0
    %3276 = vmatpush1.msra.mxu0 %v3260
    %3277 = vmatprep.subr.mxu0 0.0
    %3278 = vmatpush1.msra.mxu0 %v3261
    %3279 = vmatprep.subr.mxu0 0.0
    %3280 = vmatpush1.msra.mxu0 0.0
    %3281 = vmatprep.subr.mxu0 0.0
    %3282 = vmatpush1.msra.mxu0 0.0
    %3283 = vmatprep.subr.mxu0 0.0
    %3284 = vmatpush1.msra.mxu0 0.0
    %3285 = vmatprep.subr.mxu0 0.0
    %3286 = vmatpush1.msra.mxu0 0.0
    %3287 = vmatprep.subr.mxu0 0.0
    %3288 = vmatpush1.msra.mxu0 0.0
    %3289 = vmatprep.subr.mxu0 0.0
    %3290 = vmatpush1.msra.mxu0 0.0
    %3291 = vmatprep.subr.mxu0 0.0
    %3292 = vmatpush1.msra.mxu0 0.0
    %3293 = vmatprep.subr.mxu0 0.0
    %3294 = vmatpush1.msra.mxu0 0.0
    %3295 = vmatprep.subr.mxu0 0.0
    %3296 = vmatpush1.msra.mxu0 0.0
    %3297 = vmatprep.subr.mxu0 0.0
    %3298 = vmatpush1.msra.mxu0 0.0
    %3299 = vmatprep.subr.mxu0 0.0
    %3300 = vmatpush1.msra.mxu0 0.0
    %3301 = vmatprep.subr.mxu0 0.0
    %3302 = vmatpush1.msra.mxu0 0.0
    %3303 = vmatprep.subr.mxu0 0.0
    %3304 = vmatpush1.msra.mxu0 0.0
    %3305 = vmatprep.subr.mxu0 0.0
    %3306 = vmatpush1.msra.mxu0 0.0
    %3307 = vmatprep.subr.mxu0 0.0
    %3308 = vmatpush1.msra.mxu0 0.0
    %3309 = vmatprep.subr.mxu0 0.0
    %3310 = vmatpush1.msra.mxu0 0.0
    %3311 = vmatprep.subr.mxu0 0.0
    %3312 = vmatpush1.msra.mxu0 0.0
    %3313 = vmatprep.subr.mxu0 0.0
    %3314 = vmatpush1.msra.mxu0 0.0
    %3315 = vmatprep.subr.mxu0 0.0
    %3316 = vmatpush1.msra.mxu0 0.0
    %3317 = vmatprep.subr.mxu0 0.0
    %3318 = vmatpush1.msra.mxu0 0.0
    %3319 = vmatprep.subr.mxu0 0.0
    %3320 = vmatpush1.msra.mxu0 0.0
    %3321 = vmatprep.subr.mxu0 0.0
    %3322 = vmatpush1.msra.mxu0 0.0
    %3323 = vmatprep.subr.mxu0 0.0
    %3324 = vmatpush1.msra.mxu0 0.0
    %3325 = vmatprep.subr.mxu0 0.0
    %3326 = vmatpush1.msra.mxu0 0.0
    %3327 = vmatprep.subr.mxu0 0.0
    %3328 = vmatpush1.msra.mxu0 0.0
    %3329 = vmatprep.subr.mxu0 0.0
    %3330 = vmatpush1.msra.mxu0 0.0
    %3331 = vmatprep.subr.mxu0 0.0
    %3332 = vmatpush1.msra.mxu0 0.0
    %3333 = vmatprep.subr.mxu0 0.0
    %3334 = vmatpush1.msra.mxu0 0.0
    %3335 = vmatprep.mubr.f32.mxu0 0.0
    %3336 = vmatmul.mubr.f32.gmra.mrb[0].mxu0 %v3263
    %v3337 = vpop.f32.mrb[0].mxu0
    %v3338 = vadd.f32 0.0, %v3337
    %v3339 = vpop.f32.mrb[0].mxu0
    %3340 = vmatprep.mubr.f32.mxu0 0.0
    %3341 = vmatmul.mubr.f32.gmra.mrb[0].mxu0 %v3266
    %v3342 = vpop.f32.mrb[0].mxu0
    %v3343 = vadd.f32 0.0, %v3342
    %v3344 = vpop.f32.mrb[0].mxu0
    %3345 = vmatprep.mubr.f32.mxu0 0.0
    %3346 = vmatmul.mubr.f32.gmra.mrb[0].mxu0 %v3269
    %v3347 = vpop.f32.mrb[0].mxu0
    %v3348 = vadd.f32 0.0, %v3347
    %v3349 = vpop.f32.mrb[0].mxu0
    %3350 = vdwg.mxu0
    %vm3351 = vcmask 195584
    %v3353 = vsel %vm3351, %v3251, 0
    %v3356 = vsel %vm3351, %v3252, 0
    %v3359 = vsel %vm3351, %v3253, 0
    %v3362 = vsel %vm3351, %v3254, 0
    %v3365 = vsel %vm3351, %v3255, 0
    %v3368 = vsel %vm3351, %v3256, 0
    %3370 = vmatprep.subr.mxu0 0.0
    %3371 = vmatpush1.msra.mxu0 %v3338
    %3372 = vmatprep.subr.mxu0 0.0
    %3373 = vmatpush1.msra.mxu0 %v3343
    %3374 = vmatprep.subr.mxu0 0.0
    %3375 = vmatpush1.msra.mxu0 %v3348
    %3376 = vmatprep.subr.mxu0 0.0
    %3377 = vmatpush1.msra.mxu0 0.0
    %3378 = vmatprep.subr.mxu0 0.0
    %3379 = vmatpush1.msra.mxu0 0.0
    %3380 = vmatprep.subr.mxu0 0.0
    %3381 = vmatpush1.msra.mxu0 0.0
    %3382 = vmatprep.subr.mxu0 0.0
    %3383 = vmatpush1.msra.mxu0 0.0
    %3384 = vmatprep.subr.mxu0 0.0
    %3385 = vmatpush1.msra.mxu0 0.0
    %3386 = vmatprep.subr.mxu0 0.0
    %3387 = vmatpush1.msra.mxu0 0.0
    %3388 = vmatprep.subr.mxu0 0.0
    %3389 = vmatpush1.msra.mxu0 0.0
    %3390 = vmatprep.subr.mxu0 0.0
    %3391 = vmatpush1.msra.mxu0 0.0
    %3392 = vmatprep.subr.mxu0 0.0
    %3393 = vmatpush1.msra.mxu0 0.0
    %3394 = vmatprep.subr.mxu0 0.0
    %3395 = vmatpush1.msra.mxu0 0.0
    %3396 = vmatprep.subr.mxu0 0.0
    %3397 = vmatpush1.msra.mxu0 0.0
    %3398 = vmatprep.subr.mxu0 0.0
    %3399 = vmatpush1.msra.mxu0 0.0
    %3400 = vmatprep.subr.mxu0 0.0
    %3401 = vmatpush1.msra.mxu0 0.0
    %3402 = vmatprep.subr.mxu0 0.0
    %3403 = vmatpush1.msra.mxu0 0.0
    %3404 = vmatprep.subr.mxu0 0.0
    %3405 = vmatpush1.msra.mxu0 0.0
    %3406 = vmatprep.subr.mxu0 0.0
    %3407 = vmatpush1.msra.mxu0 0.0
    %3408 = vmatprep.subr.mxu0 0.0
    %3409 = vmatpush1.msra.mxu0 0.0
    %3410 = vmatprep.subr.mxu0 0.0
    %3411 = vmatpush1.msra.mxu0 0.0
    %3412 = vmatprep.subr.mxu0 0.0
    %3413 = vmatpush1.msra.mxu0 0.0
    %3414 = vmatprep.subr.mxu0 0.0
    %3415 = vmatpush1.msra.mxu0 0.0
    %3416 = vmatprep.subr.mxu0 0.0
    %3417 = vmatpush1.msra.mxu0 0.0
    %3418 = vmatprep.subr.mxu0 0.0
    %3419 = vmatpush1.msra.mxu0 0.0
    %3420 = vmatprep.subr.mxu0 0.0
    %3421 = vmatpush1.msra.mxu0 0.0
    %3422 = vmatprep.subr.mxu0 0.0
    %3423 = vmatpush1.msra.mxu0 0.0
    %3424 = vmatprep.subr.mxu0 0.0
    %3425 = vmatpush1.msra.mxu0 0.0
    %3426 = vmatprep.subr.mxu0 0.0
    %3427 = vmatpush1.msra.mxu0 0.0
    %3428 = vmatprep.subr.mxu0 0.0
    %3429 = vmatpush1.msra.mxu0 0.0
    %3430 = vmatprep.subr.mxu0 0.0
    %3431 = vmatpush1.msra.mxu0 0.0
    %3432 = vmatprep.subr.mxu0 0.0
    %3433 = vmatpush1.msra.mxu0 0.0
    %3434 = vmatprep.mubr.f32.mxu0 0.0
    %3435 = vmatmul.mubr.f32.gmra.mrb[0].mxu0 %v3353
    %v3436 = vpop.f32.mrb[0].mxu0
    %v3437 = vadd.f32 0.0, %v3436
    %v3438 = vpop.f32.mrb[0].mxu0
    %3439 = vmatprep.mubr.f32.mxu0 0.0
    %3440 = vmatmul.mubr.f32.gmra.mrb[0].mxu0 %v3356
    %v3441 = vpop.f32.mrb[0].mxu0
    %v3442 = vadd.f32 0.0, %v3441
    %v3443 = vpop.f32.mrb[0].mxu0
    %3444 = vmatprep.mubr.f32.mxu0 0.0
    %3445 = vmatmul.mubr.f32.gmra.mrb[0].mxu0 %v3359
    %v3446 = vpop.f32.mrb[0].mxu0
    %v3447 = vadd.f32 0.0, %v3446
    %v3448 = vpop.f32.mrb[0].mxu0
    %3449 = vmatprep.mubr.f32.mxu0 0.0
    %3450 = vmatmul.mubr.f32.gmra.mrb[0].mxu0 %v3362
    %v3451 = vpop.f32.mrb[0].mxu0
    %v3452 = vadd.f32 0.0, %v3451
    %v3453 = vpop.f32.mrb[0].mxu0
    %3454 = vmatprep.mubr.f32.mxu0 0.0
    %3455 = vmatmul.mubr.f32.gmra.mrb[0].mxu0 %v3365
    %v3456 = vpop.f32.mrb[0].mxu0
    %v3457 = vadd.f32 0.0, %v3456
    %v3458 = vpop.f32.mrb[0].mxu0
    %3459 = vmatprep.mubr.f32.mxu0 0.0
    %3460 = vmatmul.mubr.f32.gmra.mrb[0].mxu0 %v3368
    %v3461 = vpop.f32.mrb[0].mxu0
    %v3462 = vadd.f32 0.0, %v3461
    %v3463 = vpop.f32.mrb[0].mxu0
    %3464 = vdwg.mxu0
    %v3466 = vsel %vm489, %v1686, 0
    %v3469 = vsel %vm489, %v1687, 0
    %v3472 = vsel %vm489, %v1688, 0
    %v3475 = vsel %vm489, %v1689, 0
    %v3478 = vsel %vm489, %v1690, 0
    %v3481 = vsel %vm489, %v1691, 0
    %3483 = vmatprep.subr.mxu0 0.0
    %3484 = vmatpush1.msra.mxu0 %v3247
    %3485 = vmatprep.subr.mxu0 0.0
    %3486 = vmatpush1.msra.mxu0 %v3248
    %3487 = vmatprep.subr.mxu0 0.0
    %3488 = vmatpush1.msra.mxu0 %v3249
    %3489 = vmatprep.subr.mxu0 0.0
    %3490 = vmatpush1.msra.mxu0 %v3250
    %3491 = vmatprep.subr.mxu0 0.0
    %3492 = vmatpush1.msra.mxu0 0.0
    %3493 = vmatprep.subr.mxu0 0.0
    %3494 = vmatpush1.msra.mxu0 0.0
    %3495 = vmatprep.subr.mxu0 0.0
    %3496 = vmatpush1.msra.mxu0 0.0
    %3497 = vmatprep.subr.mxu0 0.0
    %3498 = vmatpush1.msra.mxu0 0.0
    %3499 = vmatprep.subr.mxu0 0.0
    %3500 = vmatpush1.msra.mxu0 0.0
    %3501 = vmatprep.subr.mxu0 0.0
    %3502 = vmatpush1.msra.mxu0 0.0
    %3503 = vmatprep.subr.mxu0 0.0
    %3504 = vmatpush1.msra.mxu0 0.0
    %3505 = vmatprep.subr.mxu0 0.0
    %3506 = vmatpush1.msra.mxu0 0.0
    %3507 = vmatprep.subr.mxu0 0.0
    %3508 = vmatpush1.msra.mxu0 0.0
    %3509 = vmatprep.subr.mxu0 0.0
    %3510 = vmatpush1.msra.mxu0 0.0
    %3511 = vmatprep.subr.mxu0 0.0
    %3512 = vmatpush1.msra.mxu0 0.0
    %3513 = vmatprep.subr.mxu0 0.0
    %3514 = vmatpush1.msra.mxu0 0.0
    %3515 = vmatprep.subr.mxu0 0.0
    %3516 = vmatpush1.msra.mxu0 0.0
    %3517 = vmatprep.subr.mxu0 0.0
    %3518 = vmatpush1.msra.mxu0 0.0
    %3519 = vmatprep.subr.mxu0 0.0
    %3520 = vmatpush1.msra.mxu0 0.0
    %3521 = vmatprep.subr.mxu0 0.0
    %3522 = vmatpush1.msra.mxu0 0.0
    %3523 = vmatprep.subr.mxu0 0.0
    %3524 = vmatpush1.msra.mxu0 0.0
    %3525 = vmatprep.subr.mxu0 0.0
    %3526 = vmatpush1.msra.mxu0 0.0
    %3527 = vmatprep.subr.mxu0 0.0
    %3528 = vmatpush1.msra.mxu0 0.0
    %3529 = vmatprep.subr.mxu0 0.0
    %3530 = vmatpush1.msra.mxu0 0.0
    %3531 = vmatprep.subr.mxu0 0.0
    %3532 = vmatpush1.msra.mxu0 0.0
    %3533 = vmatprep.subr.mxu0 0.0
    %3534 = vmatpush1.msra.mxu0 0.0
    %3535 = vmatprep.subr.mxu0 0.0
    %3536 = vmatpush1.msra.mxu0 0.0
    %3537 = vmatprep.subr.mxu0 0.0
    %3538 = vmatpush1.msra.mxu0 0.0
    %3539 = vmatprep.subr.mxu0 0.0
    %3540 = vmatpush1.msra.mxu0 0.0
    %3541 = vmatprep.subr.mxu0 0.0
    %3542 = vmatpush1.msra.mxu0 0.0
    %3543 = vmatprep.subr.mxu0 0.0
    %3544 = vmatpush1.msra.mxu0 0.0
    %3545 = vmatprep.subr.mxu0 0.0
    %3546 = vmatpush1.msra.mxu0 0.0
    %3547 = vmatprep.mubr.f32.mxu0 0.0
    %3548 = vmatmul.mubr.f32.gmra.mrb[0].mxu0 %v3466
    %v3549 = vpop.f32.mrb[0].mxu0
    %v3550 = vadd.f32 %v3437, %v3549
    %v3551 = vpop.f32.mrb[0].mxu0
    %3552 = vmatprep.mubr.f32.mxu0 0.0
    %3553 = vmatmul.mubr.f32.gmra.mrb[0].mxu0 %v3469
    %v3554 = vpop.f32.mrb[0].mxu0
    %v3555 = vadd.f32 %v3442, %v3554
    %v3556 = vpop.f32.mrb[0].mxu0
    %3557 = vmatprep.mubr.f32.mxu0 0.0
    %3558 = vmatmul.mubr.f32.gmra.mrb[0].mxu0 %v3472
    %v3559 = vpop.f32.mrb[0].mxu0
    %v3560 = vadd.f32 %v3447, %v3559
    %v3561 = vpop.f32.mrb[0].mxu0
    %3562 = vmatprep.mubr.f32.mxu0 0.0
    %3563 = vmatmul.mubr.f32.gmra.mrb[0].mxu0 %v3475
    %v3564 = vpop.f32.mrb[0].mxu0
    %v3565 = vadd.f32 %v3452, %v3564
    %v3566 = vpop.f32.mrb[0].mxu0
    %3567 = vmatprep.mubr.f32.mxu0 0.0
    %3568 = vmatmul.mubr.f32.gmra.mrb[0].mxu0 %v3478
    %v3569 = vpop.f32.mrb[0].mxu0
    %v3570 = vadd.f32 %v3457, %v3569
    %v3571 = vpop.f32.mrb[0].mxu0
    %3572 = vmatprep.mubr.f32.mxu0 0.0
    %3573 = vmatmul.mubr.f32.gmra.mrb[0].mxu0 %v3481
    %v3574 = vpop.f32.mrb[0].mxu0
    %v3575 = vadd.f32 %v3462, %v3574
    %v3576 = vpop.f32.mrb[0].mxu0
    %3577 = vdwg.mxu0
    %v3578 = vlaneseq
    %v3579 = vshrl.u32 %v3578, 7
    %v3580 = vsub.s32 3, %v3579
    %v3581 = vrot.slane %v2618, %v3580
    %v3582 = vadd.f32 %v3550, %v3581
    %v3583 = vadd.f32 %v3555, %v3581
    %v3584 = vadd.f32 %v3560, %v3581
    %v3585 = vadd.f32 %v3565, %v3581
    %v3586 = vadd.f32 %v3570, %v3581
    %v3587 = vadd.f32 %v3575, %v3581
    %v3588 = vmax.f32 %v3582, 0.0
    %v3589 = vmax.f32 %v3583, 0.0
    %v3590 = vmax.f32 %v3584, 0.0
    %v3591 = vmax.f32 %v3585, 0.0
    %v3592 = vmax.f32 %v3586, 0.0
    %v3593 = vmax.f32 %v3587, 0.0
    %v3594 = vsel %vm489, %v3588, 0.0
    %3595 = vadd.xlane.f32.xlu0 %v3594
    %v3596 = vpop.xlane.xlu0 %3595
    %v3597 = vsel %vm489, %v3589, 0.0
    %3598 = vadd.xlane.f32.xlu0 %v3597
    %v3599 = vpop.xlane.xlu0 %3598
    %v3600 = vsel %vm489, %v3590, 0.0
    %3601 = vadd.xlane.f32.xlu0 %v3600
    %v3602 = vpop.xlane.xlu0 %3601
    %v3603 = vsel %vm489, %v3591, 0.0
    %3604 = vadd.xlane.f32.xlu0 %v3603
    %v3605 = vpop.xlane.xlu0 %3604
    %v3606 = vsel %vm489, %v3592, 0.0
    %3607 = vadd.xlane.f32.xlu0 %v3606
    %v3608 = vpop.xlane.xlu0 %3607
    %v3609 = vsel %vm489, %v3593, 0.0
    %3610 = vadd.xlane.f32.xlu0 %v3609
    %v3611 = vpop.xlane.xlu0 %3610
    %v3612 = vmul.f32 %v3596, %v502
    %v3613 = vmul.f32 %v3599, %v502
    %v3614 = vmul.f32 %v3602, %v502
    %v3615 = vmul.f32 %v3605, %v502
    %v3616 = vmul.f32 %v3608, %v502
    %v3617 = vmul.f32 %v3611, %v502
    %v3618 = vsub.f32 %v3588, %v3612
    %v3619 = vsub.f32 %v3589, %v3613
    %v3620 = vsub.f32 %v3590, %v3614
    %v3621 = vsub.f32 %v3591, %v3615
    %v3622 = vsub.f32 %v3592, %v3616
    %v3623 = vsub.f32 %v3593, %v3617
    %v3624 = vmul.f32 %v3618, %v3618
    %v3625 = vmul.f32 %v3619, %v3619
    %v3626 = vmul.f32 %v3620, %v3620
    %v3627 = vmul.f32 %v3621, %v3621
    %v3628 = vmul.f32 %v3622, %v3622
    %v3629 = vmul.f32 %v3623, %v3623
    %v3630 = vsel %vm489, %v3624, 0.0
    %3631 = vadd.xlane.f32.xlu0 %v3630
    %v3632 = vpop.xlane.xlu0 %3631
    %v3633 = vsel %vm489, %v3625, 0.0
    %3634 = vadd.xlane.f32.xlu0 %v3633
    %v3635 = vpop.xlane.xlu0 %3634
    %v3636 = vsel %vm489, %v3626, 0.0
    %3637 = vadd.xlane.f32.xlu0 %v3636
    %v3638 = vpop.xlane.xlu0 %3637
    %v3639 = vsel %vm489, %v3627, 0.0
    %3640 = vadd.xlane.f32.xlu0 %v3639
    %v3641 = vpop.xlane.xlu0 %3640
    %v3642 = vsel %vm489, %v3628, 0.0
    %3643 = vadd.xlane.f32.xlu0 %v3642
    %v3644 = vpop.xlane.xlu0 %3643
    %v3645 = vsel %vm489, %v3629, 0.0
    %3646 = vadd.xlane.f32.xlu0 %v3645
    %v3647 = vpop.xlane.xlu0 %3646
    %v3648 = vmul.f32 %v3632, %v502
    %v3649 = vmul.f32 %v3635, %v502
    %v3650 = vmul.f32 %v3638, %v502
    %v3651 = vmul.f32 %v3641, %v502
    %v3652 = vmul.f32 %v3644, %v502
    %v3653 = vmul.f32 %v3647, %v502
    %v3654 = vadd.f32 %v3648, 1e-05
    %v3655 = vadd.f32 %v3649, 1e-05
    %v3656 = vadd.f32 %v3650, 1e-05
    %v3657 = vadd.f32 %v3651, 1e-05
    %v3658 = vadd.f32 %v3652, 1e-05
    %v3659 = vadd.f32 %v3653, 1e-05
    %v3660 = vrsqrt.pop %v3654
    %v3661 = vrsqrt.pop %v3655
    %v3662 = vrsqrt.pop %v3656
    %v3663 = vrsqrt.pop %v3657
    %v3664 = vrsqrt.pop %v3658
    %v3665 = vrsqrt.pop %v3659
    %v3666 = vmul.f32 %v3618, %v3660
    %v3667 = vmul.f32 %v3619, %v3661
    %v3668 = vmul.f32 %v3620, %v3662
    %v3669 = vmul.f32 %v3621, %v3663
    %v3670 = vmul.f32 %v3622, %v3664
    %v3671 = vmul.f32 %v3623, %v3665
    %v3672 = vlaneseq
    %v3673 = vshrl.u32 %v3672, 7
    %v3674 = vsub.s32 4, %v3673
    %v3675 = vrot.slane %v2618, %v3674
    %v3676 = vmul.f32 %v3666, %v3675
    %v3677 = vmul.f32 %v3667, %v3675
    %v3678 = vmul.f32 %v3668, %v3675
    %v3679 = vmul.f32 %v3669, %v3675
    %v3680 = vmul.f32 %v3670, %v3675
    %v3681 = vmul.f32 %v3671, %v3675
    %v3682 = vlaneseq
    %v3683 = vshrl.u32 %v3682, 7
    %v3684 = vsub.s32 5, %v3683
    %v3685 = vrot.slane %v2618, %v3684
    %v3686 = vadd.f32 %v3676, %v3685
    %v3687 = vadd.f32 %v3677, %v3685
    %v3688 = vadd.f32 %v3678, %v3685
    %v3689 = vadd.f32 %v3679, %v3685
    %v3690 = vadd.f32 %v3680, %v3685
    %v3691 = vadd.f32 %v3681, %v3685
    %v3692 = vld [vmem:[#allocation19] sm:$0xff]
    %v3693 = vld [vmem:[#allocation19 + $0x8] sm:$0xff]
    %v3694 = vld [vmem:[#allocation19 + $0x10] sm:$0xff]
    %v3695 = vld [vmem:[#allocation19 + $0x18] sm:$0xff]
    %v3697 = vsel %vm2622, %v3692, 0
    %v3700 = vsel %vm2622, %v3693, 0
    %v3703 = vsel %vm2622, %v3694, 0
    %v3706 = vsel %vm2622, %v3695, 0
    %3708 = vmatprep.subr.mxu0 0.0
    %3709 = vmatpush1.msra.mxu0 %v3686
    %3710 = vmatprep.subr.mxu0 0.0
    %3711 = vmatpush1.msra.mxu0 %v3687
    %3712 = vmatprep.subr.mxu0 0.0
    %3713 = vmatpush1.msra.mxu0 %v3688
    %3714 = vmatprep.subr.mxu0 0.0
    %3715 = vmatpush1.msra.mxu0 %v3689
    %3716 = vmatprep.subr.mxu0 0.0
    %3717 = vmatpush1.msra.mxu0 %v3690
    %3718 = vmatprep.subr.mxu0 0.0
    %3719 = vmatpush1.msra.mxu0 %v3691
    %3720 = vmatprep.subr.mxu0 0.0
    %3721 = vmatpush1.msra.mxu0 0.0
    %3722 = vmatprep.subr.mxu0 0.0
    %3723 = vmatpush1.msra.mxu0 0.0
    %3724 = vmatprep.subr.mxu0 0.0
    %3725 = vmatpush1.msra.mxu0 0.0
    %3726 = vmatprep.subr.mxu0 0.0
    %3727 = vmatpush1.msra.mxu0 0.0
    %3728 = vmatprep.subr.mxu0 0.0
    %3729 = vmatpush1.msra.mxu0 0.0
    %3730 = vmatprep.subr.mxu0 0.0
    %3731 = vmatpush1.msra.mxu0 0.0
    %3732 = vmatprep.subr.mxu0 0.0
    %3733 = vmatpush1.msra.mxu0 0.0
    %3734 = vmatprep.subr.mxu0 0.0
    %3735 = vmatpush1.msra.mxu0 0.0
    %3736 = vmatprep.subr.mxu0 0.0
    %3737 = vmatpush1.msra.mxu0 0.0
    %3738 = vmatprep.subr.mxu0 0.0
    %3739 = vmatpush1.msra.mxu0 0.0
    %3740 = vmatprep.subr.mxu0 0.0
    %3741 = vmatpush1.msra.mxu0 0.0
    %3742 = vmatprep.subr.mxu0 0.0
    %3743 = vmatpush1.msra.mxu0 0.0
    %3744 = vmatprep.subr.mxu0 0.0
    %3745 = vmatpush1.msra.mxu0 0.0
    %3746 = vmatprep.subr.mxu0 0.0
    %3747 = vmatpush1.msra.mxu0 0.0
    %3748 = vmatprep.subr.mxu0 0.0
    %3749 = vmatpush1.msra.mxu0 0.0
    %3750 = vmatprep.subr.mxu0 0.0
    %3751 = vmatpush1.msra.mxu0 0.0
    %3752 = vmatprep.subr.mxu0 0.0
    %3753 = vmatpush1.msra.mxu0 0.0
    %3754 = vmatprep.subr.mxu0 0.0
    %3755 = vmatpush1.msra.mxu0 0.0
    %3756 = vmatprep.subr.mxu0 0.0
    %3757 = vmatpush1.msra.mxu0 0.0
    %3758 = vmatprep.subr.mxu0 0.0
    %3759 = vmatpush1.msra.mxu0 0.0
    %3760 = vmatprep.subr.mxu0 0.0
    %3761 = vmatpush1.msra.mxu0 0.0
    %3762 = vmatprep.subr.mxu0 0.0
    %3763 = vmatpush1.msra.mxu0 0.0
    %3764 = vmatprep.subr.mxu0 0.0
    %3765 = vmatpush1.msra.mxu0 0.0
    %3766 = vmatprep.subr.mxu0 0.0
    %3767 = vmatpush1.msra.mxu0 0.0
    %3768 = vmatprep.subr.mxu0 0.0
    %3769 = vmatpush1.msra.mxu0 0.0
    %3770 = vmatprep.subr.mxu0 0.0
    %3771 = vmatpush1.msra.mxu0 0.0
    %3772 = vmatprep.mubr.f32.mxu0 0.0
    %3773 = vmatmul.mubr.f32.gmra.mrb[0].mxu0 %v3697
    %v3774 = vpop.f32.mrb[0].mxu0
    %v3775 = vadd.f32 0.0, %v3774
    %v3776 = vpop.f32.mrb[0].mxu0
    %3777 = vmatprep.mubr.f32.mxu0 0.0
    %3778 = vmatmul.mubr.f32.gmra.mrb[0].mxu0 %v3700
    %v3779 = vpop.f32.mrb[0].mxu0
    %v3780 = vadd.f32 0.0, %v3779
    %v3781 = vpop.f32.mrb[0].mxu0
    %3782 = vmatprep.mubr.f32.mxu0 0.0
    %3783 = vmatmul.mubr.f32.gmra.mrb[0].mxu0 %v3703
    %v3784 = vpop.f32.mrb[0].mxu0
    %v3785 = vadd.f32 0.0, %v3784
    %v3786 = vpop.f32.mrb[0].mxu0
    %3787 = vmatprep.mubr.f32.mxu0 0.0
    %3788 = vmatmul.mubr.f32.gmra.mrb[0].mxu0 %v3706
    %v3789 = vpop.f32.mrb[0].mxu0
    %v3790 = vadd.f32 0.0, %v3789
    %v3791 = vpop.f32.mrb[0].mxu0
    %3792 = vdwg.mxu0
    %v3793 = vld [vmem:[#allocation21] sm:$0xff]
    %v3794 = vld [vmem:[#allocation21 + $0x8] sm:$0xff]
    %v3795 = vld [vmem:[#allocation21 + $0x10] sm:$0xff]
    %v3796 = vld [vmem:[#allocation21 + $0x18] sm:$0xff]
    %v3797 = vld [vmem:[#allocation21 + $0x20] sm:$0xff]
    %v3798 = vld [vmem:[#allocation21 + $0x28] sm:$0xff]
    %v3800 = vsel %vm489, %v3793, 0
    %v3803 = vsel %vm489, %v3794, 0
    %v3806 = vsel %vm489, %v3795, 0
    %v3809 = vsel %vm489, %v3796, 0
    %v3812 = vsel %vm489, %v3797, 0
    %v3815 = vsel %vm489, %v3798, 0
    %3817 = vmatprep.subr.mxu0 0.0
    %3818 = vmatpush1.msra.mxu0 %v2613
    %3819 = vmatprep.subr.mxu0 0.0
    %3820 = vmatpush1.msra.mxu0 %v2614
    %3821 = vmatprep.subr.mxu0 0.0
    %3822 = vmatpush1.msra.mxu0 %v2615
    %3823 = vmatprep.subr.mxu0 0.0
    %3824 = vmatpush1.msra.mxu0 %v2616
    %3825 = vmatprep.subr.mxu0 0.0
    %3826 = vmatpush1.msra.mxu0 0.0
    %3827 = vmatprep.subr.mxu0 0.0
    %3828 = vmatpush1.msra.mxu0 0.0
    %3829 = vmatprep.subr.mxu0 0.0
    %3830 = vmatpush1.msra.mxu0 0.0
    %3831 = vmatprep.subr.mxu0 0.0
    %3832 = vmatpush1.msra.mxu0 0.0
    %3833 = vmatprep.subr.mxu0 0.0
    %3834 = vmatpush1.msra.mxu0 0.0
    %3835 = vmatprep.subr.mxu0 0.0
    %3836 = vmatpush1.msra.mxu0 0.0
    %3837 = vmatprep.subr.mxu0 0.0
    %3838 = vmatpush1.msra.mxu0 0.0
    %3839 = vmatprep.subr.mxu0 0.0
    %3840 = vmatpush1.msra.mxu0 0.0
    %3841 = vmatprep.subr.mxu0 0.0
    %3842 = vmatpush1.msra.mxu0 0.0
    %3843 = vmatprep.subr.mxu0 0.0
    %3844 = vmatpush1.msra.mxu0 0.0
    %3845 = vmatprep.subr.mxu0 0.0
    %3846 = vmatpush1.msra.mxu0 0.0
    %3847 = vmatprep.subr.mxu0 0.0
    %3848 = vmatpush1.msra.mxu0 0.0
    %3849 = vmatprep.subr.mxu0 0.0
    %3850 = vmatpush1.msra.mxu0 0.0
    %3851 = vmatprep.subr.mxu0 0.0
    %3852 = vmatpush1.msra.mxu0 0.0
    %3853 = vmatprep.subr.mxu0 0.0
    %3854 = vmatpush1.msra.mxu0 0.0
    %3855 = vmatprep.subr.mxu0 0.0
    %3856 = vmatpush1.msra.mxu0 0.0
    %3857 = vmatprep.subr.mxu0 0.0
    %3858 = vmatpush1.msra.mxu0 0.0
    %3859 = vmatprep.subr.mxu0 0.0
    %3860 = vmatpush1.msra.mxu0 0.0
    %3861 = vmatprep.subr.mxu0 0.0
    %3862 = vmatpush1.msra.mxu0 0.0
    %3863 = vmatprep.subr.mxu0 0.0
    %3864 = vmatpush1.msra.mxu0 0.0
    %3865 = vmatprep.subr.mxu0 0.0
    %3866 = vmatpush1.msra.mxu0 0.0
    %3867 = vmatprep.subr.mxu0 0.0
    %3868 = vmatpush1.msra.mxu0 0.0
    %3869 = vmatprep.subr.mxu0 0.0
    %3870 = vmatpush1.msra.mxu0 0.0
    %3871 = vmatprep.subr.mxu0 0.0
    %3872 = vmatpush1.msra.mxu0 0.0
    %3873 = vmatprep.subr.mxu0 0.0
    %3874 = vmatpush1.msra.mxu0 0.0
    %3875 = vmatprep.subr.mxu0 0.0
    %3876 = vmatpush1.msra.mxu0 0.0
    %3877 = vmatprep.subr.mxu0 0.0
    %3878 = vmatpush1.msra.mxu0 0.0
    %3879 = vmatprep.subr.mxu0 0.0
    %3880 = vmatpush1.msra.mxu0 0.0
    %3881 = vmatprep.mubr.f32.mxu0 0.0
    %3882 = vmatmul.mubr.f32.gmra.mrb[0].mxu0 %v3800
    %v3883 = vpop.f32.mrb[0].mxu0
    %v3884 = vadd.f32 0.0, %v3883
    %v3885 = vpop.f32.mrb[0].mxu0
    %3886 = vmatprep.mubr.f32.mxu0 0.0
    %3887 = vmatmul.mubr.f32.gmra.mrb[0].mxu0 %v3803
    %v3888 = vpop.f32.mrb[0].mxu0
    %v3889 = vadd.f32 0.0, %v3888
    %v3890 = vpop.f32.mrb[0].mxu0
    %3891 = vmatprep.mubr.f32.mxu0 0.0
    %3892 = vmatmul.mubr.f32.gmra.mrb[0].mxu0 %v3806
    %v3893 = vpop.f32.mrb[0].mxu0
    %v3894 = vadd.f32 0.0, %v3893
    %v3895 = vpop.f32.mrb[0].mxu0
    %3896 = vmatprep.mubr.f32.mxu0 0.0
    %3897 = vmatmul.mubr.f32.gmra.mrb[0].mxu0 %v3809
    %v3898 = vpop.f32.mrb[0].mxu0
    %v3899 = vadd.f32 0.0, %v3898
    %v3900 = vpop.f32.mrb[0].mxu0
    %3901 = vmatprep.mubr.f32.mxu0 0.0
    %3902 = vmatmul.mubr.f32.gmra.mrb[0].mxu0 %v3812
    %v3903 = vpop.f32.mrb[0].mxu0
    %v3904 = vadd.f32 0.0, %v3903
    %v3905 = vpop.f32.mrb[0].mxu0
    %3906 = vmatprep.mubr.f32.mxu0 0.0
    %3907 = vmatmul.mubr.f32.gmra.mrb[0].mxu0 %v3815
    %v3908 = vpop.f32.mrb[0].mxu0
    %v3909 = vadd.f32 0.0, %v3908
    %v3910 = vpop.f32.mrb[0].mxu0
    %3911 = vdwg.mxu0
    %v3912 = vld [vmem:[%s18] sm:$0x3]
    %v3913 = vadd.f32 %v2613, %v3775
    %v3914 = vadd.f32 %v2614, %v3780
    %v3915 = vadd.f32 %v2615, %v3785
    %v3916 = vadd.f32 %v2616, %v3790
    %v3917 = vld [vmem:[#allocation22] sm:$0xff]
    %v3918 = vld [vmem:[#allocation22 + $0x8] sm:$0xff]
    %v3919 = vld [vmem:[#allocation22 + $0x10] sm:$0xff]
    %v3920 = vld [vmem:[#allocation22 + $0x18] sm:$0xff]
    %v3921 = vlaneseq
    %v3922 = vshrl.u32 %v3921, 7
    %v3923 = vsub.s32 0, %v3922
    %v3924 = vrot.slane %v3912, %v3923
    %v3926 = vsel %vm489, %v3913, 0
    %v3929 = vsel %vm489, %v3914, 0
    %v3932 = vsel %vm489, %v3915, 0
    %v3935 = vsel %vm489, %v3916, 0
    %3937 = vmatprep.subr.mxu0 0.0
    %3938 = vmatpush1.msra.mxu0 %v3917
    %3939 = vmatprep.subr.mxu0 0.0
    %3940 = vmatpush1.msra.mxu0 %v3918
    %3941 = vmatprep.subr.mxu0 0.0
    %3942 = vmatpush1.msra.mxu0 %v3919
    %3943 = vmatprep.subr.mxu0 0.0
    %3944 = vmatpush1.msra.mxu0 %v3920
    %3945 = vmatprep.subr.mxu0 0.0
    %3946 = vmatpush1.msra.mxu0 0.0
    %3947 = vmatprep.subr.mxu0 0.0
    %3948 = vmatpush1.msra.mxu0 0.0
    %3949 = vmatprep.subr.mxu0 0.0
    %3950 = vmatpush1.msra.mxu0 0.0
    %3951 = vmatprep.subr.mxu0 0.0
    %3952 = vmatpush1.msra.mxu0 0.0
    %3953 = vmatprep.subr.mxu0 0.0
    %3954 = vmatpush1.msra.mxu0 0.0
    %3955 = vmatprep.subr.mxu0 0.0
    %3956 = vmatpush1.msra.mxu0 0.0
    %3957 = vmatprep.subr.mxu0 0.0
    %3958 = vmatpush1.msra.mxu0 0.0
    %3959 = vmatprep.subr.mxu0 0.0
    %3960 = vmatpush1.msra.mxu0 0.0
    %3961 = vmatprep.subr.mxu0 0.0
    %3962 = vmatpush1.msra.mxu0 0.0
    %3963 = vmatprep.subr.mxu0 0.0
    %3964 = vmatpush1.msra.mxu0 0.0
    %3965 = vmatprep.subr.mxu0 0.0
    %3966 = vmatpush1.msra.mxu0 0.0
    %3967 = vmatprep.subr.mxu0 0.0
    %3968 = vmatpush1.msra.mxu0 0.0
    %3969 = vmatprep.subr.mxu0 0.0
    %3970 = vmatpush1.msra.mxu0 0.0
    %3971 = vmatprep.subr.mxu0 0.0
    %3972 = vmatpush1.msra.mxu0 0.0
    %3973 = vmatprep.subr.mxu0 0.0
    %3974 = vmatpush1.msra.mxu0 0.0
    %3975 = vmatprep.subr.mxu0 0.0
    %3976 = vmatpush1.msra.mxu0 0.0
    %3977 = vmatprep.subr.mxu0 0.0
    %3978 = vmatpush1.msra.mxu0 0.0
    %3979 = vmatprep.subr.mxu0 0.0
    %3980 = vmatpush1.msra.mxu0 0.0
    %3981 = vmatprep.subr.mxu0 0.0
    %3982 = vmatpush1.msra.mxu0 0.0
    %3983 = vmatprep.subr.mxu0 0.0
    %3984 = vmatpush1.msra.mxu0 0.0
    %3985 = vmatprep.subr.mxu0 0.0
    %3986 = vmatpush1.msra.mxu0 0.0
    %3987 = vmatprep.subr.mxu0 0.0
    %3988 = vmatpush1.msra.mxu0 0.0
    %3989 = vmatprep.subr.mxu0 0.0
    %3990 = vmatpush1.msra.mxu0 0.0
    %3991 = vmatprep.subr.mxu0 0.0
    %3992 = vmatpush1.msra.mxu0 0.0
    %3993 = vmatprep.subr.mxu0 0.0
    %3994 = vmatpush1.msra.mxu0 0.0
    %3995 = vmatprep.subr.mxu0 0.0
    %3996 = vmatpush1.msra.mxu0 0.0
    %3997 = vmatprep.subr.mxu0 0.0
    %3998 = vmatpush1.msra.mxu0 0.0
    %3999 = vmatprep.subr.mxu0 0.0
    %4000 = vmatpush1.msra.mxu0 0.0
    %4001 = vmatprep.mubr.f32.mxu0 0.0
    %4002 = vmatmul.mubr.f32.gmra.mrb[0].mxu0 %v3926
    %v4003 = vpop.f32.mrb[0].mxu0
    %v4004 = vadd.f32 %v3924, %v4003
    %v4005 = vpop.f32.mrb[0].mxu0
    %4006 = vmatprep.mubr.f32.mxu0 0.0
    %4007 = vmatmul.mubr.f32.gmra.mrb[0].mxu0 %v3929
    %v4008 = vpop.f32.mrb[0].mxu0
    %v4009 = vadd.f32 %v3924, %v4008
    %v4010 = vpop.f32.mrb[0].mxu0
    %4011 = vmatprep.mubr.f32.mxu0 0.0
    %4012 = vmatmul.mubr.f32.gmra.mrb[0].mxu0 %v3932
    %v4013 = vpop.f32.mrb[0].mxu0
    %v4014 = vadd.f32 %v3924, %v4013
    %v4015 = vpop.f32.mrb[0].mxu0
    %4016 = vmatprep.mubr.f32.mxu0 0.0
    %4017 = vmatmul.mubr.f32.gmra.mrb[0].mxu0 %v3935
    %v4018 = vpop.f32.mrb[0].mxu0
    %v4019 = vadd.f32 %v3924, %v4018
    %v4020 = vpop.f32.mrb[0].mxu0
    %4021 = vdwg.mxu0
    %v4022 = vadd.f32 %v3686, %v3884
    %v4023 = vadd.f32 %v3687, %v3889
    %v4024 = vadd.f32 %v3688, %v3894
    %v4025 = vadd.f32 %v3689, %v3899
    %v4026 = vadd.f32 %v3690, %v3904
    %v4027 = vadd.f32 %v3691, %v3909
    %s4028 = scalar_lea.vmem [#allocation22], 32
    %v4029 = vld [vmem:[%s4028] sm:$0xff]
    %v4030 = vld [vmem:[%s4028 + $0x8] sm:$0xff]
    %v4031 = vld [vmem:[%s4028 + $0x10] sm:$0xff]
    %v4032 = vld [vmem:[%s4028 + $0x18] sm:$0xff]
    %v4033 = vlaneseq
    %v4034 = vshrl.u32 %v4033, 7
    %v4035 = vsub.s32 1, %v4034
    %v4036 = vrot.slane %v3912, %v4035
    %v4038 = vsel %vm489, %v4022, 0
    %v4041 = vsel %vm489, %v4023, 0
    %v4044 = vsel %vm489, %v4024, 0
    %v4047 = vsel %vm489, %v4025, 0
    %v4050 = vsel %vm489, %v4026, 0
    %v4053 = vsel %vm489, %v4027, 0
    %4055 = vmatprep.subr.mxu0 0.0
    %4056 = vmatpush1.msra.mxu0 %v4029
    %4057 = vmatprep.subr.mxu0 0.0
    %4058 = vmatpush1.msra.mxu0 %v4030
    %4059 = vmatprep.subr.mxu0 0.0
    %4060 = vmatpush1.msra.mxu0 %v4031
    %4061 = vmatprep.subr.mxu0 0.0
    %4062 = vmatpush1.msra.mxu0 %v4032
    %4063 = vmatprep.subr.mxu0 0.0
    %4064 = vmatpush1.msra.mxu0 0.0
    %4065 = vmatprep.subr.mxu0 0.0
    %4066 = vmatpush1.msra.mxu0 0.0
    %4067 = vmatprep.subr.mxu0 0.0
    %4068 = vmatpush1.msra.mxu0 0.0
    %4069 = vmatprep.subr.mxu0 0.0
    %4070 = vmatpush1.msra.mxu0 0.0
    %4071 = vmatprep.subr.mxu0 0.0
    %4072 = vmatpush1.msra.mxu0 0.0
    %4073 = vmatprep.subr.mxu0 0.0
    %4074 = vmatpush1.msra.mxu0 0.0
    %4075 = vmatprep.subr.mxu0 0.0
    %4076 = vmatpush1.msra.mxu0 0.0
    %4077 = vmatprep.subr.mxu0 0.0
    %4078 = vmatpush1.msra.mxu0 0.0
    %4079 = vmatprep.subr.mxu0 0.0
    %4080 = vmatpush1.msra.mxu0 0.0
    %4081 = vmatprep.subr.mxu0 0.0
    %4082 = vmatpush1.msra.mxu0 0.0
    %4083 = vmatprep.subr.mxu0 0.0
    %4084 = vmatpush1.msra.mxu0 0.0
    %4085 = vmatprep.subr.mxu0 0.0
    %4086 = vmatpush1.msra.mxu0 0.0
    %4087 = vmatprep.subr.mxu0 0.0
    %4088 = vmatpush1.msra.mxu0 0.0
    %4089 = vmatprep.subr.mxu0 0.0
    %4090 = vmatpush1.msra.mxu0 0.0
    %4091 = vmatprep.subr.mxu0 0.0
    %4092 = vmatpush1.msra.mxu0 0.0
    %4093 = vmatprep.subr.mxu0 0.0
    %4094 = vmatpush1.msra.mxu0 0.0
    %4095 = vmatprep.subr.mxu0 0.0
    %4096 = vmatpush1.msra.mxu0 0.0
    %4097 = vmatprep.subr.mxu0 0.0
    %4098 = vmatpush1.msra.mxu0 0.0
    %4099 = vmatprep.subr.mxu0 0.0
    %4100 = vmatpush1.msra.mxu0 0.0
    %4101 = vmatprep.subr.mxu0 0.0
    %4102 = vmatpush1.msra.mxu0 0.0
    %4103 = vmatprep.subr.mxu0 0.0
    %4104 = vmatpush1.msra.mxu0 0.0
    %4105 = vmatprep.subr.mxu0 0.0
    %4106 = vmatpush1.msra.mxu0 0.0
    %4107 = vmatprep.subr.mxu0 0.0
    %4108 = vmatpush1.msra.mxu0 0.0
    %4109 = vmatprep.subr.mxu0 0.0
    %4110 = vmatpush1.msra.mxu0 0.0
    %4111 = vmatprep.subr.mxu0 0.0
    %4112 = vmatpush1.msra.mxu0 0.0
    %4113 = vmatprep.subr.mxu0 0.0
    %4114 = vmatpush1.msra.mxu0 0.0
    %4115 = vmatprep.subr.mxu0 0.0
    %4116 = vmatpush1.msra.mxu0 0.0
    %4117 = vmatprep.subr.mxu0 0.0
    %4118 = vmatpush1.msra.mxu0 0.0
    %4119 = vmatprep.mubr.f32.mxu0 0.0
    %4120 = vmatmul.mubr.f32.gmra.mrb[0].mxu0 %v4038
    %v4121 = vpop.f32.mrb[0].mxu0
    %v4122 = vadd.f32 %v4036, %v4121
    %v4123 = vpop.f32.mrb[0].mxu0
    %4124 = vmatprep.mubr.f32.mxu0 0.0
    %4125 = vmatmul.mubr.f32.gmra.mrb[0].mxu0 %v4041
    %v4126 = vpop.f32.mrb[0].mxu0
    %v4127 = vadd.f32 %v4036, %v4126
    %v4128 = vpop.f32.mrb[0].mxu0
    %4129 = vmatprep.mubr.f32.mxu0 0.0
    %4130 = vmatmul.mubr.f32.gmra.mrb[0].mxu0 %v4044
    %v4131 = vpop.f32.mrb[0].mxu0
    %v4132 = vadd.f32 %v4036, %v4131
    %v4133 = vpop.f32.mrb[0].mxu0
    %4134 = vmatprep.mubr.f32.mxu0 0.0
    %4135 = vmatmul.mubr.f32.gmra.mrb[0].mxu0 %v4047
    %v4136 = vpop.f32.mrb[0].mxu0
    %v4137 = vadd.f32 %v4036, %v4136
    %v4138 = vpop.f32.mrb[0].mxu0
    %4139 = vmatprep.mubr.f32.mxu0 0.0
    %4140 = vmatmul.mubr.f32.gmra.mrb[0].mxu0 %v4050
    %v4141 = vpop.f32.mrb[0].mxu0
    %v4142 = vadd.f32 %v4036, %v4141
    %v4143 = vpop.f32.mrb[0].mxu0
    %4144 = vmatprep.mubr.f32.mxu0 0.0
    %4145 = vmatmul.mubr.f32.gmra.mrb[0].mxu0 %v4053
    %v4146 = vpop.f32.mrb[0].mxu0
    %v4147 = vadd.f32 %v4036, %v4146
    %v4148 = vpop.f32.mrb[0].mxu0
    %4149 = vdwg.mxu0
    %v4150 = vadd.f32 %v4004, %v2613
    %v4151 = vadd.f32 %v4009, %v2614
    %v4152 = vadd.f32 %v4014, %v2615
    %v4153 = vadd.f32 %v4019, %v2616
    %s4154 = scalar_lea.vmem [#allocation13], 8
    %v4155 = vld [vmem:[%s4154] sm:$0x3f]
    %4156 = vmatprep.subr.mxu0 0.0
    %4157 = vmatpush1.msra.mxu0 %v4150
    %4158 = vmatprep.subr.mxu0 0.0
    %4159 = vmatpush1.msra.mxu0 %v4151
    %4160 = vmatprep.subr.mxu0 0.0
    %4161 = vmatpush1.msra.mxu0 %v4152
    %4162 = vmatprep.subr.mxu0 0.0
    %4163 = vmatpush1.msra.mxu0 %v4153
    %4164 = vmatprep.subr.mxu0 0.0
    %4165 = vmatpush1.msra.mxu0 0.0
    %4166 = vmatprep.subr.mxu0 0.0
    %4167 = vmatpush1.msra.mxu0 0.0
    %4168 = vmatprep.subr.mxu0 0.0
    %4169 = vmatpush1.msra.mxu0 0.0
    %4170 = vmatprep.subr.mxu0 0.0
    %4171 = vmatpush1.msra.mxu0 0.0
    %4172 = vmatprep.subr.mxu0 0.0
    %4173 = vmatpush1.msra.mxu0 0.0
    %4174 = vmatprep.subr.mxu0 0.0
    %4175 = vmatpush1.msra.mxu0 0.0
    %4176 = vmatprep.subr.mxu0 0.0
    %4177 = vmatpush1.msra.mxu0 0.0
    %4178 = vmatprep.subr.mxu0 0.0
    %4179 = vmatpush1.msra.mxu0 0.0
    %4180 = vmatprep.subr.mxu0 0.0
    %4181 = vmatpush1.msra.mxu0 0.0
    %4182 = vmatprep.subr.mxu0 0.0
    %4183 = vmatpush1.msra.mxu0 0.0
    %4184 = vmatprep.subr.mxu0 0.0
    %4185 = vmatpush1.msra.mxu0 0.0
    %4186 = vmatprep.subr.mxu0 0.0
    %4187 = vmatpush1.msra.mxu0 0.0
    %4188 = vmatprep.subr.mxu0 0.0
    %4189 = vmatpush1.msra.mxu0 0.0
    %4190 = vmatprep.subr.mxu0 0.0
    %4191 = vmatpush1.msra.mxu0 0.0
    %4192 = vmatprep.subr.mxu0 0.0
    %4193 = vmatpush1.msra.mxu0 0.0
    %4194 = vmatprep.subr.mxu0 0.0
    %4195 = vmatpush1.msra.mxu0 0.0
    %4196 = vmatprep.subr.mxu0 0.0
    %4197 = vmatpush1.msra.mxu0 0.0
    %4198 = vmatprep.subr.mxu0 0.0
    %4199 = vmatpush1.msra.mxu0 0.0
    %4200 = vmatprep.subr.mxu0 0.0
    %4201 = vmatpush1.msra.mxu0 0.0
    %4202 = vmatprep.subr.mxu0 0.0
    %4203 = vmatpush1.msra.mxu0 0.0
    %4204 = vmatprep.subr.mxu0 0.0
    %4205 = vmatpush1.msra.mxu0 0.0
    %4206 = vmatprep.subr.mxu0 0.0
    %4207 = vmatpush1.msra.mxu0 0.0
    %4208 = vmatprep.subr.mxu0 0.0
    %4209 = vmatpush1.msra.mxu0 0.0
    %4210 = vmatprep.subr.mxu0 0.0
    %4211 = vmatpush1.msra.mxu0 0.0
    %4212 = vmatprep.subr.mxu0 0.0
    %4213 = vmatpush1.msra.mxu0 0.0
    %4214 = vmatprep.subr.mxu0 0.0
    %4215 = vmatpush1.msra.mxu0 0.0
    %4216 = vmatprep.subr.mxu0 0.0
    %4217 = vmatpush1.msra.mxu0 0.0
    %4218 = vmatprep.subr.mxu0 0.0
    %4219 = vmatpush1.msra.mxu0 0.0
    %4220 = vmatprep.mubr.f32.mxu0 0.0
    %4221 = vmatmul.mubr.f32.gmra.mrb[0].mxu0 %v1696
    %v4222 = vpop.f32.mrb[0].mxu0
    %v4223 = vadd.f32 0.0, %v4222
    %v4224 = vpop.f32.mrb[0].mxu0
    %4225 = vmatprep.mubr.f32.mxu0 0.0
    %4226 = vmatmul.mubr.f32.gmra.mrb[0].mxu0 %v1699
    %v4227 = vpop.f32.mrb[0].mxu0
    %v4228 = vadd.f32 0.0, %v4227
    %v4229 = vpop.f32.mrb[0].mxu0
    %4230 = vdwg.mxu0
    %s4231 = scalar_lea.vmem [#allocation10], 96
    %v4232 = vld [vmem:[%s4231] sm:$0xff]
    %v4233 = vld [vmem:[%s4231 + $0x8] sm:$0xff]
    %v4234 = vld [vmem:[%s4231 + $0x10] sm:$0xff]
    %v4235 = vld [vmem:[%s4231 + $0x18] sm:$0xff]
    %4236 = vmatprep.subr.mxu0 0.0
    %4237 = vmatpush1.msra.mxu0 %v4150
    %4238 = vmatprep.subr.mxu0 0.0
    %4239 = vmatpush1.msra.mxu0 %v4151
    %4240 = vmatprep.subr.mxu0 0.0
    %4241 = vmatpush1.msra.mxu0 %v4152
    %4242 = vmatprep.subr.mxu0 0.0
    %4243 = vmatpush1.msra.mxu0 %v4153
    %4244 = vmatprep.subr.mxu0 0.0
    %4245 = vmatpush1.msra.mxu0 0.0
    %4246 = vmatprep.subr.mxu0 0.0
    %4247 = vmatpush1.msra.mxu0 0.0
    %4248 = vmatprep.subr.mxu0 0.0
    %4249 = vmatpush1.msra.mxu0 0.0
    %4250 = vmatprep.subr.mxu0 0.0
    %4251 = vmatpush1.msra.mxu0 0.0
    %4252 = vmatprep.subr.mxu0 0.0
    %4253 = vmatpush1.msra.mxu0 0.0
    %4254 = vmatprep.subr.mxu0 0.0
    %4255 = vmatpush1.msra.mxu0 0.0
    %4256 = vmatprep.subr.mxu0 0.0
    %4257 = vmatpush1.msra.mxu0 0.0
    %4258 = vmatprep.subr.mxu0 0.0
    %4259 = vmatpush1.msra.mxu0 0.0
    %4260 = vmatprep.subr.mxu0 0.0
    %4261 = vmatpush1.msra.mxu0 0.0
    %4262 = vmatprep.subr.mxu0 0.0
    %4263 = vmatpush1.msra.mxu0 0.0
    %4264 = vmatprep.subr.mxu0 0.0
    %4265 = vmatpush1.msra.mxu0 0.0
    %4266 = vmatprep.subr.mxu0 0.0
    %4267 = vmatpush1.msra.mxu0 0.0
    %4268 = vmatprep.subr.mxu0 0.0
    %4269 = vmatpush1.msra.mxu0 0.0
    %4270 = vmatprep.subr.mxu0 0.0
    %4271 = vmatpush1.msra.mxu0 0.0
    %4272 = vmatprep.subr.mxu0 0.0
    %4273 = vmatpush1.msra.mxu0 0.0
    %4274 = vmatprep.subr.mxu0 0.0
    %4275 = vmatpush1.msra.mxu0 0.0
    %4276 = vmatprep.subr.mxu0 0.0
    %4277 = vmatpush1.msra.mxu0 0.0
    %4278 = vmatprep.subr.mxu0 0.0
    %4279 = vmatpush1.msra.mxu0 0.0
    %4280 = vmatprep.subr.mxu0 0.0
    %4281 = vmatpush1.msra.mxu0 0.0
    %4282 = vmatprep.subr.mxu0 0.0
    %4283 = vmatpush1.msra.mxu0 0.0
    %4284 = vmatprep.subr.mxu0 0.0
    %4285 = vmatpush1.msra.mxu0 0.0
    %4286 = vmatprep.subr.mxu0 0.0
    %4287 = vmatpush1.msra.mxu0 0.0
    %4288 = vmatprep.subr.mxu0 0.0
    %4289 = vmatpush1.msra.mxu0 0.0
    %4290 = vmatprep.subr.mxu0 0.0
    %4291 = vmatpush1.msra.mxu0 0.0
    %4292 = vmatprep.subr.mxu0 0.0
    %4293 = vmatpush1.msra.mxu0 0.0
    %4294 = vmatprep.subr.mxu0 0.0
    %4295 = vmatpush1.msra.mxu0 0.0
    %4296 = vmatprep.subr.mxu0 0.0
    %4297 = vmatpush1.msra.mxu0 0.0
    %4298 = vmatprep.subr.mxu0 0.0
    %4299 = vmatpush1.msra.mxu0 0.0
    %4300 = vmatprep.mubr.f32.mxu0 0.0
    %4301 = vmatmul.mubr.f32.gmra.mrb[0].mxu0 %v1784
    %v4302 = vpop.f32.mrb[0].mxu0
    %v4303 = vadd.f32 0.0, %v4302
    %v4304 = vpop.f32.mrb[0].mxu0
    %4305 = vmatprep.mubr.f32.mxu0 0.0
    %4306 = vmatmul.mubr.f32.gmra.mrb[0].mxu0 %v1787
    %v4307 = vpop.f32.mrb[0].mxu0
    %v4308 = vadd.f32 0.0, %v4307
    %v4309 = vpop.f32.mrb[0].mxu0
    %4310 = vdwg.mxu0
    %s4311 = scalar_lea.vmem [#allocation10], 128
    %v4312 = vld [vmem:[%s4311] sm:$0xff]
    %v4313 = vld [vmem:[%s4311 + $0x8] sm:$0xff]
    %v4314 = vld [vmem:[%s4311 + $0x10] sm:$0xff]
    %v4315 = vld [vmem:[%s4311 + $0x18] sm:$0xff]
    %v4317 = vsel %vm489, %v4303, 0
    %v4320 = vsel %vm489, %v4308, 0
    %4322 = vmatprep.subr.mxu0 0.0
    %4323 = vmatpush1.msra.mxu0 %v4312
    %4324 = vmatprep.subr.mxu0 0.0
    %4325 = vmatpush1.msra.mxu0 %v4313
    %4326 = vmatprep.subr.mxu0 0.0
    %4327 = vmatpush1.msra.mxu0 %v4314
    %4328 = vmatprep.subr.mxu0 0.0
    %4329 = vmatpush1.msra.mxu0 %v4315
    %4330 = vmatprep.subr.mxu0 0.0
    %4331 = vmatpush1.msra.mxu0 0.0
    %4332 = vmatprep.subr.mxu0 0.0
    %4333 = vmatpush1.msra.mxu0 0.0
    %4334 = vmatprep.subr.mxu0 0.0
    %4335 = vmatpush1.msra.mxu0 0.0
    %4336 = vmatprep.subr.mxu0 0.0
    %4337 = vmatpush1.msra.mxu0 0.0
    %4338 = vmatprep.subr.mxu0 0.0
    %4339 = vmatpush1.msra.mxu0 0.0
    %4340 = vmatprep.subr.mxu0 0.0
    %4341 = vmatpush1.msra.mxu0 0.0
    %4342 = vmatprep.subr.mxu0 0.0
    %4343 = vmatpush1.msra.mxu0 0.0
    %4344 = vmatprep.subr.mxu0 0.0
    %4345 = vmatpush1.msra.mxu0 0.0
    %4346 = vmatprep.subr.mxu0 0.0
    %4347 = vmatpush1.msra.mxu0 0.0
    %4348 = vmatprep.subr.mxu0 0.0
    %4349 = vmatpush1.msra.mxu0 0.0
    %4350 = vmatprep.subr.mxu0 0.0
    %4351 = vmatpush1.msra.mxu0 0.0
    %4352 = vmatprep.subr.mxu0 0.0
    %4353 = vmatpush1.msra.mxu0 0.0
    %4354 = vmatprep.subr.mxu0 0.0
    %4355 = vmatpush1.msra.mxu0 0.0
    %4356 = vmatprep.subr.mxu0 0.0
    %4357 = vmatpush1.msra.mxu0 0.0
    %4358 = vmatprep.subr.mxu0 0.0
    %4359 = vmatpush1.msra.mxu0 0.0
    %4360 = vmatprep.subr.mxu0 0.0
    %4361 = vmatpush1.msra.mxu0 0.0
    %4362 = vmatprep.subr.mxu0 0.0
    %4363 = vmatpush1.msra.mxu0 0.0
    %4364 = vmatprep.subr.mxu0 0.0
    %4365 = vmatpush1.msra.mxu0 0.0
    %4366 = vmatprep.subr.mxu0 0.0
    %4367 = vmatpush1.msra.mxu0 0.0
    %4368 = vmatprep.subr.mxu0 0.0
    %4369 = vmatpush1.msra.mxu0 0.0
    %4370 = vmatprep.subr.mxu0 0.0
    %4371 = vmatpush1.msra.mxu0 0.0
    %4372 = vmatprep.subr.mxu0 0.0
    %4373 = vmatpush1.msra.mxu0 0.0
    %4374 = vmatprep.subr.mxu0 0.0
    %4375 = vmatpush1.msra.mxu0 0.0
    %4376 = vmatprep.subr.mxu0 0.0
    %4377 = vmatpush1.msra.mxu0 0.0
    %4378 = vmatprep.subr.mxu0 0.0
    %4379 = vmatpush1.msra.mxu0 0.0
    %4380 = vmatprep.subr.mxu0 0.0
    %4381 = vmatpush1.msra.mxu0 0.0
    %4382 = vmatprep.subr.mxu0 0.0
    %4383 = vmatpush1.msra.mxu0 0.0
    %4384 = vmatprep.subr.mxu0 0.0
    %4385 = vmatpush1.msra.mxu0 0.0
    %4386 = vmatprep.mubr.f32.mxu0 0.0
    %4387 = vmatmul.mubr.f32.gmra.mrb[0].mxu0 %v4317
    %v4388 = vpop.f32.mrb[0].mxu0
    %v4389 = vadd.f32 0.0, %v4388
    %v4390 = vpop.f32.mrb[0].mxu0
    %4391 = vmatprep.mubr.f32.mxu0 0.0
    %4392 = vmatmul.mubr.f32.gmra.mrb[0].mxu0 %v4320
    %v4393 = vpop.f32.mrb[0].mxu0
    %v4394 = vadd.f32 0.0, %v4393
    %v4395 = vpop.f32.mrb[0].mxu0
    %4396 = vdwg.mxu0
    %v4398 = vsel %vm489, %v4223, 0
    %v4401 = vsel %vm489, %v4228, 0
    %4403 = vmatprep.subr.mxu0 0.0
    %4404 = vmatpush1.msra.mxu0 %v4232
    %4405 = vmatprep.subr.mxu0 0.0
    %4406 = vmatpush1.msra.mxu0 %v4233
    %4407 = vmatprep.subr.mxu0 0.0
    %4408 = vmatpush1.msra.mxu0 %v4234
    %4409 = vmatprep.subr.mxu0 0.0
    %4410 = vmatpush1.msra.mxu0 %v4235
    %4411 = vmatprep.subr.mxu0 0.0
    %4412 = vmatpush1.msra.mxu0 0.0
    %4413 = vmatprep.subr.mxu0 0.0
    %4414 = vmatpush1.msra.mxu0 0.0
    %4415 = vmatprep.subr.mxu0 0.0
    %4416 = vmatpush1.msra.mxu0 0.0
    %4417 = vmatprep.subr.mxu0 0.0
    %4418 = vmatpush1.msra.mxu0 0.0
    %4419 = vmatprep.subr.mxu0 0.0
    %4420 = vmatpush1.msra.mxu0 0.0
    %4421 = vmatprep.subr.mxu0 0.0
    %4422 = vmatpush1.msra.mxu0 0.0
    %4423 = vmatprep.subr.mxu0 0.0
    %4424 = vmatpush1.msra.mxu0 0.0
    %4425 = vmatprep.subr.mxu0 0.0
    %4426 = vmatpush1.msra.mxu0 0.0
    %4427 = vmatprep.subr.mxu0 0.0
    %4428 = vmatpush1.msra.mxu0 0.0
    %4429 = vmatprep.subr.mxu0 0.0
    %4430 = vmatpush1.msra.mxu0 0.0
    %4431 = vmatprep.subr.mxu0 0.0
    %4432 = vmatpush1.msra.mxu0 0.0
    %4433 = vmatprep.subr.mxu0 0.0
    %4434 = vmatpush1.msra.mxu0 0.0
    %4435 = vmatprep.subr.mxu0 0.0
    %4436 = vmatpush1.msra.mxu0 0.0
    %4437 = vmatprep.subr.mxu0 0.0
    %4438 = vmatpush1.msra.mxu0 0.0
    %4439 = vmatprep.subr.mxu0 0.0
    %4440 = vmatpush1.msra.mxu0 0.0
    %4441 = vmatprep.subr.mxu0 0.0
    %4442 = vmatpush1.msra.mxu0 0.0
    %4443 = vmatprep.subr.mxu0 0.0
    %4444 = vmatpush1.msra.mxu0 0.0
    %4445 = vmatprep.subr.mxu0 0.0
    %4446 = vmatpush1.msra.mxu0 0.0
    %4447 = vmatprep.subr.mxu0 0.0
    %4448 = vmatpush1.msra.mxu0 0.0
    %4449 = vmatprep.subr.mxu0 0.0
    %4450 = vmatpush1.msra.mxu0 0.0
    %4451 = vmatprep.subr.mxu0 0.0
    %4452 = vmatpush1.msra.mxu0 0.0
    %4453 = vmatprep.subr.mxu0 0.0
    %4454 = vmatpush1.msra.mxu0 0.0
    %4455 = vmatprep.subr.mxu0 0.0
    %4456 = vmatpush1.msra.mxu0 0.0
    %4457 = vmatprep.subr.mxu0 0.0
    %4458 = vmatpush1.msra.mxu0 0.0
    %4459 = vmatprep.subr.mxu0 0.0
    %4460 = vmatpush1.msra.mxu0 0.0
    %4461 = vmatprep.subr.mxu0 0.0
    %4462 = vmatpush1.msra.mxu0 0.0
    %4463 = vmatprep.subr.mxu0 0.0
    %4464 = vmatpush1.msra.mxu0 0.0
    %4465 = vmatprep.subr.mxu0 0.0
    %4466 = vmatpush1.msra.mxu0 0.0
    %4467 = vmatprep.mubr.f32.mxu0 0.0
    %4468 = vmatmul.mubr.f32.gmra.mrb[0].mxu0 %v4398
    %v4469 = vpop.f32.mrb[0].mxu0
    %v4470 = vadd.f32 %v4389, %v4469
    %v4471 = vpop.f32.mrb[0].mxu0
    %4472 = vmatprep.mubr.f32.mxu0 0.0
    %4473 = vmatmul.mubr.f32.gmra.mrb[0].mxu0 %v4401
    %v4474 = vpop.f32.mrb[0].mxu0
    %v4475 = vadd.f32 %v4394, %v4474
    %v4476 = vpop.f32.mrb[0].mxu0
    %4477 = vdwg.mxu0
    %4478 = vmatprep.subr.mxu0 0.0
    %4479 = vmatpush1.msra.mxu0 %v4150
    %4480 = vmatprep.subr.mxu0 0.0
    %4481 = vmatpush1.msra.mxu0 %v4151
    %4482 = vmatprep.subr.mxu0 0.0
    %4483 = vmatpush1.msra.mxu0 %v4152
    %4484 = vmatprep.subr.mxu0 0.0
    %4485 = vmatpush1.msra.mxu0 %v4153
    %4486 = vmatprep.subr.mxu0 0.0
    %4487 = vmatpush1.msra.mxu0 0.0
    %4488 = vmatprep.subr.mxu0 0.0
    %4489 = vmatpush1.msra.mxu0 0.0
    %4490 = vmatprep.subr.mxu0 0.0
    %4491 = vmatpush1.msra.mxu0 0.0
    %4492 = vmatprep.subr.mxu0 0.0
    %4493 = vmatpush1.msra.mxu0 0.0
    %4494 = vmatprep.subr.mxu0 0.0
    %4495 = vmatpush1.msra.mxu0 0.0
    %4496 = vmatprep.subr.mxu0 0.0
    %4497 = vmatpush1.msra.mxu0 0.0
    %4498 = vmatprep.subr.mxu0 0.0
    %4499 = vmatpush1.msra.mxu0 0.0
    %4500 = vmatprep.subr.mxu0 0.0
    %4501 = vmatpush1.msra.mxu0 0.0
    %4502 = vmatprep.subr.mxu0 0.0
    %4503 = vmatpush1.msra.mxu0 0.0
    %4504 = vmatprep.subr.mxu0 0.0
    %4505 = vmatpush1.msra.mxu0 0.0
    %4506 = vmatprep.subr.mxu0 0.0
    %4507 = vmatpush1.msra.mxu0 0.0
    %4508 = vmatprep.subr.mxu0 0.0
    %4509 = vmatpush1.msra.mxu0 0.0
    %4510 = vmatprep.subr.mxu0 0.0
    %4511 = vmatpush1.msra.mxu0 0.0
    %4512 = vmatprep.subr.mxu0 0.0
    %4513 = vmatpush1.msra.mxu0 0.0
    %4514 = vmatprep.subr.mxu0 0.0
    %4515 = vmatpush1.msra.mxu0 0.0
    %4516 = vmatprep.subr.mxu0 0.0
    %4517 = vmatpush1.msra.mxu0 0.0
    %4518 = vmatprep.subr.mxu0 0.0
    %4519 = vmatpush1.msra.mxu0 0.0
    %4520 = vmatprep.subr.mxu0 0.0
    %4521 = vmatpush1.msra.mxu0 0.0
    %4522 = vmatprep.subr.mxu0 0.0
    %4523 = vmatpush1.msra.mxu0 0.0
    %4524 = vmatprep.subr.mxu0 0.0
    %4525 = vmatpush1.msra.mxu0 0.0
    %4526 = vmatprep.subr.mxu0 0.0
    %4527 = vmatpush1.msra.mxu0 0.0
    %4528 = vmatprep.subr.mxu0 0.0
    %4529 = vmatpush1.msra.mxu0 0.0
    %4530 = vmatprep.subr.mxu0 0.0
    %4531 = vmatpush1.msra.mxu0 0.0
    %4532 = vmatprep.subr.mxu0 0.0
    %4533 = vmatpush1.msra.mxu0 0.0
    %4534 = vmatprep.subr.mxu0 0.0
    %4535 = vmatpush1.msra.mxu0 0.0
    %4536 = vmatprep.subr.mxu0 0.0
    %4537 = vmatpush1.msra.mxu0 0.0
    %4538 = vmatprep.subr.mxu0 0.0
    %4539 = vmatpush1.msra.mxu0 0.0
    %4540 = vmatprep.subr.mxu0 0.0
    %4541 = vmatpush1.msra.mxu0 0.0
    %4542 = vmatprep.mubr.f32.mxu0 0.0
    %4543 = vmatmul.mubr.f32.gmra.mrb[0].mxu0 %v2035
    %v4544 = vpop.f32.mrb[0].mxu0
    %v4545 = vadd.f32 0.0, %v4544
    %v4546 = vpop.f32.mrb[0].mxu0
    %4547 = vmatprep.mubr.f32.mxu0 0.0
    %4548 = vmatmul.mubr.f32.gmra.mrb[0].mxu0 %v2038
    %v4549 = vpop.f32.mrb[0].mxu0
    %v4550 = vadd.f32 0.0, %v4549
    %v4551 = vpop.f32.mrb[0].mxu0
    %4552 = vdwg.mxu0
    %s4553 = scalar_lea.vmem [#allocation10], 160
    %v4554 = vld [vmem:[%s4553] sm:$0xff]
    %v4555 = vld [vmem:[%s4553 + $0x8] sm:$0xff]
    %v4556 = vld [vmem:[%s4553 + $0x10] sm:$0xff]
    %v4557 = vld [vmem:[%s4553 + $0x18] sm:$0xff]
    %v4559 = vsel %vm489, %v4545, 0
    %v4562 = vsel %vm489, %v4550, 0
    %4564 = vmatprep.subr.mxu0 0.0
    %4565 = vmatpush1.msra.mxu0 %v4554
    %4566 = vmatprep.subr.mxu0 0.0
    %4567 = vmatpush1.msra.mxu0 %v4555
    %4568 = vmatprep.subr.mxu0 0.0
    %4569 = vmatpush1.msra.mxu0 %v4556
    %4570 = vmatprep.subr.mxu0 0.0
    %4571 = vmatpush1.msra.mxu0 %v4557
    %4572 = vmatprep.subr.mxu0 0.0
    %4573 = vmatpush1.msra.mxu0 0.0
    %4574 = vmatprep.subr.mxu0 0.0
    %4575 = vmatpush1.msra.mxu0 0.0
    %4576 = vmatprep.subr.mxu0 0.0
    %4577 = vmatpush1.msra.mxu0 0.0
    %4578 = vmatprep.subr.mxu0 0.0
    %4579 = vmatpush1.msra.mxu0 0.0
    %4580 = vmatprep.subr.mxu0 0.0
    %4581 = vmatpush1.msra.mxu0 0.0
    %4582 = vmatprep.subr.mxu0 0.0
    %4583 = vmatpush1.msra.mxu0 0.0
    %4584 = vmatprep.subr.mxu0 0.0
    %4585 = vmatpush1.msra.mxu0 0.0
    %4586 = vmatprep.subr.mxu0 0.0
    %4587 = vmatpush1.msra.mxu0 0.0
    %4588 = vmatprep.subr.mxu0 0.0
    %4589 = vmatpush1.msra.mxu0 0.0
    %4590 = vmatprep.subr.mxu0 0.0
    %4591 = vmatpush1.msra.mxu0 0.0
    %4592 = vmatprep.subr.mxu0 0.0
    %4593 = vmatpush1.msra.mxu0 0.0
    %4594 = vmatprep.subr.mxu0 0.0
    %4595 = vmatpush1.msra.mxu0 0.0
    %4596 = vmatprep.subr.mxu0 0.0
    %4597 = vmatpush1.msra.mxu0 0.0
    %4598 = vmatprep.subr.mxu0 0.0
    %4599 = vmatpush1.msra.mxu0 0.0
    %4600 = vmatprep.subr.mxu0 0.0
    %4601 = vmatpush1.msra.mxu0 0.0
    %4602 = vmatprep.subr.mxu0 0.0
    %4603 = vmatpush1.msra.mxu0 0.0
    %4604 = vmatprep.subr.mxu0 0.0
    %4605 = vmatpush1.msra.mxu0 0.0
    %4606 = vmatprep.subr.mxu0 0.0
    %4607 = vmatpush1.msra.mxu0 0.0
    %4608 = vmatprep.subr.mxu0 0.0
    %4609 = vmatpush1.msra.mxu0 0.0
    %4610 = vmatprep.subr.mxu0 0.0
    %4611 = vmatpush1.msra.mxu0 0.0
    %4612 = vmatprep.subr.mxu0 0.0
    %4613 = vmatpush1.msra.mxu0 0.0
    %4614 = vmatprep.subr.mxu0 0.0
    %4615 = vmatpush1.msra.mxu0 0.0
    %4616 = vmatprep.subr.mxu0 0.0
    %4617 = vmatpush1.msra.mxu0 0.0
    %4618 = vmatprep.subr.mxu0 0.0
    %4619 = vmatpush1.msra.mxu0 0.0
    %4620 = vmatprep.subr.mxu0 0.0
    %4621 = vmatpush1.msra.mxu0 0.0
    %4622 = vmatprep.subr.mxu0 0.0
    %4623 = vmatpush1.msra.mxu0 0.0
    %4624 = vmatprep.subr.mxu0 0.0
    %4625 = vmatpush1.msra.mxu0 0.0
    %4626 = vmatprep.subr.mxu0 0.0
    %4627 = vmatpush1.msra.mxu0 0.0
    %4628 = vmatprep.mubr.f32.mxu0 0.0
    %4629 = vmatmul.mubr.f32.gmra.mrb[0].mxu0 %v4559
    %v4630 = vpop.f32.mrb[0].mxu0
    %v4631 = vadd.f32 0.0, %v4630
    %v4632 = vpop.f32.mrb[0].mxu0
    %4633 = vmatprep.mubr.f32.mxu0 0.0
    %4634 = vmatmul.mubr.f32.gmra.mrb[0].mxu0 %v4562
    %v4635 = vpop.f32.mrb[0].mxu0
    %v4636 = vadd.f32 0.0, %v4635
    %v4637 = vpop.f32.mrb[0].mxu0
    %4638 = vdwg.mxu0
    %v4639 = vadd.f32 %v4470, %v4631
    %v4640 = vadd.f32 %v4475, %v4636
    %v4641 = vlaneseq
    %v4642 = vshrl.u32 %v4641, 7
    %v4643 = vsub.s32 0, %v4642
    %v4644 = vrot.slane %v4155, %v4643
    %v4645 = vadd.f32 %v4639, %v4644
    %v4646 = vadd.f32 %v4640, %v4644
    %v4647 = vmax.f32 %v4645, 0.0
    %v4648 = vmax.f32 %v4646, 0.0
    %v4649 = vsel %vm489, %v4647, 0.0
    %4650 = vadd.xlane.f32.xlu0 %v4649
    %v4651 = vpop.xlane.xlu0 %4650
    %v4652 = vsel %vm489, %v4648, 0.0
    %4653 = vadd.xlane.f32.xlu0 %v4652
    %v4654 = vpop.xlane.xlu0 %4653
    %v4655 = vmul.f32 %v4651, %v502
    %v4656 = vmul.f32 %v4654, %v502
    %v4657 = vsub.f32 %v4647, %v4655
    %v4658 = vsub.f32 %v4648, %v4656
    %v4659 = vmul.f32 %v4657, %v4657
    %v4660 = vmul.f32 %v4658, %v4658
    %v4661 = vsel %vm489, %v4659, 0.0
    %4662 = vadd.xlane.f32.xlu0 %v4661
    %v4663 = vpop.xlane.xlu0 %4662
    %v4664 = vsel %vm489, %v4660, 0.0
    %4665 = vadd.xlane.f32.xlu0 %v4664
    %v4666 = vpop.xlane.xlu0 %4665
    %v4667 = vmul.f32 %v4663, %v502
    %v4668 = vmul.f32 %v4666, %v502
    %v4669 = vadd.f32 %v4667, 1e-05
    %v4670 = vadd.f32 %v4668, 1e-05
    %v4671 = vrsqrt.pop %v4669
    %v4672 = vrsqrt.pop %v4670
    %v4673 = vmul.f32 %v4657, %v4671
    %v4674 = vmul.f32 %v4658, %v4672
    %v4675 = vlaneseq
    %v4676 = vshrl.u32 %v4675, 7
    %v4677 = vsub.s32 1, %v4676
    %v4678 = vrot.slane %v4155, %v4677
    %v4679 = vmul.f32 %v4673, %v4678
    %v4680 = vmul.f32 %v4674, %v4678
    %v4681 = vlaneseq
    %v4682 = vshrl.u32 %v4681, 7
    %v4683 = vsub.s32 2, %v4682
    %v4684 = vrot.slane %v4155, %v4683
    %v4685 = vadd.f32 %v4679, %v4684
    %v4686 = vadd.f32 %v4680, %v4684
    %s4687 = scalar_lea.vmem [#allocation12], 64
    %v4688 = vld [vmem:[%s4687] sm:$0xff]
    %v4689 = vld [vmem:[%s4687 + $0x8] sm:$0xff]
    %v4690 = vld [vmem:[%s4687 + $0x10] sm:$0xff]
    %v4691 = vld [vmem:[%s4687 + $0x18] sm:$0xff]
    %s4692 = scalar_lea.vmem [#allocation12], 96
    %v4693 = vld [vmem:[%s4692] sm:$0xff]
    %v4694 = vld [vmem:[%s4692 + $0x8] sm:$0xff]
    %v4695 = vld [vmem:[%s4692 + $0x10] sm:$0xff]
    %v4696 = vld [vmem:[%s4692 + $0x18] sm:$0xff]
    %v4698 = vsel %vm489, %v4685, 0
    %v4701 = vsel %vm489, %v4686, 0
    %4703 = vmatprep.subr.mxu0 0.0
    %4704 = vmatpush1.msra.mxu0 %v4693
    %4705 = vmatprep.subr.mxu0 0.0
    %4706 = vmatpush1.msra.mxu0 %v4694
    %4707 = vmatprep.subr.mxu0 0.0
    %4708 = vmatpush1.msra.mxu0 %v4695
    %4709 = vmatprep.subr.mxu0 0.0
    %4710 = vmatpush1.msra.mxu0 %v4696
    %4711 = vmatprep.subr.mxu0 0.0
    %4712 = vmatpush1.msra.mxu0 0.0
    %4713 = vmatprep.subr.mxu0 0.0
    %4714 = vmatpush1.msra.mxu0 0.0
    %4715 = vmatprep.subr.mxu0 0.0
    %4716 = vmatpush1.msra.mxu0 0.0
    %4717 = vmatprep.subr.mxu0 0.0
    %4718 = vmatpush1.msra.mxu0 0.0
    %4719 = vmatprep.subr.mxu0 0.0
    %4720 = vmatpush1.msra.mxu0 0.0
    %4721 = vmatprep.subr.mxu0 0.0
    %4722 = vmatpush1.msra.mxu0 0.0
    %4723 = vmatprep.subr.mxu0 0.0
    %4724 = vmatpush1.msra.mxu0 0.0
    %4725 = vmatprep.subr.mxu0 0.0
    %4726 = vmatpush1.msra.mxu0 0.0
    %4727 = vmatprep.subr.mxu0 0.0
    %4728 = vmatpush1.msra.mxu0 0.0
    %4729 = vmatprep.subr.mxu0 0.0
    %4730 = vmatpush1.msra.mxu0 0.0
    %4731 = vmatprep.subr.mxu0 0.0
    %4732 = vmatpush1.msra.mxu0 0.0
    %4733 = vmatprep.subr.mxu0 0.0
    %4734 = vmatpush1.msra.mxu0 0.0
    %4735 = vmatprep.subr.mxu0 0.0
    %4736 = vmatpush1.msra.mxu0 0.0
    %4737 = vmatprep.subr.mxu0 0.0
    %4738 = vmatpush1.msra.mxu0 0.0
    %4739 = vmatprep.subr.mxu0 0.0
    %4740 = vmatpush1.msra.mxu0 0.0
    %4741 = vmatprep.subr.mxu0 0.0
    %4742 = vmatpush1.msra.mxu0 0.0
    %4743 = vmatprep.subr.mxu0 0.0
    %4744 = vmatpush1.msra.mxu0 0.0
    %4745 = vmatprep.subr.mxu0 0.0
    %4746 = vmatpush1.msra.mxu0 0.0
    %4747 = vmatprep.subr.mxu0 0.0
    %4748 = vmatpush1.msra.mxu0 0.0
    %4749 = vmatprep.subr.mxu0 0.0
    %4750 = vmatpush1.msra.mxu0 0.0
    %4751 = vmatprep.subr.mxu0 0.0
    %4752 = vmatpush1.msra.mxu0 0.0
    %4753 = vmatprep.subr.mxu0 0.0
    %4754 = vmatpush1.msra.mxu0 0.0
    %4755 = vmatprep.subr.mxu0 0.0
    %4756 = vmatpush1.msra.mxu0 0.0
    %4757 = vmatprep.subr.mxu0 0.0
    %4758 = vmatpush1.msra.mxu0 0.0
    %4759 = vmatprep.subr.mxu0 0.0
    %4760 = vmatpush1.msra.mxu0 0.0
    %4761 = vmatprep.subr.mxu0 0.0
    %4762 = vmatpush1.msra.mxu0 0.0
    %4763 = vmatprep.subr.mxu0 0.0
    %4764 = vmatpush1.msra.mxu0 0.0
    %4765 = vmatprep.subr.mxu0 0.0
    %4766 = vmatpush1.msra.mxu0 0.0
    %4767 = vmatprep.mubr.f32.mxu0 0.0
    %4768 = vmatmul.mubr.f32.gmra.mrb[0].mxu0 %v4698
    %v4769 = vpop.f32.mrb[0].mxu0
    %v4770 = vadd.f32 0.0, %v4769
    %v4771 = vpop.f32.mrb[0].mxu0
    %4772 = vmatprep.mubr.f32.mxu0 0.0
    %4773 = vmatmul.mubr.f32.gmra.mrb[0].mxu0 %v4701
    %v4774 = vpop.f32.mrb[0].mxu0
    %v4775 = vadd.f32 0.0, %v4774
    %v4776 = vpop.f32.mrb[0].mxu0
    %4777 = vdwg.mxu0
    %4778 = vmatprep.subr.mxu0 0.0
    %4779 = vmatpush1.msra.mxu0 %v4770
    %4780 = vmatprep.subr.mxu0 0.0
    %4781 = vmatpush1.msra.mxu0 %v4775
    %4782 = vmatprep.subr.mxu0 0.0
    %4783 = vmatpush1.msra.mxu0 0.0
    %4784 = vmatprep.subr.mxu0 0.0
    %4785 = vmatpush1.msra.mxu0 0.0
    %4786 = vmatprep.subr.mxu0 0.0
    %4787 = vmatpush1.msra.mxu0 0.0
    %4788 = vmatprep.subr.mxu0 0.0
    %4789 = vmatpush1.msra.mxu0 0.0
    %4790 = vmatprep.subr.mxu0 0.0
    %4791 = vmatpush1.msra.mxu0 0.0
    %4792 = vmatprep.subr.mxu0 0.0
    %4793 = vmatpush1.msra.mxu0 0.0
    %4794 = vmatprep.subr.mxu0 0.0
    %4795 = vmatpush1.msra.mxu0 0.0
    %4796 = vmatprep.subr.mxu0 0.0
    %4797 = vmatpush1.msra.mxu0 0.0
    %4798 = vmatprep.subr.mxu0 0.0
    %4799 = vmatpush1.msra.mxu0 0.0
    %4800 = vmatprep.subr.mxu0 0.0
    %4801 = vmatpush1.msra.mxu0 0.0
    %4802 = vmatprep.subr.mxu0 0.0
    %4803 = vmatpush1.msra.mxu0 0.0
    %4804 = vmatprep.subr.mxu0 0.0
    %4805 = vmatpush1.msra.mxu0 0.0
    %4806 = vmatprep.subr.mxu0 0.0
    %4807 = vmatpush1.msra.mxu0 0.0
    %4808 = vmatprep.subr.mxu0 0.0
    %4809 = vmatpush1.msra.mxu0 0.0
    %4810 = vmatprep.subr.mxu0 0.0
    %4811 = vmatpush1.msra.mxu0 0.0
    %4812 = vmatprep.subr.mxu0 0.0
    %4813 = vmatpush1.msra.mxu0 0.0
    %4814 = vmatprep.subr.mxu0 0.0
    %4815 = vmatpush1.msra.mxu0 0.0
    %4816 = vmatprep.subr.mxu0 0.0
    %4817 = vmatpush1.msra.mxu0 0.0
    %4818 = vmatprep.subr.mxu0 0.0
    %4819 = vmatpush1.msra.mxu0 0.0
    %4820 = vmatprep.subr.mxu0 0.0
    %4821 = vmatpush1.msra.mxu0 0.0
    %4822 = vmatprep.subr.mxu0 0.0
    %4823 = vmatpush1.msra.mxu0 0.0
    %4824 = vmatprep.subr.mxu0 0.0
    %4825 = vmatpush1.msra.mxu0 0.0
    %4826 = vmatprep.subr.mxu0 0.0
    %4827 = vmatpush1.msra.mxu0 0.0
    %4828 = vmatprep.subr.mxu0 0.0
    %4829 = vmatpush1.msra.mxu0 0.0
    %4830 = vmatprep.subr.mxu0 0.0
    %4831 = vmatpush1.msra.mxu0 0.0
    %4832 = vmatprep.subr.mxu0 0.0
    %4833 = vmatpush1.msra.mxu0 0.0
    %4834 = vmatprep.subr.mxu0 0.0
    %4835 = vmatpush1.msra.mxu0 0.0
    %4836 = vmatprep.subr.mxu0 0.0
    %4837 = vmatpush1.msra.mxu0 0.0
    %4838 = vmatprep.subr.mxu0 0.0
    %4839 = vmatpush1.msra.mxu0 0.0
    %4840 = vmatprep.subr.mxu0 0.0
    %4841 = vmatpush1.msra.mxu0 0.0
    %4842 = vmatprep.mubr.f32.mxu0 0.0
    %4843 = vmatmul.mubr.f32.gmra.mrb[0].mxu0 %v2344
    %v4844 = vpop.f32.mrb[0].mxu0
    %v4845 = vadd.f32 0.0, %v4844
    %v4846 = vpop.f32.mrb[0].mxu0
    %4847 = vmatprep.mubr.f32.mxu0 0.0
    %4848 = vmatmul.mubr.f32.gmra.mrb[0].mxu0 %v2347
    %v4849 = vpop.f32.mrb[0].mxu0
    %v4850 = vadd.f32 0.0, %v4849
    %v4851 = vpop.f32.mrb[0].mxu0
    %4852 = vmatprep.mubr.f32.mxu0 0.0
    %4853 = vmatmul.mubr.f32.gmra.mrb[0].mxu0 %v2350
    %v4854 = vpop.f32.mrb[0].mxu0
    %v4855 = vadd.f32 0.0, %v4854
    %v4856 = vpop.f32.mrb[0].mxu0
    %4857 = vmatprep.mubr.f32.mxu0 0.0
    %4858 = vmatmul.mubr.f32.gmra.mrb[0].mxu0 %v2353
    %v4859 = vpop.f32.mrb[0].mxu0
    %v4860 = vadd.f32 0.0, %v4859
    %v4861 = vpop.f32.mrb[0].mxu0
    %4862 = vdwg.mxu0
    %v4864 = vsel %vm489, %v4150, 0
    %v4867 = vsel %vm489, %v4151, 0
    %v4870 = vsel %vm489, %v4152, 0
    %v4873 = vsel %vm489, %v4153, 0
    %4875 = vmatprep.subr.mxu0 0.0
    %4876 = vmatpush1.msra.mxu0 %v4688
    %4877 = vmatprep.subr.mxu0 0.0
    %4878 = vmatpush1.msra.mxu0 %v4689
    %4879 = vmatprep.subr.mxu0 0.0
    %4880 = vmatpush1.msra.mxu0 %v4690
    %4881 = vmatprep.subr.mxu0 0.0
    %4882 = vmatpush1.msra.mxu0 %v4691
    %4883 = vmatprep.subr.mxu0 0.0
    %4884 = vmatpush1.msra.mxu0 0.0
    %4885 = vmatprep.subr.mxu0 0.0
    %4886 = vmatpush1.msra.mxu0 0.0
    %4887 = vmatprep.subr.mxu0 0.0
    %4888 = vmatpush1.msra.mxu0 0.0
    %4889 = vmatprep.subr.mxu0 0.0
    %4890 = vmatpush1.msra.mxu0 0.0
    %4891 = vmatprep.subr.mxu0 0.0
    %4892 = vmatpush1.msra.mxu0 0.0
    %4893 = vmatprep.subr.mxu0 0.0
    %4894 = vmatpush1.msra.mxu0 0.0
    %4895 = vmatprep.subr.mxu0 0.0
    %4896 = vmatpush1.msra.mxu0 0.0
    %4897 = vmatprep.subr.mxu0 0.0
    %4898 = vmatpush1.msra.mxu0 0.0
    %4899 = vmatprep.subr.mxu0 0.0
    %4900 = vmatpush1.msra.mxu0 0.0
    %4901 = vmatprep.subr.mxu0 0.0
    %4902 = vmatpush1.msra.mxu0 0.0
    %4903 = vmatprep.subr.mxu0 0.0
    %4904 = vmatpush1.msra.mxu0 0.0
    %4905 = vmatprep.subr.mxu0 0.0
    %4906 = vmatpush1.msra.mxu0 0.0
    %4907 = vmatprep.subr.mxu0 0.0
    %4908 = vmatpush1.msra.mxu0 0.0
    %4909 = vmatprep.subr.mxu0 0.0
    %4910 = vmatpush1.msra.mxu0 0.0
    %4911 = vmatprep.subr.mxu0 0.0
    %4912 = vmatpush1.msra.mxu0 0.0
    %4913 = vmatprep.subr.mxu0 0.0
    %4914 = vmatpush1.msra.mxu0 0.0
    %4915 = vmatprep.subr.mxu0 0.0
    %4916 = vmatpush1.msra.mxu0 0.0
    %4917 = vmatprep.subr.mxu0 0.0
    %4918 = vmatpush1.msra.mxu0 0.0
    %4919 = vmatprep.subr.mxu0 0.0
    %4920 = vmatpush1.msra.mxu0 0.0
    %4921 = vmatprep.subr.mxu0 0.0
    %4922 = vmatpush1.msra.mxu0 0.0
    %4923 = vmatprep.subr.mxu0 0.0
    %4924 = vmatpush1.msra.mxu0 0.0
    %4925 = vmatprep.subr.mxu0 0.0
    %4926 = vmatpush1.msra.mxu0 0.0
    %4927 = vmatprep.subr.mxu0 0.0
    %4928 = vmatpush1.msra.mxu0 0.0
    %4929 = vmatprep.subr.mxu0 0.0
    %4930 = vmatpush1.msra.mxu0 0.0
    %4931 = vmatprep.subr.mxu0 0.0
    %4932 = vmatpush1.msra.mxu0 0.0
    %4933 = vmatprep.subr.mxu0 0.0
    %4934 = vmatpush1.msra.mxu0 0.0
    %4935 = vmatprep.subr.mxu0 0.0
    %4936 = vmatpush1.msra.mxu0 0.0
    %4937 = vmatprep.subr.mxu0 0.0
    %4938 = vmatpush1.msra.mxu0 0.0
    %4939 = vmatprep.mubr.f32.mxu0 0.0
    %4940 = vmatmul.mubr.f32.gmra.mrb[0].mxu0 %v4864
    %v4941 = vpop.f32.mrb[0].mxu0
    %v4942 = vadd.f32 %v4845, %v4941
    %v4943 = vpop.f32.mrb[0].mxu0
    %4944 = vmatprep.mubr.f32.mxu0 0.0
    %4945 = vmatmul.mubr.f32.gmra.mrb[0].mxu0 %v4867
    %v4946 = vpop.f32.mrb[0].mxu0
    %v4947 = vadd.f32 %v4850, %v4946
    %v4948 = vpop.f32.mrb[0].mxu0
    %4949 = vmatprep.mubr.f32.mxu0 0.0
    %4950 = vmatmul.mubr.f32.gmra.mrb[0].mxu0 %v4870
    %v4951 = vpop.f32.mrb[0].mxu0
    %v4952 = vadd.f32 %v4855, %v4951
    %v4953 = vpop.f32.mrb[0].mxu0
    %4954 = vmatprep.mubr.f32.mxu0 0.0
    %4955 = vmatmul.mubr.f32.gmra.mrb[0].mxu0 %v4873
    %v4956 = vpop.f32.mrb[0].mxu0
    %v4957 = vadd.f32 %v4860, %v4956
    %v4958 = vpop.f32.mrb[0].mxu0
    %4959 = vdwg.mxu0
    %v4960 = vlaneseq
    %v4961 = vshrl.u32 %v4960, 7
    %v4962 = vsub.s32 3, %v4961
    %v4963 = vrot.slane %v4155, %v4962
    %v4964 = vadd.f32 %v4942, %v4963
    %v4965 = vadd.f32 %v4947, %v4963
    %v4966 = vadd.f32 %v4952, %v4963
    %v4967 = vadd.f32 %v4957, %v4963
    %v4968 = vmax.f32 %v4964, 0.0
    %v4969 = vmax.f32 %v4965, 0.0
    %v4970 = vmax.f32 %v4966, 0.0
    %v4971 = vmax.f32 %v4967, 0.0
    %v4972 = vsel %vm489, %v4968, 0.0
    %4973 = vadd.xlane.f32.xlu0 %v4972
    %v4974 = vpop.xlane.xlu0 %4973
    %v4975 = vsel %vm489, %v4969, 0.0
    %4976 = vadd.xlane.f32.xlu0 %v4975
    %v4977 = vpop.xlane.xlu0 %4976
    %v4978 = vsel %vm489, %v4970, 0.0
    %4979 = vadd.xlane.f32.xlu0 %v4978
    %v4980 = vpop.xlane.xlu0 %4979
    %v4981 = vsel %vm489, %v4971, 0.0
    %4982 = vadd.xlane.f32.xlu0 %v4981
    %v4983 = vpop.xlane.xlu0 %4982
    %v4984 = vmul.f32 %v4974, %v502
    %v4985 = vmul.f32 %v4977, %v502
    %v4986 = vmul.f32 %v4980, %v502
    %v4987 = vmul.f32 %v4983, %v502
    %v4988 = vsub.f32 %v4968, %v4984
    %v4989 = vsub.f32 %v4969, %v4985
    %v4990 = vsub.f32 %v4970, %v4986
    %v4991 = vsub.f32 %v4971, %v4987
    %v4992 = vmul.f32 %v4988, %v4988
    %v4993 = vmul.f32 %v4989, %v4989
    %v4994 = vmul.f32 %v4990, %v4990
    %v4995 = vmul.f32 %v4991, %v4991
    %v4996 = vsel %vm489, %v4992, 0.0
    %4997 = vadd.xlane.f32.xlu0 %v4996
    %v4998 = vpop.xlane.xlu0 %4997
    %v4999 = vsel %vm489, %v4993, 0.0
    %5000 = vadd.xlane.f32.xlu0 %v4999
    %v5001 = vpop.xlane.xlu0 %5000
    %v5002 = vsel %vm489, %v4994, 0.0
    %5003 = vadd.xlane.f32.xlu0 %v5002
    %v5004 = vpop.xlane.xlu0 %5003
    %v5005 = vsel %vm489, %v4995, 0.0
    %5006 = vadd.xlane.f32.xlu0 %v5005
    %v5007 = vpop.xlane.xlu0 %5006
    %v5008 = vmul.f32 %v4998, %v502
    %v5009 = vmul.f32 %v5001, %v502
    %v5010 = vmul.f32 %v5004, %v502
    %v5011 = vmul.f32 %v5007, %v502
    %v5012 = vadd.f32 %v5008, 1e-05
    %v5013 = vadd.f32 %v5009, 1e-05
    %v5014 = vadd.f32 %v5010, 1e-05
    %v5015 = vadd.f32 %v5011, 1e-05
    %v5016 = vrsqrt.pop %v5012
    %v5017 = vrsqrt.pop %v5013
    %v5018 = vrsqrt.pop %v5014
    %v5019 = vrsqrt.pop %v5015
    %v5020 = vmul.f32 %v4988, %v5016
    %v5021 = vmul.f32 %v4989, %v5017
    %v5022 = vmul.f32 %v4990, %v5018
    %v5023 = vmul.f32 %v4991, %v5019
    %v5024 = vlaneseq
    %v5025 = vshrl.u32 %v5024, 7
    %v5026 = vsub.s32 4, %v5025
    %v5027 = vrot.slane %v4155, %v5026
    %v5028 = vmul.f32 %v5020, %v5027
    %v5029 = vmul.f32 %v5021, %v5027
    %v5030 = vmul.f32 %v5022, %v5027
    %v5031 = vmul.f32 %v5023, %v5027
    %v5032 = vlaneseq
    %v5033 = vshrl.u32 %v5032, 7
    %v5034 = vsub.s32 5, %v5033
    %v5035 = vrot.slane %v4155, %v5034
    %v5036 = vadd.f32 %v5028, %v5035
    %v5037 = vadd.f32 %v5029, %v5035
    %v5038 = vadd.f32 %v5030, %v5035
    %v5039 = vadd.f32 %v5031, %v5035
    %v5040 = vadd.f32 %v4122, %v3686
    %v5041 = vadd.f32 %v4127, %v3687
    %v5042 = vadd.f32 %v4132, %v3688
    %v5043 = vadd.f32 %v4137, %v3689
    %v5044 = vadd.f32 %v4142, %v3690
    %v5045 = vadd.f32 %v4147, %v3691
    %s5046 = scalar_lea.vmem [#allocation13], 32
    %v5047 = vld [vmem:[%s5046] sm:$0x3f]
    %5048 = vmatprep.subr.mxu0 0.0
    %5049 = vmatpush1.msra.mxu0 %v5040
    %5050 = vmatprep.subr.mxu0 0.0
    %5051 = vmatpush1.msra.mxu0 %v5041
    %5052 = vmatprep.subr.mxu0 0.0
    %5053 = vmatpush1.msra.mxu0 %v5042
    %5054 = vmatprep.subr.mxu0 0.0
    %5055 = vmatpush1.msra.mxu0 %v5043
    %5056 = vmatprep.subr.mxu0 0.0
    %5057 = vmatpush1.msra.mxu0 %v5044
    %5058 = vmatprep.subr.mxu0 0.0
    %5059 = vmatpush1.msra.mxu0 %v5045
    %5060 = vmatprep.subr.mxu0 0.0
    %5061 = vmatpush1.msra.mxu0 0.0
    %5062 = vmatprep.subr.mxu0 0.0
    %5063 = vmatpush1.msra.mxu0 0.0
    %5064 = vmatprep.subr.mxu0 0.0
    %5065 = vmatpush1.msra.mxu0 0.0
    %5066 = vmatprep.subr.mxu0 0.0
    %5067 = vmatpush1.msra.mxu0 0.0
    %5068 = vmatprep.subr.mxu0 0.0
    %5069 = vmatpush1.msra.mxu0 0.0
    %5070 = vmatprep.subr.mxu0 0.0
    %5071 = vmatpush1.msra.mxu0 0.0
    %5072 = vmatprep.subr.mxu0 0.0
    %5073 = vmatpush1.msra.mxu0 0.0
    %5074 = vmatprep.subr.mxu0 0.0
    %5075 = vmatpush1.msra.mxu0 0.0
    %5076 = vmatprep.subr.mxu0 0.0
    %5077 = vmatpush1.msra.mxu0 0.0
    %5078 = vmatprep.subr.mxu0 0.0
    %5079 = vmatpush1.msra.mxu0 0.0
    %5080 = vmatprep.subr.mxu0 0.0
    %5081 = vmatpush1.msra.mxu0 0.0
    %5082 = vmatprep.subr.mxu0 0.0
    %5083 = vmatpush1.msra.mxu0 0.0
    %5084 = vmatprep.subr.mxu0 0.0
    %5085 = vmatpush1.msra.mxu0 0.0
    %5086 = vmatprep.subr.mxu0 0.0
    %5087 = vmatpush1.msra.mxu0 0.0
    %5088 = vmatprep.subr.mxu0 0.0
    %5089 = vmatpush1.msra.mxu0 0.0
    %5090 = vmatprep.subr.mxu0 0.0
    %5091 = vmatpush1.msra.mxu0 0.0
    %5092 = vmatprep.subr.mxu0 0.0
    %5093 = vmatpush1.msra.mxu0 0.0
    %5094 = vmatprep.subr.mxu0 0.0
    %5095 = vmatpush1.msra.mxu0 0.0
    %5096 = vmatprep.subr.mxu0 0.0
    %5097 = vmatpush1.msra.mxu0 0.0
    %5098 = vmatprep.subr.mxu0 0.0
    %5099 = vmatpush1.msra.mxu0 0.0
    %5100 = vmatprep.subr.mxu0 0.0
    %5101 = vmatpush1.msra.mxu0 0.0
    %5102 = vmatprep.subr.mxu0 0.0
    %5103 = vmatpush1.msra.mxu0 0.0
    %5104 = vmatprep.subr.mxu0 0.0
    %5105 = vmatpush1.msra.mxu0 0.0
    %5106 = vmatprep.subr.mxu0 0.0
    %5107 = vmatpush1.msra.mxu0 0.0
    %5108 = vmatprep.subr.mxu0 0.0
    %5109 = vmatpush1.msra.mxu0 0.0
    %5110 = vmatprep.subr.mxu0 0.0
    %5111 = vmatpush1.msra.mxu0 0.0
    %5112 = vmatprep.mubr.f32.mxu0 0.0
    %5113 = vmatmul.mubr.f32.gmra.mrb[0].mxu0 %v2624
    %v5114 = vpop.f32.mrb[0].mxu0
    %v5115 = vadd.f32 0.0, %v5114
    %v5116 = vpop.f32.mrb[0].mxu0
    %5117 = vmatprep.mubr.f32.mxu0 0.0
    %5118 = vmatmul.mubr.f32.gmra.mrb[0].mxu0 %v2627
    %v5119 = vpop.f32.mrb[0].mxu0
    %v5120 = vadd.f32 0.0, %v5119
    %v5121 = vpop.f32.mrb[0].mxu0
    %5122 = vmatprep.mubr.f32.mxu0 0.0
    %5123 = vmatmul.mubr.f32.gmra.mrb[0].mxu0 %v2630
    %v5124 = vpop.f32.mrb[0].mxu0
    %v5125 = vadd.f32 0.0, %v5124
    %v5126 = vpop.f32.mrb[0].mxu0
    %5127 = vdwg.mxu0
    %s5128 = scalar_lea.vmem [#allocation10], 384
    %v5129 = vld [vmem:[%s5128] sm:$0xff]
    %v5130 = vld [vmem:[%s5128 + $0x8] sm:$0xff]
    %v5131 = vld [vmem:[%s5128 + $0x10] sm:$0xff]
    %v5132 = vld [vmem:[%s5128 + $0x18] sm:$0xff]
    %5133 = vmatprep.subr.mxu0 0.0
    %5134 = vmatpush1.msra.mxu0 %v5040
    %5135 = vmatprep.subr.mxu0 0.0
    %5136 = vmatpush1.msra.mxu0 %v5041
    %5137 = vmatprep.subr.mxu0 0.0
    %5138 = vmatpush1.msra.mxu0 %v5042
    %5139 = vmatprep.subr.mxu0 0.0
    %5140 = vmatpush1.msra.mxu0 %v5043
    %5141 = vmatprep.subr.mxu0 0.0
    %5142 = vmatpush1.msra.mxu0 %v5044
    %5143 = vmatprep.subr.mxu0 0.0
    %5144 = vmatpush1.msra.mxu0 %v5045
    %5145 = vmatprep.subr.mxu0 0.0
    %5146 = vmatpush1.msra.mxu0 0.0
    %5147 = vmatprep.subr.mxu0 0.0
    %5148 = vmatpush1.msra.mxu0 0.0
    %5149 = vmatprep.subr.mxu0 0.0
    %5150 = vmatpush1.msra.mxu0 0.0
    %5151 = vmatprep.subr.mxu0 0.0
    %5152 = vmatpush1.msra.mxu0 0.0
    %5153 = vmatprep.subr.mxu0 0.0
    %5154 = vmatpush1.msra.mxu0 0.0
    %5155 = vmatprep.subr.mxu0 0.0
    %5156 = vmatpush1.msra.mxu0 0.0
    %5157 = vmatprep.subr.mxu0 0.0
    %5158 = vmatpush1.msra.mxu0 0.0
    %5159 = vmatprep.subr.mxu0 0.0
    %5160 = vmatpush1.msra.mxu0 0.0
    %5161 = vmatprep.subr.mxu0 0.0
    %5162 = vmatpush1.msra.mxu0 0.0
    %5163 = vmatprep.subr.mxu0 0.0
    %5164 = vmatpush1.msra.mxu0 0.0
    %5165 = vmatprep.subr.mxu0 0.0
    %5166 = vmatpush1.msra.mxu0 0.0
    %5167 = vmatprep.subr.mxu0 0.0
    %5168 = vmatpush1.msra.mxu0 0.0
    %5169 = vmatprep.subr.mxu0 0.0
    %5170 = vmatpush1.msra.mxu0 0.0
    %5171 = vmatprep.subr.mxu0 0.0
    %5172 = vmatpush1.msra.mxu0 0.0
    %5173 = vmatprep.subr.mxu0 0.0
    %5174 = vmatpush1.msra.mxu0 0.0
    %5175 = vmatprep.subr.mxu0 0.0
    %5176 = vmatpush1.msra.mxu0 0.0
    %5177 = vmatprep.subr.mxu0 0.0
    %5178 = vmatpush1.msra.mxu0 0.0
    %5179 = vmatprep.subr.mxu0 0.0
    %5180 = vmatpush1.msra.mxu0 0.0
    %5181 = vmatprep.subr.mxu0 0.0
    %5182 = vmatpush1.msra.mxu0 0.0
    %5183 = vmatprep.subr.mxu0 0.0
    %5184 = vmatpush1.msra.mxu0 0.0
    %5185 = vmatprep.subr.mxu0 0.0
    %5186 = vmatpush1.msra.mxu0 0.0
    %5187 = vmatprep.subr.mxu0 0.0
    %5188 = vmatpush1.msra.mxu0 0.0
    %5189 = vmatprep.subr.mxu0 0.0
    %5190 = vmatpush1.msra.mxu0 0.0
    %5191 = vmatprep.subr.mxu0 0.0
    %5192 = vmatpush1.msra.mxu0 0.0
    %5193 = vmatprep.subr.mxu0 0.0
    %5194 = vmatpush1.msra.mxu0 0.0
    %5195 = vmatprep.subr.mxu0 0.0
    %5196 = vmatpush1.msra.mxu0 0.0
    %5197 = vmatprep.mubr.f32.mxu0 0.0
    %5198 = vmatmul.mubr.f32.gmra.mrb[0].mxu0 %v2722
    %v5199 = vpop.f32.mrb[0].mxu0
    %v5200 = vadd.f32 0.0, %v5199
    %v5201 = vpop.f32.mrb[0].mxu0
    %5202 = vmatprep.mubr.f32.mxu0 0.0
    %5203 = vmatmul.mubr.f32.gmra.mrb[0].mxu0 %v2725
    %v5204 = vpop.f32.mrb[0].mxu0
    %v5205 = vadd.f32 0.0, %v5204
    %v5206 = vpop.f32.mrb[0].mxu0
    %5207 = vmatprep.mubr.f32.mxu0 0.0
    %5208 = vmatmul.mubr.f32.gmra.mrb[0].mxu0 %v2728
    %v5209 = vpop.f32.mrb[0].mxu0
    %v5210 = vadd.f32 0.0, %v5209
    %v5211 = vpop.f32.mrb[0].mxu0
    %5212 = vdwg.mxu0
    %s5213 = scalar_lea.vmem [#allocation10], 416
    %v5214 = vld [vmem:[%s5213] sm:$0xff]
    %v5215 = vld [vmem:[%s5213 + $0x8] sm:$0xff]
    %v5216 = vld [vmem:[%s5213 + $0x10] sm:$0xff]
    %v5217 = vld [vmem:[%s5213 + $0x18] sm:$0xff]
    %v5219 = vsel %vm489, %v5200, 0
    %v5222 = vsel %vm489, %v5205, 0
    %v5225 = vsel %vm489, %v5210, 0
    %5227 = vmatprep.subr.mxu0 0.0
    %5228 = vmatpush1.msra.mxu0 %v5214
    %5229 = vmatprep.subr.mxu0 0.0
    %5230 = vmatpush1.msra.mxu0 %v5215
    %5231 = vmatprep.subr.mxu0 0.0
    %5232 = vmatpush1.msra.mxu0 %v5216
    %5233 = vmatprep.subr.mxu0 0.0
    %5234 = vmatpush1.msra.mxu0 %v5217
    %5235 = vmatprep.subr.mxu0 0.0
    %5236 = vmatpush1.msra.mxu0 0.0
    %5237 = vmatprep.subr.mxu0 0.0
    %5238 = vmatpush1.msra.mxu0 0.0
    %5239 = vmatprep.subr.mxu0 0.0
    %5240 = vmatpush1.msra.mxu0 0.0
    %5241 = vmatprep.subr.mxu0 0.0
    %5242 = vmatpush1.msra.mxu0 0.0
    %5243 = vmatprep.subr.mxu0 0.0
    %5244 = vmatpush1.msra.mxu0 0.0
    %5245 = vmatprep.subr.mxu0 0.0
    %5246 = vmatpush1.msra.mxu0 0.0
    %5247 = vmatprep.subr.mxu0 0.0
    %5248 = vmatpush1.msra.mxu0 0.0
    %5249 = vmatprep.subr.mxu0 0.0
    %5250 = vmatpush1.msra.mxu0 0.0
    %5251 = vmatprep.subr.mxu0 0.0
    %5252 = vmatpush1.msra.mxu0 0.0
    %5253 = vmatprep.subr.mxu0 0.0
    %5254 = vmatpush1.msra.mxu0 0.0
    %5255 = vmatprep.subr.mxu0 0.0
    %5256 = vmatpush1.msra.mxu0 0.0
    %5257 = vmatprep.subr.mxu0 0.0
    %5258 = vmatpush1.msra.mxu0 0.0
    %5259 = vmatprep.subr.mxu0 0.0
    %5260 = vmatpush1.msra.mxu0 0.0
    %5261 = vmatprep.subr.mxu0 0.0
    %5262 = vmatpush1.msra.mxu0 0.0
    %5263 = vmatprep.subr.mxu0 0.0
    %5264 = vmatpush1.msra.mxu0 0.0
    %5265 = vmatprep.subr.mxu0 0.0
    %5266 = vmatpush1.msra.mxu0 0.0
    %5267 = vmatprep.subr.mxu0 0.0
    %5268 = vmatpush1.msra.mxu0 0.0
    %5269 = vmatprep.subr.mxu0 0.0
    %5270 = vmatpush1.msra.mxu0 0.0
    %5271 = vmatprep.subr.mxu0 0.0
    %5272 = vmatpush1.msra.mxu0 0.0
    %5273 = vmatprep.subr.mxu0 0.0
    %5274 = vmatpush1.msra.mxu0 0.0
    %5275 = vmatprep.subr.mxu0 0.0
    %5276 = vmatpush1.msra.mxu0 0.0
    %5277 = vmatprep.subr.mxu0 0.0
    %5278 = vmatpush1.msra.mxu0 0.0
    %5279 = vmatprep.subr.mxu0 0.0
    %5280 = vmatpush1.msra.mxu0 0.0
    %5281 = vmatprep.subr.mxu0 0.0
    %5282 = vmatpush1.msra.mxu0 0.0
    %5283 = vmatprep.subr.mxu0 0.0
    %5284 = vmatpush1.msra.mxu0 0.0
    %5285 = vmatprep.subr.mxu0 0.0
    %5286 = vmatpush1.msra.mxu0 0.0
    %5287 = vmatprep.subr.mxu0 0.0
    %5288 = vmatpush1.msra.mxu0 0.0
    %5289 = vmatprep.subr.mxu0 0.0
    %5290 = vmatpush1.msra.mxu0 0.0
    %5291 = vmatprep.mubr.f32.mxu0 0.0
    %5292 = vmatmul.mubr.f32.gmra.mrb[0].mxu0 %v5219
    %v5293 = vpop.f32.mrb[0].mxu0
    %v5294 = vadd.f32 0.0, %v5293
    %v5295 = vpop.f32.mrb[0].mxu0
    %5296 = vmatprep.mubr.f32.mxu0 0.0
    %5297 = vmatmul.mubr.f32.gmra.mrb[0].mxu0 %v5222
    %v5298 = vpop.f32.mrb[0].mxu0
    %v5299 = vadd.f32 0.0, %v5298
    %v5300 = vpop.f32.mrb[0].mxu0
    %5301 = vmatprep.mubr.f32.mxu0 0.0
    %5302 = vmatmul.mubr.f32.gmra.mrb[0].mxu0 %v5225
    %v5303 = vpop.f32.mrb[0].mxu0
    %v5304 = vadd.f32 0.0, %v5303
    %v5305 = vpop.f32.mrb[0].mxu0
    %5306 = vdwg.mxu0
    %v5308 = vsel %vm489, %v5115, 0
    %v5311 = vsel %vm489, %v5120, 0
    %v5314 = vsel %vm489, %v5125, 0
    %5316 = vmatprep.subr.mxu0 0.0
    %5317 = vmatpush1.msra.mxu0 %v5129
    %5318 = vmatprep.subr.mxu0 0.0
    %5319 = vmatpush1.msra.mxu0 %v5130
    %5320 = vmatprep.subr.mxu0 0.0
    %5321 = vmatpush1.msra.mxu0 %v5131
    %5322 = vmatprep.subr.mxu0 0.0
    %5323 = vmatpush1.msra.mxu0 %v5132
    %5324 = vmatprep.subr.mxu0 0.0
    %5325 = vmatpush1.msra.mxu0 0.0
    %5326 = vmatprep.subr.mxu0 0.0
    %5327 = vmatpush1.msra.mxu0 0.0
    %5328 = vmatprep.subr.mxu0 0.0
    %5329 = vmatpush1.msra.mxu0 0.0
    %5330 = vmatprep.subr.mxu0 0.0
    %5331 = vmatpush1.msra.mxu0 0.0
    %5332 = vmatprep.subr.mxu0 0.0
    %5333 = vmatpush1.msra.mxu0 0.0
    %5334 = vmatprep.subr.mxu0 0.0
    %5335 = vmatpush1.msra.mxu0 0.0
    %5336 = vmatprep.subr.mxu0 0.0
    %5337 = vmatpush1.msra.mxu0 0.0
    %5338 = vmatprep.subr.mxu0 0.0
    %5339 = vmatpush1.msra.mxu0 0.0
    %5340 = vmatprep.subr.mxu0 0.0
    %5341 = vmatpush1.msra.mxu0 0.0
    %5342 = vmatprep.subr.mxu0 0.0
    %5343 = vmatpush1.msra.mxu0 0.0
    %5344 = vmatprep.subr.mxu0 0.0
    %5345 = vmatpush1.msra.mxu0 0.0
    %5346 = vmatprep.subr.mxu0 0.0
    %5347 = vmatpush1.msra.mxu0 0.0
    %5348 = vmatprep.subr.mxu0 0.0
    %5349 = vmatpush1.msra.mxu0 0.0
    %5350 = vmatprep.subr.mxu0 0.0
    %5351 = vmatpush1.msra.mxu0 0.0
    %5352 = vmatprep.subr.mxu0 0.0
    %5353 = vmatpush1.msra.mxu0 0.0
    %5354 = vmatprep.subr.mxu0 0.0
    %5355 = vmatpush1.msra.mxu0 0.0
    %5356 = vmatprep.subr.mxu0 0.0
    %5357 = vmatpush1.msra.mxu0 0.0
    %5358 = vmatprep.subr.mxu0 0.0
    %5359 = vmatpush1.msra.mxu0 0.0
    %5360 = vmatprep.subr.mxu0 0.0
    %5361 = vmatpush1.msra.mxu0 0.0
    %5362 = vmatprep.subr.mxu0 0.0
    %5363 = vmatpush1.msra.mxu0 0.0
    %5364 = vmatprep.subr.mxu0 0.0
    %5365 = vmatpush1.msra.mxu0 0.0
    %5366 = vmatprep.subr.mxu0 0.0
    %5367 = vmatpush1.msra.mxu0 0.0
    %5368 = vmatprep.subr.mxu0 0.0
    %5369 = vmatpush1.msra.mxu0 0.0
    %5370 = vmatprep.subr.mxu0 0.0
    %5371 = vmatpush1.msra.mxu0 0.0
    %5372 = vmatprep.subr.mxu0 0.0
    %5373 = vmatpush1.msra.mxu0 0.0
    %5374 = vmatprep.subr.mxu0 0.0
    %5375 = vmatpush1.msra.mxu0 0.0
    %5376 = vmatprep.subr.mxu0 0.0
    %5377 = vmatpush1.msra.mxu0 0.0
    %5378 = vmatprep.subr.mxu0 0.0
    %5379 = vmatpush1.msra.mxu0 0.0
    %5380 = vmatprep.mubr.f32.mxu0 0.0
    %5381 = vmatmul.mubr.f32.gmra.mrb[0].mxu0 %v5308
    %v5382 = vpop.f32.mrb[0].mxu0
    %v5383 = vadd.f32 %v5294, %v5382
    %v5384 = vpop.f32.mrb[0].mxu0
    %5385 = vmatprep.mubr.f32.mxu0 0.0
    %5386 = vmatmul.mubr.f32.gmra.mrb[0].mxu0 %v5311
    %v5387 = vpop.f32.mrb[0].mxu0
    %v5388 = vadd.f32 %v5299, %v5387
    %v5389 = vpop.f32.mrb[0].mxu0
    %5390 = vmatprep.mubr.f32.mxu0 0.0
    %5391 = vmatmul.mubr.f32.gmra.mrb[0].mxu0 %v5314
    %v5392 = vpop.f32.mrb[0].mxu0
    %v5393 = vadd.f32 %v5304, %v5392
    %v5394 = vpop.f32.mrb[0].mxu0
    %5395 = vdwg.mxu0
    %5396 = vmatprep.subr.mxu0 0.0
    %5397 = vmatpush1.msra.mxu0 %v5040
    %5398 = vmatprep.subr.mxu0 0.0
    %5399 = vmatpush1.msra.mxu0 %v5041
    %5400 = vmatprep.subr.mxu0 0.0
    %5401 = vmatpush1.msra.mxu0 %v5042
    %5402 = vmatprep.subr.mxu0 0.0
    %5403 = vmatpush1.msra.mxu0 %v5043
    %5404 = vmatprep.subr.mxu0 0.0
    %5405 = vmatpush1.msra.mxu0 %v5044
    %5406 = vmatprep.subr.mxu0 0.0
    %5407 = vmatpush1.msra.mxu0 %v5045
    %5408 = vmatprep.subr.mxu0 0.0
    %5409 = vmatpush1.msra.mxu0 0.0
    %5410 = vmatprep.subr.mxu0 0.0
    %5411 = vmatpush1.msra.mxu0 0.0
    %5412 = vmatprep.subr.mxu0 0.0
    %5413 = vmatpush1.msra.mxu0 0.0
    %5414 = vmatprep.subr.mxu0 0.0
    %5415 = vmatpush1.msra.mxu0 0.0
    %5416 = vmatprep.subr.mxu0 0.0
    %5417 = vmatpush1.msra.mxu0 0.0
    %5418 = vmatprep.subr.mxu0 0.0
    %5419 = vmatpush1.msra.mxu0 0.0
    %5420 = vmatprep.subr.mxu0 0.0
    %5421 = vmatpush1.msra.mxu0 0.0
    %5422 = vmatprep.subr.mxu0 0.0
    %5423 = vmatpush1.msra.mxu0 0.0
    %5424 = vmatprep.subr.mxu0 0.0
    %5425 = vmatpush1.msra.mxu0 0.0
    %5426 = vmatprep.subr.mxu0 0.0
    %5427 = vmatpush1.msra.mxu0 0.0
    %5428 = vmatprep.subr.mxu0 0.0
    %5429 = vmatpush1.msra.mxu0 0.0
    %5430 = vmatprep.subr.mxu0 0.0
    %5431 = vmatpush1.msra.mxu0 0.0
    %5432 = vmatprep.subr.mxu0 0.0
    %5433 = vmatpush1.msra.mxu0 0.0
    %5434 = vmatprep.subr.mxu0 0.0
    %5435 = vmatpush1.msra.mxu0 0.0
    %5436 = vmatprep.subr.mxu0 0.0
    %5437 = vmatpush1.msra.mxu0 0.0
    %5438 = vmatprep.subr.mxu0 0.0
    %5439 = vmatpush1.msra.mxu0 0.0
    %5440 = vmatprep.subr.mxu0 0.0
    %5441 = vmatpush1.msra.mxu0 0.0
    %5442 = vmatprep.subr.mxu0 0.0
    %5443 = vmatpush1.msra.mxu0 0.0
    %5444 = vmatprep.subr.mxu0 0.0
    %5445 = vmatpush1.msra.mxu0 0.0
    %5446 = vmatprep.subr.mxu0 0.0
    %5447 = vmatpush1.msra.mxu0 0.0
    %5448 = vmatprep.subr.mxu0 0.0
    %5449 = vmatpush1.msra.mxu0 0.0
    %5450 = vmatprep.subr.mxu0 0.0
    %5451 = vmatpush1.msra.mxu0 0.0
    %5452 = vmatprep.subr.mxu0 0.0
    %5453 = vmatpush1.msra.mxu0 0.0
    %5454 = vmatprep.subr.mxu0 0.0
    %5455 = vmatpush1.msra.mxu0 0.0
    %5456 = vmatprep.subr.mxu0 0.0
    %5457 = vmatpush1.msra.mxu0 0.0
    %5458 = vmatprep.subr.mxu0 0.0
    %5459 = vmatpush1.msra.mxu0 0.0
    %5460 = vmatprep.mubr.f32.mxu0 0.0
    %5461 = vmatmul.mubr.f32.gmra.mrb[0].mxu0 %v2998
    %v5462 = vpop.f32.mrb[0].mxu0
    %v5463 = vadd.f32 0.0, %v5462
    %v5464 = vpop.f32.mrb[0].mxu0
    %5465 = vmatprep.mubr.f32.mxu0 0.0
    %5466 = vmatmul.mubr.f32.gmra.mrb[0].mxu0 %v3001
    %v5467 = vpop.f32.mrb[0].mxu0
    %v5468 = vadd.f32 0.0, %v5467
    %v5469 = vpop.f32.mrb[0].mxu0
    %5470 = vmatprep.mubr.f32.mxu0 0.0
    %5471 = vmatmul.mubr.f32.gmra.mrb[0].mxu0 %v3004
    %v5472 = vpop.f32.mrb[0].mxu0
    %v5473 = vadd.f32 0.0, %v5472
    %v5474 = vpop.f32.mrb[0].mxu0
    %5475 = vdwg.mxu0
    %s5476 = scalar_lea.vmem [#allocation10], 448
    %v5477 = vld [vmem:[%s5476] sm:$0xff]
    %v5478 = vld [vmem:[%s5476 + $0x8] sm:$0xff]
    %v5479 = vld [vmem:[%s5476 + $0x10] sm:$0xff]
    %v5480 = vld [vmem:[%s5476 + $0x18] sm:$0xff]
    %v5482 = vsel %vm489, %v5463, 0
    %v5485 = vsel %vm489, %v5468, 0
    %v5488 = vsel %vm489, %v5473, 0
    %5490 = vmatprep.subr.mxu0 0.0
    %5491 = vmatpush1.msra.mxu0 %v5477
    %5492 = vmatprep.subr.mxu0 0.0
    %5493 = vmatpush1.msra.mxu0 %v5478
    %5494 = vmatprep.subr.mxu0 0.0
    %5495 = vmatpush1.msra.mxu0 %v5479
    %5496 = vmatprep.subr.mxu0 0.0
    %5497 = vmatpush1.msra.mxu0 %v5480
    %5498 = vmatprep.subr.mxu0 0.0
    %5499 = vmatpush1.msra.mxu0 0.0
    %5500 = vmatprep.subr.mxu0 0.0
    %5501 = vmatpush1.msra.mxu0 0.0
    %5502 = vmatprep.subr.mxu0 0.0
    %5503 = vmatpush1.msra.mxu0 0.0
    %5504 = vmatprep.subr.mxu0 0.0
    %5505 = vmatpush1.msra.mxu0 0.0
    %5506 = vmatprep.subr.mxu0 0.0
    %5507 = vmatpush1.msra.mxu0 0.0
    %5508 = vmatprep.subr.mxu0 0.0
    %5509 = vmatpush1.msra.mxu0 0.0
    %5510 = vmatprep.subr.mxu0 0.0
    %5511 = vmatpush1.msra.mxu0 0.0
    %5512 = vmatprep.subr.mxu0 0.0
    %5513 = vmatpush1.msra.mxu0 0.0
    %5514 = vmatprep.subr.mxu0 0.0
    %5515 = vmatpush1.msra.mxu0 0.0
    %5516 = vmatprep.subr.mxu0 0.0
    %5517 = vmatpush1.msra.mxu0 0.0
    %5518 = vmatprep.subr.mxu0 0.0
    %5519 = vmatpush1.msra.mxu0 0.0
    %5520 = vmatprep.subr.mxu0 0.0
    %5521 = vmatpush1.msra.mxu0 0.0
    %5522 = vmatprep.subr.mxu0 0.0
    %5523 = vmatpush1.msra.mxu0 0.0
    %5524 = vmatprep.subr.mxu0 0.0
    %5525 = vmatpush1.msra.mxu0 0.0
    %5526 = vmatprep.subr.mxu0 0.0
    %5527 = vmatpush1.msra.mxu0 0.0
    %5528 = vmatprep.subr.mxu0 0.0
    %5529 = vmatpush1.msra.mxu0 0.0
    %5530 = vmatprep.subr.mxu0 0.0
    %5531 = vmatpush1.msra.mxu0 0.0
    %5532 = vmatprep.subr.mxu0 0.0
    %5533 = vmatpush1.msra.mxu0 0.0
    %5534 = vmatprep.subr.mxu0 0.0
    %5535 = vmatpush1.msra.mxu0 0.0
    %5536 = vmatprep.subr.mxu0 0.0
    %5537 = vmatpush1.msra.mxu0 0.0
    %5538 = vmatprep.subr.mxu0 0.0
    %5539 = vmatpush1.msra.mxu0 0.0
    %5540 = vmatprep.subr.mxu0 0.0
    %5541 = vmatpush1.msra.mxu0 0.0
    %5542 = vmatprep.subr.mxu0 0.0
    %5543 = vmatpush1.msra.mxu0 0.0
    %5544 = vmatprep.subr.mxu0 0.0
    %5545 = vmatpush1.msra.mxu0 0.0
    %5546 = vmatprep.subr.mxu0 0.0
    %5547 = vmatpush1.msra.mxu0 0.0
    %5548 = vmatprep.subr.mxu0 0.0
    %5549 = vmatpush1.msra.mxu0 0.0
    %5550 = vmatprep.subr.mxu0 0.0
    %5551 = vmatpush1.msra.mxu0 0.0
    %5552 = vmatprep.subr.mxu0 0.0
    %5553 = vmatpush1.msra.mxu0 0.0
    %5554 = vmatprep.mubr.f32.mxu0 0.0
    %5555 = vmatmul.mubr.f32.gmra.mrb[0].mxu0 %v5482
    %v5556 = vpop.f32.mrb[0].mxu0
    %v5557 = vadd.f32 0.0, %v5556
    %v5558 = vpop.f32.mrb[0].mxu0
    %5559 = vmatprep.mubr.f32.mxu0 0.0
    %5560 = vmatmul.mubr.f32.gmra.mrb[0].mxu0 %v5485
    %v5561 = vpop.f32.mrb[0].mxu0
    %v5562 = vadd.f32 0.0, %v5561
    %v5563 = vpop.f32.mrb[0].mxu0
    %5564 = vmatprep.mubr.f32.mxu0 0.0
    %5565 = vmatmul.mubr.f32.gmra.mrb[0].mxu0 %v5488
    %v5566 = vpop.f32.mrb[0].mxu0
    %v5567 = vadd.f32 0.0, %v5566
    %v5568 = vpop.f32.mrb[0].mxu0
    %5569 = vdwg.mxu0
    %v5570 = vadd.f32 %v5383, %v5557
    %v5571 = vadd.f32 %v5388, %v5562
    %v5572 = vadd.f32 %v5393, %v5567
    %v5573 = vlaneseq
    %v5574 = vshrl.u32 %v5573, 7
    %v5575 = vsub.s32 0, %v5574
    %v5576 = vrot.slane %v5047, %v5575
    %v5577 = vadd.f32 %v5570, %v5576
    %v5578 = vadd.f32 %v5571, %v5576
    %v5579 = vadd.f32 %v5572, %v5576
    %v5580 = vmax.f32 %v5577, 0.0
    %v5581 = vmax.f32 %v5578, 0.0
    %v5582 = vmax.f32 %v5579, 0.0
    %v5583 = vsel %vm489, %v5580, 0.0
    %5584 = vadd.xlane.f32.xlu0 %v5583
    %v5585 = vpop.xlane.xlu0 %5584
    %v5586 = vsel %vm489, %v5581, 0.0
    %5587 = vadd.xlane.f32.xlu0 %v5586
    %v5588 = vpop.xlane.xlu0 %5587
    %v5589 = vsel %vm489, %v5582, 0.0
    %5590 = vadd.xlane.f32.xlu0 %v5589
    %v5591 = vpop.xlane.xlu0 %5590
    %v5592 = vmul.f32 %v5585, %v502
    %v5593 = vmul.f32 %v5588, %v502
    %v5594 = vmul.f32 %v5591, %v502
    %v5595 = vsub.f32 %v5580, %v5592
    %v5596 = vsub.f32 %v5581, %v5593
    %v5597 = vsub.f32 %v5582, %v5594
    %v5598 = vmul.f32 %v5595, %v5595
    %v5599 = vmul.f32 %v5596, %v5596
    %v5600 = vmul.f32 %v5597, %v5597
    %v5601 = vsel %vm489, %v5598, 0.0
    %5602 = vadd.xlane.f32.xlu0 %v5601
    %v5603 = vpop.xlane.xlu0 %5602
    %v5604 = vsel %vm489, %v5599, 0.0
    %5605 = vadd.xlane.f32.xlu0 %v5604
    %v5606 = vpop.xlane.xlu0 %5605
    %v5607 = vsel %vm489, %v5600, 0.0
    %5608 = vadd.xlane.f32.xlu0 %v5607
    %v5609 = vpop.xlane.xlu0 %5608
    %v5610 = vmul.f32 %v5603, %v502
    %v5611 = vmul.f32 %v5606, %v502
    %v5612 = vmul.f32 %v5609, %v502
    %v5613 = vadd.f32 %v5610, 1e-05
    %v5614 = vadd.f32 %v5611, 1e-05
    %v5615 = vadd.f32 %v5612, 1e-05
    %v5616 = vrsqrt.pop %v5613
    %v5617 = vrsqrt.pop %v5614
    %v5618 = vrsqrt.pop %v5615
    %v5619 = vmul.f32 %v5595, %v5616
    %v5620 = vmul.f32 %v5596, %v5617
    %v5621 = vmul.f32 %v5597, %v5618
    %v5622 = vlaneseq
    %v5623 = vshrl.u32 %v5622, 7
    %v5624 = vsub.s32 1, %v5623
    %v5625 = vrot.slane %v5047, %v5624
    %v5626 = vmul.f32 %v5619, %v5625
    %v5627 = vmul.f32 %v5620, %v5625
    %v5628 = vmul.f32 %v5621, %v5625
    %v5629 = vlaneseq
    %v5630 = vshrl.u32 %v5629, 7
    %v5631 = vsub.s32 2, %v5630
    %v5632 = vrot.slane %v5047, %v5631
    %v5633 = vadd.f32 %v5626, %v5632
    %v5634 = vadd.f32 %v5627, %v5632
    %v5635 = vadd.f32 %v5628, %v5632
    %s5636 = scalar_lea.vmem [#allocation12], 256
    %v5637 = vld [vmem:[%s5636] sm:$0xff]
    %v5638 = vld [vmem:[%s5636 + $0x8] sm:$0xff]
    %v5639 = vld [vmem:[%s5636 + $0x10] sm:$0xff]
    %v5640 = vld [vmem:[%s5636 + $0x18] sm:$0xff]
    %s5641 = scalar_lea.vmem [#allocation12], 288
    %v5642 = vld [vmem:[%s5641] sm:$0xff]
    %v5643 = vld [vmem:[%s5641 + $0x8] sm:$0xff]
    %v5644 = vld [vmem:[%s5641 + $0x10] sm:$0xff]
    %v5645 = vld [vmem:[%s5641 + $0x18] sm:$0xff]
    %v5647 = vsel %vm489, %v5633, 0
    %v5650 = vsel %vm489, %v5634, 0
    %v5653 = vsel %vm489, %v5635, 0
    %5655 = vmatprep.subr.mxu0 0.0
    %5656 = vmatpush1.msra.mxu0 %v5642
    %5657 = vmatprep.subr.mxu0 0.0
    %5658 = vmatpush1.msra.mxu0 %v5643
    %5659 = vmatprep.subr.mxu0 0.0
    %5660 = vmatpush1.msra.mxu0 %v5644
    %5661 = vmatprep.subr.mxu0 0.0
    %5662 = vmatpush1.msra.mxu0 %v5645
    %5663 = vmatprep.subr.mxu0 0.0
    %5664 = vmatpush1.msra.mxu0 0.0
    %5665 = vmatprep.subr.mxu0 0.0
    %5666 = vmatpush1.msra.mxu0 0.0
    %5667 = vmatprep.subr.mxu0 0.0
    %5668 = vmatpush1.msra.mxu0 0.0
    %5669 = vmatprep.subr.mxu0 0.0
    %5670 = vmatpush1.msra.mxu0 0.0
    %5671 = vmatprep.subr.mxu0 0.0
    %5672 = vmatpush1.msra.mxu0 0.0
    %5673 = vmatprep.subr.mxu0 0.0
    %5674 = vmatpush1.msra.mxu0 0.0
    %5675 = vmatprep.subr.mxu0 0.0
    %5676 = vmatpush1.msra.mxu0 0.0
    %5677 = vmatprep.subr.mxu0 0.0
    %5678 = vmatpush1.msra.mxu0 0.0
    %5679 = vmatprep.subr.mxu0 0.0
    %5680 = vmatpush1.msra.mxu0 0.0
    %5681 = vmatprep.subr.mxu0 0.0
    %5682 = vmatpush1.msra.mxu0 0.0
    %5683 = vmatprep.subr.mxu0 0.0
    %5684 = vmatpush1.msra.mxu0 0.0
    %5685 = vmatprep.subr.mxu0 0.0
    %5686 = vmatpush1.msra.mxu0 0.0
    %5687 = vmatprep.subr.mxu0 0.0
    %5688 = vmatpush1.msra.mxu0 0.0
    %5689 = vmatprep.subr.mxu0 0.0
    %5690 = vmatpush1.msra.mxu0 0.0
    %5691 = vmatprep.subr.mxu0 0.0
    %5692 = vmatpush1.msra.mxu0 0.0
    %5693 = vmatprep.subr.mxu0 0.0
    %5694 = vmatpush1.msra.mxu0 0.0
    %5695 = vmatprep.subr.mxu0 0.0
    %5696 = vmatpush1.msra.mxu0 0.0
    %5697 = vmatprep.subr.mxu0 0.0
    %5698 = vmatpush1.msra.mxu0 0.0
    %5699 = vmatprep.subr.mxu0 0.0
    %5700 = vmatpush1.msra.mxu0 0.0
    %5701 = vmatprep.subr.mxu0 0.0
    %5702 = vmatpush1.msra.mxu0 0.0
    %5703 = vmatprep.subr.mxu0 0.0
    %5704 = vmatpush1.msra.mxu0 0.0
    %5705 = vmatprep.subr.mxu0 0.0
    %5706 = vmatpush1.msra.mxu0 0.0
    %5707 = vmatprep.subr.mxu0 0.0
    %5708 = vmatpush1.msra.mxu0 0.0
    %5709 = vmatprep.subr.mxu0 0.0
    %5710 = vmatpush1.msra.mxu0 0.0
    %5711 = vmatprep.subr.mxu0 0.0
    %5712 = vmatpush1.msra.mxu0 0.0
    %5713 = vmatprep.subr.mxu0 0.0
    %5714 = vmatpush1.msra.mxu0 0.0
    %5715 = vmatprep.subr.mxu0 0.0
    %5716 = vmatpush1.msra.mxu0 0.0
    %5717 = vmatprep.subr.mxu0 0.0
    %5718 = vmatpush1.msra.mxu0 0.0
    %5719 = vmatprep.mubr.f32.mxu0 0.0
    %5720 = vmatmul.mubr.f32.gmra.mrb[0].mxu0 %v5647
    %v5721 = vpop.f32.mrb[0].mxu0
    %v5722 = vadd.f32 0.0, %v5721
    %v5723 = vpop.f32.mrb[0].mxu0
    %5724 = vmatprep.mubr.f32.mxu0 0.0
    %5725 = vmatmul.mubr.f32.gmra.mrb[0].mxu0 %v5650
    %v5726 = vpop.f32.mrb[0].mxu0
    %v5727 = vadd.f32 0.0, %v5726
    %v5728 = vpop.f32.mrb[0].mxu0
    %5729 = vmatprep.mubr.f32.mxu0 0.0
    %5730 = vmatmul.mubr.f32.gmra.mrb[0].mxu0 %v5653
    %v5731 = vpop.f32.mrb[0].mxu0
    %v5732 = vadd.f32 0.0, %v5731
    %v5733 = vpop.f32.mrb[0].mxu0
    %5734 = vdwg.mxu0
    %5735 = vmatprep.subr.mxu0 0.0
    %5736 = vmatpush1.msra.mxu0 %v5722
    %5737 = vmatprep.subr.mxu0 0.0
    %5738 = vmatpush1.msra.mxu0 %v5727
    %5739 = vmatprep.subr.mxu0 0.0
    %5740 = vmatpush1.msra.mxu0 %v5732
    %5741 = vmatprep.subr.mxu0 0.0
    %5742 = vmatpush1.msra.mxu0 0.0
    %5743 = vmatprep.subr.mxu0 0.0
    %5744 = vmatpush1.msra.mxu0 0.0
    %5745 = vmatprep.subr.mxu0 0.0
    %5746 = vmatpush1.msra.mxu0 0.0
    %5747 = vmatprep.subr.mxu0 0.0
    %5748 = vmatpush1.msra.mxu0 0.0
    %5749 = vmatprep.subr.mxu0 0.0
    %5750 = vmatpush1.msra.mxu0 0.0
    %5751 = vmatprep.subr.mxu0 0.0
    %5752 = vmatpush1.msra.mxu0 0.0
    %5753 = vmatprep.subr.mxu0 0.0
    %5754 = vmatpush1.msra.mxu0 0.0
    %5755 = vmatprep.subr.mxu0 0.0
    %5756 = vmatpush1.msra.mxu0 0.0
    %5757 = vmatprep.subr.mxu0 0.0
    %5758 = vmatpush1.msra.mxu0 0.0
    %5759 = vmatprep.subr.mxu0 0.0
    %5760 = vmatpush1.msra.mxu0 0.0
    %5761 = vmatprep.subr.mxu0 0.0
    %5762 = vmatpush1.msra.mxu0 0.0
    %5763 = vmatprep.subr.mxu0 0.0
    %5764 = vmatpush1.msra.mxu0 0.0
    %5765 = vmatprep.subr.mxu0 0.0
    %5766 = vmatpush1.msra.mxu0 0.0
    %5767 = vmatprep.subr.mxu0 0.0
    %5768 = vmatpush1.msra.mxu0 0.0
    %5769 = vmatprep.subr.mxu0 0.0
    %5770 = vmatpush1.msra.mxu0 0.0
    %5771 = vmatprep.subr.mxu0 0.0
    %5772 = vmatpush1.msra.mxu0 0.0
    %5773 = vmatprep.subr.mxu0 0.0
    %5774 = vmatpush1.msra.mxu0 0.0
    %5775 = vmatprep.subr.mxu0 0.0
    %5776 = vmatpush1.msra.mxu0 0.0
    %5777 = vmatprep.subr.mxu0 0.0
    %5778 = vmatpush1.msra.mxu0 0.0
    %5779 = vmatprep.subr.mxu0 0.0
    %5780 = vmatpush1.msra.mxu0 0.0
    %5781 = vmatprep.subr.mxu0 0.0
    %5782 = vmatpush1.msra.mxu0 0.0
    %5783 = vmatprep.subr.mxu0 0.0
    %5784 = vmatpush1.msra.mxu0 0.0
    %5785 = vmatprep.subr.mxu0 0.0
    %5786 = vmatpush1.msra.mxu0 0.0
    %5787 = vmatprep.subr.mxu0 0.0
    %5788 = vmatpush1.msra.mxu0 0.0
    %5789 = vmatprep.subr.mxu0 0.0
    %5790 = vmatpush1.msra.mxu0 0.0
    %5791 = vmatprep.subr.mxu0 0.0
    %5792 = vmatpush1.msra.mxu0 0.0
    %5793 = vmatprep.subr.mxu0 0.0
    %5794 = vmatpush1.msra.mxu0 0.0
    %5795 = vmatprep.subr.mxu0 0.0
    %5796 = vmatpush1.msra.mxu0 0.0
    %5797 = vmatprep.subr.mxu0 0.0
    %5798 = vmatpush1.msra.mxu0 0.0
    %5799 = vmatprep.mubr.f32.mxu0 0.0
    %5800 = vmatmul.mubr.f32.gmra.mrb[0].mxu0 %v3353
    %v5801 = vpop.f32.mrb[0].mxu0
    %v5802 = vadd.f32 0.0, %v5801
    %v5803 = vpop.f32.mrb[0].mxu0
    %5804 = vmatprep.mubr.f32.mxu0 0.0
    %5805 = vmatmul.mubr.f32.gmra.mrb[0].mxu0 %v3356
    %v5806 = vpop.f32.mrb[0].mxu0
    %v5807 = vadd.f32 0.0, %v5806
    %v5808 = vpop.f32.mrb[0].mxu0
    %5809 = vmatprep.mubr.f32.mxu0 0.0
    %5810 = vmatmul.mubr.f32.gmra.mrb[0].mxu0 %v3359
    %v5811 = vpop.f32.mrb[0].mxu0
    %v5812 = vadd.f32 0.0, %v5811
    %v5813 = vpop.f32.mrb[0].mxu0
    %5814 = vmatprep.mubr.f32.mxu0 0.0
    %5815 = vmatmul.mubr.f32.gmra.mrb[0].mxu0 %v3362
    %v5816 = vpop.f32.mrb[0].mxu0
    %v5817 = vadd.f32 0.0, %v5816
    %v5818 = vpop.f32.mrb[0].mxu0
    %5819 = vmatprep.mubr.f32.mxu0 0.0
    %5820 = vmatmul.mubr.f32.gmra.mrb[0].mxu0 %v3365
    %v5821 = vpop.f32.mrb[0].mxu0
    %v5822 = vadd.f32 0.0, %v5821
    %v5823 = vpop.f32.mrb[0].mxu0
    %5824 = vmatprep.mubr.f32.mxu0 0.0
    %5825 = vmatmul.mubr.f32.gmra.mrb[0].mxu0 %v3368
    %v5826 = vpop.f32.mrb[0].mxu0
    %v5827 = vadd.f32 0.0, %v5826
    %v5828 = vpop.f32.mrb[0].mxu0
    %5829 = vdwg.mxu0
    %v5831 = vsel %vm489, %v5040, 0
    %v5834 = vsel %vm489, %v5041, 0
    %v5837 = vsel %vm489, %v5042, 0
    %v5840 = vsel %vm489, %v5043, 0
    %v5843 = vsel %vm489, %v5044, 0
    %v5846 = vsel %vm489, %v5045, 0
    %5848 = vmatprep.subr.mxu0 0.0
    %5849 = vmatpush1.msra.mxu0 %v5637
    %5850 = vmatprep.subr.mxu0 0.0
    %5851 = vmatpush1.msra.mxu0 %v5638
    %5852 = vmatprep.subr.mxu0 0.0
    %5853 = vmatpush1.msra.mxu0 %v5639
    %5854 = vmatprep.subr.mxu0 0.0
    %5855 = vmatpush1.msra.mxu0 %v5640
    %5856 = vmatprep.subr.mxu0 0.0
    %5857 = vmatpush1.msra.mxu0 0.0
    %5858 = vmatprep.subr.mxu0 0.0
    %5859 = vmatpush1.msra.mxu0 0.0
    %5860 = vmatprep.subr.mxu0 0.0
    %5861 = vmatpush1.msra.mxu0 0.0
    %5862 = vmatprep.subr.mxu0 0.0
    %5863 = vmatpush1.msra.mxu0 0.0
    %5864 = vmatprep.subr.mxu0 0.0
    %5865 = vmatpush1.msra.mxu0 0.0
    %5866 = vmatprep.subr.mxu0 0.0
    %5867 = vmatpush1.msra.mxu0 0.0
    %5868 = vmatprep.subr.mxu0 0.0
    %5869 = vmatpush1.msra.mxu0 0.0
    %5870 = vmatprep.subr.mxu0 0.0
    %5871 = vmatpush1.msra.mxu0 0.0
    %5872 = vmatprep.subr.mxu0 0.0
    %5873 = vmatpush1.msra.mxu0 0.0
    %5874 = vmatprep.subr.mxu0 0.0
    %5875 = vmatpush1.msra.mxu0 0.0
    %5876 = vmatprep.subr.mxu0 0.0
    %5877 = vmatpush1.msra.mxu0 0.0
    %5878 = vmatprep.subr.mxu0 0.0
    %5879 = vmatpush1.msra.mxu0 0.0
    %5880 = vmatprep.subr.mxu0 0.0
    %5881 = vmatpush1.msra.mxu0 0.0
    %5882 = vmatprep.subr.mxu0 0.0
    %5883 = vmatpush1.msra.mxu0 0.0
    %5884 = vmatprep.subr.mxu0 0.0
    %5885 = vmatpush1.msra.mxu0 0.0
    %5886 = vmatprep.subr.mxu0 0.0
    %5887 = vmatpush1.msra.mxu0 0.0
    %5888 = vmatprep.subr.mxu0 0.0
    %5889 = vmatpush1.msra.mxu0 0.0
    %5890 = vmatprep.subr.mxu0 0.0
    %5891 = vmatpush1.msra.mxu0 0.0
    %5892 = vmatprep.subr.mxu0 0.0
    %5893 = vmatpush1.msra.mxu0 0.0
    %5894 = vmatprep.subr.mxu0 0.0
    %5895 = vmatpush1.msra.mxu0 0.0
    %5896 = vmatprep.subr.mxu0 0.0
    %5897 = vmatpush1.msra.mxu0 0.0
    %5898 = vmatprep.subr.mxu0 0.0
    %5899 = vmatpush1.msra.mxu0 0.0
    %5900 = vmatprep.subr.mxu0 0.0
    %5901 = vmatpush1.msra.mxu0 0.0
    %5902 = vmatprep.subr.mxu0 0.0
    %5903 = vmatpush1.msra.mxu0 0.0
    %5904 = vmatprep.subr.mxu0 0.0
    %5905 = vmatpush1.msra.mxu0 0.0
    %5906 = vmatprep.subr.mxu0 0.0
    %5907 = vmatpush1.msra.mxu0 0.0
    %5908 = vmatprep.subr.mxu0 0.0
    %5909 = vmatpush1.msra.mxu0 0.0
    %5910 = vmatprep.subr.mxu0 0.0
    %5911 = vmatpush1.msra.mxu0 0.0
    %5912 = vmatprep.mubr.f32.mxu0 0.0
    %5913 = vmatmul.mubr.f32.gmra.mrb[0].mxu0 %v5831
    %v5914 = vpop.f32.mrb[0].mxu0
    %v5915 = vadd.f32 %v5802, %v5914
    %v5916 = vpop.f32.mrb[0].mxu0
    %5917 = vmatprep.mubr.f32.mxu0 0.0
    %5918 = vmatmul.mubr.f32.gmra.mrb[0].mxu0 %v5834
    %v5919 = vpop.f32.mrb[0].mxu0
    %v5920 = vadd.f32 %v5807, %v5919
    %v5921 = vpop.f32.mrb[0].mxu0
    %5922 = vmatprep.mubr.f32.mxu0 0.0
    %5923 = vmatmul.mubr.f32.gmra.mrb[0].mxu0 %v5837
    %v5924 = vpop.f32.mrb[0].mxu0
    %v5925 = vadd.f32 %v5812, %v5924
    %v5926 = vpop.f32.mrb[0].mxu0
    %5927 = vmatprep.mubr.f32.mxu0 0.0
    %5928 = vmatmul.mubr.f32.gmra.mrb[0].mxu0 %v5840
    %v5929 = vpop.f32.mrb[0].mxu0
    %v5930 = vadd.f32 %v5817, %v5929
    %v5931 = vpop.f32.mrb[0].mxu0
    %5932 = vmatprep.mubr.f32.mxu0 0.0
    %5933 = vmatmul.mubr.f32.gmra.mrb[0].mxu0 %v5843
    %v5934 = vpop.f32.mrb[0].mxu0
    %v5935 = vadd.f32 %v5822, %v5934
    %v5936 = vpop.f32.mrb[0].mxu0
    %5937 = vmatprep.mubr.f32.mxu0 0.0
    %5938 = vmatmul.mubr.f32.gmra.mrb[0].mxu0 %v5846
    %v5939 = vpop.f32.mrb[0].mxu0
    %v5940 = vadd.f32 %v5827, %v5939
    %v5941 = vpop.f32.mrb[0].mxu0
    %5942 = vdwg.mxu0
    %v5943 = vlaneseq
    %v5944 = vshrl.u32 %v5943, 7
    %v5945 = vsub.s32 3, %v5944
    %v5946 = vrot.slane %v5047, %v5945
    %v5947 = vadd.f32 %v5915, %v5946
    %v5948 = vadd.f32 %v5920, %v5946
    %v5949 = vadd.f32 %v5925, %v5946
    %v5950 = vadd.f32 %v5930, %v5946
    %v5951 = vadd.f32 %v5935, %v5946
    %v5952 = vadd.f32 %v5940, %v5946
    %v5953 = vmax.f32 %v5947, 0.0
    %v5954 = vmax.f32 %v5948, 0.0
    %v5955 = vmax.f32 %v5949, 0.0
    %v5956 = vmax.f32 %v5950, 0.0
    %v5957 = vmax.f32 %v5951, 0.0
    %v5958 = vmax.f32 %v5952, 0.0
    %v5959 = vsel %vm489, %v5953, 0.0
    %5960 = vadd.xlane.f32.xlu0 %v5959
    %v5961 = vpop.xlane.xlu0 %5960
    %v5962 = vsel %vm489, %v5954, 0.0
    %5963 = vadd.xlane.f32.xlu0 %v5962
    %v5964 = vpop.xlane.xlu0 %5963
    %v5965 = vsel %vm489, %v5955, 0.0
    %5966 = vadd.xlane.f32.xlu0 %v5965
    %v5967 = vpop.xlane.xlu0 %5966
    %v5968 = vsel %vm489, %v5956, 0.0
    %5969 = vadd.xlane.f32.xlu0 %v5968
    %v5970 = vpop.xlane.xlu0 %5969
    %v5971 = vsel %vm489, %v5957, 0.0
    %5972 = vadd.xlane.f32.xlu0 %v5971
    %v5973 = vpop.xlane.xlu0 %5972
    %v5974 = vsel %vm489, %v5958, 0.0
    %5975 = vadd.xlane.f32.xlu0 %v5974
    %v5976 = vpop.xlane.xlu0 %5975
    %v5977 = vmul.f32 %v5961, %v502
    %v5978 = vmul.f32 %v5964, %v502
    %v5979 = vmul.f32 %v5967, %v502
    %v5980 = vmul.f32 %v5970, %v502
    %v5981 = vmul.f32 %v5973, %v502
    %v5982 = vmul.f32 %v5976, %v502
    %v5983 = vsub.f32 %v5953, %v5977
    %v5984 = vsub.f32 %v5954, %v5978
    %v5985 = vsub.f32 %v5955, %v5979
    %v5986 = vsub.f32 %v5956, %v5980
    %v5987 = vsub.f32 %v5957, %v5981
    %v5988 = vsub.f32 %v5958, %v5982
    %v5989 = vmul.f32 %v5983, %v5983
    %v5990 = vmul.f32 %v5984, %v5984
    %v5991 = vmul.f32 %v5985, %v5985
    %v5992 = vmul.f32 %v5986, %v5986
    %v5993 = vmul.f32 %v5987, %v5987
    %v5994 = vmul.f32 %v5988, %v5988
    %v5995 = vsel %vm489, %v5989, 0.0
    %5996 = vadd.xlane.f32.xlu0 %v5995
    %v5997 = vpop.xlane.xlu0 %5996
    %v5998 = vsel %vm489, %v5990, 0.0
    %5999 = vadd.xlane.f32.xlu0 %v5998
    %v6000 = vpop.xlane.xlu0 %5999
    %v6001 = vsel %vm489, %v5991, 0.0
    %6002 = vadd.xlane.f32.xlu0 %v6001
    %v6003 = vpop.xlane.xlu0 %6002
    %v6004 = vsel %vm489, %v5992, 0.0
    %6005 = vadd.xlane.f32.xlu0 %v6004
    %v6006 = vpop.xlane.xlu0 %6005
    %v6007 = vsel %vm489, %v5993, 0.0
    %6008 = vadd.xlane.f32.xlu0 %v6007
    %v6009 = vpop.xlane.xlu0 %6008
    %v6010 = vsel %vm489, %v5994, 0.0
    %6011 = vadd.xlane.f32.xlu0 %v6010
    %v6012 = vpop.xlane.xlu0 %6011
    %v6013 = vmul.f32 %v5997, %v502
    %v6014 = vmul.f32 %v6000, %v502
    %v6015 = vmul.f32 %v6003, %v502
    %v6016 = vmul.f32 %v6006, %v502
    %v6017 = vmul.f32 %v6009, %v502
    %v6018 = vmul.f32 %v6012, %v502
    %v6019 = vadd.f32 %v6013, 1e-05
    %v6020 = vadd.f32 %v6014, 1e-05
    %v6021 = vadd.f32 %v6015, 1e-05
    %v6022 = vadd.f32 %v6016, 1e-05
    %v6023 = vadd.f32 %v6017, 1e-05
    %v6024 = vadd.f32 %v6018, 1e-05
    %v6025 = vrsqrt.pop %v6019
    %v6026 = vrsqrt.pop %v6020
    %v6027 = vrsqrt.pop %v6021
    %v6028 = vrsqrt.pop %v6022
    %v6029 = vrsqrt.pop %v6023
    %v6030 = vrsqrt.pop %v6024
    %v6031 = vmul.f32 %v5983, %v6025
    %v6032 = vmul.f32 %v5984, %v6026
    %v6033 = vmul.f32 %v5985, %v6027
    %v6034 = vmul.f32 %v5986, %v6028
    %v6035 = vmul.f32 %v5987, %v6029
    %v6036 = vmul.f32 %v5988, %v6030
    %v6037 = vlaneseq
    %v6038 = vshrl.u32 %v6037, 7
    %v6039 = vsub.s32 4, %v6038
    %v6040 = vrot.slane %v5047, %v6039
    %v6041 = vmul.f32 %v6031, %v6040
    %v6042 = vmul.f32 %v6032, %v6040
    %v6043 = vmul.f32 %v6033, %v6040
    %v6044 = vmul.f32 %v6034, %v6040
    %v6045 = vmul.f32 %v6035, %v6040
    %v6046 = vmul.f32 %v6036, %v6040
    %v6047 = vlaneseq
    %v6048 = vshrl.u32 %v6047, 7
    %v6049 = vsub.s32 5, %v6048
    %v6050 = vrot.slane %v5047, %v6049
    %v6051 = vadd.f32 %v6041, %v6050
    %v6052 = vadd.f32 %v6042, %v6050
    %v6053 = vadd.f32 %v6043, %v6050
    %v6054 = vadd.f32 %v6044, %v6050
    %v6055 = vadd.f32 %v6045, %v6050
    %v6056 = vadd.f32 %v6046, %v6050
    %6057 = vmatprep.subr.mxu0 0.0
    %6058 = vmatpush1.msra.mxu0 %v6051
    %6059 = vmatprep.subr.mxu0 0.0
    %6060 = vmatpush1.msra.mxu0 %v6052
    %6061 = vmatprep.subr.mxu0 0.0
    %6062 = vmatpush1.msra.mxu0 %v6053
    %6063 = vmatprep.subr.mxu0 0.0
    %6064 = vmatpush1.msra.mxu0 %v6054
    %6065 = vmatprep.subr.mxu0 0.0
    %6066 = vmatpush1.msra.mxu0 %v6055
    %6067 = vmatprep.subr.mxu0 0.0
    %6068 = vmatpush1.msra.mxu0 %v6056
    %6069 = vmatprep.subr.mxu0 0.0
    %6070 = vmatpush1.msra.mxu0 0.0
    %6071 = vmatprep.subr.mxu0 0.0
    %6072 = vmatpush1.msra.mxu0 0.0
    %6073 = vmatprep.subr.mxu0 0.0
    %6074 = vmatpush1.msra.mxu0 0.0
    %6075 = vmatprep.subr.mxu0 0.0
    %6076 = vmatpush1.msra.mxu0 0.0
    %6077 = vmatprep.subr.mxu0 0.0
    %6078 = vmatpush1.msra.mxu0 0.0
    %6079 = vmatprep.subr.mxu0 0.0
    %6080 = vmatpush1.msra.mxu0 0.0
    %6081 = vmatprep.subr.mxu0 0.0
    %6082 = vmatpush1.msra.mxu0 0.0
    %6083 = vmatprep.subr.mxu0 0.0
    %6084 = vmatpush1.msra.mxu0 0.0
    %6085 = vmatprep.subr.mxu0 0.0
    %6086 = vmatpush1.msra.mxu0 0.0
    %6087 = vmatprep.subr.mxu0 0.0
    %6088 = vmatpush1.msra.mxu0 0.0
    %6089 = vmatprep.subr.mxu0 0.0
    %6090 = vmatpush1.msra.mxu0 0.0
    %6091 = vmatprep.subr.mxu0 0.0
    %6092 = vmatpush1.msra.mxu0 0.0
    %6093 = vmatprep.subr.mxu0 0.0
    %6094 = vmatpush1.msra.mxu0 0.0
    %6095 = vmatprep.subr.mxu0 0.0
    %6096 = vmatpush1.msra.mxu0 0.0
    %6097 = vmatprep.subr.mxu0 0.0
    %6098 = vmatpush1.msra.mxu0 0.0
    %6099 = vmatprep.subr.mxu0 0.0
    %6100 = vmatpush1.msra.mxu0 0.0
    %6101 = vmatprep.subr.mxu0 0.0
    %6102 = vmatpush1.msra.mxu0 0.0
    %6103 = vmatprep.subr.mxu0 0.0
    %6104 = vmatpush1.msra.mxu0 0.0
    %6105 = vmatprep.subr.mxu0 0.0
    %6106 = vmatpush1.msra.mxu0 0.0
    %6107 = vmatprep.subr.mxu0 0.0
    %6108 = vmatpush1.msra.mxu0 0.0
    %6109 = vmatprep.subr.mxu0 0.0
    %6110 = vmatpush1.msra.mxu0 0.0
    %6111 = vmatprep.subr.mxu0 0.0
    %6112 = vmatpush1.msra.mxu0 0.0
    %6113 = vmatprep.subr.mxu0 0.0
    %6114 = vmatpush1.msra.mxu0 0.0
    %6115 = vmatprep.subr.mxu0 0.0
    %6116 = vmatpush1.msra.mxu0 0.0
    %6117 = vmatprep.subr.mxu0 0.0
    %6118 = vmatpush1.msra.mxu0 0.0
    %6119 = vmatprep.subr.mxu0 0.0
    %6120 = vmatpush1.msra.mxu0 0.0
    %6121 = vmatprep.mubr.f32.mxu0 0.0
    %6122 = vmatmul.mubr.f32.gmra.mrb[0].mxu0 %v3697
    %v6123 = vpop.f32.mrb[0].mxu0
    %v6124 = vadd.f32 0.0, %v6123
    %v6125 = vpop.f32.mrb[0].mxu0
    %6126 = vmatprep.mubr.f32.mxu0 0.0
    %6127 = vmatmul.mubr.f32.gmra.mrb[0].mxu0 %v3700
    %v6128 = vpop.f32.mrb[0].mxu0
    %v6129 = vadd.f32 0.0, %v6128
    %v6130 = vpop.f32.mrb[0].mxu0
    %6131 = vmatprep.mubr.f32.mxu0 0.0
    %6132 = vmatmul.mubr.f32.gmra.mrb[0].mxu0 %v3703
    %v6133 = vpop.f32.mrb[0].mxu0
    %v6134 = vadd.f32 0.0, %v6133
    %v6135 = vpop.f32.mrb[0].mxu0
    %6136 = vmatprep.mubr.f32.mxu0 0.0
    %6137 = vmatmul.mubr.f32.gmra.mrb[0].mxu0 %v3706
    %v6138 = vpop.f32.mrb[0].mxu0
    %v6139 = vadd.f32 0.0, %v6138
    %v6140 = vpop.f32.mrb[0].mxu0
    %6141 = vdwg.mxu0
    %s6142 = scalar_lea.vmem %s18, 2
    %v6143 = vld [vmem:[%s6142] sm:$0x3]
    %v6144 = vadd.f32 %v5036, %v6124
    %v6145 = vadd.f32 %v5037, %v6129
    %v6146 = vadd.f32 %v5038, %v6134
    %v6147 = vadd.f32 %v5039, %v6139
    %s6148 = scalar_lea.vmem [#allocation22], 64
    %v6149 = vld [vmem:[%s6148] sm:$0xff]
    %v6150 = vld [vmem:[%s6148 + $0x8] sm:$0xff]
    %v6151 = vld [vmem:[%s6148 + $0x10] sm:$0xff]
    %v6152 = vld [vmem:[%s6148 + $0x18] sm:$0xff]
    %v6153 = vlaneseq
    %v6154 = vshrl.u32 %v6153, 7
    %v6155 = vsub.s32 0, %v6154
    %v6156 = vrot.slane %v6143, %v6155
    %v6158 = vsel %vm489, %v6144, 0
    %v6161 = vsel %vm489, %v6145, 0
    %v6164 = vsel %vm489, %v6146, 0
    %v6167 = vsel %vm489, %v6147, 0
    %6169 = vmatprep.subr.mxu0 0.0
    %6170 = vmatpush1.msra.mxu0 %v6149
    %6171 = vmatprep.subr.mxu0 0.0
    %6172 = vmatpush1.msra.mxu0 %v6150
    %6173 = vmatprep.subr.mxu0 0.0
    %6174 = vmatpush1.msra.mxu0 %v6151
    %6175 = vmatprep.subr.mxu0 0.0
    %6176 = vmatpush1.msra.mxu0 %v6152
    %6177 = vmatprep.subr.mxu0 0.0
    %6178 = vmatpush1.msra.mxu0 0.0
    %6179 = vmatprep.subr.mxu0 0.0
    %6180 = vmatpush1.msra.mxu0 0.0
    %6181 = vmatprep.subr.mxu0 0.0
    %6182 = vmatpush1.msra.mxu0 0.0
    %6183 = vmatprep.subr.mxu0 0.0
    %6184 = vmatpush1.msra.mxu0 0.0
    %6185 = vmatprep.subr.mxu0 0.0
    %6186 = vmatpush1.msra.mxu0 0.0
    %6187 = vmatprep.subr.mxu0 0.0
    %6188 = vmatpush1.msra.mxu0 0.0
    %6189 = vmatprep.subr.mxu0 0.0
    %6190 = vmatpush1.msra.mxu0 0.0
    %6191 = vmatprep.subr.mxu0 0.0
    %6192 = vmatpush1.msra.mxu0 0.0
    %6193 = vmatprep.subr.mxu0 0.0
    %6194 = vmatpush1.msra.mxu0 0.0
    %6195 = vmatprep.subr.mxu0 0.0
    %6196 = vmatpush1.msra.mxu0 0.0
    %6197 = vmatprep.subr.mxu0 0.0
    %6198 = vmatpush1.msra.mxu0 0.0
    %6199 = vmatprep.subr.mxu0 0.0
    %6200 = vmatpush1.msra.mxu0 0.0
    %6201 = vmatprep.subr.mxu0 0.0
    %6202 = vmatpush1.msra.mxu0 0.0
    %6203 = vmatprep.subr.mxu0 0.0
    %6204 = vmatpush1.msra.mxu0 0.0
    %6205 = vmatprep.subr.mxu0 0.0
    %6206 = vmatpush1.msra.mxu0 0.0
    %6207 = vmatprep.subr.mxu0 0.0
    %6208 = vmatpush1.msra.mxu0 0.0
    %6209 = vmatprep.subr.mxu0 0.0
    %6210 = vmatpush1.msra.mxu0 0.0
    %6211 = vmatprep.subr.mxu0 0.0
    %6212 = vmatpush1.msra.mxu0 0.0
    %6213 = vmatprep.subr.mxu0 0.0
    %6214 = vmatpush1.msra.mxu0 0.0
    %6215 = vmatprep.subr.mxu0 0.0
    %6216 = vmatpush1.msra.mxu0 0.0
    %6217 = vmatprep.subr.mxu0 0.0
    %6218 = vmatpush1.msra.mxu0 0.0
    %6219 = vmatprep.subr.mxu0 0.0
    %6220 = vmatpush1.msra.mxu0 0.0
    %6221 = vmatprep.subr.mxu0 0.0
    %6222 = vmatpush1.msra.mxu0 0.0
    %6223 = vmatprep.subr.mxu0 0.0
    %6224 = vmatpush1.msra.mxu0 0.0
    %6225 = vmatprep.subr.mxu0 0.0
    %6226 = vmatpush1.msra.mxu0 0.0
    %6227 = vmatprep.subr.mxu0 0.0
    %6228 = vmatpush1.msra.mxu0 0.0
    %6229 = vmatprep.subr.mxu0 0.0
    %6230 = vmatpush1.msra.mxu0 0.0
    %6231 = vmatprep.subr.mxu0 0.0
    %6232 = vmatpush1.msra.mxu0 0.0
    %6233 = vmatprep.mubr.f32.mxu0 0.0
    %6234 = vmatmul.mubr.f32.gmra.mrb[0].mxu0 %v6158
    %v6235 = vpop.f32.mrb[0].mxu0
    %v6236 = vadd.f32 %v6156, %v6235
    %v6237 = vpop.f32.mrb[0].mxu0
    %6238 = vmatprep.mubr.f32.mxu0 0.0
    %6239 = vmatmul.mubr.f32.gmra.mrb[0].mxu0 %v6161
    %v6240 = vpop.f32.mrb[0].mxu0
    %v6241 = vadd.f32 %v6156, %v6240
    %v6242 = vpop.f32.mrb[0].mxu0
    %6243 = vmatprep.mubr.f32.mxu0 0.0
    %6244 = vmatmul.mubr.f32.gmra.mrb[0].mxu0 %v6164
    %v6245 = vpop.f32.mrb[0].mxu0
    %v6246 = vadd.f32 %v6156, %v6245
    %v6247 = vpop.f32.mrb[0].mxu0
    %6248 = vmatprep.mubr.f32.mxu0 0.0
    %6249 = vmatmul.mubr.f32.gmra.mrb[0].mxu0 %v6167
    %v6250 = vpop.f32.mrb[0].mxu0
    %v6251 = vadd.f32 %v6156, %v6250
    %v6252 = vpop.f32.mrb[0].mxu0
    %6253 = vdwg.mxu0
    %s6254 = scalar_lea.vmem [#allocation13], 16
    %v6255 = vld [vmem:[%s6254] sm:$0x3f]
    %6256 = vmatprep.subr.mxu0 0.0
    %6257 = vmatpush1.msra.mxu0 %v6236
    %6258 = vmatprep.subr.mxu0 0.0
    %6259 = vmatpush1.msra.mxu0 %v6241
    %6260 = vmatprep.subr.mxu0 0.0
    %6261 = vmatpush1.msra.mxu0 %v6246
    %6262 = vmatprep.subr.mxu0 0.0
    %6263 = vmatpush1.msra.mxu0 %v6251
    %6264 = vmatprep.subr.mxu0 0.0
    %6265 = vmatpush1.msra.mxu0 0.0
    %6266 = vmatprep.subr.mxu0 0.0
    %6267 = vmatpush1.msra.mxu0 0.0
    %6268 = vmatprep.subr.mxu0 0.0
    %6269 = vmatpush1.msra.mxu0 0.0
    %6270 = vmatprep.subr.mxu0 0.0
    %6271 = vmatpush1.msra.mxu0 0.0
    %6272 = vmatprep.subr.mxu0 0.0
    %6273 = vmatpush1.msra.mxu0 0.0
    %6274 = vmatprep.subr.mxu0 0.0
    %6275 = vmatpush1.msra.mxu0 0.0
    %6276 = vmatprep.subr.mxu0 0.0
    %6277 = vmatpush1.msra.mxu0 0.0
    %6278 = vmatprep.subr.mxu0 0.0
    %6279 = vmatpush1.msra.mxu0 0.0
    %6280 = vmatprep.subr.mxu0 0.0
    %6281 = vmatpush1.msra.mxu0 0.0
    %6282 = vmatprep.subr.mxu0 0.0
    %6283 = vmatpush1.msra.mxu0 0.0
    %6284 = vmatprep.subr.mxu0 0.0
    %6285 = vmatpush1.msra.mxu0 0.0
    %6286 = vmatprep.subr.mxu0 0.0
    %6287 = vmatpush1.msra.mxu0 0.0
    %6288 = vmatprep.subr.mxu0 0.0
    %6289 = vmatpush1.msra.mxu0 0.0
    %6290 = vmatprep.subr.mxu0 0.0
    %6291 = vmatpush1.msra.mxu0 0.0
    %6292 = vmatprep.subr.mxu0 0.0
    %6293 = vmatpush1.msra.mxu0 0.0
    %6294 = vmatprep.subr.mxu0 0.0
    %6295 = vmatpush1.msra.mxu0 0.0
    %6296 = vmatprep.subr.mxu0 0.0
    %6297 = vmatpush1.msra.mxu0 0.0
    %6298 = vmatprep.subr.mxu0 0.0
    %6299 = vmatpush1.msra.mxu0 0.0
    %6300 = vmatprep.subr.mxu0 0.0
    %6301 = vmatpush1.msra.mxu0 0.0
    %6302 = vmatprep.subr.mxu0 0.0
    %6303 = vmatpush1.msra.mxu0 0.0
    %6304 = vmatprep.subr.mxu0 0.0
    %6305 = vmatpush1.msra.mxu0 0.0
    %6306 = vmatprep.subr.mxu0 0.0
    %6307 = vmatpush1.msra.mxu0 0.0
    %6308 = vmatprep.subr.mxu0 0.0
    %6309 = vmatpush1.msra.mxu0 0.0
    %6310 = vmatprep.subr.mxu0 0.0
    %6311 = vmatpush1.msra.mxu0 0.0
    %6312 = vmatprep.subr.mxu0 0.0
    %6313 = vmatpush1.msra.mxu0 0.0
    %6314 = vmatprep.subr.mxu0 0.0
    %6315 = vmatpush1.msra.mxu0 0.0
    %6316 = vmatprep.subr.mxu0 0.0
    %6317 = vmatpush1.msra.mxu0 0.0
    %6318 = vmatprep.subr.mxu0 0.0
    %6319 = vmatpush1.msra.mxu0 0.0
    %6320 = vmatprep.mubr.f32.mxu0 0.0
    %6321 = vmatmul.mubr.f32.gmra.mrb[0].mxu0 %v1696
    %v6322 = vpop.f32.mrb[0].mxu0
    %v6323 = vadd.f32 0.0, %v6322
    %v6324 = vpop.f32.mrb[0].mxu0
    %6325 = vmatprep.mubr.f32.mxu0 0.0
    %6326 = vmatmul.mubr.f32.gmra.mrb[0].mxu0 %v1699
    %v6327 = vpop.f32.mrb[0].mxu0
    %v6328 = vadd.f32 0.0, %v6327
    %v6329 = vpop.f32.mrb[0].mxu0
    %6330 = vdwg.mxu0
    %s6331 = scalar_lea.vmem [#allocation10], 192
    %v6332 = vld [vmem:[%s6331] sm:$0xff]
    %v6333 = vld [vmem:[%s6331 + $0x8] sm:$0xff]
    %v6334 = vld [vmem:[%s6331 + $0x10] sm:$0xff]
    %v6335 = vld [vmem:[%s6331 + $0x18] sm:$0xff]
    %6336 = vmatprep.subr.mxu0 0.0
    %6337 = vmatpush1.msra.mxu0 %v6236
    %6338 = vmatprep.subr.mxu0 0.0
    %6339 = vmatpush1.msra.mxu0 %v6241
    %6340 = vmatprep.subr.mxu0 0.0
    %6341 = vmatpush1.msra.mxu0 %v6246
    %6342 = vmatprep.subr.mxu0 0.0
    %6343 = vmatpush1.msra.mxu0 %v6251
    %6344 = vmatprep.subr.mxu0 0.0
    %6345 = vmatpush1.msra.mxu0 0.0
    %6346 = vmatprep.subr.mxu0 0.0
    %6347 = vmatpush1.msra.mxu0 0.0
    %6348 = vmatprep.subr.mxu0 0.0
    %6349 = vmatpush1.msra.mxu0 0.0
    %6350 = vmatprep.subr.mxu0 0.0
    %6351 = vmatpush1.msra.mxu0 0.0
    %6352 = vmatprep.subr.mxu0 0.0
    %6353 = vmatpush1.msra.mxu0 0.0
    %6354 = vmatprep.subr.mxu0 0.0
    %6355 = vmatpush1.msra.mxu0 0.0
    %6356 = vmatprep.subr.mxu0 0.0
    %6357 = vmatpush1.msra.mxu0 0.0
    %6358 = vmatprep.subr.mxu0 0.0
    %6359 = vmatpush1.msra.mxu0 0.0
    %6360 = vmatprep.subr.mxu0 0.0
    %6361 = vmatpush1.msra.mxu0 0.0
    %6362 = vmatprep.subr.mxu0 0.0
    %6363 = vmatpush1.msra.mxu0 0.0
    %6364 = vmatprep.subr.mxu0 0.0
    %6365 = vmatpush1.msra.mxu0 0.0
    %6366 = vmatprep.subr.mxu0 0.0
    %6367 = vmatpush1.msra.mxu0 0.0
    %6368 = vmatprep.subr.mxu0 0.0
    %6369 = vmatpush1.msra.mxu0 0.0
    %6370 = vmatprep.subr.mxu0 0.0
    %6371 = vmatpush1.msra.mxu0 0.0
    %6372 = vmatprep.subr.mxu0 0.0
    %6373 = vmatpush1.msra.mxu0 0.0
    %6374 = vmatprep.subr.mxu0 0.0
    %6375 = vmatpush1.msra.mxu0 0.0
    %6376 = vmatprep.subr.mxu0 0.0
    %6377 = vmatpush1.msra.mxu0 0.0
    %6378 = vmatprep.subr.mxu0 0.0
    %6379 = vmatpush1.msra.mxu0 0.0
    %6380 = vmatprep.subr.mxu0 0.0
    %6381 = vmatpush1.msra.mxu0 0.0
    %6382 = vmatprep.subr.mxu0 0.0
    %6383 = vmatpush1.msra.mxu0 0.0
    %6384 = vmatprep.subr.mxu0 0.0
    %6385 = vmatpush1.msra.mxu0 0.0
    %6386 = vmatprep.subr.mxu0 0.0
    %6387 = vmatpush1.msra.mxu0 0.0
    %6388 = vmatprep.subr.mxu0 0.0
    %6389 = vmatpush1.msra.mxu0 0.0
    %6390 = vmatprep.subr.mxu0 0.0
    %6391 = vmatpush1.msra.mxu0 0.0
    %6392 = vmatprep.subr.mxu0 0.0
    %6393 = vmatpush1.msra.mxu0 0.0
    %6394 = vmatprep.subr.mxu0 0.0
    %6395 = vmatpush1.msra.mxu0 0.0
    %6396 = vmatprep.subr.mxu0 0.0
    %6397 = vmatpush1.msra.mxu0 0.0
    %6398 = vmatprep.subr.mxu0 0.0
    %6399 = vmatpush1.msra.mxu0 0.0
    %6400 = vmatprep.mubr.f32.mxu0 0.0
    %6401 = vmatmul.mubr.f32.gmra.mrb[0].mxu0 %v1784
    %v6402 = vpop.f32.mrb[0].mxu0
    %v6403 = vadd.f32 0.0, %v6402
    %v6404 = vpop.f32.mrb[0].mxu0
    %6405 = vmatprep.mubr.f32.mxu0 0.0
    %6406 = vmatmul.mubr.f32.gmra.mrb[0].mxu0 %v1787
    %v6407 = vpop.f32.mrb[0].mxu0
    %v6408 = vadd.f32 0.0, %v6407
    %v6409 = vpop.f32.mrb[0].mxu0
    %6410 = vdwg.mxu0
    %s6411 = scalar_lea.vmem [#allocation10], 224
    %v6412 = vld [vmem:[%s6411] sm:$0xff]
    %v6413 = vld [vmem:[%s6411 + $0x8] sm:$0xff]
    %v6414 = vld [vmem:[%s6411 + $0x10] sm:$0xff]
    %v6415 = vld [vmem:[%s6411 + $0x18] sm:$0xff]
    %v6417 = vsel %vm489, %v6403, 0
    %v6420 = vsel %vm489, %v6408, 0
    %6422 = vmatprep.subr.mxu0 0.0
    %6423 = vmatpush1.msra.mxu0 %v6412
    %6424 = vmatprep.subr.mxu0 0.0
    %6425 = vmatpush1.msra.mxu0 %v6413
    %6426 = vmatprep.subr.mxu0 0.0
    %6427 = vmatpush1.msra.mxu0 %v6414
    %6428 = vmatprep.subr.mxu0 0.0
    %6429 = vmatpush1.msra.mxu0 %v6415
    %6430 = vmatprep.subr.mxu0 0.0
    %6431 = vmatpush1.msra.mxu0 0.0
    %6432 = vmatprep.subr.mxu0 0.0
    %6433 = vmatpush1.msra.mxu0 0.0
    %6434 = vmatprep.subr.mxu0 0.0
    %6435 = vmatpush1.msra.mxu0 0.0
    %6436 = vmatprep.subr.mxu0 0.0
    %6437 = vmatpush1.msra.mxu0 0.0
    %6438 = vmatprep.subr.mxu0 0.0
    %6439 = vmatpush1.msra.mxu0 0.0
    %6440 = vmatprep.subr.mxu0 0.0
    %6441 = vmatpush1.msra.mxu0 0.0
    %6442 = vmatprep.subr.mxu0 0.0
    %6443 = vmatpush1.msra.mxu0 0.0
    %6444 = vmatprep.subr.mxu0 0.0
    %6445 = vmatpush1.msra.mxu0 0.0
    %6446 = vmatprep.subr.mxu0 0.0
    %6447 = vmatpush1.msra.mxu0 0.0
    %6448 = vmatprep.subr.mxu0 0.0
    %6449 = vmatpush1.msra.mxu0 0.0
    %6450 = vmatprep.subr.mxu0 0.0
    %6451 = vmatpush1.msra.mxu0 0.0
    %6452 = vmatprep.subr.mxu0 0.0
    %6453 = vmatpush1.msra.mxu0 0.0
    %6454 = vmatprep.subr.mxu0 0.0
    %6455 = vmatpush1.msra.mxu0 0.0
    %6456 = vmatprep.subr.mxu0 0.0
    %6457 = vmatpush1.msra.mxu0 0.0
    %6458 = vmatprep.subr.mxu0 0.0
    %6459 = vmatpush1.msra.mxu0 0.0
    %6460 = vmatprep.subr.mxu0 0.0
    %6461 = vmatpush1.msra.mxu0 0.0
    %6462 = vmatprep.subr.mxu0 0.0
    %6463 = vmatpush1.msra.mxu0 0.0
    %6464 = vmatprep.subr.mxu0 0.0
    %6465 = vmatpush1.msra.mxu0 0.0
    %6466 = vmatprep.subr.mxu0 0.0
    %6467 = vmatpush1.msra.mxu0 0.0
    %6468 = vmatprep.subr.mxu0 0.0
    %6469 = vmatpush1.msra.mxu0 0.0
    %6470 = vmatprep.subr.mxu0 0.0
    %6471 = vmatpush1.msra.mxu0 0.0
    %6472 = vmatprep.subr.mxu0 0.0
    %6473 = vmatpush1.msra.mxu0 0.0
    %6474 = vmatprep.subr.mxu0 0.0
    %6475 = vmatpush1.msra.mxu0 0.0
    %6476 = vmatprep.subr.mxu0 0.0
    %6477 = vmatpush1.msra.mxu0 0.0
    %6478 = vmatprep.subr.mxu0 0.0
    %6479 = vmatpush1.msra.mxu0 0.0
    %6480 = vmatprep.subr.mxu0 0.0
    %6481 = vmatpush1.msra.mxu0 0.0
    %6482 = vmatprep.subr.mxu0 0.0
    %6483 = vmatpush1.msra.mxu0 0.0
    %6484 = vmatprep.subr.mxu0 0.0
    %6485 = vmatpush1.msra.mxu0 0.0
    %6486 = vmatprep.mubr.f32.mxu0 0.0
    %6487 = vmatmul.mubr.f32.gmra.mrb[0].mxu0 %v6417
    %v6488 = vpop.f32.mrb[0].mxu0
    %v6489 = vadd.f32 0.0, %v6488
    %v6490 = vpop.f32.mrb[0].mxu0
    %6491 = vmatprep.mubr.f32.mxu0 0.0
    %6492 = vmatmul.mubr.f32.gmra.mrb[0].mxu0 %v6420
    %v6493 = vpop.f32.mrb[0].mxu0
    %v6494 = vadd.f32 0.0, %v6493
    %v6495 = vpop.f32.mrb[0].mxu0
    %6496 = vdwg.mxu0
    %v6498 = vsel %vm489, %v6323, 0
    %v6501 = vsel %vm489, %v6328, 0
    %6503 = vmatprep.subr.mxu0 0.0
    %6504 = vmatpush1.msra.mxu0 %v6332
    %6505 = vmatprep.subr.mxu0 0.0
    %6506 = vmatpush1.msra.mxu0 %v6333
    %6507 = vmatprep.subr.mxu0 0.0
    %6508 = vmatpush1.msra.mxu0 %v6334
    %6509 = vmatprep.subr.mxu0 0.0
    %6510 = vmatpush1.msra.mxu0 %v6335
    %6511 = vmatprep.subr.mxu0 0.0
    %6512 = vmatpush1.msra.mxu0 0.0
    %6513 = vmatprep.subr.mxu0 0.0
    %6514 = vmatpush1.msra.mxu0 0.0
    %6515 = vmatprep.subr.mxu0 0.0
    %6516 = vmatpush1.msra.mxu0 0.0
    %6517 = vmatprep.subr.mxu0 0.0
    %6518 = vmatpush1.msra.mxu0 0.0
    %6519 = vmatprep.subr.mxu0 0.0
    %6520 = vmatpush1.msra.mxu0 0.0
    %6521 = vmatprep.subr.mxu0 0.0
    %6522 = vmatpush1.msra.mxu0 0.0
    %6523 = vmatprep.subr.mxu0 0.0
    %6524 = vmatpush1.msra.mxu0 0.0
    %6525 = vmatprep.subr.mxu0 0.0
    %6526 = vmatpush1.msra.mxu0 0.0
    %6527 = vmatprep.subr.mxu0 0.0
    %6528 = vmatpush1.msra.mxu0 0.0
    %6529 = vmatprep.subr.mxu0 0.0
    %6530 = vmatpush1.msra.mxu0 0.0
    %6531 = vmatprep.subr.mxu0 0.0
    %6532 = vmatpush1.msra.mxu0 0.0
    %6533 = vmatprep.subr.mxu0 0.0
    %6534 = vmatpush1.msra.mxu0 0.0
    %6535 = vmatprep.subr.mxu0 0.0
    %6536 = vmatpush1.msra.mxu0 0.0
    %6537 = vmatprep.subr.mxu0 0.0
    %6538 = vmatpush1.msra.mxu0 0.0
    %6539 = vmatprep.subr.mxu0 0.0
    %6540 = vmatpush1.msra.mxu0 0.0
    %6541 = vmatprep.subr.mxu0 0.0
    %6542 = vmatpush1.msra.mxu0 0.0
    %6543 = vmatprep.subr.mxu0 0.0
    %6544 = vmatpush1.msra.mxu0 0.0
    %6545 = vmatprep.subr.mxu0 0.0
    %6546 = vmatpush1.msra.mxu0 0.0
    %6547 = vmatprep.subr.mxu0 0.0
    %6548 = vmatpush1.msra.mxu0 0.0
    %6549 = vmatprep.subr.mxu0 0.0
    %6550 = vmatpush1.msra.mxu0 0.0
    %6551 = vmatprep.subr.mxu0 0.0
    %6552 = vmatpush1.msra.mxu0 0.0
    %6553 = vmatprep.subr.mxu0 0.0
    %6554 = vmatpush1.msra.mxu0 0.0
    %6555 = vmatprep.subr.mxu0 0.0
    %6556 = vmatpush1.msra.mxu0 0.0
    %6557 = vmatprep.subr.mxu0 0.0
    %6558 = vmatpush1.msra.mxu0 0.0
    %6559 = vmatprep.subr.mxu0 0.0
    %6560 = vmatpush1.msra.mxu0 0.0
    %6561 = vmatprep.subr.mxu0 0.0
    %6562 = vmatpush1.msra.mxu0 0.0
    %6563 = vmatprep.subr.mxu0 0.0
    %6564 = vmatpush1.msra.mxu0 0.0
    %6565 = vmatprep.subr.mxu0 0.0
    %6566 = vmatpush1.msra.mxu0 0.0
    %6567 = vmatprep.mubr.f32.mxu0 0.0
    %6568 = vmatmul.mubr.f32.gmra.mrb[0].mxu0 %v6498
    %v6569 = vpop.f32.mrb[0].mxu0
    %v6570 = vadd.f32 %v6489, %v6569
    %v6571 = vpop.f32.mrb[0].mxu0
    %6572 = vmatprep.mubr.f32.mxu0 0.0
    %6573 = vmatmul.mubr.f32.gmra.mrb[0].mxu0 %v6501
    %v6574 = vpop.f32.mrb[0].mxu0
    %v6575 = vadd.f32 %v6494, %v6574
    %v6576 = vpop.f32.mrb[0].mxu0
    %6577 = vdwg.mxu0
    %6578 = vmatprep.subr.mxu0 0.0
    %6579 = vmatpush1.msra.mxu0 %v6236
    %6580 = vmatprep.subr.mxu0 0.0
    %6581 = vmatpush1.msra.mxu0 %v6241
    %6582 = vmatprep.subr.mxu0 0.0
    %6583 = vmatpush1.msra.mxu0 %v6246
    %6584 = vmatprep.subr.mxu0 0.0
    %6585 = vmatpush1.msra.mxu0 %v6251
    %6586 = vmatprep.subr.mxu0 0.0
    %6587 = vmatpush1.msra.mxu0 0.0
    %6588 = vmatprep.subr.mxu0 0.0
    %6589 = vmatpush1.msra.mxu0 0.0
    %6590 = vmatprep.subr.mxu0 0.0
    %6591 = vmatpush1.msra.mxu0 0.0
    %6592 = vmatprep.subr.mxu0 0.0
    %6593 = vmatpush1.msra.mxu0 0.0
    %6594 = vmatprep.subr.mxu0 0.0
    %6595 = vmatpush1.msra.mxu0 0.0
    %6596 = vmatprep.subr.mxu0 0.0
    %6597 = vmatpush1.msra.mxu0 0.0
    %6598 = vmatprep.subr.mxu0 0.0
    %6599 = vmatpush1.msra.mxu0 0.0
    %6600 = vmatprep.subr.mxu0 0.0
    %6601 = vmatpush1.msra.mxu0 0.0
    %6602 = vmatprep.subr.mxu0 0.0
    %6603 = vmatpush1.msra.mxu0 0.0
    %6604 = vmatprep.subr.mxu0 0.0
    %6605 = vmatpush1.msra.mxu0 0.0
    %6606 = vmatprep.subr.mxu0 0.0
    %6607 = vmatpush1.msra.mxu0 0.0
    %6608 = vmatprep.subr.mxu0 0.0
    %6609 = vmatpush1.msra.mxu0 0.0
    %6610 = vmatprep.subr.mxu0 0.0
    %6611 = vmatpush1.msra.mxu0 0.0
    %6612 = vmatprep.subr.mxu0 0.0
    %6613 = vmatpush1.msra.mxu0 0.0
    %6614 = vmatprep.subr.mxu0 0.0
    %6615 = vmatpush1.msra.mxu0 0.0
    %6616 = vmatprep.subr.mxu0 0.0
    %6617 = vmatpush1.msra.mxu0 0.0
    %6618 = vmatprep.subr.mxu0 0.0
    %6619 = vmatpush1.msra.mxu0 0.0
    %6620 = vmatprep.subr.mxu0 0.0
    %6621 = vmatpush1.msra.mxu0 0.0
    %6622 = vmatprep.subr.mxu0 0.0
    %6623 = vmatpush1.msra.mxu0 0.0
    %6624 = vmatprep.subr.mxu0 0.0
    %6625 = vmatpush1.msra.mxu0 0.0
    %6626 = vmatprep.subr.mxu0 0.0
    %6627 = vmatpush1.msra.mxu0 0.0
    %6628 = vmatprep.subr.mxu0 0.0
    %6629 = vmatpush1.msra.mxu0 0.0
    %6630 = vmatprep.subr.mxu0 0.0
    %6631 = vmatpush1.msra.mxu0 0.0
    %6632 = vmatprep.subr.mxu0 0.0
    %6633 = vmatpush1.msra.mxu0 0.0
    %6634 = vmatprep.subr.mxu0 0.0
    %6635 = vmatpush1.msra.mxu0 0.0
    %6636 = vmatprep.subr.mxu0 0.0
    %6637 = vmatpush1.msra.mxu0 0.0
    %6638 = vmatprep.subr.mxu0 0.0
    %6639 = vmatpush1.msra.mxu0 0.0
    %6640 = vmatprep.subr.mxu0 0.0
    %6641 = vmatpush1.msra.mxu0 0.0
    %6642 = vmatprep.mubr.f32.mxu0 0.0
    %6643 = vmatmul.mubr.f32.gmra.mrb[0].mxu0 %v2035
    %v6644 = vpop.f32.mrb[0].mxu0
    %v6645 = vadd.f32 0.0, %v6644
    %v6646 = vpop.f32.mrb[0].mxu0
    %6647 = vmatprep.mubr.f32.mxu0 0.0
    %6648 = vmatmul.mubr.f32.gmra.mrb[0].mxu0 %v2038
    %v6649 = vpop.f32.mrb[0].mxu0
    %v6650 = vadd.f32 0.0, %v6649
    %v6651 = vpop.f32.mrb[0].mxu0
    %6652 = vdwg.mxu0
    %s6653 = scalar_lea.vmem [#allocation10], 256
    %v6654 = vld [vmem:[%s6653] sm:$0xff]
    %v6655 = vld [vmem:[%s6653 + $0x8] sm:$0xff]
    %v6656 = vld [vmem:[%s6653 + $0x10] sm:$0xff]
    %v6657 = vld [vmem:[%s6653 + $0x18] sm:$0xff]
    %v6659 = vsel %vm489, %v6645, 0
    %v6662 = vsel %vm489, %v6650, 0
    %6664 = vmatprep.subr.mxu0 0.0
    %6665 = vmatpush1.msra.mxu0 %v6654
    %6666 = vmatprep.subr.mxu0 0.0
    %6667 = vmatpush1.msra.mxu0 %v6655
    %6668 = vmatprep.subr.mxu0 0.0
    %6669 = vmatpush1.msra.mxu0 %v6656
    %6670 = vmatprep.subr.mxu0 0.0
    %6671 = vmatpush1.msra.mxu0 %v6657
    %6672 = vmatprep.subr.mxu0 0.0
    %6673 = vmatpush1.msra.mxu0 0.0
    %6674 = vmatprep.subr.mxu0 0.0
    %6675 = vmatpush1.msra.mxu0 0.0
    %6676 = vmatprep.subr.mxu0 0.0
    %6677 = vmatpush1.msra.mxu0 0.0
    %6678 = vmatprep.subr.mxu0 0.0
    %6679 = vmatpush1.msra.mxu0 0.0
    %6680 = vmatprep.subr.mxu0 0.0
    %6681 = vmatpush1.msra.mxu0 0.0
    %6682 = vmatprep.subr.mxu0 0.0
    %6683 = vmatpush1.msra.mxu0 0.0
    %6684 = vmatprep.subr.mxu0 0.0
    %6685 = vmatpush1.msra.mxu0 0.0
    %6686 = vmatprep.subr.mxu0 0.0
    %6687 = vmatpush1.msra.mxu0 0.0
    %6688 = vmatprep.subr.mxu0 0.0
    %6689 = vmatpush1.msra.mxu0 0.0
    %6690 = vmatprep.subr.mxu0 0.0
    %6691 = vmatpush1.msra.mxu0 0.0
    %6692 = vmatprep.subr.mxu0 0.0
    %6693 = vmatpush1.msra.mxu0 0.0
    %6694 = vmatprep.subr.mxu0 0.0
    %6695 = vmatpush1.msra.mxu0 0.0
    %6696 = vmatprep.subr.mxu0 0.0
    %6697 = vmatpush1.msra.mxu0 0.0
    %6698 = vmatprep.subr.mxu0 0.0
    %6699 = vmatpush1.msra.mxu0 0.0
    %6700 = vmatprep.subr.mxu0 0.0
    %6701 = vmatpush1.msra.mxu0 0.0
    %6702 = vmatprep.subr.mxu0 0.0
    %6703 = vmatpush1.msra.mxu0 0.0
    %6704 = vmatprep.subr.mxu0 0.0
    %6705 = vmatpush1.msra.mxu0 0.0
    %6706 = vmatprep.subr.mxu0 0.0
    %6707 = vmatpush1.msra.mxu0 0.0
    %6708 = vmatprep.subr.mxu0 0.0
    %6709 = vmatpush1.msra.mxu0 0.0
    %6710 = vmatprep.subr.mxu0 0.0
    %6711 = vmatpush1.msra.mxu0 0.0
    %6712 = vmatprep.subr.mxu0 0.0
    %6713 = vmatpush1.msra.mxu0 0.0
    %6714 = vmatprep.subr.mxu0 0.0
    %6715 = vmatpush1.msra.mxu0 0.0
    %6716 = vmatprep.subr.mxu0 0.0
    %6717 = vmatpush1.msra.mxu0 0.0
    %6718 = vmatprep.subr.mxu0 0.0
    %6719 = vmatpush1.msra.mxu0 0.0
    %6720 = vmatprep.subr.mxu0 0.0
    %6721 = vmatpush1.msra.mxu0 0.0
    %6722 = vmatprep.subr.mxu0 0.0
    %6723 = vmatpush1.msra.mxu0 0.0
    %6724 = vmatprep.subr.mxu0 0.0
    %6725 = vmatpush1.msra.mxu0 0.0
    %6726 = vmatprep.subr.mxu0 0.0
    %6727 = vmatpush1.msra.mxu0 0.0
    %6728 = vmatprep.mubr.f32.mxu0 0.0
    %6729 = vmatmul.mubr.f32.gmra.mrb[0].mxu0 %v6659
    %v6730 = vpop.f32.mrb[0].mxu0
    %v6731 = vadd.f32 0.0, %v6730
    %v6732 = vpop.f32.mrb[0].mxu0
    %6733 = vmatprep.mubr.f32.mxu0 0.0
    %6734 = vmatmul.mubr.f32.gmra.mrb[0].mxu0 %v6662
    %v6735 = vpop.f32.mrb[0].mxu0
    %v6736 = vadd.f32 0.0, %v6735
    %v6737 = vpop.f32.mrb[0].mxu0
    %6738 = vdwg.mxu0
    %v6739 = vadd.f32 %v6570, %v6731
    %v6740 = vadd.f32 %v6575, %v6736
    %v6741 = vlaneseq
    %v6742 = vshrl.u32 %v6741, 7
    %v6743 = vsub.s32 0, %v6742
    %v6744 = vrot.slane %v6255, %v6743
    %v6745 = vadd.f32 %v6739, %v6744
    %v6746 = vadd.f32 %v6740, %v6744
    %v6747 = vmax.f32 %v6745, 0.0
    %v6748 = vmax.f32 %v6746, 0.0
    %v6749 = vsel %vm489, %v6747, 0.0
    %6750 = vadd.xlane.f32.xlu0 %v6749
    %v6751 = vpop.xlane.xlu0 %6750
    %v6752 = vsel %vm489, %v6748, 0.0
    %6753 = vadd.xlane.f32.xlu0 %v6752
    %v6754 = vpop.xlane.xlu0 %6753
    %v6755 = vmul.f32 %v6751, %v502
    %v6756 = vmul.f32 %v6754, %v502
    %v6757 = vsub.f32 %v6747, %v6755
    %v6758 = vsub.f32 %v6748, %v6756
    %v6759 = vmul.f32 %v6757, %v6757
    %v6760 = vmul.f32 %v6758, %v6758
    %v6761 = vsel %vm489, %v6759, 0.0
    %6762 = vadd.xlane.f32.xlu0 %v6761
    %v6763 = vpop.xlane.xlu0 %6762
    %v6764 = vsel %vm489, %v6760, 0.0
    %6765 = vadd.xlane.f32.xlu0 %v6764
    %v6766 = vpop.xlane.xlu0 %6765
    %v6767 = vmul.f32 %v6763, %v502
    %v6768 = vmul.f32 %v6766, %v502
    %v6769 = vadd.f32 %v6767, 1e-05
    %v6770 = vadd.f32 %v6768, 1e-05
    %v6771 = vrsqrt.pop %v6769
    %v6772 = vrsqrt.pop %v6770
    %v6773 = vmul.f32 %v6757, %v6771
    %v6774 = vmul.f32 %v6758, %v6772
    %v6775 = vlaneseq
    %v6776 = vshrl.u32 %v6775, 7
    %v6777 = vsub.s32 1, %v6776
    %v6778 = vrot.slane %v6255, %v6777
    %v6779 = vmul.f32 %v6773, %v6778
    %v6780 = vmul.f32 %v6774, %v6778
    %v6781 = vlaneseq
    %v6782 = vshrl.u32 %v6781, 7
    %v6783 = vsub.s32 2, %v6782
    %v6784 = vrot.slane %v6255, %v6783
    %v6785 = vadd.f32 %v6779, %v6784
    %v6786 = vadd.f32 %v6780, %v6784
    %s6787 = scalar_lea.vmem [#allocation12], 128
    %v6788 = vld [vmem:[%s6787] sm:$0xff]
    %v6789 = vld [vmem:[%s6787 + $0x8] sm:$0xff]
    %v6790 = vld [vmem:[%s6787 + $0x10] sm:$0xff]
    %v6791 = vld [vmem:[%s6787 + $0x18] sm:$0xff]
    %s6792 = scalar_lea.vmem [#allocation12], 160
    %v6793 = vld [vmem:[%s6792] sm:$0xff]
    %v6794 = vld [vmem:[%s6792 + $0x8] sm:$0xff]
    %v6795 = vld [vmem:[%s6792 + $0x10] sm:$0xff]
    %v6796 = vld [vmem:[%s6792 + $0x18] sm:$0xff]
    %v6798 = vsel %vm489, %v6785, 0
    %v6801 = vsel %vm489, %v6786, 0
    %6803 = vmatprep.subr.mxu0 0.0
    %6804 = vmatpush1.msra.mxu0 %v6793
    %6805 = vmatprep.subr.mxu0 0.0
    %6806 = vmatpush1.msra.mxu0 %v6794
    %6807 = vmatprep.subr.mxu0 0.0
    %6808 = vmatpush1.msra.mxu0 %v6795
    %6809 = vmatprep.subr.mxu0 0.0
    %6810 = vmatpush1.msra.mxu0 %v6796
    %6811 = vmatprep.subr.mxu0 0.0
    %6812 = vmatpush1.msra.mxu0 0.0
    %6813 = vmatprep.subr.mxu0 0.0
    %6814 = vmatpush1.msra.mxu0 0.0
    %6815 = vmatprep.subr.mxu0 0.0
    %6816 = vmatpush1.msra.mxu0 0.0
    %6817 = vmatprep.subr.mxu0 0.0
    %6818 = vmatpush1.msra.mxu0 0.0
    %6819 = vmatprep.subr.mxu0 0.0
    %6820 = vmatpush1.msra.mxu0 0.0
    %6821 = vmatprep.subr.mxu0 0.0
    %6822 = vmatpush1.msra.mxu0 0.0
    %6823 = vmatprep.subr.mxu0 0.0
    %6824 = vmatpush1.msra.mxu0 0.0
    %6825 = vmatprep.subr.mxu0 0.0
    %6826 = vmatpush1.msra.mxu0 0.0
    %6827 = vmatprep.subr.mxu0 0.0
    %6828 = vmatpush1.msra.mxu0 0.0
    %6829 = vmatprep.subr.mxu0 0.0
    %6830 = vmatpush1.msra.mxu0 0.0
    %6831 = vmatprep.subr.mxu0 0.0
    %6832 = vmatpush1.msra.mxu0 0.0
    %6833 = vmatprep.subr.mxu0 0.0
    %6834 = vmatpush1.msra.mxu0 0.0
    %6835 = vmatprep.subr.mxu0 0.0
    %6836 = vmatpush1.msra.mxu0 0.0
    %6837 = vmatprep.subr.mxu0 0.0
    %6838 = vmatpush1.msra.mxu0 0.0
    %6839 = vmatprep.subr.mxu0 0.0
    %6840 = vmatpush1.msra.mxu0 0.0
    %6841 = vmatprep.subr.mxu0 0.0
    %6842 = vmatpush1.msra.mxu0 0.0
    %6843 = vmatprep.subr.mxu0 0.0
    %6844 = vmatpush1.msra.mxu0 0.0
    %6845 = vmatprep.subr.mxu0 0.0
    %6846 = vmatpush1.msra.mxu0 0.0
    %6847 = vmatprep.subr.mxu0 0.0
    %6848 = vmatpush1.msra.mxu0 0.0
    %6849 = vmatprep.subr.mxu0 0.0
    %6850 = vmatpush1.msra.mxu0 0.0
    %6851 = vmatprep.subr.mxu0 0.0
    %6852 = vmatpush1.msra.mxu0 0.0
    %6853 = vmatprep.subr.mxu0 0.0
    %6854 = vmatpush1.msra.mxu0 0.0
    %6855 = vmatprep.subr.mxu0 0.0
    %6856 = vmatpush1.msra.mxu0 0.0
    %6857 = vmatprep.subr.mxu0 0.0
    %6858 = vmatpush1.msra.mxu0 0.0
    %6859 = vmatprep.subr.mxu0 0.0
    %6860 = vmatpush1.msra.mxu0 0.0
    %6861 = vmatprep.subr.mxu0 0.0
    %6862 = vmatpush1.msra.mxu0 0.0
    %6863 = vmatprep.subr.mxu0 0.0
    %6864 = vmatpush1.msra.mxu0 0.0
    %6865 = vmatprep.subr.mxu0 0.0
    %6866 = vmatpush1.msra.mxu0 0.0
    %6867 = vmatprep.mubr.f32.mxu0 0.0
    %6868 = vmatmul.mubr.f32.gmra.mrb[0].mxu0 %v6798
    %v6869 = vpop.f32.mrb[0].mxu0
    %v6870 = vadd.f32 0.0, %v6869
    %v6871 = vpop.f32.mrb[0].mxu0
    %6872 = vmatprep.mubr.f32.mxu0 0.0
    %6873 = vmatmul.mubr.f32.gmra.mrb[0].mxu0 %v6801
    %v6874 = vpop.f32.mrb[0].mxu0
    %v6875 = vadd.f32 0.0, %v6874
    %v6876 = vpop.f32.mrb[0].mxu0
    %6877 = vdwg.mxu0
    %6878 = vmatprep.subr.mxu0 0.0
    %6879 = vmatpush1.msra.mxu0 %v6870
    %6880 = vmatprep.subr.mxu0 0.0
    %6881 = vmatpush1.msra.mxu0 %v6875
    %6882 = vmatprep.subr.mxu0 0.0
    %6883 = vmatpush1.msra.mxu0 0.0
    %6884 = vmatprep.subr.mxu0 0.0
    %6885 = vmatpush1.msra.mxu0 0.0
    %6886 = vmatprep.subr.mxu0 0.0
    %6887 = vmatpush1.msra.mxu0 0.0
    %6888 = vmatprep.subr.mxu0 0.0
    %6889 = vmatpush1.msra.mxu0 0.0
    %6890 = vmatprep.subr.mxu0 0.0
    %6891 = vmatpush1.msra.mxu0 0.0
    %6892 = vmatprep.subr.mxu0 0.0
    %6893 = vmatpush1.msra.mxu0 0.0
    %6894 = vmatprep.subr.mxu0 0.0
    %6895 = vmatpush1.msra.mxu0 0.0
    %6896 = vmatprep.subr.mxu0 0.0
    %6897 = vmatpush1.msra.mxu0 0.0
    %6898 = vmatprep.subr.mxu0 0.0
    %6899 = vmatpush1.msra.mxu0 0.0
    %6900 = vmatprep.subr.mxu0 0.0
    %6901 = vmatpush1.msra.mxu0 0.0
    %6902 = vmatprep.subr.mxu0 0.0
    %6903 = vmatpush1.msra.mxu0 0.0
    %6904 = vmatprep.subr.mxu0 0.0
    %6905 = vmatpush1.msra.mxu0 0.0
    %6906 = vmatprep.subr.mxu0 0.0
    %6907 = vmatpush1.msra.mxu0 0.0
    %6908 = vmatprep.subr.mxu0 0.0
    %6909 = vmatpush1.msra.mxu0 0.0
    %6910 = vmatprep.subr.mxu0 0.0
    %6911 = vmatpush1.msra.mxu0 0.0
    %6912 = vmatprep.subr.mxu0 0.0
    %6913 = vmatpush1.msra.mxu0 0.0
    %6914 = vmatprep.subr.mxu0 0.0
    %6915 = vmatpush1.msra.mxu0 0.0
    %6916 = vmatprep.subr.mxu0 0.0
    %6917 = vmatpush1.msra.mxu0 0.0
    %6918 = vmatprep.subr.mxu0 0.0
    %6919 = vmatpush1.msra.mxu0 0.0
    %6920 = vmatprep.subr.mxu0 0.0
    %6921 = vmatpush1.msra.mxu0 0.0
    %6922 = vmatprep.subr.mxu0 0.0
    %6923 = vmatpush1.msra.mxu0 0.0
    %6924 = vmatprep.subr.mxu0 0.0
    %6925 = vmatpush1.msra.mxu0 0.0
    %6926 = vmatprep.subr.mxu0 0.0
    %6927 = vmatpush1.msra.mxu0 0.0
    %6928 = vmatprep.subr.mxu0 0.0
    %6929 = vmatpush1.msra.mxu0 0.0
    %6930 = vmatprep.subr.mxu0 0.0
    %6931 = vmatpush1.msra.mxu0 0.0
    %6932 = vmatprep.subr.mxu0 0.0
    %6933 = vmatpush1.msra.mxu0 0.0
    %6934 = vmatprep.subr.mxu0 0.0
    %6935 = vmatpush1.msra.mxu0 0.0
    %6936 = vmatprep.subr.mxu0 0.0
    %6937 = vmatpush1.msra.mxu0 0.0
    %6938 = vmatprep.subr.mxu0 0.0
    %6939 = vmatpush1.msra.mxu0 0.0
    %6940 = vmatprep.subr.mxu0 0.0
    %6941 = vmatpush1.msra.mxu0 0.0
    %6942 = vmatprep.mubr.f32.mxu0 0.0
    %6943 = vmatmul.mubr.f32.gmra.mrb[0].mxu0 %v2344
    %v6944 = vpop.f32.mrb[0].mxu0
    %v6945 = vadd.f32 0.0, %v6944
    %v6946 = vpop.f32.mrb[0].mxu0
    %6947 = vmatprep.mubr.f32.mxu0 0.0
    %6948 = vmatmul.mubr.f32.gmra.mrb[0].mxu0 %v2347
    %v6949 = vpop.f32.mrb[0].mxu0
    %v6950 = vadd.f32 0.0, %v6949
    %v6951 = vpop.f32.mrb[0].mxu0
    %6952 = vmatprep.mubr.f32.mxu0 0.0
    %6953 = vmatmul.mubr.f32.gmra.mrb[0].mxu0 %v2350
    %v6954 = vpop.f32.mrb[0].mxu0
    %v6955 = vadd.f32 0.0, %v6954
    %v6956 = vpop.f32.mrb[0].mxu0
    %6957 = vmatprep.mubr.f32.mxu0 0.0
    %6958 = vmatmul.mubr.f32.gmra.mrb[0].mxu0 %v2353
    %v6959 = vpop.f32.mrb[0].mxu0
    %v6960 = vadd.f32 0.0, %v6959
    %v6961 = vpop.f32.mrb[0].mxu0
    %6962 = vdwg.mxu0
    %v6964 = vsel %vm489, %v6236, 0
    %v6967 = vsel %vm489, %v6241, 0
    %v6970 = vsel %vm489, %v6246, 0
    %v6973 = vsel %vm489, %v6251, 0
    %6975 = vmatprep.subr.mxu0 0.0
    %6976 = vmatpush1.msra.mxu0 %v6788
    %6977 = vmatprep.subr.mxu0 0.0
    %6978 = vmatpush1.msra.mxu0 %v6789
    %6979 = vmatprep.subr.mxu0 0.0
    %6980 = vmatpush1.msra.mxu0 %v6790
    %6981 = vmatprep.subr.mxu0 0.0
    %6982 = vmatpush1.msra.mxu0 %v6791
    %6983 = vmatprep.subr.mxu0 0.0
    %6984 = vmatpush1.msra.mxu0 0.0
    %6985 = vmatprep.subr.mxu0 0.0
    %6986 = vmatpush1.msra.mxu0 0.0
    %6987 = vmatprep.subr.mxu0 0.0
    %6988 = vmatpush1.msra.mxu0 0.0
    %6989 = vmatprep.subr.mxu0 0.0
    %6990 = vmatpush1.msra.mxu0 0.0
    %6991 = vmatprep.subr.mxu0 0.0
    %6992 = vmatpush1.msra.mxu0 0.0
    %6993 = vmatprep.subr.mxu0 0.0
    %6994 = vmatpush1.msra.mxu0 0.0
    %6995 = vmatprep.subr.mxu0 0.0
    %6996 = vmatpush1.msra.mxu0 0.0
    %6997 = vmatprep.subr.mxu0 0.0
    %6998 = vmatpush1.msra.mxu0 0.0
    %6999 = vmatprep.subr.mxu0 0.0
    %7000 = vmatpush1.msra.mxu0 0.0
    %7001 = vmatprep.subr.mxu0 0.0
    %7002 = vmatpush1.msra.mxu0 0.0
    %7003 = vmatprep.subr.mxu0 0.0
    %7004 = vmatpush1.msra.mxu0 0.0
    %7005 = vmatprep.subr.mxu0 0.0
    %7006 = vmatpush1.msra.mxu0 0.0
    %7007 = vmatprep.subr.mxu0 0.0
    %7008 = vmatpush1.msra.mxu0 0.0
    %7009 = vmatprep.subr.mxu0 0.0
    %7010 = vmatpush1.msra.mxu0 0.0
    %7011 = vmatprep.subr.mxu0 0.0
    %7012 = vmatpush1.msra.mxu0 0.0
    %7013 = vmatprep.subr.mxu0 0.0
    %7014 = vmatpush1.msra.mxu0 0.0
    %7015 = vmatprep.subr.mxu0 0.0
    %7016 = vmatpush1.msra.mxu0 0.0
    %7017 = vmatprep.subr.mxu0 0.0
    %7018 = vmatpush1.msra.mxu0 0.0
    %7019 = vmatprep.subr.mxu0 0.0
    %7020 = vmatpush1.msra.mxu0 0.0
    %7021 = vmatprep.subr.mxu0 0.0
    %7022 = vmatpush1.msra.mxu0 0.0
    %7023 = vmatprep.subr.mxu0 0.0
    %7024 = vmatpush1.msra.mxu0 0.0
    %7025 = vmatprep.subr.mxu0 0.0
    %7026 = vmatpush1.msra.mxu0 0.0
    %7027 = vmatprep.subr.mxu0 0.0
    %7028 = vmatpush1.msra.mxu0 0.0
    %7029 = vmatprep.subr.mxu0 0.0
    %7030 = vmatpush1.msra.mxu0 0.0
    %7031 = vmatprep.subr.mxu0 0.0
    %7032 = vmatpush1.msra.mxu0 0.0
    %7033 = vmatprep.subr.mxu0 0.0
    %7034 = vmatpush1.msra.mxu0 0.0
    %7035 = vmatprep.subr.mxu0 0.0
    %7036 = vmatpush1.msra.mxu0 0.0
    %7037 = vmatprep.subr.mxu0 0.0
    %7038 = vmatpush1.msra.mxu0 0.0
    %7039 = vmatprep.mubr.f32.mxu0 0.0
    %7040 = vmatmul.mubr.f32.gmra.mrb[0].mxu0 %v6964
    %v7041 = vpop.f32.mrb[0].mxu0
    %v7042 = vadd.f32 %v6945, %v7041
    %v7043 = vpop.f32.mrb[0].mxu0
    %7044 = vmatprep.mubr.f32.mxu0 0.0
    %7045 = vmatmul.mubr.f32.gmra.mrb[0].mxu0 %v6967
    %v7046 = vpop.f32.mrb[0].mxu0
    %v7047 = vadd.f32 %v6950, %v7046
    %v7048 = vpop.f32.mrb[0].mxu0
    %7049 = vmatprep.mubr.f32.mxu0 0.0
    %7050 = vmatmul.mubr.f32.gmra.mrb[0].mxu0 %v6970
    %v7051 = vpop.f32.mrb[0].mxu0
    %v7052 = vadd.f32 %v6955, %v7051
    %v7053 = vpop.f32.mrb[0].mxu0
    %7054 = vmatprep.mubr.f32.mxu0 0.0
    %7055 = vmatmul.mubr.f32.gmra.mrb[0].mxu0 %v6973
    %v7056 = vpop.f32.mrb[0].mxu0
    %v7057 = vadd.f32 %v6960, %v7056
    %v7058 = vpop.f32.mrb[0].mxu0
    %7059 = vdwg.mxu0
    %v7060 = vlaneseq
    %v7061 = vshrl.u32 %v7060, 7
    %v7062 = vsub.s32 3, %v7061
    %v7063 = vrot.slane %v6255, %v7062
    %v7064 = vadd.f32 %v7042, %v7063
    %v7065 = vadd.f32 %v7047, %v7063
    %v7066 = vadd.f32 %v7052, %v7063
    %v7067 = vadd.f32 %v7057, %v7063
    %v7068 = vmax.f32 %v7064, 0.0
    %v7069 = vmax.f32 %v7065, 0.0
    %v7070 = vmax.f32 %v7066, 0.0
    %v7071 = vmax.f32 %v7067, 0.0
    %v7072 = vsel %vm489, %v7068, 0.0
    %7073 = vadd.xlane.f32.xlu0 %v7072
    %v7074 = vpop.xlane.xlu0 %7073
    %v7075 = vsel %vm489, %v7069, 0.0
    %7076 = vadd.xlane.f32.xlu0 %v7075
    %v7077 = vpop.xlane.xlu0 %7076
    %v7078 = vsel %vm489, %v7070, 0.0
    %7079 = vadd.xlane.f32.xlu0 %v7078
    %v7080 = vpop.xlane.xlu0 %7079
    %v7081 = vsel %vm489, %v7071, 0.0
    %7082 = vadd.xlane.f32.xlu0 %v7081
    %v7083 = vpop.xlane.xlu0 %7082
    %v7084 = vmul.f32 %v7074, %v502
    %v7085 = vmul.f32 %v7077, %v502
    %v7086 = vmul.f32 %v7080, %v502
    %v7087 = vmul.f32 %v7083, %v502
    %v7088 = vsub.f32 %v7068, %v7084
    %v7089 = vsub.f32 %v7069, %v7085
    %v7090 = vsub.f32 %v7070, %v7086
    %v7091 = vsub.f32 %v7071, %v7087
    %v7092 = vmul.f32 %v7088, %v7088
    %v7093 = vmul.f32 %v7089, %v7089
    %v7094 = vmul.f32 %v7090, %v7090
    %v7095 = vmul.f32 %v7091, %v7091
    %v7096 = vsel %vm489, %v7092, 0.0
    %7097 = vadd.xlane.f32.xlu0 %v7096
    %v7098 = vpop.xlane.xlu0 %7097
    %v7099 = vsel %vm489, %v7093, 0.0
    %7100 = vadd.xlane.f32.xlu0 %v7099
    %v7101 = vpop.xlane.xlu0 %7100
    %v7102 = vsel %vm489, %v7094, 0.0
    %7103 = vadd.xlane.f32.xlu0 %v7102
    %v7104 = vpop.xlane.xlu0 %7103
    %v7105 = vsel %vm489, %v7095, 0.0
    %7106 = vadd.xlane.f32.xlu0 %v7105
    %v7107 = vpop.xlane.xlu0 %7106
    %v7108 = vmul.f32 %v7098, %v502
    %v7109 = vmul.f32 %v7101, %v502
    %v7110 = vmul.f32 %v7104, %v502
    %v7111 = vmul.f32 %v7107, %v502
    %v7112 = vadd.f32 %v7108, 1e-05
    %v7113 = vadd.f32 %v7109, 1e-05
    %v7114 = vadd.f32 %v7110, 1e-05
    %v7115 = vadd.f32 %v7111, 1e-05
    %v7116 = vrsqrt.pop %v7112
    %v7117 = vrsqrt.pop %v7113
    %v7118 = vrsqrt.pop %v7114
    %v7119 = vrsqrt.pop %v7115
    %v7120 = vmul.f32 %v7088, %v7116
    %v7121 = vmul.f32 %v7089, %v7117
    %v7122 = vmul.f32 %v7090, %v7118
    %v7123 = vmul.f32 %v7091, %v7119
    %v7124 = vlaneseq
    %v7125 = vshrl.u32 %v7124, 7
    %v7126 = vsub.s32 4, %v7125
    %v7127 = vrot.slane %v6255, %v7126
    %v7128 = vmul.f32 %v7120, %v7127
    %v7129 = vmul.f32 %v7121, %v7127
    %v7130 = vmul.f32 %v7122, %v7127
    %v7131 = vmul.f32 %v7123, %v7127
    %v7132 = vlaneseq
    %v7133 = vshrl.u32 %v7132, 7
    %v7134 = vsub.s32 5, %v7133
    %v7135 = vrot.slane %v6255, %v7134
    %v7136 = vadd.f32 %v7128, %v7135
    %v7137 = vadd.f32 %v7129, %v7135
    %v7138 = vadd.f32 %v7130, %v7135
    %v7139 = vadd.f32 %v7131, %v7135
    %v7140 = vld [vmem:[%s19] sm:$0xff]
    %v7141 = vld [vmem:[%s19 + $0x8] sm:$0xff]
    %v7142 = vld [vmem:[%s19 + $0x10] sm:$0xff]
    %v7143 = vld [vmem:[%s19 + $0x18] sm:$0xff]
    %v7144 = vld [vmem:[%s20] sm:$0x1]
    %v7146 = vlaneseq
    %v7147 = vshrl.u32 %v7146, 7
    %v7148 = vsub.s32 0, %v7147
    %v7149 = vrot.slane %v7144, %v7148
    %v7152 = vsel %vm489, %v7136, 0
    %v7155 = vsel %vm489, %v7137, 0
    %v7158 = vsel %vm489, %v7138, 0
    %v7161 = vsel %vm489, %v7139, 0
    %7163 = vmatprep.subr.mxu0 0.0
    %7164 = vmatpush1.msra.mxu0 %v7140
    %7165 = vmatprep.subr.mxu0 0.0
    %7166 = vmatpush1.msra.mxu0 %v7141
    %7167 = vmatprep.subr.mxu0 0.0
    %7168 = vmatpush1.msra.mxu0 %v7142
    %7169 = vmatprep.subr.mxu0 0.0
    %7170 = vmatpush1.msra.mxu0 %v7143
    %7171 = vmatprep.subr.mxu0 0.0
    %7172 = vmatpush1.msra.mxu0 0.0
    %7173 = vmatprep.subr.mxu0 0.0
    %7174 = vmatpush1.msra.mxu0 0.0
    %7175 = vmatprep.subr.mxu0 0.0
    %7176 = vmatpush1.msra.mxu0 0.0
    %7177 = vmatprep.subr.mxu0 0.0
    %7178 = vmatpush1.msra.mxu0 0.0
    %7179 = vmatprep.subr.mxu0 0.0
    %7180 = vmatpush1.msra.mxu0 0.0
    %7181 = vmatprep.subr.mxu0 0.0
    %7182 = vmatpush1.msra.mxu0 0.0
    %7183 = vmatprep.subr.mxu0 0.0
    %7184 = vmatpush1.msra.mxu0 0.0
    %7185 = vmatprep.subr.mxu0 0.0
    %7186 = vmatpush1.msra.mxu0 0.0
    %7187 = vmatprep.subr.mxu0 0.0
    %7188 = vmatpush1.msra.mxu0 0.0
    %7189 = vmatprep.subr.mxu0 0.0
    %7190 = vmatpush1.msra.mxu0 0.0
    %7191 = vmatprep.subr.mxu0 0.0
    %7192 = vmatpush1.msra.mxu0 0.0
    %7193 = vmatprep.subr.mxu0 0.0
    %7194 = vmatpush1.msra.mxu0 0.0
    %7195 = vmatprep.subr.mxu0 0.0
    %7196 = vmatpush1.msra.mxu0 0.0
    %7197 = vmatprep.subr.mxu0 0.0
    %7198 = vmatpush1.msra.mxu0 0.0
    %7199 = vmatprep.subr.mxu0 0.0
    %7200 = vmatpush1.msra.mxu0 0.0
    %7201 = vmatprep.subr.mxu0 0.0
    %7202 = vmatpush1.msra.mxu0 0.0
    %7203 = vmatprep.subr.mxu0 0.0
    %7204 = vmatpush1.msra.mxu0 0.0
    %7205 = vmatprep.subr.mxu0 0.0
    %7206 = vmatpush1.msra.mxu0 0.0
    %7207 = vmatprep.subr.mxu0 0.0
    %7208 = vmatpush1.msra.mxu0 0.0
    %7209 = vmatprep.subr.mxu0 0.0
    %7210 = vmatpush1.msra.mxu0 0.0
    %7211 = vmatprep.subr.mxu0 0.0
    %7212 = vmatpush1.msra.mxu0 0.0
    %7213 = vmatprep.subr.mxu0 0.0
    %7214 = vmatpush1.msra.mxu0 0.0
    %7215 = vmatprep.subr.mxu0 0.0
    %7216 = vmatpush1.msra.mxu0 0.0
    %7217 = vmatprep.subr.mxu0 0.0
    %7218 = vmatpush1.msra.mxu0 0.0
    %7219 = vmatprep.subr.mxu0 0.0
    %7220 = vmatpush1.msra.mxu0 0.0
    %7221 = vmatprep.subr.mxu0 0.0
    %7222 = vmatpush1.msra.mxu0 0.0
    %7223 = vmatprep.subr.mxu0 0.0
    %7224 = vmatpush1.msra.mxu0 0.0
    %7225 = vmatprep.subr.mxu0 0.0
    %7226 = vmatpush1.msra.mxu0 0.0
    %7227 = vmatprep.mubr.f32.mxu0 0.0
    %7228 = vmatmul.mubr.f32.gmra.mrb[0].mxu0 %v7152
    %v7229 = vpop.f32.mrb[0].mxu0
    %v7230 = vadd.f32 %v7149, %v7229
    %v7231 = vpop.f32.mrb[0].mxu0
    %7232 = vmatprep.mubr.f32.mxu0 0.0
    %7233 = vmatmul.mubr.f32.gmra.mrb[0].mxu0 %v7155
    %v7234 = vpop.f32.mrb[0].mxu0
    %v7235 = vadd.f32 %v7149, %v7234
    %v7236 = vpop.f32.mrb[0].mxu0
    %7237 = vmatprep.mubr.f32.mxu0 0.0
    %7238 = vmatmul.mubr.f32.gmra.mrb[0].mxu0 %v7158
    %v7239 = vpop.f32.mrb[0].mxu0
    %v7240 = vadd.f32 %v7149, %v7239
    %v7241 = vpop.f32.mrb[0].mxu0
    %7242 = vmatprep.mubr.f32.mxu0 0.0
    %7243 = vmatmul.mubr.f32.gmra.mrb[0].mxu0 %v7161
    %v7244 = vpop.f32.mrb[0].mxu0
    %v7245 = vadd.f32 %v7149, %v7244
    %v7246 = vpop.f32.mrb[0].mxu0
    %7247 = vdwg.mxu0
    %v7248 = vmax.f32 %v7230, 0.0
    %v7249 = vmax.f32 %v7235, 0.0
    %v7250 = vmax.f32 %v7240, 0.0
    %v7251 = vmax.f32 %v7245, 0.0
    %v7252 = vmul.f32 %v555, %v7248
    %v7253 = vmul.f32 %v556, %v7249
    %v7254 = vmul.f32 %v557, %v7250
    %v7255 = vmul.f32 %v558, %v7251
    %v7256 = vld [vmem:[#allocation24] sm:$0xff]
    %v7257 = vld [vmem:[#allocation24 + $0x8] sm:$0xff]
    %v7258 = vld [vmem:[#allocation24 + $0x10] sm:$0xff]
    %v7259 = vld [vmem:[#allocation24 + $0x18] sm:$0xff]
    %v7261 = vsel %vm489, %v7252, 0
    %v7264 = vsel %vm489, %v7253, 0
    %v7267 = vsel %vm489, %v7254, 0
    %v7270 = vsel %vm489, %v7255, 0
    %7272 = vmatprep.subr.mxu0 0.0
    %7273 = vmatpush1.msra.mxu0 %v7256
    %7274 = vmatprep.subr.mxu0 0.0
    %7275 = vmatpush1.msra.mxu0 %v7257
    %7276 = vmatprep.subr.mxu0 0.0
    %7277 = vmatpush1.msra.mxu0 %v7258
    %7278 = vmatprep.subr.mxu0 0.0
    %7279 = vmatpush1.msra.mxu0 %v7259
    %7280 = vmatprep.subr.mxu0 0.0
    %7281 = vmatpush1.msra.mxu0 0.0
    %7282 = vmatprep.subr.mxu0 0.0
    %7283 = vmatpush1.msra.mxu0 0.0
    %7284 = vmatprep.subr.mxu0 0.0
    %7285 = vmatpush1.msra.mxu0 0.0
    %7286 = vmatprep.subr.mxu0 0.0
    %7287 = vmatpush1.msra.mxu0 0.0
    %7288 = vmatprep.subr.mxu0 0.0
    %7289 = vmatpush1.msra.mxu0 0.0
    %7290 = vmatprep.subr.mxu0 0.0
    %7291 = vmatpush1.msra.mxu0 0.0
    %7292 = vmatprep.subr.mxu0 0.0
    %7293 = vmatpush1.msra.mxu0 0.0
    %7294 = vmatprep.subr.mxu0 0.0
    %7295 = vmatpush1.msra.mxu0 0.0
    %7296 = vmatprep.subr.mxu0 0.0
    %7297 = vmatpush1.msra.mxu0 0.0
    %7298 = vmatprep.subr.mxu0 0.0
    %7299 = vmatpush1.msra.mxu0 0.0
    %7300 = vmatprep.subr.mxu0 0.0
    %7301 = vmatpush1.msra.mxu0 0.0
    %7302 = vmatprep.subr.mxu0 0.0
    %7303 = vmatpush1.msra.mxu0 0.0
    %7304 = vmatprep.subr.mxu0 0.0
    %7305 = vmatpush1.msra.mxu0 0.0
    %7306 = vmatprep.subr.mxu0 0.0
    %7307 = vmatpush1.msra.mxu0 0.0
    %7308 = vmatprep.subr.mxu0 0.0
    %7309 = vmatpush1.msra.mxu0 0.0
    %7310 = vmatprep.subr.mxu0 0.0
    %7311 = vmatpush1.msra.mxu0 0.0
    %7312 = vmatprep.subr.mxu0 0.0
    %7313 = vmatpush1.msra.mxu0 0.0
    %7314 = vmatprep.subr.mxu0 0.0
    %7315 = vmatpush1.msra.mxu0 0.0
    %7316 = vmatprep.subr.mxu0 0.0
    %7317 = vmatpush1.msra.mxu0 0.0
    %7318 = vmatprep.subr.mxu0 0.0
    %7319 = vmatpush1.msra.mxu0 0.0
    %7320 = vmatprep.subr.mxu0 0.0
    %7321 = vmatpush1.msra.mxu0 0.0
    %7322 = vmatprep.subr.mxu0 0.0
    %7323 = vmatpush1.msra.mxu0 0.0
    %7324 = vmatprep.subr.mxu0 0.0
    %7325 = vmatpush1.msra.mxu0 0.0
    %7326 = vmatprep.subr.mxu0 0.0
    %7327 = vmatpush1.msra.mxu0 0.0
    %7328 = vmatprep.subr.mxu0 0.0
    %7329 = vmatpush1.msra.mxu0 0.0
    %7330 = vmatprep.subr.mxu0 0.0
    %7331 = vmatpush1.msra.mxu0 0.0
    %7332 = vmatprep.subr.mxu0 0.0
    %7333 = vmatpush1.msra.mxu0 0.0
    %7334 = vmatprep.subr.mxu0 0.0
    %7335 = vmatpush1.msra.mxu0 0.0
    %7336 = vmatprep.mubr.f32.mxu0 0.0
    %7337 = vmatmul.mubr.f32.gmra.mrb[0].mxu0 %v7261
    %v7338 = vpop.f32.mrb[0].mxu0
    %v7339 = vadd.f32 0.0, %v7338
    %v7340 = vpop.f32.mrb[0].mxu0
    %7341 = vmatprep.mubr.f32.mxu0 0.0
    %7342 = vmatmul.mubr.f32.gmra.mrb[0].mxu0 %v7264
    %v7343 = vpop.f32.mrb[0].mxu0
    %v7344 = vadd.f32 0.0, %v7343
    %v7345 = vpop.f32.mrb[0].mxu0
    %7346 = vmatprep.mubr.f32.mxu0 0.0
    %7347 = vmatmul.mubr.f32.gmra.mrb[0].mxu0 %v7267
    %v7348 = vpop.f32.mrb[0].mxu0
    %v7349 = vadd.f32 0.0, %v7348
    %v7350 = vpop.f32.mrb[0].mxu0
    %7351 = vmatprep.mubr.f32.mxu0 0.0
    %7352 = vmatmul.mubr.f32.gmra.mrb[0].mxu0 %v7270
    %v7353 = vpop.f32.mrb[0].mxu0
    %v7354 = vadd.f32 0.0, %v7353
    %v7355 = vpop.f32.mrb[0].mxu0
    %7356 = vdwg.mxu0
    %s7357 = scalar_lea.vmem [#allocation24], 32
    %v7358 = vld [vmem:[%s7357] sm:$0xff]
    %v7359 = vld [vmem:[%s7357 + $0x8] sm:$0xff]
    %v7360 = vld [vmem:[%s7357 + $0x10] sm:$0xff]
    %v7361 = vld [vmem:[%s7357 + $0x18] sm:$0xff]
    %7362 = vmatprep.subr.mxu0 0.0
    %7363 = vmatpush1.msra.mxu0 %v7358
    %7364 = vmatprep.subr.mxu0 0.0
    %7365 = vmatpush1.msra.mxu0 %v7359
    %7366 = vmatprep.subr.mxu0 0.0
    %7367 = vmatpush1.msra.mxu0 %v7360
    %7368 = vmatprep.subr.mxu0 0.0
    %7369 = vmatpush1.msra.mxu0 %v7361
    %7370 = vmatprep.subr.mxu0 0.0
    %7371 = vmatpush1.msra.mxu0 0.0
    %7372 = vmatprep.subr.mxu0 0.0
    %7373 = vmatpush1.msra.mxu0 0.0
    %7374 = vmatprep.subr.mxu0 0.0
    %7375 = vmatpush1.msra.mxu0 0.0
    %7376 = vmatprep.subr.mxu0 0.0
    %7377 = vmatpush1.msra.mxu0 0.0
    %7378 = vmatprep.subr.mxu0 0.0
    %7379 = vmatpush1.msra.mxu0 0.0
    %7380 = vmatprep.subr.mxu0 0.0
    %7381 = vmatpush1.msra.mxu0 0.0
    %7382 = vmatprep.subr.mxu0 0.0
    %7383 = vmatpush1.msra.mxu0 0.0
    %7384 = vmatprep.subr.mxu0 0.0
    %7385 = vmatpush1.msra.mxu0 0.0
    %7386 = vmatprep.subr.mxu0 0.0
    %7387 = vmatpush1.msra.mxu0 0.0
    %7388 = vmatprep.subr.mxu0 0.0
    %7389 = vmatpush1.msra.mxu0 0.0
    %7390 = vmatprep.subr.mxu0 0.0
    %7391 = vmatpush1.msra.mxu0 0.0
    %7392 = vmatprep.subr.mxu0 0.0
    %7393 = vmatpush1.msra.mxu0 0.0
    %7394 = vmatprep.subr.mxu0 0.0
    %7395 = vmatpush1.msra.mxu0 0.0
    %7396 = vmatprep.subr.mxu0 0.0
    %7397 = vmatpush1.msra.mxu0 0.0
    %7398 = vmatprep.subr.mxu0 0.0
    %7399 = vmatpush1.msra.mxu0 0.0
    %7400 = vmatprep.subr.mxu0 0.0
    %7401 = vmatpush1.msra.mxu0 0.0
    %7402 = vmatprep.subr.mxu0 0.0
    %7403 = vmatpush1.msra.mxu0 0.0
    %7404 = vmatprep.subr.mxu0 0.0
    %7405 = vmatpush1.msra.mxu0 0.0
    %7406 = vmatprep.subr.mxu0 0.0
    %7407 = vmatpush1.msra.mxu0 0.0
    %7408 = vmatprep.subr.mxu0 0.0
    %7409 = vmatpush1.msra.mxu0 0.0
    %7410 = vmatprep.subr.mxu0 0.0
    %7411 = vmatpush1.msra.mxu0 0.0
    %7412 = vmatprep.subr.mxu0 0.0
    %7413 = vmatpush1.msra.mxu0 0.0
    %7414 = vmatprep.subr.mxu0 0.0
    %7415 = vmatpush1.msra.mxu0 0.0
    %7416 = vmatprep.subr.mxu0 0.0
    %7417 = vmatpush1.msra.mxu0 0.0
    %7418 = vmatprep.subr.mxu0 0.0
    %7419 = vmatpush1.msra.mxu0 0.0
    %7420 = vmatprep.subr.mxu0 0.0
    %7421 = vmatpush1.msra.mxu0 0.0
    %7422 = vmatprep.subr.mxu0 0.0
    %7423 = vmatpush1.msra.mxu0 0.0
    %7424 = vmatprep.subr.mxu0 0.0
    %7425 = vmatpush1.msra.mxu0 0.0
    %7426 = vmatprep.mubr.f32.mxu0 0.0
    %7427 = vmatmul.mubr.f32.gmra.mrb[0].mxu0 %v7261
    %v7428 = vpop.f32.mrb[0].mxu0
    %v7429 = vadd.f32 0.0, %v7428
    %v7430 = vpop.f32.mrb[0].mxu0
    %7431 = vmatprep.mubr.f32.mxu0 0.0
    %7432 = vmatmul.mubr.f32.gmra.mrb[0].mxu0 %v7264
    %v7433 = vpop.f32.mrb[0].mxu0
    %v7434 = vadd.f32 0.0, %v7433
    %v7435 = vpop.f32.mrb[0].mxu0
    %7436 = vmatprep.mubr.f32.mxu0 0.0
    %7437 = vmatmul.mubr.f32.gmra.mrb[0].mxu0 %v7267
    %v7438 = vpop.f32.mrb[0].mxu0
    %v7439 = vadd.f32 0.0, %v7438
    %v7440 = vpop.f32.mrb[0].mxu0
    %7441 = vmatprep.mubr.f32.mxu0 0.0
    %7442 = vmatmul.mubr.f32.gmra.mrb[0].mxu0 %v7270
    %v7443 = vpop.f32.mrb[0].mxu0
    %v7444 = vadd.f32 0.0, %v7443
    %v7445 = vpop.f32.mrb[0].mxu0
    %7446 = vdwg.mxu0
    %vm7447 = vcmask 57344
    %7448 = vst.msk [vmem:[%s22] sm:$0x1] %vm7447, %v7339
    %vm7451 = vcmask 1040384
    %v7452 = vrot.slane %v7429, 7
    %v7453 = vrot.slane %v7434, 7
    %v7454 = vsel %vm7451, %v7452, %v7453
    %v7457 = vadd.f32 %v7339, %v7452
    %v7458 = vadd.f32 %v7344, %v7454
    %vm7459 = vcmask 64513
    %7460 = vst.msk [vmem:[%s22] sm:$0xfe] %vm7459, %v7457
    %7461 = vst.msk [vmem:[%s22 + $0x8] sm:$0xff] %vm281, %v7458
    %vm7462 = vcmask 64519
    %7463 = vst.msk [vmem:[%s22 + $0x9] sm:$0x80] %vm7462, %v7434
    %7464 = vst.msk [vmem:[%s22 + $0x11] sm:$0x1] %vm7447, %v7349
    %v7467 = vrot.slane %v7439, 7
    %v7468 = vrot.slane %v7444, 7
    %v7469 = vsel %vm7451, %v7467, %v7468
    %v7472 = vadd.f32 %v7349, %v7467
    %v7473 = vadd.f32 %v7354, %v7469
    %7474 = vst.msk [vmem:[%s22 + $0x11] sm:$0xfe] %vm7459, %v7472
    %7475 = vst.msk [vmem:[%s22 + $0x19] sm:$0xff] %vm281, %v7473
    %7476 = vst.msk [vmem:[%s22 + $0x1a] sm:$0x80] %vm7462, %v7444
    // Predicated region
    $region150: #{ctcnet_forward.1} parent=1 // pred_check
      _
    $region151: #{ctcnet_forward.1} parent=1 // pred_check_branch
      %7478 = sbr.rel (0) target = $region153
    $region152: #{ctcnet_forward.1} parent=1 // pred_region
      _
    $region153: #{ctcnet_forward.1} parent=1 // pred_fallthru
      _
    // Predicated region
    $region154: #{ctcnet_forward.1} parent=1 // pred_check
      _
    $region155: #{ctcnet_forward.1} parent=1 // pred_check_branch
      %7480 = sbr.rel (0) target = $region157
    $region156: #{ctcnet_forward.1} parent=1 // pred_region
      _
    $region157: #{ctcnet_forward.1} parent=1 // pred_fallthru
      _
    %7481 = vsyncpa [#allocation3], 1
    %7482 = vsyncpa [#allocation5], 1
    %7483 = vsyncpa [#allocation8], 1
    %7484 = vsyncpa [#allocation11], 1
    %7485 = vsyncpa [#allocation14], 1
    %7486 = vsyncpa [#allocation17], 1
    %7487 = vsyncpa [#allocation20], 1
    %7488 = vsyncpa [#allocation23], 1

</llo_original>
